<compile_context>
chip_gen: v5e
topology: v5e:2x2
jax: 0.10.0
libtpu: 0.0.40
codegen_flags: <defaults>
</compile_context>

<pallas_src>
import jax
import jax.numpy as jnp
import numpy as np
from jax.experimental import pallas as pl
from jax.experimental.pallas import tpu as pltpu


def _round_up(x, m):
    return (x + m - 1) // m * m


# ----------------------------------------------------------------------- fused kernel
def _simplenet_kernel(x_ref, m1_ref, bv1_ref, m2_ref, bv2_ref,
                      wf1_ref, bf1_ref, wf2_ref, bf2_ref, o_ref, pad2_scr):
    """One grid step processes a tile of B images end-to-end.

    x_ref   : (B, 30, 30) f32   pre-padded input images
    m1_ref  : (90, 448)  bf16   conv1 banded row-window matrix (pool-permuted cols)
    bv1_ref : (1, 224)   f32    conv1 bias tiled per pooled lane (j*16 + c)
    m2_ref  : (768, 448) bf16   conv2 banded row-window matrix (pool-permuted cols)
    bv2_ref : (1, 224)   f32    conv2 bias tiled per pooled lane (j*32 + c)
    wf1_ref : (1568,128) bf16   fc1 weight, rows permuted to the kernel flatten order
    bf1_ref : (1, 128)   f32
    wf2_ref : (128, 128) bf16   fc2 weight transposed + zero-padded to 128 lanes
    bf2_ref : (1, 128)   f32    fc2 bias zero-padded to 128 lanes
    o_ref   : (B, 128)   f32    lane-dense output (cols 10..127 are zero)
    pad2_scr: (B, 16, 256) f32  persistent scratch: conv2 input, spatially padded
    """
    B = x_ref.shape[0]
    f32, bf16 = jnp.float32, jnp.bfloat16

    # ---- conv1: one row-window matmul -----------------------------------------------
    # X1[b, h, dy*30 + wi] = xpad[b, h+dy, wi]  -> (B, 28, 90)
    xp = x_ref[...]
    x1 = jnp.concatenate([xp[:, 0:28, :], xp[:, 1:29, :], xp[:, 2:30, :]], axis=-1)
    lhs1 = x1.reshape(B * 28, 90).astype(bf16)
    y1 = jnp.dot(lhs1, m1_ref[...], preferred_element_type=f32)       # (B*28, 448)

    # ---- pool1 (2x2) + bias + ReLU ---------------------------------------------------
    # Column order of m1 puts even-w outputs in lanes [0:224) and odd-w in [224:448),
    # so the W-direction pool is a plain half-split max (no lane shuffling).
    w1max = jnp.maximum(y1[:, 0:224], y1[:, 224:448])                 # (B*28, 224)
    h1max = w1max.reshape(B, 14, 2, 224)
    p1 = jnp.maximum(h1max[:, :, 0, :], h1max[:, :, 1, :])            # (B, 14, 224)
    a1 = jnp.maximum(p1 + bv1_ref[...], 0.0)                          # lanes = j*16 + ci

    # ---- conv2 input: write into persistent padded scratch ---------------------------
    # Borders are thin; re-zero them every step (cheap, and correct regardless of how
    # the 'parallel' grid dimension is split across TensorCores).  Interior is always
    # fully overwritten, so no init-once pl.when is required.
    pad2_scr[:, 0:1, :] = jnp.zeros((B, 1, 256), f32)
    pad2_scr[:, 15:16, :] = jnp.zeros((B, 1, 256), f32)
    pad2_scr[:, :, 0:16] = jnp.zeros((B, 16, 16), f32)
    pad2_scr[:, :, 240:256] = jnp.zeros((B, 16, 16), f32)
    pad2_scr[:, 1:15, 16:240] = a1                                    # interior

    # ---- conv2: one row-window matmul -------------------------------------------------
    # X2[b, h, dy*256 + wi*16 + ci] = a1pad[b, h+dy, wi, ci]  -> (B, 14, 768)
    x2 = jnp.concatenate([pad2_scr[:, 0:14, :], pad2_scr[:, 1:15, :],
                          pad2_scr[:, 2:16, :]], axis=-1)
    lhs2 = x2.reshape(B * 14, 768).astype(bf16)
    y2 = jnp.dot(lhs2, m2_ref[...], preferred_element_type=f32)       # (B*14, 448)

    # ---- pool2 (2x2) + bias + ReLU -----------------------------------------------------
    w2max = jnp.maximum(y2[:, 0:224], y2[:, 224:448])                 # (B*14, 224)
    h2max = w2max.reshape(B, 7, 2, 224)
    p2 = jnp.maximum(h2max[:, :, 0, :], h2max[:, :, 1, :])            # (B, 7, 224)
    a2 = jnp.maximum(p2 + bv2_ref[...], 0.0)                          # lanes = j*32 + co

    # ---- fc1 (+ReLU) and fc2, both on the MXU -----------------------------------------
    flat = a2.reshape(B, 1568).astype(bf16)            # flatten order h*224 + w*32 + c
    z1 = jnp.dot(flat, wf1_ref[...], preferred_element_type=f32) + bf1_ref[...]
    z1 = jnp.maximum(z1, 0.0).astype(bf16)                            # (B, 128)
    o_ref[...] = jnp.dot(z1, wf2_ref[...], preferred_element_type=f32) + bf2_ref[...]


# --------------------------------------------------------------------- parameter prep
def prepare_params(params):
    """One-time re-layout of PyTorch-shaped parameters into kernel-friendly matrices."""
    w1, b1, w2, b2, wf1, bf1, wf2, bf2 = [np.asarray(p, np.float32) for p in params]

    # conv1 -> banded row-window matrix M1 (90, 448):
    #   row = dy*30 + wi                  (wi: column of the 30-wide padded input row)
    #   col = (w%2)*224 + (w//2)*16 + co  (w: output column 0..27, co: out channel)
    m1 = np.zeros((90, 448), np.float32)
    w_idx = np.arange(28)
    col1 = (w_idx % 2) * 224 + (w_idx // 2) * 16
    for dy in range(3):
        for dx in range(3):
            rows = dy * 30 + w_idx + dx
            m1[rows[:, None], col1[:, None] + np.arange(16)[None, :]] = \
                w1[:, 0, dy, dx][None, :]
    bv1 = np.tile(b1, 14).reshape(1, 224)              # pooled lane j*16+co -> b1[co]

    # conv2 -> banded row-window matrix M2 (768, 448):
    #   row = dy*256 + wi*16 + ci          (wi: padded column 0..15, ci: in channel)
    #   col = (w%2)*224 + (w//2)*32 + co   (w: output column 0..13, co: out channel)
    m2 = np.zeros((768, 448), np.float32)
    w_idx2 = np.arange(14)
    col2 = (w_idx2 % 2) * 224 + (w_idx2 // 2) * 32
    ci_idx = np.arange(16)
    co_idx = np.arange(32)
    for dy in range(3):
        for dx in range(3):
            rows = dy * 256 + (w_idx2 + dx) * 16
            m2[rows[:, None, None] + ci_idx[None, :, None],
               col2[:, None, None] + co_idx[None, None, :]] = \
                w2[:, :, dy, dx].T[None, :, :]
    bv2 = np.tile(b2, 7).reshape(1, 224)               # pooled lane j*32+co -> b2[co]

    # fc1: permute rows from PyTorch's NCHW flatten (c*49 + h*7 + w) to the kernel's
    # HWC flatten (h*224 + w*32 + c).  fc2: transpose + zero-pad to 128 lanes.
    wf1p = np.transpose(wf1.reshape(128, 32, 7, 7), (2, 3, 1, 0)).reshape(1568, 128)
    wf2p = np.zeros((128, 128), np.float32)
    wf2p[:, :10] = wf2.T
    bf2p = np.zeros((1, 128), np.float32)
    bf2p[0, :10] = bf2

    bf16 = jnp.bfloat16
    return (jnp.asarray(m1, bf16), jnp.asarray(bv1),
            jnp.asarray(m2, bf16), jnp.asarray(bv2),
            jnp.asarray(wf1p, bf16), jnp.asarray(bf1.reshape(1, 128)),
            jnp.asarray(wf2p, bf16), jnp.asarray(bf2p))


# --------------------------------------------------------------------------- wrappers
def simplenet_forward(x_nchw, prepared, block_images=64):
    """Mirrors SimpleNet.forward.  x_nchw: (N, 1, 28, 28) f32 -> (N, 10) f32."""
    m1, bv1, m2, bv2, wf1p, bf1, wf2p, bf2p = prepared
    n = x_nchw.shape[0]
    b = min(block_images, _round_up(n, 8))             # batch tile (multiple of 8)
    n_pad = _round_up(n, b)

    # Drop the singleton channel dim and pre-apply the padding=1 border host-side;
    # pad the batch up to a multiple of the tile (zero images, sliced away below).
    x = x_nchw.reshape(n, 28, 28)
    x = jnp.pad(x, ((0, n_pad - n), (1, 1), (1, 1)))                  # (n_pad, 30, 30)

    def const_spec(shape):
        return pl.BlockSpec(shape, lambda i: (0,) * len(shape))

    out = pl.pallas_call(
        _simplenet_kernel,
        out_shape=jax.ShapeDtypeStruct((n_pad, 128), jnp.float32),
        grid=(n_pad // b,),
        in_specs=[
            pl.BlockSpec((b, 30, 30), lambda i: (i, 0, 0)),           # image tile
            const_spec((90, 448)), const_spec((1, 224)),              # conv1
            const_spec((768, 448)), const_spec((1, 224)),             # conv2
            const_spec((1568, 128)), const_spec((1, 128)),            # fc1
            const_spec((128, 128)), const_spec((1, 128)),             # fc2
        ],
        out_specs=pl.BlockSpec((b, 128), lambda i: (i, 0)),
        scratch_shapes=[pltpu.VMEM((b, 16, 256), jnp.float32)],
        compiler_params=pltpu.CompilerParams(
            dimension_semantics=("parallel",),
            vmem_limit_bytes=40 * 1024 * 1024),
    )(x, m1, bv1, m2, bv2, wf1p, bf1, wf2p, bf2p)
    return out[:n, :10]


def _reference_forward(x, params):
    """Pure-XLA reference of SimpleNet.forward (for correctness checking)."""
    w1, b1, w2, b2, wf1, bf1, wf2, bf2 = params
    dn = ("NCHW", "OIHW", "NCHW")
    y = jax.lax.conv_general_dilated(x, w1, (1, 1), ((1, 1), (1, 1)),
                                     dimension_numbers=dn) + b1[None, :, None, None]
    y = jax.lax.reduce_window(y, -jnp.inf, jax.lax.max, (1, 1, 2, 2), (1, 1, 2, 2), "VALID")
    y = jnp.maximum(y, 0.0)
    y = jax.lax.conv_general_dilated(y, w2, (1, 1), ((1, 1), (1, 1)),
                                     dimension_numbers=dn) + b2[None, :, None, None]
    y = jax.lax.reduce_window(y, -jnp.inf, jax.lax.max, (1, 1, 2, 2), (1, 1, 2, 2), "VALID")
    y = jnp.maximum(y, 0.0)
    y = y.reshape(y.shape[0], -1)
    y = jnp.maximum(y @ wf1.T + bf1, 0.0)
    return y @ wf2.T + bf2


# -------------------------------------------------------------------------------- main
if __name__ == "__main__":
    key = jax.random.PRNGKey(0)
    ks = jax.random.split(key, 9)

    n = 2
    x = jax.random.normal(ks[0], (n, 1, 28, 28), jnp.float32)          # PyTorch NCHW input

    # Deterministic synthetic parameters (PyTorch module shapes).
    params = (
        0.10 * jax.random.normal(ks[1], (16, 1, 3, 3), jnp.float32),   # conv1.weight
        0.10 * jax.random.normal(ks[2], (16,), jnp.float32),           # conv1.bias
        0.10 * jax.random.normal(ks[3], (32, 16, 3, 3), jnp.float32),  # conv2.weight
        0.10 * jax.random.normal(ks[4], (32,), jnp.float32),           # conv2.bias
        0.05 * jax.random.normal(ks[5], (128, 1568), jnp.float32),     # fc1.weight
        0.05 * jax.random.normal(ks[6], (128,), jnp.float32),          # fc1.bias
        0.05 * jax.random.normal(ks[7], (10, 128), jnp.float32),       # fc2.weight
        0.05 * jax.random.normal(ks[8], (10,), jnp.float32),           # fc2.bias
    )

    prepared = prepare_params(params)                                  # one-time re-layout
    out = jax.jit(simplenet_forward)(x, prepared)
    out = jax.block_until_ready(out)
    assert out.shape == (n, 10) and out.dtype == jnp.float32

    # Correctness check against a pure-XLA f32 reference (bf16 MXU => loose tolerance).
    ref = _reference_forward(x, params)
    err = float(jnp.max(jnp.abs(out - ref)))
    scale = float(jnp.max(jnp.abs(ref))) + 1e-6
    assert err <= 0.05 + 0.05 * scale, f"mismatch vs reference: max|diff|={err}, scale={scale}"
    print("KERNEL_OK")
</pallas_src>

<mosaic_0001>
module attributes {stable_mosaic.version = 11 : i64} {
  func.func @_simplenet_kernel(%arg0: i32, %arg1: memref<8x30x30xf32, #tpu.memory_space<vmem>>, %arg2: memref<90x448xbf16, #tpu.memory_space<vmem>>, %arg3: memref<1x224xf32, #tpu.memory_space<vmem>>, %arg4: memref<768x448xbf16, #tpu.memory_space<vmem>>, %arg5: memref<1x224xf32, #tpu.memory_space<vmem>>, %arg6: memref<1568x128xbf16, #tpu.memory_space<vmem>>, %arg7: memref<1x128xf32, #tpu.memory_space<vmem>>, %arg8: memref<128x128xbf16, #tpu.memory_space<vmem>>, %arg9: memref<1x128xf32, #tpu.memory_space<vmem>>, %arg10: memref<8x128xf32, #tpu.memory_space<vmem>>, %arg11: memref<8x16x256xf32, #tpu.memory_space<vmem>>) attributes {dimension_semantics = [#tpu.dimension_semantics<parallel>], iteration_bounds = array<i64: 1>, scalar_prefetch = 0 : i64, scratch_operands = 1 : i64, tpu.core_type = #tpu.core_type<tc>, window_params = [{transform_indices = @transform_0, window_bounds = array<i64: 8, 30, 30>}, {pipeline_mode = #tpu.pipeline_mode<synchronous>, transform_indices = @transform_1, window_bounds = array<i64: 90, 448>}, {pipeline_mode = #tpu.pipeline_mode<synchronous>, transform_indices = @transform_2, window_bounds = array<i64: 1, 224>}, {pipeline_mode = #tpu.pipeline_mode<synchronous>, transform_indices = @transform_3, window_bounds = array<i64: 768, 448>}, {pipeline_mode = #tpu.pipeline_mode<synchronous>, transform_indices = @transform_4, window_bounds = array<i64: 1, 224>}, {pipeline_mode = #tpu.pipeline_mode<synchronous>, transform_indices = @transform_5, window_bounds = array<i64: 1568, 128>}, {pipeline_mode = #tpu.pipeline_mode<synchronous>, transform_indices = @transform_6, window_bounds = array<i64: 1, 128>}, {pipeline_mode = #tpu.pipeline_mode<synchronous>, transform_indices = @transform_7, window_bounds = array<i64: 128, 128>}, {pipeline_mode = #tpu.pipeline_mode<synchronous>, transform_indices = @transform_8, window_bounds = array<i64: 1, 128>}, {transform_indices = @transform_9, window_bounds = array<i64: 8, 128>}]} {
    %c0 = arith.constant 0 : index
    %c0_0 = arith.constant 0 : index
    %c0_1 = arith.constant 0 : index
    %0 = vector.load %arg1[%c0, %c0_0, %c0_1] : memref<8x30x30xf32, #tpu.memory_space<vmem>>, vector<8x30x30xf32>
    %1 = vector.extract_strided_slice %0 {offsets = [0, 0, 0], sizes = [8, 28, 30], strides = [1, 1, 1]} : vector<8x30x30xf32> to vector<8x28x30xf32>
    %2 = vector.extract_strided_slice %0 {offsets = [0, 1, 0], sizes = [8, 28, 30], strides = [1, 1, 1]} : vector<8x30x30xf32> to vector<8x28x30xf32>
    %3 = vector.extract_strided_slice %0 {offsets = [0, 2, 0], sizes = [8, 28, 30], strides = [1, 1, 1]} : vector<8x30x30xf32> to vector<8x28x30xf32>
    %4 = tpu.concatenate %1, %2, %3 in 2 : vector<8x28x30xf32>, vector<8x28x30xf32>, vector<8x28x30xf32> -> vector<8x28x90xf32>
    %5 = vector.shape_cast %4 : vector<8x28x90xf32> to vector<224x90xf32>
    %6 = arith.truncf %5 : vector<224x90xf32> to vector<224x90xbf16>
    %c0_2 = arith.constant 0 : index
    %c0_3 = arith.constant 0 : index
    %7 = vector.load %arg2[%c0_2, %c0_3] : memref<90x448xbf16, #tpu.memory_space<vmem>>, vector<90x448xbf16>
    %cst = arith.constant dense<0.000000e+00> : vector<224x448xf32>
    %8 = tpu.matmul %6, %7, %cst {dimension_numbers = #tpu.dot_dimension_numbers<[1], [0], [0], [1], [0, 0, 1, 1], [], []>} : vector<224x90xbf16>, vector<90x448xbf16>, vector<224x448xf32> -> vector<224x448xf32>
    %9 = vector.extract_strided_slice %8 {offsets = [0, 0], sizes = [224, 224], strides = [1, 1]} : vector<224x448xf32> to vector<224x224xf32>
    %10 = vector.extract_strided_slice %8 {offsets = [0, 224], sizes = [224, 224], strides = [1, 1]} : vector<224x448xf32> to vector<224x224xf32>
    %11 = arith.maximumf %9, %10 : vector<224x224xf32>
    %12 = vector.shape_cast %11 : vector<224x224xf32> to vector<8x14x2x224xf32>
    %13 = vector.extract_strided_slice %12 {offsets = [0, 0, 0, 0], sizes = [8, 14, 1, 224], strides = [1, 1, 1, 1]} : vector<8x14x2x224xf32> to vector<8x14x1x224xf32>
    %14 = vector.shape_cast %13 : vector<8x14x1x224xf32> to vector<8x14x224xf32>
    %15 = vector.extract_strided_slice %12 {offsets = [0, 0, 1, 0], sizes = [8, 14, 1, 224], strides = [1, 1, 1, 1]} : vector<8x14x2x224xf32> to vector<8x14x1x224xf32>
    %16 = vector.shape_cast %15 : vector<8x14x1x224xf32> to vector<8x14x224xf32>
    %17 = arith.maximumf %14, %16 : vector<8x14x224xf32>
    %c0_4 = arith.constant 0 : index
    %c0_5 = arith.constant 0 : index
    %18 = vector.load %arg3[%c0_4, %c0_5] : memref<1x224xf32, #tpu.memory_space<vmem>>, vector<1x224xf32>
    %19 = vector.shape_cast %18 : vector<1x224xf32> to vector<1x1x224xf32>
    %20 = vector.broadcast %19 : vector<1x1x224xf32> to vector<8x14x224xf32>
    %21 = arith.addf %17, %20 : vector<8x14x224xf32>
    %cst_6 = arith.constant 0.000000e+00 : f32
    %22 = vector.broadcast %cst_6 : f32 to vector<8x14x224xf32>
    %23 = arith.maximumf %21, %22 : vector<8x14x224xf32>
    %cst_7 = arith.constant 0.000000e+00 : f32
    %24 = vector.broadcast %cst_7 : f32 to vector<8x1x256xf32>
    %c0_8 = arith.constant 0 : index
    %c0_9 = arith.constant 0 : index
    %c0_10 = arith.constant 0 : index
    %25 = vector.load %arg11[%c0_8, %c0_9, %c0_10] : memref<8x16x256xf32, #tpu.memory_space<vmem>>, vector<8x1x256xf32>
    tpu.vector_store %arg11[%c0_8, %c0_9, %c0_10], %24 {strides = array<i32>} : memref<8x16x256xf32, #tpu.memory_space<vmem>>, vector<8x1x256xf32>,
    %cst_11 = arith.constant 0.000000e+00 : f32
    %26 = vector.broadcast %cst_11 : f32 to vector<8x1x256xf32>
    %c0_12 = arith.constant 0 : index
    %c15 = arith.constant 15 : index
    %c0_13 = arith.constant 0 : index
    %27 = vector.load %arg11[%c0_12, %c15, %c0_13] : memref<8x16x256xf32, #tpu.memory_space<vmem>>, vector<8x1x256xf32>
    tpu.vector_store %arg11[%c0_12, %c15, %c0_13], %26 {strides = array<i32>} : memref<8x16x256xf32, #tpu.memory_space<vmem>>, vector<8x1x256xf32>,
    %cst_14 = arith.constant 0.000000e+00 : f32
    %28 = vector.broadcast %cst_14 : f32 to vector<8x16x16xf32>
    %c0_15 = arith.constant 0 : index
    %c0_16 = arith.constant 0 : index
    %c0_17 = arith.constant 0 : index
    %29 = vector.load %arg11[%c0_15, %c0_16, %c0_17] : memref<8x16x256xf32, #tpu.memory_space<vmem>>, vector<8x16x16xf32>
    tpu.vector_store %arg11[%c0_15, %c0_16, %c0_17], %28 {strides = array<i32>} : memref<8x16x256xf32, #tpu.memory_space<vmem>>, vector<8x16x16xf32>,
    %cst_18 = arith.constant 0.000000e+00 : f32
    %30 = vector.broadcast %cst_18 : f32 to vector<8x16x16xf32>
    %c0_19 = arith.constant 0 : index
    %c0_20 = arith.constant 0 : index
    %c240 = arith.constant 240 : index
    %31 = vector.load %arg11[%c0_19, %c0_20, %c240] : memref<8x16x256xf32, #tpu.memory_space<vmem>>, vector<8x16x16xf32>
    tpu.vector_store %arg11[%c0_19, %c0_20, %c240], %30 {strides = array<i32>} : memref<8x16x256xf32, #tpu.memory_space<vmem>>, vector<8x16x16xf32>,
    %c0_21 = arith.constant 0 : index
    %c1 = arith.constant 1 : index
    %c16 = arith.constant 16 : index
    %32 = vector.load %arg11[%c0_21, %c1, %c16] : memref<8x16x256xf32, #tpu.memory_space<vmem>>, vector<8x14x224xf32>
    tpu.vector_store %arg11[%c0_21, %c1, %c16], %23 {strides = array<i32>} : memref<8x16x256xf32, #tpu.memory_space<vmem>>, vector<8x14x224xf32>,
    %c0_22 = arith.constant 0 : index
    %c0_23 = arith.constant 0 : index
    %c0_24 = arith.constant 0 : index
    %33 = vector.load %arg11[%c0_22, %c0_23, %c0_24] : memref<8x16x256xf32, #tpu.memory_space<vmem>>, vector<8x14x256xf32>
    %c0_25 = arith.constant 0 : index
    %c1_26 = arith.constant 1 : index
    %c0_27 = arith.constant 0 : index
    %34 = vector.load %arg11[%c0_25, %c1_26, %c0_27] : memref<8x16x256xf32, #tpu.memory_space<vmem>>, vector<8x14x256xf32>
    %c0_28 = arith.constant 0 : index
    %c2 = arith.constant 2 : index
    %c0_29 = arith.constant 0 : index
    %35 = vector.load %arg11[%c0_28, %c2, %c0_29] : memref<8x16x256xf32, #tpu.memory_space<vmem>>, vector<8x14x256xf32>
    %36 = tpu.concatenate %33, %34, %35 in 2 : vector<8x14x256xf32>, vector<8x14x256xf32>, vector<8x14x256xf32> -> vector<8x14x768xf32>
    %37 = vector.shape_cast %36 : vector<8x14x768xf32> to vector<112x768xf32>
    %38 = arith.truncf %37 : vector<112x768xf32> to vector<112x768xbf16>
    %c0_30 = arith.constant 0 : index
    %c0_31 = arith.constant 0 : index
    %39 = vector.load %arg4[%c0_30, %c0_31] : memref<768x448xbf16, #tpu.memory_space<vmem>>, vector<768x448xbf16>
    %cst_32 = arith.constant dense<0.000000e+00> : vector<112x448xf32>
    %40 = tpu.matmul %38, %39, %cst_32 {dimension_numbers = #tpu.dot_dimension_numbers<[1], [0], [0], [1], [0, 0, 1, 1], [], []>} : vector<112x768xbf16>, vector<768x448xbf16>, vector<112x448xf32> -> vector<112x448xf32>
    %41 = vector.extract_strided_slice %40 {offsets = [0, 0], sizes = [112, 224], strides = [1, 1]} : vector<112x448xf32> to vector<112x224xf32>
    %42 = vector.extract_strided_slice %40 {offsets = [0, 224], sizes = [112, 224], strides = [1, 1]} : vector<112x448xf32> to vector<112x224xf32>
    %43 = arith.maximumf %41, %42 : vector<112x224xf32>
    %44 = vector.shape_cast %43 : vector<112x224xf32> to vector<8x7x2x224xf32>
    %45 = vector.extract_strided_slice %44 {offsets = [0, 0, 0, 0], sizes = [8, 7, 1, 224], strides = [1, 1, 1, 1]} : vector<8x7x2x224xf32> to vector<8x7x1x224xf32>
    %46 = vector.shape_cast %45 : vector<8x7x1x224xf32> to vector<8x7x224xf32>
    %47 = vector.extract_strided_slice %44 {offsets = [0, 0, 1, 0], sizes = [8, 7, 1, 224], strides = [1, 1, 1, 1]} : vector<8x7x2x224xf32> to vector<8x7x1x224xf32>
    %48 = vector.shape_cast %47 : vector<8x7x1x224xf32> to vector<8x7x224xf32>
    %49 = arith.maximumf %46, %48 : vector<8x7x224xf32>
    %c0_33 = arith.constant 0 : index
    %c0_34 = arith.constant 0 : index
    %50 = vector.load %arg5[%c0_33, %c0_34] : memref<1x224xf32, #tpu.memory_space<vmem>>, vector<1x224xf32>
    %51 = vector.shape_cast %50 : vector<1x224xf32> to vector<1x1x224xf32>
    %52 = vector.broadcast %51 : vector<1x1x224xf32> to vector<8x7x224xf32>
    %53 = arith.addf %49, %52 : vector<8x7x224xf32>
    %cst_35 = arith.constant 0.000000e+00 : f32
    %54 = vector.broadcast %cst_35 : f32 to vector<8x7x224xf32>
    %55 = arith.maximumf %53, %54 : vector<8x7x224xf32>
    %56 = vector.shape_cast %55 : vector<8x7x224xf32> to vector<8x1568xf32>
    %57 = arith.truncf %56 : vector<8x1568xf32> to vector<8x1568xbf16>
    %c0_36 = arith.constant 0 : index
    %c0_37 = arith.constant 0 : index
    %58 = vector.load %arg6[%c0_36, %c0_37] : memref<1568x128xbf16, #tpu.memory_space<vmem>>, vector<1568x128xbf16>
    %cst_38 = arith.constant dense<0.000000e+00> : vector<8x128xf32>
    %59 = tpu.matmul %57, %58, %cst_38 {dimension_numbers = #tpu.dot_dimension_numbers<[1], [0], [0], [1], [0, 0, 1, 1], [], []>} : vector<8x1568xbf16>, vector<1568x128xbf16>, vector<8x128xf32> -> vector<8x128xf32>
    %c0_39 = arith.constant 0 : index
    %c0_40 = arith.constant 0 : index
    %60 = vector.load %arg7[%c0_39, %c0_40] : memref<1x128xf32, #tpu.memory_space<vmem>>, vector<1x128xf32>
    %61 = vector.broadcast %60 : vector<1x128xf32> to vector<8x128xf32>
    %62 = arith.addf %59, %61 : vector<8x128xf32>
    %cst_41 = arith.constant 0.000000e+00 : f32
    %63 = vector.broadcast %cst_41 : f32 to vector<8x128xf32>
    %64 = arith.maximumf %62, %63 : vector<8x128xf32>
    %65 = arith.truncf %64 : vector<8x128xf32> to vector<8x128xbf16>
    %c0_42 = arith.constant 0 : index
    %c0_43 = arith.constant 0 : index
    %66 = vector.load %arg8[%c0_42, %c0_43] : memref<128x128xbf16, #tpu.memory_space<vmem>>, vector<128x128xbf16>
    %cst_44 = arith.constant dense<0.000000e+00> : vector<8x128xf32>
    %67 = tpu.matmul %65, %66, %cst_44 {dimension_numbers = #tpu.dot_dimension_numbers<[1], [0], [0], [1], [0, 0, 1, 1], [], []>} : vector<8x128xbf16>, vector<128x128xbf16>, vector<8x128xf32> -> vector<8x128xf32>
    %c0_45 = arith.constant 0 : index
    %c0_46 = arith.constant 0 : index
    %68 = vector.load %arg9[%c0_45, %c0_46] : memref<1x128xf32, #tpu.memory_space<vmem>>, vector<1x128xf32>
    %69 = vector.broadcast %68 : vector<1x128xf32> to vector<8x128xf32>
    %70 = arith.addf %67, %69 : vector<8x128xf32>
    %c0_47 = arith.constant 0 : index
    %c0_48 = arith.constant 0 : index
    %71 = vector.load %arg10[%c0_47, %c0_48] : memref<8x128xf32, #tpu.memory_space<vmem>>, vector<8x128xf32>
    tpu.vector_store %arg10[%c0_47, %c0_48], %70 {strides = array<i32>} : memref<8x128xf32, #tpu.memory_space<vmem>>, vector<8x128xf32>,
    return
  }
  func.func @transform_0(%arg0: i32) -> (i32, i32, i32) {
    %c0_i32 = arith.constant 0 : i32
    %c0_i32_0 = arith.constant 0 : i32
    %c0_i32_1 = arith.constant 0 : i32
    return %arg0, %c0_i32, %c0_i32_0 : i32, i32, i32
  }
  func.func @transform_1(%arg0: i32) -> (i32, i32) {
    %c0_i32 = arith.constant 0 : i32
    %c0_i32_0 = arith.constant 0 : i32
    %c0_i32_1 = arith.constant 0 : i32
    return %c0_i32, %c0_i32_0 : i32, i32
  }
  func.func @transform_2(%arg0: i32) -> (i32, i32) {
    %c0_i32 = arith.constant 0 : i32
    %c0_i32_0 = arith.constant 0 : i32
    %c0_i32_1 = arith.constant 0 : i32
    return %c0_i32, %c0_i32_0 : i32, i32
  }
  func.func @transform_3(%arg0: i32) -> (i32, i32) {
    %c0_i32 = arith.constant 0 : i32
    %c0_i32_0 = arith.constant 0 : i32
    %c0_i32_1 = arith.constant 0 : i32
    return %c0_i32, %c0_i32_0 : i32, i32
  }
  func.func @transform_4(%arg0: i32) -> (i32, i32) {
    %c0_i32 = arith.constant 0 : i32
    %c0_i32_0 = arith.constant 0 : i32
    %c0_i32_1 = arith.constant 0 : i32
    return %c0_i32, %c0_i32_0 : i32, i32
  }
  func.func @transform_5(%arg0: i32) -> (i32, i32) {
    %c0_i32 = arith.constant 0 : i32
    %c0_i32_0 = arith.constant 0 : i32
    %c0_i32_1 = arith.constant 0 : i32
    return %c0_i32, %c0_i32_0 : i32, i32
  }
  func.func @transform_6(%arg0: i32) -> (i32, i32) {
    %c0_i32 = arith.constant 0 : i32
    %c0_i32_0 = arith.constant 0 : i32
    %c0_i32_1 = arith.constant 0 : i32
    return %c0_i32, %c0_i32_0 : i32, i32
  }
  func.func @transform_7(%arg0: i32) -> (i32, i32) {
    %c0_i32 = arith.constant 0 : i32
    %c0_i32_0 = arith.constant 0 : i32
    %c0_i32_1 = arith.constant 0 : i32
    return %c0_i32, %c0_i32_0 : i32, i32
  }
  func.func @transform_8(%arg0: i32) -> (i32, i32) {
    %c0_i32 = arith.constant 0 : i32
    %c0_i32_0 = arith.constant 0 : i32
    %c0_i32_1 = arith.constant 0 : i32
    return %c0_i32, %c0_i32_0 : i32, i32
  }
  func.func @transform_9(%arg0: i32) -> (i32, i32) {
    %c0_i32 = arith.constant 0 : i32
    %c0_i32_0 = arith.constant 0 : i32
    return %arg0, %c0_i32 : i32, i32
  }
}

</mosaic_0001>

<llo_original>
// kernel: simplenet_forward.1
$region0: #{simplenet_forward.1}
  #allocation0 [shape = 'u32[]', space=smem, size = 0x4, offset = 0x4, fixed_abs, tag = 'smem constant byte address 0x4 - core index']
  #allocation1 [shape = 'u32[72,128]{1,0:T(1,128)}', space=vmem, size = 0x9000, scoped, tag = 'internal scratch']
  #allocation2 [shape = 'f32[8,16,256]{2,1,0:T(8,128)}', space=vmem, size = 0x20000, scoped, tag = 'scratch operand']
  %s0 = inlined_call_operand.vmem [shape: f32[8,30,30], index: 0, kind: input, shape index: {}]
  %s1 = inlined_call_operand.vmem [shape: bf16[90,448], index: 1, kind: input, shape index: {}]
  %s2 = inlined_call_operand.vmem [shape: f32[1,224], index: 2, kind: input, shape index: {}]
  %s3 = inlined_call_operand.vmem [shape: bf16[768,448], index: 3, kind: input, shape index: {}]
  %s4 = inlined_call_operand.vmem [shape: f32[1,224], index: 4, kind: input, shape index: {}]
  %s5 = inlined_call_operand.vmem [shape: bf16[1568,128], index: 5, kind: input, shape index: {}]
  %s6 = inlined_call_operand.vmem [shape: f32[1,128], index: 6, kind: input, shape index: {}]
  %s7 = inlined_call_operand.vmem [shape: bf16[128,128], index: 7, kind: input, shape index: {}]
  %s8 = inlined_call_operand.vmem [shape: f32[1,128], index: 8, kind: input, shape index: {}]
  %s9 = inlined_call_operand.vmem [shape: f32[8,128], index: 9, kind: output, shape index: {}]
  %s10 = sld [smem:[#allocation0]]
  $region46: #{simplenet_forward.1} parent=0
    _
  %s12 = ssub.s32 1, %s10
  %s13 = scalar_select 0, %s12, %s10
  // Predicated region
  $region2: #{simplenet_forward.1} parent=0 // pred_check
    _
  $region3: #{simplenet_forward.1} parent=0 // pred_check_branch
    %15 = sbr.rel (0) target = $region5
  $region4: #{simplenet_forward.1} parent=0 // pred_region
    _
  $region5: #{simplenet_forward.1} parent=0 // pred_fallthru
    _
  // Predicated region
  $region6: #{simplenet_forward.1} parent=0 // pred_check
    _
  $region7: #{simplenet_forward.1} parent=0 // pred_check_branch
    %17 = sbr.rel (0) target = $region9
  $region8: #{simplenet_forward.1} parent=0 // pred_region
    _
  $region9: #{simplenet_forward.1} parent=0 // pred_fallthru
    _
  // Predicated region
  $region10: #{simplenet_forward.1} parent=0 // pred_check
    _
  $region11: #{simplenet_forward.1} parent=0 // pred_check_branch
    %19 = sbr.rel (0) target = $region13
  $region12: #{simplenet_forward.1} parent=0 // pred_region
    _
  $region13: #{simplenet_forward.1} parent=0 // pred_fallthru
    _
  // Predicated region
  $region14: #{simplenet_forward.1} parent=0 // pred_check
    _
  $region15: #{simplenet_forward.1} parent=0 // pred_check_branch
    %21 = sbr.rel (0) target = $region17
  $region16: #{simplenet_forward.1} parent=0 // pred_region
    _
  $region17: #{simplenet_forward.1} parent=0 // pred_fallthru
    _
  // Predicated region
  $region18: #{simplenet_forward.1} parent=0 // pred_check
    _
  $region19: #{simplenet_forward.1} parent=0 // pred_check_branch
    %23 = sbr.rel (0) target = $region21
  $region20: #{simplenet_forward.1} parent=0 // pred_region
    _
  $region21: #{simplenet_forward.1} parent=0 // pred_fallthru
    _
  // Predicated region
  $region22: #{simplenet_forward.1} parent=0 // pred_check
    _
  $region23: #{simplenet_forward.1} parent=0 // pred_check_branch
    %25 = sbr.rel (0) target = $region25
  $region24: #{simplenet_forward.1} parent=0 // pred_region
    _
  $region25: #{simplenet_forward.1} parent=0 // pred_fallthru
    _
  // Predicated region
  $region26: #{simplenet_forward.1} parent=0 // pred_check
    _
  $region27: #{simplenet_forward.1} parent=0 // pred_check_branch
    %27 = sbr.rel (0) target = $region29
  $region28: #{simplenet_forward.1} parent=0 // pred_region
    _
  $region29: #{simplenet_forward.1} parent=0 // pred_fallthru
    _
  // Predicated region
  $region30: #{simplenet_forward.1} parent=0 // pred_check
    _
  $region31: #{simplenet_forward.1} parent=0 // pred_check_branch
    %29 = sbr.rel (0) target = $region33
  $region32: #{simplenet_forward.1} parent=0 // pred_region
    _
  $region33: #{simplenet_forward.1} parent=0 // pred_fallthru
    _
  // Predicated region
  $region34: #{simplenet_forward.1} parent=0 // pred_check
    _
  $region35: #{simplenet_forward.1} parent=0 // pred_check_branch
    %31 = sbr.rel (0) target = $region37
  $region36: #{simplenet_forward.1} parent=0 // pred_region
    _
  $region37: #{simplenet_forward.1} parent=0 // pred_fallthru
    _
  %v33 = vld [vmem:[%s0] sm:$0xff]
  %v34 = vld [vmem:[%s0 + $0x8] sm:$0xff]
  %v35 = vld [vmem:[%s0 + $0x10] sm:$0xff]
  %v36 = vld [vmem:[%s0 + $0x18] sm:$0x3f]
  %v37 = vld [vmem:[%s0 + $0x20] sm:$0xff]
  %v38 = vld [vmem:[%s0 + $0x28] sm:$0xff]
  %v39 = vld [vmem:[%s0 + $0x30] sm:$0xff]
  %v40 = vld [vmem:[%s0 + $0x38] sm:$0x3f]
  %v41 = vld [vmem:[%s0 + $0x40] sm:$0xff]
  %v42 = vld [vmem:[%s0 + $0x48] sm:$0xff]
  %v43 = vld [vmem:[%s0 + $0x50] sm:$0xff]
  %v44 = vld [vmem:[%s0 + $0x58] sm:$0x3f]
  %v45 = vld [vmem:[%s0 + $0x60] sm:$0xff]
  %v46 = vld [vmem:[%s0 + $0x68] sm:$0xff]
  %v47 = vld [vmem:[%s0 + $0x70] sm:$0xff]
  %v48 = vld [vmem:[%s0 + $0x78] sm:$0x3f]
  %v49 = vld [vmem:[%s0 + $0x80] sm:$0xff]
  %v50 = vld [vmem:[%s0 + $0x88] sm:$0xff]
  %v51 = vld [vmem:[%s0 + $0x90] sm:$0xff]
  %v52 = vld [vmem:[%s0 + $0x98] sm:$0x3f]
  %v53 = vld [vmem:[%s0 + $0xa0] sm:$0xff]
  %v54 = vld [vmem:[%s0 + $0xa8] sm:$0xff]
  %v55 = vld [vmem:[%s0 + $0xb0] sm:$0xff]
  %v56 = vld [vmem:[%s0 + $0xb8] sm:$0x3f]
  %v57 = vld [vmem:[%s0 + $0xc0] sm:$0xff]
  %v58 = vld [vmem:[%s0 + $0xc8] sm:$0xff]
  %v59 = vld [vmem:[%s0 + $0xd0] sm:$0xff]
  %v60 = vld [vmem:[%s0 + $0xd8] sm:$0x3f]
  %v61 = vld [vmem:[%s0 + $0xe0] sm:$0xff]
  %v62 = vld [vmem:[%s0 + $0xe8] sm:$0xff]
  %v63 = vld [vmem:[%s0 + $0xf0] sm:$0xff]
  %v64 = vld [vmem:[%s0 + $0xf8] sm:$0x3f]
  %vm97 = vcmask 1046528
  %v98 = vrot.slane %v33, 1
  %v99 = vrot.slane %v34, 1
  %v100 = vsel %vm97, %v98, %v99
  %v101 = vrot.slane %v35, 1
  %v102 = vsel %vm97, %v99, %v101
  %v103 = vrot.slane %v36, 1
  %v104 = vsel %vm97, %v101, %v103
  %v105 = vrot.slane %v37, 1
  %v106 = vrot.slane %v38, 1
  %v107 = vsel %vm97, %v105, %v106
  %v108 = vrot.slane %v39, 1
  %v109 = vsel %vm97, %v106, %v108
  %v110 = vrot.slane %v40, 1
  %v111 = vsel %vm97, %v108, %v110
  %v112 = vrot.slane %v41, 1
  %v113 = vrot.slane %v42, 1
  %v114 = vsel %vm97, %v112, %v113
  %v115 = vrot.slane %v43, 1
  %v116 = vsel %vm97, %v113, %v115
  %v117 = vrot.slane %v44, 1
  %v118 = vsel %vm97, %v115, %v117
  %v119 = vrot.slane %v45, 1
  %v120 = vrot.slane %v46, 1
  %v121 = vsel %vm97, %v119, %v120
  %v122 = vrot.slane %v47, 1
  %v123 = vsel %vm97, %v120, %v122
  %v124 = vrot.slane %v48, 1
  %v125 = vsel %vm97, %v122, %v124
  %v126 = vrot.slane %v49, 1
  %v127 = vrot.slane %v50, 1
  %v128 = vsel %vm97, %v126, %v127
  %v129 = vrot.slane %v51, 1
  %v130 = vsel %vm97, %v127, %v129
  %v131 = vrot.slane %v52, 1
  %v132 = vsel %vm97, %v129, %v131
  %v133 = vrot.slane %v53, 1
  %v134 = vrot.slane %v54, 1
  %v135 = vsel %vm97, %v133, %v134
  %v136 = vrot.slane %v55, 1
  %v137 = vsel %vm97, %v134, %v136
  %v138 = vrot.slane %v56, 1
  %v139 = vsel %vm97, %v136, %v138
  %v140 = vrot.slane %v57, 1
  %v141 = vrot.slane %v58, 1
  %v142 = vsel %vm97, %v140, %v141
  %v143 = vrot.slane %v59, 1
  %v144 = vsel %vm97, %v141, %v143
  %v145 = vrot.slane %v60, 1
  %v146 = vsel %vm97, %v143, %v145
  %v147 = vrot.slane %v61, 1
  %v148 = vrot.slane %v62, 1
  %v149 = vsel %vm97, %v147, %v148
  %v150 = vrot.slane %v63, 1
  %v151 = vsel %vm97, %v148, %v150
  %v152 = vrot.slane %v64, 1
  %v153 = vsel %vm97, %v150, %v152
  %154 = vrot.lane.b32.xlu0 %v100, 30
  %v155 = vpop.permute.xlu0 %154
  %156 = vrot.lane.b32.xlu0 %v102, 30
  %v157 = vpop.permute.xlu0 %156
  %158 = vrot.lane.b32.xlu0 %v104, 30
  %v159 = vpop.permute.xlu0 %158
  %160 = vrot.lane.b32.xlu0 %v103, 30
  %v161 = vpop.permute.xlu0 %160
  %162 = vrot.lane.b32.xlu0 %v107, 30
  %v163 = vpop.permute.xlu0 %162
  %164 = vrot.lane.b32.xlu0 %v109, 30
  %v165 = vpop.permute.xlu0 %164
  %166 = vrot.lane.b32.xlu0 %v111, 30
  %v167 = vpop.permute.xlu0 %166
  %168 = vrot.lane.b32.xlu0 %v110, 30
  %v169 = vpop.permute.xlu0 %168
  %170 = vrot.lane.b32.xlu0 %v114, 30
  %v171 = vpop.permute.xlu0 %170
  %172 = vrot.lane.b32.xlu0 %v116, 30
  %v173 = vpop.permute.xlu0 %172
  %174 = vrot.lane.b32.xlu0 %v118, 30
  %v175 = vpop.permute.xlu0 %174
  %176 = vrot.lane.b32.xlu0 %v117, 30
  %v177 = vpop.permute.xlu0 %176
  %178 = vrot.lane.b32.xlu0 %v121, 30
  %v179 = vpop.permute.xlu0 %178
  %180 = vrot.lane.b32.xlu0 %v123, 30
  %v181 = vpop.permute.xlu0 %180
  %182 = vrot.lane.b32.xlu0 %v125, 30
  %v183 = vpop.permute.xlu0 %182
  %184 = vrot.lane.b32.xlu0 %v124, 30
  %v185 = vpop.permute.xlu0 %184
  %186 = vrot.lane.b32.xlu0 %v128, 30
  %v187 = vpop.permute.xlu0 %186
  %188 = vrot.lane.b32.xlu0 %v130, 30
  %v189 = vpop.permute.xlu0 %188
  %190 = vrot.lane.b32.xlu0 %v132, 30
  %v191 = vpop.permute.xlu0 %190
  %192 = vrot.lane.b32.xlu0 %v131, 30
  %v193 = vpop.permute.xlu0 %192
  %194 = vrot.lane.b32.xlu0 %v135, 30
  %v195 = vpop.permute.xlu0 %194
  %196 = vrot.lane.b32.xlu0 %v137, 30
  %v197 = vpop.permute.xlu0 %196
  %198 = vrot.lane.b32.xlu0 %v139, 30
  %v199 = vpop.permute.xlu0 %198
  %200 = vrot.lane.b32.xlu0 %v138, 30
  %v201 = vpop.permute.xlu0 %200
  %202 = vrot.lane.b32.xlu0 %v142, 30
  %v203 = vpop.permute.xlu0 %202
  %204 = vrot.lane.b32.xlu0 %v144, 30
  %v205 = vpop.permute.xlu0 %204
  %206 = vrot.lane.b32.xlu0 %v146, 30
  %v207 = vpop.permute.xlu0 %206
  %208 = vrot.lane.b32.xlu0 %v145, 30
  %v209 = vpop.permute.xlu0 %208
  %210 = vrot.lane.b32.xlu0 %v149, 30
  %v211 = vpop.permute.xlu0 %210
  %212 = vrot.lane.b32.xlu0 %v151, 30
  %v213 = vpop.permute.xlu0 %212
  %214 = vrot.lane.b32.xlu0 %v153, 30
  %v215 = vpop.permute.xlu0 %214
  %216 = vrot.lane.b32.xlu0 %v152, 30
  %v217 = vpop.permute.xlu0 %216
  %vm250 = vcmask 1045504
  %v251 = vrot.slane %v33, 2
  %v252 = vrot.slane %v34, 2
  %v253 = vsel %vm250, %v251, %v252
  %v254 = vrot.slane %v35, 2
  %v255 = vsel %vm250, %v252, %v254
  %v256 = vrot.slane %v36, 2
  %v257 = vsel %vm250, %v254, %v256
  %v258 = vrot.slane %v37, 2
  %v259 = vrot.slane %v38, 2
  %v260 = vsel %vm250, %v258, %v259
  %v261 = vrot.slane %v39, 2
  %v262 = vsel %vm250, %v259, %v261
  %v263 = vrot.slane %v40, 2
  %v264 = vsel %vm250, %v261, %v263
  %v265 = vrot.slane %v41, 2
  %v266 = vrot.slane %v42, 2
  %v267 = vsel %vm250, %v265, %v266
  %v268 = vrot.slane %v43, 2
  %v269 = vsel %vm250, %v266, %v268
  %v270 = vrot.slane %v44, 2
  %v271 = vsel %vm250, %v268, %v270
  %v272 = vrot.slane %v45, 2
  %v273 = vrot.slane %v46, 2
  %v274 = vsel %vm250, %v272, %v273
  %v275 = vrot.slane %v47, 2
  %v276 = vsel %vm250, %v273, %v275
  %v277 = vrot.slane %v48, 2
  %v278 = vsel %vm250, %v275, %v277
  %v279 = vrot.slane %v49, 2
  %v280 = vrot.slane %v50, 2
  %v281 = vsel %vm250, %v279, %v280
  %v282 = vrot.slane %v51, 2
  %v283 = vsel %vm250, %v280, %v282
  %v284 = vrot.slane %v52, 2
  %v285 = vsel %vm250, %v282, %v284
  %v286 = vrot.slane %v53, 2
  %v287 = vrot.slane %v54, 2
  %v288 = vsel %vm250, %v286, %v287
  %v289 = vrot.slane %v55, 2
  %v290 = vsel %vm250, %v287, %v289
  %v291 = vrot.slane %v56, 2
  %v292 = vsel %vm250, %v289, %v291
  %v293 = vrot.slane %v57, 2
  %v294 = vrot.slane %v58, 2
  %v295 = vsel %vm250, %v293, %v294
  %v296 = vrot.slane %v59, 2
  %v297 = vsel %vm250, %v294, %v296
  %v298 = vrot.slane %v60, 2
  %v299 = vsel %vm250, %v296, %v298
  %v300 = vrot.slane %v61, 2
  %v301 = vrot.slane %v62, 2
  %v302 = vsel %vm250, %v300, %v301
  %v303 = vrot.slane %v63, 2
  %v304 = vsel %vm250, %v301, %v303
  %v305 = vrot.slane %v64, 2
  %v306 = vsel %vm250, %v303, %v305
  %307 = vrot.lane.b32.xlu0 %v253, 60
  %v308 = vpop.permute.xlu0 %307
  %309 = vrot.lane.b32.xlu0 %v255, 60
  %v310 = vpop.permute.xlu0 %309
  %311 = vrot.lane.b32.xlu0 %v257, 60
  %v312 = vpop.permute.xlu0 %311
  %313 = vrot.lane.b32.xlu0 %v256, 60
  %v314 = vpop.permute.xlu0 %313
  %315 = vrot.lane.b32.xlu0 %v260, 60
  %v316 = vpop.permute.xlu0 %315
  %317 = vrot.lane.b32.xlu0 %v262, 60
  %v318 = vpop.permute.xlu0 %317
  %319 = vrot.lane.b32.xlu0 %v264, 60
  %v320 = vpop.permute.xlu0 %319
  %321 = vrot.lane.b32.xlu0 %v263, 60
  %v322 = vpop.permute.xlu0 %321
  %323 = vrot.lane.b32.xlu0 %v267, 60
  %v324 = vpop.permute.xlu0 %323
  %325 = vrot.lane.b32.xlu0 %v269, 60
  %v326 = vpop.permute.xlu0 %325
  %327 = vrot.lane.b32.xlu0 %v271, 60
  %v328 = vpop.permute.xlu0 %327
  %329 = vrot.lane.b32.xlu0 %v270, 60
  %v330 = vpop.permute.xlu0 %329
  %331 = vrot.lane.b32.xlu0 %v274, 60
  %v332 = vpop.permute.xlu0 %331
  %333 = vrot.lane.b32.xlu0 %v276, 60
  %v334 = vpop.permute.xlu0 %333
  %335 = vrot.lane.b32.xlu0 %v278, 60
  %v336 = vpop.permute.xlu0 %335
  %337 = vrot.lane.b32.xlu0 %v277, 60
  %v338 = vpop.permute.xlu0 %337
  %339 = vrot.lane.b32.xlu0 %v281, 60
  %v340 = vpop.permute.xlu0 %339
  %341 = vrot.lane.b32.xlu0 %v283, 60
  %v342 = vpop.permute.xlu0 %341
  %343 = vrot.lane.b32.xlu0 %v285, 60
  %v344 = vpop.permute.xlu0 %343
  %345 = vrot.lane.b32.xlu0 %v284, 60
  %v346 = vpop.permute.xlu0 %345
  %347 = vrot.lane.b32.xlu0 %v288, 60
  %v348 = vpop.permute.xlu0 %347
  %349 = vrot.lane.b32.xlu0 %v290, 60
  %v350 = vpop.permute.xlu0 %349
  %351 = vrot.lane.b32.xlu0 %v292, 60
  %v352 = vpop.permute.xlu0 %351
  %353 = vrot.lane.b32.xlu0 %v291, 60
  %v354 = vpop.permute.xlu0 %353
  %355 = vrot.lane.b32.xlu0 %v295, 60
  %v356 = vpop.permute.xlu0 %355
  %357 = vrot.lane.b32.xlu0 %v297, 60
  %v358 = vpop.permute.xlu0 %357
  %359 = vrot.lane.b32.xlu0 %v299, 60
  %v360 = vpop.permute.xlu0 %359
  %361 = vrot.lane.b32.xlu0 %v298, 60
  %v362 = vpop.permute.xlu0 %361
  %363 = vrot.lane.b32.xlu0 %v302, 60
  %v364 = vpop.permute.xlu0 %363
  %365 = vrot.lane.b32.xlu0 %v304, 60
  %v366 = vpop.permute.xlu0 %365
  %367 = vrot.lane.b32.xlu0 %v306, 60
  %v368 = vpop.permute.xlu0 %367
  %369 = vrot.lane.b32.xlu0 %v305, 60
  %v370 = vpop.permute.xlu0 %369
  %vm403 = vcmask 244736
  %v404 = vsel %vm403, %v33, %v155
  %v405 = vsel %vm403, %v34, %v157
  %v406 = vsel %vm403, %v35, %v159
  %v407 = vsel %vm403, %v36, %v161
  %v408 = vsel %vm403, %v37, %v163
  %v409 = vsel %vm403, %v38, %v165
  %v410 = vsel %vm403, %v39, %v167
  %v411 = vsel %vm403, %v40, %v169
  %v412 = vsel %vm403, %v41, %v171
  %v413 = vsel %vm403, %v42, %v173
  %v414 = vsel %vm403, %v43, %v175
  %v415 = vsel %vm403, %v44, %v177
  %v416 = vsel %vm403, %v45, %v179
  %v417 = vsel %vm403, %v46, %v181
  %v418 = vsel %vm403, %v47, %v183
  %v419 = vsel %vm403, %v48, %v185
  %v420 = vsel %vm403, %v49, %v187
  %v421 = vsel %vm403, %v50, %v189
  %v422 = vsel %vm403, %v51, %v191
  %v423 = vsel %vm403, %v52, %v193
  %v424 = vsel %vm403, %v53, %v195
  %v425 = vsel %vm403, %v54, %v197
  %v426 = vsel %vm403, %v55, %v199
  %v427 = vsel %vm403, %v56, %v201
  %v428 = vsel %vm403, %v57, %v203
  %v429 = vsel %vm403, %v58, %v205
  %v430 = vsel %vm403, %v59, %v207
  %v431 = vsel %vm403, %v60, %v209
  %v432 = vsel %vm403, %v61, %v211
  %v433 = vsel %vm403, %v62, %v213
  %v434 = vsel %vm403, %v63, %v215
  %v435 = vsel %vm403, %v64, %v217
  %vm436 = vcmask 490496
  %v437 = vsel %vm436, %v404, %v308
  %v438 = vsel %vm436, %v405, %v310
  %v439 = vsel %vm436, %v406, %v312
  %v440 = vsel %vm436, %v407, %v314
  %v441 = vsel %vm436, %v408, %v316
  %v442 = vsel %vm436, %v409, %v318
  %v443 = vsel %vm436, %v410, %v320
  %v444 = vsel %vm436, %v411, %v322
  %v445 = vsel %vm436, %v412, %v324
  %v446 = vsel %vm436, %v413, %v326
  %v447 = vsel %vm436, %v414, %v328
  %v448 = vsel %vm436, %v415, %v330
  %v449 = vsel %vm436, %v416, %v332
  %v450 = vsel %vm436, %v417, %v334
  %v451 = vsel %vm436, %v418, %v336
  %v452 = vsel %vm436, %v419, %v338
  %v453 = vsel %vm436, %v420, %v340
  %v454 = vsel %vm436, %v421, %v342
  %v455 = vsel %vm436, %v422, %v344
  %v456 = vsel %vm436, %v423, %v346
  %v457 = vsel %vm436, %v424, %v348
  %v458 = vsel %vm436, %v425, %v350
  %v459 = vsel %vm436, %v426, %v352
  %v460 = vsel %vm436, %v427, %v354
  %v461 = vsel %vm436, %v428, %v356
  %v462 = vsel %vm436, %v429, %v358
  %v463 = vsel %vm436, %v430, %v360
  %v464 = vsel %vm436, %v431, %v362
  %v465 = vsel %vm436, %v432, %v364
  %v466 = vsel %vm436, %v433, %v366
  %v467 = vsel %vm436, %v434, %v368
  %v468 = vsel %vm436, %v435, %v370
  %v501 = vrot.slane %v437, 4
  %v502 = vrot.slane %v438, 4
  %v503 = vrot.slane %v439, 4
  %v504 = vrot.slane %v441, 4
  %v505 = vrot.slane %v442, 4
  %v506 = vrot.slane %v443, 4
  %v507 = vrot.slane %v445, 4
  %v508 = vrot.slane %v446, 4
  %v509 = vrot.slane %v447, 4
  %v510 = vrot.slane %v449, 4
  %v511 = vrot.slane %v450, 4
  %v512 = vrot.slane %v451, 4
  %v513 = vrot.slane %v453, 4
  %v514 = vrot.slane %v454, 4
  %v515 = vrot.slane %v455, 4
  %v516 = vrot.slane %v457, 4
  %v517 = vrot.slane %v458, 4
  %v518 = vrot.slane %v459, 4
  %v519 = vrot.slane %v461, 4
  %v520 = vrot.slane %v462, 4
  %v521 = vrot.slane %v463, 4
  %v522 = vrot.slane %v465, 4
  %v523 = vrot.slane %v466, 4
  %v524 = vrot.slane %v467, 4
  %525 = vst [vmem:[#allocation1] ss:$2 sm:$0xff] %v437
  %s526 = scalar_lea.vmem [#allocation1], 1
  %527 = vst [vmem:[%s526] ss:$2 sm:$0xff] %v501
  %s528 = scalar_lea.vmem [#allocation1], 16
  %529 = vst [vmem:[%s528] ss:$2 sm:$0xff] %v438
  %s530 = scalar_lea.vmem [#allocation1], 17
  %531 = vst [vmem:[%s530] ss:$2 sm:$0xff] %v502
  %s532 = scalar_lea.vmem [#allocation1], 32
  %533 = vst [vmem:[%s532] ss:$2 sm:$0xff] %v439
  %s534 = scalar_lea.vmem [#allocation1], 33
  %535 = vst [vmem:[%s534] ss:$2 sm:$0xff] %v503
  %s536 = scalar_lea.vmem [#allocation1], 48
  %537 = vst [vmem:[%s536] ss:$2 sm:$0xff] %v440
  %s538 = scalar_lea.vmem [#allocation1], 49
  %539 = vst [vmem:[%s538] ss:$2 sm:$0xff] %v441
  %v540 = vld.sshfl [vmem:[#allocation1] sm:$0xff pattern:$0x75316420]
  %v541 = vld.sshfl [vmem:[#allocation1 + $0x10] sm:$0xff pattern:$0x75316420]
  %v542 = vld.sshfl [vmem:[#allocation1 + $0x20] sm:$0xff pattern:$0x75316420]
  %v543 = vld.sshfl [vmem:[#allocation1 + $0x30] sm:$0xff pattern:$0x75316420]
  %544 = vst [vmem:[#allocation1] ss:$2 sm:$0xff] %v504
  %545 = vst [vmem:[%s526] ss:$2 sm:$0xff] %v442
  %546 = vst [vmem:[%s528] ss:$2 sm:$0xff] %v505
  %547 = vst [vmem:[%s530] ss:$2 sm:$0xff] %v443
  %548 = vst [vmem:[%s532] ss:$2 sm:$0xff] %v506
  %549 = vst [vmem:[%s534] ss:$2 sm:$0xff] %v444
  %550 = vst [vmem:[%s536] ss:$2 sm:$0xff] %v445
  %551 = vst [vmem:[%s538] ss:$2 sm:$0xff] %v507
  %v552 = vld.sshfl [vmem:[#allocation1] sm:$0xff pattern:$0x75316420]
  %v553 = vld.sshfl [vmem:[#allocation1 + $0x10] sm:$0xff pattern:$0x75316420]
  %v554 = vld.sshfl [vmem:[#allocation1 + $0x20] sm:$0xff pattern:$0x75316420]
  %v555 = vld.sshfl [vmem:[#allocation1 + $0x30] sm:$0xff pattern:$0x75316420]
  %556 = vst [vmem:[#allocation1] ss:$2 sm:$0xff] %v446
  %557 = vst [vmem:[%s526] ss:$2 sm:$0xff] %v508
  %558 = vst [vmem:[%s528] ss:$2 sm:$0xff] %v447
  %559 = vst [vmem:[%s530] ss:$2 sm:$0xff] %v509
  %560 = vst [vmem:[%s532] ss:$2 sm:$0xff] %v448
  %561 = vst [vmem:[%s534] ss:$2 sm:$0xff] %v449
  %562 = vst [vmem:[%s536] ss:$2 sm:$0xff] %v510
  %563 = vst [vmem:[%s538] ss:$2 sm:$0xff] %v450
  %v564 = vld.sshfl [vmem:[#allocation1] sm:$0xff pattern:$0x75316420]
  %v565 = vld.sshfl [vmem:[#allocation1 + $0x10] sm:$0xff pattern:$0x75316420]
  %v566 = vld.sshfl [vmem:[#allocation1 + $0x20] sm:$0xff pattern:$0x75316420]
  %v567 = vld.sshfl [vmem:[#allocation1 + $0x30] sm:$0xff pattern:$0x75316420]
  %568 = vst [vmem:[#allocation1] ss:$2 sm:$0xff] %v511
  %569 = vst [vmem:[%s526] ss:$2 sm:$0xff] %v451
  %570 = vst [vmem:[%s528] ss:$2 sm:$0xff] %v512
  %571 = vst [vmem:[%s530] ss:$2 sm:$0xff] %v452
  %572 = vst [vmem:[%s532] ss:$2 sm:$0xff] %v453
  %573 = vst [vmem:[%s534] ss:$2 sm:$0xff] %v513
  %574 = vst [vmem:[%s536] ss:$2 sm:$0xff] %v454
  %575 = vst [vmem:[%s538] ss:$2 sm:$0xff] %v514
  %v576 = vld.sshfl [vmem:[#allocation1] sm:$0xff pattern:$0x75316420]
  %v577 = vld.sshfl [vmem:[#allocation1 + $0x10] sm:$0xff pattern:$0x75316420]
  %v578 = vld.sshfl [vmem:[#allocation1 + $0x20] sm:$0xff pattern:$0x75316420]
  %v579 = vld.sshfl [vmem:[#allocation1 + $0x30] sm:$0xff pattern:$0x75316420]
  %580 = vst [vmem:[#allocation1] ss:$2 sm:$0xff] %v455
  %581 = vst [vmem:[%s526] ss:$2 sm:$0xff] %v515
  %582 = vst [vmem:[%s528] ss:$2 sm:$0xff] %v456
  %583 = vst [vmem:[%s530] ss:$2 sm:$0xff] %v457
  %584 = vst [vmem:[%s532] ss:$2 sm:$0xff] %v516
  %585 = vst [vmem:[%s534] ss:$2 sm:$0xff] %v458
  %586 = vst [vmem:[%s536] ss:$2 sm:$0xff] %v517
  %587 = vst [vmem:[%s538] ss:$2 sm:$0xff] %v459
  %v588 = vld.sshfl [vmem:[#allocation1] sm:$0xff pattern:$0x75316420]
  %v589 = vld.sshfl [vmem:[#allocation1 + $0x10] sm:$0xff pattern:$0x75316420]
  %v590 = vld.sshfl [vmem:[#allocation1 + $0x20] sm:$0xff pattern:$0x75316420]
  %v591 = vld.sshfl [vmem:[#allocation1 + $0x30] sm:$0xff pattern:$0x75316420]
  %592 = vst [vmem:[#allocation1] ss:$2 sm:$0xff] %v518
  %593 = vst [vmem:[%s526] ss:$2 sm:$0xff] %v460
  %594 = vst [vmem:[%s528] ss:$2 sm:$0xff] %v461
  %595 = vst [vmem:[%s530] ss:$2 sm:$0xff] %v519
  %596 = vst [vmem:[%s532] ss:$2 sm:$0xff] %v462
  %597 = vst [vmem:[%s534] ss:$2 sm:$0xff] %v520
  %598 = vst [vmem:[%s536] ss:$2 sm:$0xff] %v463
  %599 = vst [vmem:[%s538] ss:$2 sm:$0xff] %v521
  %v600 = vld.sshfl [vmem:[#allocation1] sm:$0xff pattern:$0x75316420]
  %v601 = vld.sshfl [vmem:[#allocation1 + $0x10] sm:$0xff pattern:$0x75316420]
  %v602 = vld.sshfl [vmem:[#allocation1 + $0x20] sm:$0xff pattern:$0x75316420]
  %v603 = vld.sshfl [vmem:[#allocation1 + $0x30] sm:$0xff pattern:$0x75316420]
  %604 = vst [vmem:[#allocation1] ss:$2 sm:$0xff] %v464
  %605 = vst [vmem:[%s526] ss:$2 sm:$0xff] %v465
  %606 = vst [vmem:[%s528] ss:$2 sm:$0xff] %v522
  %607 = vst [vmem:[%s530] ss:$2 sm:$0xff] %v466
  %608 = vst [vmem:[%s532] ss:$2 sm:$0xff] %v523
  %609 = vst [vmem:[%s534] ss:$2 sm:$0xff] %v467
  %610 = vst [vmem:[%s536] ss:$2 sm:$0xff] %v524
  %611 = vst [vmem:[%s538] ss:$2 sm:$0xff] %v468
  %v612 = vld.sshfl [vmem:[#allocation1] sm:$0xff pattern:$0x75316420]
  %v613 = vld.sshfl [vmem:[#allocation1 + $0x10] sm:$0xff pattern:$0x75316420]
  %v614 = vld.sshfl [vmem:[#allocation1 + $0x20] sm:$0xff pattern:$0x75316420]
  %v615 = vld.sshfl [vmem:[#allocation1 + $0x30] sm:$0xff pattern:$0x75316420]
  %v644 = vpack.c.bf16 %v541, %v540
  %v645 = vpack.c.bf16 %v543, %v542
  %v646 = vpack.c.bf16 %v553, %v552
  %v647 = vpack.c.bf16 %v555, %v554
  %v648 = vpack.c.bf16 %v565, %v564
  %v649 = vpack.c.bf16 %v567, %v566
  %v650 = vpack.c.bf16 %v577, %v576
  %v651 = vpack.c.bf16 %v579, %v578
  %v652 = vpack.c.bf16 %v589, %v588
  %v653 = vpack.c.bf16 %v591, %v590
  %v654 = vpack.c.bf16 %v601, %v600
  %v655 = vpack.c.bf16 %v603, %v602
  %v656 = vpack.c.bf16 %v613, %v612
  %v657 = vpack.c.bf16 %v615, %v614
  %v658 = vld [vmem:[%s1] sm:$0xff]
  %v659 = vld [vmem:[%s1 + $0x8] sm:$0xff]
  %v660 = vld [vmem:[%s1 + $0x10] sm:$0xff]
  %v661 = vld [vmem:[%s1 + $0x18] sm:$0xff]
  %v662 = vld [vmem:[%s1 + $0x20] sm:$0xff]
  %v663 = vld [vmem:[%s1 + $0x28] sm:$0xff]
  %v664 = vld [vmem:[%s1 + $0x30] sm:$0xff]
  %v665 = vld [vmem:[%s1 + $0x38] sm:$0xff]
  %v666 = vld [vmem:[%s1 + $0x40] sm:$0xff]
  %v667 = vld [vmem:[%s1 + $0x48] sm:$0xff]
  %v668 = vld [vmem:[%s1 + $0x50] sm:$0xff]
  %v669 = vld [vmem:[%s1 + $0x58] sm:$0xff]
  %v670 = vld [vmem:[%s1 + $0x60] sm:$0xff]
  %v671 = vld [vmem:[%s1 + $0x68] sm:$0xff]
  %v672 = vld [vmem:[%s1 + $0x70] sm:$0xff]
  %v673 = vld [vmem:[%s1 + $0x78] sm:$0xff]
  %v674 = vld [vmem:[%s1 + $0x80] sm:$0xff]
  %v675 = vld [vmem:[%s1 + $0x88] sm:$0xff]
  %v676 = vld [vmem:[%s1 + $0x90] sm:$0xff]
  %v677 = vld [vmem:[%s1 + $0x98] sm:$0xff]
  %v678 = vld [vmem:[%s1 + $0xa0] sm:$0xff]
  %v679 = vld [vmem:[%s1 + $0xa8] sm:$0xff]
  %v680 = vld [vmem:[%s1 + $0xb0] sm:$0x11]
  %v681 = vld [vmem:[%s1 + $0xb8] sm:$0x11]
  %v706 = vunpack.c.l.b16 %v658
  %v707 = vunpack.c.h.b16 %v658
  %v708 = vunpack.c.l.b16 %v659
  %v709 = vunpack.c.h.b16 %v659
  %v710 = vunpack.c.l.b16 %v660
  %v711 = vunpack.c.h.b16 %v660
  %v712 = vunpack.c.l.b16 %v661
  %v713 = vunpack.c.h.b16 %v661
  %v714 = vunpack.c.l.b16 %v662
  %v715 = vunpack.c.h.b16 %v662
  %v716 = vunpack.c.l.b16 %v663
  %v717 = vunpack.c.h.b16 %v663
  %v718 = vunpack.c.l.b16 %v664
  %v719 = vunpack.c.h.b16 %v664
  %v720 = vunpack.c.l.b16 %v665
  %v721 = vunpack.c.h.b16 %v665
  %v722 = vunpack.c.l.b16 %v666
  %v723 = vunpack.c.h.b16 %v666
  %v724 = vunpack.c.l.b16 %v667
  %v725 = vunpack.c.h.b16 %v667
  %v726 = vunpack.c.l.b16 %v668
  %v727 = vunpack.c.h.b16 %v668
  %v728 = vunpack.c.l.b16 %v669
  %v729 = vunpack.c.h.b16 %v669
  %v730 = vunpack.c.l.b16 %v670
  %v731 = vunpack.c.h.b16 %v670
  %v732 = vunpack.c.l.b16 %v671
  %v733 = vunpack.c.h.b16 %v671
  %v734 = vunpack.c.l.b16 %v672
  %v735 = vunpack.c.h.b16 %v672
  %v736 = vunpack.c.l.b16 %v673
  %v737 = vunpack.c.h.b16 %v673
  %v738 = vunpack.c.l.b16 %v674
  %v739 = vunpack.c.h.b16 %v674
  %v740 = vunpack.c.l.b16 %v675
  %v741 = vunpack.c.h.b16 %v675
  %v742 = vunpack.c.l.b16 %v676
  %v743 = vunpack.c.h.b16 %v676
  %v744 = vunpack.c.l.b16 %v677
  %v745 = vunpack.c.h.b16 %v677
  %v746 = vunpack.c.l.b16 %v678
  %v747 = vunpack.c.h.b16 %v678
  %v748 = vunpack.c.l.b16 %v679
  %v749 = vunpack.c.h.b16 %v679
  %v750 = vunpack.c.l.b16 %v680
  %v751 = vunpack.c.h.b16 %v680
  %v752 = vunpack.c.l.b16 %v681
  %v753 = vunpack.c.h.b16 %v681
  %v754 = vpack.c.b16 %v710, %v706
  %v755 = vpack.c.b16 %v711, %v707
  %v756 = vpack.c.b16 %v712, %v708
  %v757 = vpack.c.b16 %v713, %v709
  %v758 = vpack.c.b16 %v718, %v714
  %v759 = vpack.c.b16 %v719, %v715
  %v760 = vpack.c.b16 %v720, %v716
  %v761 = vpack.c.b16 %v721, %v717
  %v762 = vpack.c.b16 %v726, %v722
  %v763 = vpack.c.b16 %v727, %v723
  %v764 = vpack.c.b16 %v728, %v724
  %v765 = vpack.c.b16 %v729, %v725
  %v766 = vpack.c.b16 %v734, %v730
  %v767 = vpack.c.b16 %v735, %v731
  %v768 = vpack.c.b16 %v736, %v732
  %v769 = vpack.c.b16 %v737, %v733
  %v770 = vpack.c.b16 %v742, %v738
  %v771 = vpack.c.b16 %v743, %v739
  %v772 = vpack.c.b16 %v744, %v740
  %v773 = vpack.c.b16 %v745, %v741
  %v774 = vpack.c.b16 %v750, %v746
  %v775 = vpack.c.b16 %v751, %v747
  %v776 = vpack.c.b16 %v752, %v748
  %v777 = vpack.c.b16 %v753, %v749
  %vm798 = vcmask 736256
  %v800 = vsel %vm798, %v644, 0
  %v803 = vsel %vm798, %v645, 0
  %v806 = vsel %vm798, %v646, 0
  %v809 = vsel %vm798, %v647, 0
  %v812 = vsel %vm798, %v648, 0
  %v815 = vsel %vm798, %v649, 0
  %v818 = vsel %vm798, %v650, 0
  %v821 = vsel %vm798, %v651, 0
  %v824 = vsel %vm798, %v652, 0
  %v827 = vsel %vm798, %v653, 0
  %v830 = vsel %vm798, %v654, 0
  %v833 = vsel %vm798, %v655, 0
  %v836 = vsel %vm798, %v656, 0
  %v839 = vsel %vm798, %v657, 0
  %vm841 = vcmask 1044480
  %v843 = vsel %vm841, %v774, 0
  %v846 = vsel %vm841, %v775, 0
  %v849 = vsel %vm841, %v776, 0
  %v852 = vsel %vm841, %v777, 0
  %854 = vmatpush.bf16.msra.mxu0 0
  %855 = vmatpush.bf16.msra.mxu0 0
  %856 = vmatpush.bf16.msra.mxu0 %v843
  %857 = vmatpush.bf16.msra.mxu0 %v770
  %858 = vmatpush.bf16.msra.mxu0 %v766
  %859 = vmatpush.bf16.msra.mxu0 %v762
  %860 = vmatpush.bf16.msra.mxu0 %v758
  %861 = vmatpush.bf16.msra.mxu0 %v754
  %862 = vmatmul.bf16.gmra.mxu0 %v800
  %v863 = vpop.f32.mrf.mxu0
  %v864 = vadd.f32 0.0, %v863
  %v865 = vpop.f32.mrf.mxu0
  %v866 = vadd.f32 0.0, %v865
  %867 = vmatmul.bf16.gmra.mxu0 %v803
  %v868 = vpop.f32.mrf.mxu0
  %v869 = vadd.f32 0.0, %v868
  %v870 = vpop.f32.mrf.mxu0
  %v871 = vadd.f32 0.0, %v870
  %872 = vmatmul.bf16.gmra.mxu0 %v806
  %v873 = vpop.f32.mrf.mxu0
  %v874 = vadd.f32 0.0, %v873
  %v875 = vpop.f32.mrf.mxu0
  %v876 = vadd.f32 0.0, %v875
  %877 = vmatmul.bf16.gmra.mxu0 %v809
  %v878 = vpop.f32.mrf.mxu0
  %v879 = vadd.f32 0.0, %v878
  %v880 = vpop.f32.mrf.mxu0
  %v881 = vadd.f32 0.0, %v880
  %882 = vmatmul.bf16.gmra.mxu0 %v812
  %v883 = vpop.f32.mrf.mxu0
  %v884 = vadd.f32 0.0, %v883
  %v885 = vpop.f32.mrf.mxu0
  %v886 = vadd.f32 0.0, %v885
  %887 = vmatmul.bf16.gmra.mxu0 %v815
  %v888 = vpop.f32.mrf.mxu0
  %v889 = vadd.f32 0.0, %v888
  %v890 = vpop.f32.mrf.mxu0
  %v891 = vadd.f32 0.0, %v890
  %892 = vmatmul.bf16.gmra.mxu0 %v818
  %v893 = vpop.f32.mrf.mxu0
  %v894 = vadd.f32 0.0, %v893
  %v895 = vpop.f32.mrf.mxu0
  %v896 = vadd.f32 0.0, %v895
  %897 = vmatmul.bf16.gmra.mxu0 %v821
  %v898 = vpop.f32.mrf.mxu0
  %v899 = vadd.f32 0.0, %v898
  %v900 = vpop.f32.mrf.mxu0
  %v901 = vadd.f32 0.0, %v900
  %902 = vmatmul.bf16.gmra.mxu0 %v824
  %v903 = vpop.f32.mrf.mxu0
  %v904 = vadd.f32 0.0, %v903
  %v905 = vpop.f32.mrf.mxu0
  %v906 = vadd.f32 0.0, %v905
  %907 = vmatmul.bf16.gmra.mxu0 %v827
  %v908 = vpop.f32.mrf.mxu0
  %v909 = vadd.f32 0.0, %v908
  %v910 = vpop.f32.mrf.mxu0
  %v911 = vadd.f32 0.0, %v910
  %912 = vmatmul.bf16.gmra.mxu0 %v830
  %v913 = vpop.f32.mrf.mxu0
  %v914 = vadd.f32 0.0, %v913
  %v915 = vpop.f32.mrf.mxu0
  %v916 = vadd.f32 0.0, %v915
  %917 = vmatmul.bf16.gmra.mxu0 %v833
  %v918 = vpop.f32.mrf.mxu0
  %v919 = vadd.f32 0.0, %v918
  %v920 = vpop.f32.mrf.mxu0
  %v921 = vadd.f32 0.0, %v920
  %922 = vmatmul.bf16.gmra.mxu0 %v836
  %v923 = vpop.f32.mrf.mxu0
  %v924 = vadd.f32 0.0, %v923
  %v925 = vpop.f32.mrf.mxu0
  %v926 = vadd.f32 0.0, %v925
  %927 = vmatmul.bf16.gmra.mxu0 %v839
  %v928 = vpop.f32.mrf.mxu0
  %v929 = vadd.f32 0.0, %v928
  %v930 = vpop.f32.mrf.mxu0
  %v931 = vadd.f32 0.0, %v930
  %932 = vdwg.mxu0
  %933 = vmatpush.bf16.msra.mxu0 0
  %934 = vmatpush.bf16.msra.mxu0 0
  %935 = vmatpush.bf16.msra.mxu0 %v846
  %936 = vmatpush.bf16.msra.mxu0 %v771
  %937 = vmatpush.bf16.msra.mxu0 %v767
  %938 = vmatpush.bf16.msra.mxu0 %v763
  %939 = vmatpush.bf16.msra.mxu0 %v759
  %940 = vmatpush.bf16.msra.mxu0 %v755
  %941 = vmatmul.bf16.gmra.mxu0 %v800
  %v942 = vpop.f32.mrf.mxu0
  %v943 = vadd.f32 0.0, %v942
  %v944 = vpop.f32.mrf.mxu0
  %v945 = vadd.f32 0.0, %v944
  %946 = vmatmul.bf16.gmra.mxu0 %v803
  %v947 = vpop.f32.mrf.mxu0
  %v948 = vadd.f32 0.0, %v947
  %v949 = vpop.f32.mrf.mxu0
  %v950 = vadd.f32 0.0, %v949
  %951 = vmatmul.bf16.gmra.mxu0 %v806
  %v952 = vpop.f32.mrf.mxu0
  %v953 = vadd.f32 0.0, %v952
  %v954 = vpop.f32.mrf.mxu0
  %v955 = vadd.f32 0.0, %v954
  %956 = vmatmul.bf16.gmra.mxu0 %v809
  %v957 = vpop.f32.mrf.mxu0
  %v958 = vadd.f32 0.0, %v957
  %v959 = vpop.f32.mrf.mxu0
  %v960 = vadd.f32 0.0, %v959
  %961 = vmatmul.bf16.gmra.mxu0 %v812
  %v962 = vpop.f32.mrf.mxu0
  %v963 = vadd.f32 0.0, %v962
  %v964 = vpop.f32.mrf.mxu0
  %v965 = vadd.f32 0.0, %v964
  %966 = vmatmul.bf16.gmra.mxu0 %v815
  %v967 = vpop.f32.mrf.mxu0
  %v968 = vadd.f32 0.0, %v967
  %v969 = vpop.f32.mrf.mxu0
  %v970 = vadd.f32 0.0, %v969
  %971 = vmatmul.bf16.gmra.mxu0 %v818
  %v972 = vpop.f32.mrf.mxu0
  %v973 = vadd.f32 0.0, %v972
  %v974 = vpop.f32.mrf.mxu0
  %v975 = vadd.f32 0.0, %v974
  %976 = vmatmul.bf16.gmra.mxu0 %v821
  %v977 = vpop.f32.mrf.mxu0
  %v978 = vadd.f32 0.0, %v977
  %v979 = vpop.f32.mrf.mxu0
  %v980 = vadd.f32 0.0, %v979
  %981 = vmatmul.bf16.gmra.mxu0 %v824
  %v982 = vpop.f32.mrf.mxu0
  %v983 = vadd.f32 0.0, %v982
  %v984 = vpop.f32.mrf.mxu0
  %v985 = vadd.f32 0.0, %v984
  %986 = vmatmul.bf16.gmra.mxu0 %v827
  %v987 = vpop.f32.mrf.mxu0
  %v988 = vadd.f32 0.0, %v987
  %v989 = vpop.f32.mrf.mxu0
  %v990 = vadd.f32 0.0, %v989
  %991 = vmatmul.bf16.gmra.mxu0 %v830
  %v992 = vpop.f32.mrf.mxu0
  %v993 = vadd.f32 0.0, %v992
  %v994 = vpop.f32.mrf.mxu0
  %v995 = vadd.f32 0.0, %v994
  %996 = vmatmul.bf16.gmra.mxu0 %v833
  %v997 = vpop.f32.mrf.mxu0
  %v998 = vadd.f32 0.0, %v997
  %v999 = vpop.f32.mrf.mxu0
  %v1000 = vadd.f32 0.0, %v999
  %1001 = vmatmul.bf16.gmra.mxu0 %v836
  %v1002 = vpop.f32.mrf.mxu0
  %v1003 = vadd.f32 0.0, %v1002
  %v1004 = vpop.f32.mrf.mxu0
  %v1005 = vadd.f32 0.0, %v1004
  %1006 = vmatmul.bf16.gmra.mxu0 %v839
  %v1007 = vpop.f32.mrf.mxu0
  %v1008 = vadd.f32 0.0, %v1007
  %v1009 = vpop.f32.mrf.mxu0
  %v1010 = vadd.f32 0.0, %v1009
  %1011 = vdwg.mxu0
  %1012 = vmatpush.bf16.msra.mxu0 0
  %1013 = vmatpush.bf16.msra.mxu0 0
  %1014 = vmatpush.bf16.msra.mxu0 %v849
  %1015 = vmatpush.bf16.msra.mxu0 %v772
  %1016 = vmatpush.bf16.msra.mxu0 %v768
  %1017 = vmatpush.bf16.msra.mxu0 %v764
  %1018 = vmatpush.bf16.msra.mxu0 %v760
  %1019 = vmatpush.bf16.msra.mxu0 %v756
  %1020 = vmatmul.bf16.gmra.mxu0 %v800
  %v1021 = vpop.f32.mrf.mxu0
  %v1022 = vadd.f32 0.0, %v1021
  %v1023 = vpop.f32.mrf.mxu0
  %v1024 = vadd.f32 0.0, %v1023
  %1025 = vmatmul.bf16.gmra.mxu0 %v803
  %v1026 = vpop.f32.mrf.mxu0
  %v1027 = vadd.f32 0.0, %v1026
  %v1028 = vpop.f32.mrf.mxu0
  %v1029 = vadd.f32 0.0, %v1028
  %1030 = vmatmul.bf16.gmra.mxu0 %v806
  %v1031 = vpop.f32.mrf.mxu0
  %v1032 = vadd.f32 0.0, %v1031
  %v1033 = vpop.f32.mrf.mxu0
  %v1034 = vadd.f32 0.0, %v1033
  %1035 = vmatmul.bf16.gmra.mxu0 %v809
  %v1036 = vpop.f32.mrf.mxu0
  %v1037 = vadd.f32 0.0, %v1036
  %v1038 = vpop.f32.mrf.mxu0
  %v1039 = vadd.f32 0.0, %v1038
  %1040 = vmatmul.bf16.gmra.mxu0 %v812
  %v1041 = vpop.f32.mrf.mxu0
  %v1042 = vadd.f32 0.0, %v1041
  %v1043 = vpop.f32.mrf.mxu0
  %v1044 = vadd.f32 0.0, %v1043
  %1045 = vmatmul.bf16.gmra.mxu0 %v815
  %v1046 = vpop.f32.mrf.mxu0
  %v1047 = vadd.f32 0.0, %v1046
  %v1048 = vpop.f32.mrf.mxu0
  %v1049 = vadd.f32 0.0, %v1048
  %1050 = vmatmul.bf16.gmra.mxu0 %v818
  %v1051 = vpop.f32.mrf.mxu0
  %v1052 = vadd.f32 0.0, %v1051
  %v1053 = vpop.f32.mrf.mxu0
  %v1054 = vadd.f32 0.0, %v1053
  %1055 = vmatmul.bf16.gmra.mxu0 %v821
  %v1056 = vpop.f32.mrf.mxu0
  %v1057 = vadd.f32 0.0, %v1056
  %v1058 = vpop.f32.mrf.mxu0
  %v1059 = vadd.f32 0.0, %v1058
  %1060 = vmatmul.bf16.gmra.mxu0 %v824
  %v1061 = vpop.f32.mrf.mxu0
  %v1062 = vadd.f32 0.0, %v1061
  %v1063 = vpop.f32.mrf.mxu0
  %v1064 = vadd.f32 0.0, %v1063
  %1065 = vmatmul.bf16.gmra.mxu0 %v827
  %v1066 = vpop.f32.mrf.mxu0
  %v1067 = vadd.f32 0.0, %v1066
  %v1068 = vpop.f32.mrf.mxu0
  %v1069 = vadd.f32 0.0, %v1068
  %1070 = vmatmul.bf16.gmra.mxu0 %v830
  %v1071 = vpop.f32.mrf.mxu0
  %v1072 = vadd.f32 0.0, %v1071
  %v1073 = vpop.f32.mrf.mxu0
  %v1074 = vadd.f32 0.0, %v1073
  %1075 = vmatmul.bf16.gmra.mxu0 %v833
  %v1076 = vpop.f32.mrf.mxu0
  %v1077 = vadd.f32 0.0, %v1076
  %v1078 = vpop.f32.mrf.mxu0
  %v1079 = vadd.f32 0.0, %v1078
  %1080 = vmatmul.bf16.gmra.mxu0 %v836
  %v1081 = vpop.f32.mrf.mxu0
  %v1082 = vadd.f32 0.0, %v1081
  %v1083 = vpop.f32.mrf.mxu0
  %v1084 = vadd.f32 0.0, %v1083
  %1085 = vmatmul.bf16.gmra.mxu0 %v839
  %v1086 = vpop.f32.mrf.mxu0
  %v1087 = vadd.f32 0.0, %v1086
  %v1088 = vpop.f32.mrf.mxu0
  %v1089 = vadd.f32 0.0, %v1088
  %1090 = vdwg.mxu0
  %1091 = vmatpush.bf16.msra.mxu0 0
  %1092 = vmatpush.bf16.msra.mxu0 0
  %1093 = vmatpush.bf16.msra.mxu0 %v852
  %1094 = vmatpush.bf16.msra.mxu0 %v773
  %1095 = vmatpush.bf16.msra.mxu0 %v769
  %1096 = vmatpush.bf16.msra.mxu0 %v765
  %1097 = vmatpush.bf16.msra.mxu0 %v761
  %1098 = vmatpush.bf16.msra.mxu0 %v757
  %1099 = vmatmul.bf16.gmra.mxu0 %v800
  %v1100 = vpop.f32.mrf.mxu0
  %v1101 = vadd.f32 0.0, %v1100
  %v1102 = vpop.f32.mrf.mxu0
  %v1103 = vadd.f32 0.0, %v1102
  %1104 = vmatmul.bf16.gmra.mxu0 %v803
  %v1105 = vpop.f32.mrf.mxu0
  %v1106 = vadd.f32 0.0, %v1105
  %v1107 = vpop.f32.mrf.mxu0
  %v1108 = vadd.f32 0.0, %v1107
  %1109 = vmatmul.bf16.gmra.mxu0 %v806
  %v1110 = vpop.f32.mrf.mxu0
  %v1111 = vadd.f32 0.0, %v1110
  %v1112 = vpop.f32.mrf.mxu0
  %v1113 = vadd.f32 0.0, %v1112
  %1114 = vmatmul.bf16.gmra.mxu0 %v809
  %v1115 = vpop.f32.mrf.mxu0
  %v1116 = vadd.f32 0.0, %v1115
  %v1117 = vpop.f32.mrf.mxu0
  %v1118 = vadd.f32 0.0, %v1117
  %1119 = vmatmul.bf16.gmra.mxu0 %v812
  %v1120 = vpop.f32.mrf.mxu0
  %v1121 = vadd.f32 0.0, %v1120
  %v1122 = vpop.f32.mrf.mxu0
  %v1123 = vadd.f32 0.0, %v1122
  %1124 = vmatmul.bf16.gmra.mxu0 %v815
  %v1125 = vpop.f32.mrf.mxu0
  %v1126 = vadd.f32 0.0, %v1125
  %v1127 = vpop.f32.mrf.mxu0
  %v1128 = vadd.f32 0.0, %v1127
  %1129 = vmatmul.bf16.gmra.mxu0 %v818
  %v1130 = vpop.f32.mrf.mxu0
  %v1131 = vadd.f32 0.0, %v1130
  %v1132 = vpop.f32.mrf.mxu0
  %v1133 = vadd.f32 0.0, %v1132
  %1134 = vmatmul.bf16.gmra.mxu0 %v821
  %v1135 = vpop.f32.mrf.mxu0
  %v1136 = vadd.f32 0.0, %v1135
  %v1137 = vpop.f32.mrf.mxu0
  %v1138 = vadd.f32 0.0, %v1137
  %1139 = vmatmul.bf16.gmra.mxu0 %v824
  %v1140 = vpop.f32.mrf.mxu0
  %v1141 = vadd.f32 0.0, %v1140
  %v1142 = vpop.f32.mrf.mxu0
  %v1143 = vadd.f32 0.0, %v1142
  %1144 = vmatmul.bf16.gmra.mxu0 %v827
  %v1145 = vpop.f32.mrf.mxu0
  %v1146 = vadd.f32 0.0, %v1145
  %v1147 = vpop.f32.mrf.mxu0
  %v1148 = vadd.f32 0.0, %v1147
  %1149 = vmatmul.bf16.gmra.mxu0 %v830
  %v1150 = vpop.f32.mrf.mxu0
  %v1151 = vadd.f32 0.0, %v1150
  %v1152 = vpop.f32.mrf.mxu0
  %v1153 = vadd.f32 0.0, %v1152
  %1154 = vmatmul.bf16.gmra.mxu0 %v833
  %v1155 = vpop.f32.mrf.mxu0
  %v1156 = vadd.f32 0.0, %v1155
  %v1157 = vpop.f32.mrf.mxu0
  %v1158 = vadd.f32 0.0, %v1157
  %1159 = vmatmul.bf16.gmra.mxu0 %v836
  %v1160 = vpop.f32.mrf.mxu0
  %v1161 = vadd.f32 0.0, %v1160
  %v1162 = vpop.f32.mrf.mxu0
  %v1163 = vadd.f32 0.0, %v1162
  %1164 = vmatmul.bf16.gmra.mxu0 %v839
  %v1165 = vpop.f32.mrf.mxu0
  %v1166 = vadd.f32 0.0, %v1165
  %v1167 = vpop.f32.mrf.mxu0
  %v1168 = vadd.f32 0.0, %v1167
  %1169 = vdwg.mxu0
  %1254 = vrot.lane.b32.xlu0 %v943, 32
  %v1255 = vpop.permute.xlu0 %1254
  %1256 = vrot.lane.b32.xlu0 %v1022, 32
  %v1257 = vpop.permute.xlu0 %1256
  %1258 = vrot.lane.b32.xlu0 %v1101, 32
  %v1259 = vpop.permute.xlu0 %1258
  %1260 = vrot.lane.b32.xlu0 %v945, 32
  %v1261 = vpop.permute.xlu0 %1260
  %1262 = vrot.lane.b32.xlu0 %v1024, 32
  %v1263 = vpop.permute.xlu0 %1262
  %1264 = vrot.lane.b32.xlu0 %v1103, 32
  %v1265 = vpop.permute.xlu0 %1264
  %1266 = vrot.lane.b32.xlu0 %v948, 32
  %v1267 = vpop.permute.xlu0 %1266
  %1268 = vrot.lane.b32.xlu0 %v1027, 32
  %v1269 = vpop.permute.xlu0 %1268
  %1270 = vrot.lane.b32.xlu0 %v1106, 32
  %v1271 = vpop.permute.xlu0 %1270
  %1272 = vrot.lane.b32.xlu0 %v950, 32
  %v1273 = vpop.permute.xlu0 %1272
  %1274 = vrot.lane.b32.xlu0 %v1029, 32
  %v1275 = vpop.permute.xlu0 %1274
  %1276 = vrot.lane.b32.xlu0 %v1108, 32
  %v1277 = vpop.permute.xlu0 %1276
  %1278 = vrot.lane.b32.xlu0 %v953, 32
  %v1279 = vpop.permute.xlu0 %1278
  %1280 = vrot.lane.b32.xlu0 %v1032, 32
  %v1281 = vpop.permute.xlu0 %1280
  %1282 = vrot.lane.b32.xlu0 %v1111, 32
  %v1283 = vpop.permute.xlu0 %1282
  %1284 = vrot.lane.b32.xlu0 %v955, 32
  %v1285 = vpop.permute.xlu0 %1284
  %1286 = vrot.lane.b32.xlu0 %v1034, 32
  %v1287 = vpop.permute.xlu0 %1286
  %1288 = vrot.lane.b32.xlu0 %v1113, 32
  %v1289 = vpop.permute.xlu0 %1288
  %1290 = vrot.lane.b32.xlu0 %v958, 32
  %v1291 = vpop.permute.xlu0 %1290
  %1292 = vrot.lane.b32.xlu0 %v1037, 32
  %v1293 = vpop.permute.xlu0 %1292
  %1294 = vrot.lane.b32.xlu0 %v1116, 32
  %v1295 = vpop.permute.xlu0 %1294
  %1296 = vrot.lane.b32.xlu0 %v960, 32
  %v1297 = vpop.permute.xlu0 %1296
  %1298 = vrot.lane.b32.xlu0 %v1039, 32
  %v1299 = vpop.permute.xlu0 %1298
  %1300 = vrot.lane.b32.xlu0 %v1118, 32
  %v1301 = vpop.permute.xlu0 %1300
  %1302 = vrot.lane.b32.xlu0 %v963, 32
  %v1303 = vpop.permute.xlu0 %1302
  %1304 = vrot.lane.b32.xlu0 %v1042, 32
  %v1305 = vpop.permute.xlu0 %1304
  %1306 = vrot.lane.b32.xlu0 %v1121, 32
  %v1307 = vpop.permute.xlu0 %1306
  %1308 = vrot.lane.b32.xlu0 %v965, 32
  %v1309 = vpop.permute.xlu0 %1308
  %1310 = vrot.lane.b32.xlu0 %v1044, 32
  %v1311 = vpop.permute.xlu0 %1310
  %1312 = vrot.lane.b32.xlu0 %v1123, 32
  %v1313 = vpop.permute.xlu0 %1312
  %1314 = vrot.lane.b32.xlu0 %v968, 32
  %v1315 = vpop.permute.xlu0 %1314
  %1316 = vrot.lane.b32.xlu0 %v1047, 32
  %v1317 = vpop.permute.xlu0 %1316
  %1318 = vrot.lane.b32.xlu0 %v1126, 32
  %v1319 = vpop.permute.xlu0 %1318
  %1320 = vrot.lane.b32.xlu0 %v970, 32
  %v1321 = vpop.permute.xlu0 %1320
  %1322 = vrot.lane.b32.xlu0 %v1049, 32
  %v1323 = vpop.permute.xlu0 %1322
  %1324 = vrot.lane.b32.xlu0 %v1128, 32
  %v1325 = vpop.permute.xlu0 %1324
  %1326 = vrot.lane.b32.xlu0 %v973, 32
  %v1327 = vpop.permute.xlu0 %1326
  %1328 = vrot.lane.b32.xlu0 %v1052, 32
  %v1329 = vpop.permute.xlu0 %1328
  %1330 = vrot.lane.b32.xlu0 %v1131, 32
  %v1331 = vpop.permute.xlu0 %1330
  %1332 = vrot.lane.b32.xlu0 %v975, 32
  %v1333 = vpop.permute.xlu0 %1332
  %1334 = vrot.lane.b32.xlu0 %v1054, 32
  %v1335 = vpop.permute.xlu0 %1334
  %1336 = vrot.lane.b32.xlu0 %v1133, 32
  %v1337 = vpop.permute.xlu0 %1336
  %1338 = vrot.lane.b32.xlu0 %v978, 32
  %v1339 = vpop.permute.xlu0 %1338
  %1340 = vrot.lane.b32.xlu0 %v1057, 32
  %v1341 = vpop.permute.xlu0 %1340
  %1342 = vrot.lane.b32.xlu0 %v1136, 32
  %v1343 = vpop.permute.xlu0 %1342
  %1344 = vrot.lane.b32.xlu0 %v980, 32
  %v1345 = vpop.permute.xlu0 %1344
  %1346 = vrot.lane.b32.xlu0 %v1059, 32
  %v1347 = vpop.permute.xlu0 %1346
  %1348 = vrot.lane.b32.xlu0 %v1138, 32
  %v1349 = vpop.permute.xlu0 %1348
  %1350 = vrot.lane.b32.xlu0 %v983, 32
  %v1351 = vpop.permute.xlu0 %1350
  %1352 = vrot.lane.b32.xlu0 %v1062, 32
  %v1353 = vpop.permute.xlu0 %1352
  %1354 = vrot.lane.b32.xlu0 %v1141, 32
  %v1355 = vpop.permute.xlu0 %1354
  %1356 = vrot.lane.b32.xlu0 %v985, 32
  %v1357 = vpop.permute.xlu0 %1356
  %1358 = vrot.lane.b32.xlu0 %v1064, 32
  %v1359 = vpop.permute.xlu0 %1358
  %1360 = vrot.lane.b32.xlu0 %v1143, 32
  %v1361 = vpop.permute.xlu0 %1360
  %1362 = vrot.lane.b32.xlu0 %v988, 32
  %v1363 = vpop.permute.xlu0 %1362
  %1364 = vrot.lane.b32.xlu0 %v1067, 32
  %v1365 = vpop.permute.xlu0 %1364
  %1366 = vrot.lane.b32.xlu0 %v1146, 32
  %v1367 = vpop.permute.xlu0 %1366
  %1368 = vrot.lane.b32.xlu0 %v990, 32
  %v1369 = vpop.permute.xlu0 %1368
  %1370 = vrot.lane.b32.xlu0 %v1069, 32
  %v1371 = vpop.permute.xlu0 %1370
  %1372 = vrot.lane.b32.xlu0 %v1148, 32
  %v1373 = vpop.permute.xlu0 %1372
  %1374 = vrot.lane.b32.xlu0 %v993, 32
  %v1375 = vpop.permute.xlu0 %1374
  %1376 = vrot.lane.b32.xlu0 %v1072, 32
  %v1377 = vpop.permute.xlu0 %1376
  %1378 = vrot.lane.b32.xlu0 %v1151, 32
  %v1379 = vpop.permute.xlu0 %1378
  %1380 = vrot.lane.b32.xlu0 %v995, 32
  %v1381 = vpop.permute.xlu0 %1380
  %1382 = vrot.lane.b32.xlu0 %v1074, 32
  %v1383 = vpop.permute.xlu0 %1382
  %1384 = vrot.lane.b32.xlu0 %v1153, 32
  %v1385 = vpop.permute.xlu0 %1384
  %1386 = vrot.lane.b32.xlu0 %v998, 32
  %v1387 = vpop.permute.xlu0 %1386
  %1388 = vrot.lane.b32.xlu0 %v1077, 32
  %v1389 = vpop.permute.xlu0 %1388
  %1390 = vrot.lane.b32.xlu0 %v1156, 32
  %v1391 = vpop.permute.xlu0 %1390
  %1392 = vrot.lane.b32.xlu0 %v1000, 32
  %v1393 = vpop.permute.xlu0 %1392
  %1394 = vrot.lane.b32.xlu0 %v1079, 32
  %v1395 = vpop.permute.xlu0 %1394
  %1396 = vrot.lane.b32.xlu0 %v1158, 32
  %v1397 = vpop.permute.xlu0 %1396
  %1398 = vrot.lane.b32.xlu0 %v1003, 32
  %v1399 = vpop.permute.xlu0 %1398
  %1400 = vrot.lane.b32.xlu0 %v1082, 32
  %v1401 = vpop.permute.xlu0 %1400
  %1402 = vrot.lane.b32.xlu0 %v1161, 32
  %v1403 = vpop.permute.xlu0 %1402
  %1404 = vrot.lane.b32.xlu0 %v1005, 32
  %v1405 = vpop.permute.xlu0 %1404
  %1406 = vrot.lane.b32.xlu0 %v1084, 32
  %v1407 = vpop.permute.xlu0 %1406
  %1408 = vrot.lane.b32.xlu0 %v1163, 32
  %v1409 = vpop.permute.xlu0 %1408
  %1410 = vrot.lane.b32.xlu0 %v1008, 32
  %v1411 = vpop.permute.xlu0 %1410
  %1412 = vrot.lane.b32.xlu0 %v1087, 32
  %v1413 = vpop.permute.xlu0 %1412
  %1414 = vrot.lane.b32.xlu0 %v1166, 32
  %v1415 = vpop.permute.xlu0 %1414
  %1416 = vrot.lane.b32.xlu0 %v1010, 32
  %v1417 = vpop.permute.xlu0 %1416
  %1418 = vrot.lane.b32.xlu0 %v1089, 32
  %v1419 = vpop.permute.xlu0 %1418
  %1420 = vrot.lane.b32.xlu0 %v1168, 32
  %v1421 = vpop.permute.xlu0 %1420
  %vm1422 = vcmask 261120
  %v1423 = vsel %vm1422, %v1255, %v1257
  %v1424 = vsel %vm1422, %v1257, %v1259
  %v1425 = vsel %vm1422, %v1261, %v1263
  %v1426 = vsel %vm1422, %v1263, %v1265
  %v1427 = vsel %vm1422, %v1267, %v1269
  %v1428 = vsel %vm1422, %v1269, %v1271
  %v1429 = vsel %vm1422, %v1273, %v1275
  %v1430 = vsel %vm1422, %v1275, %v1277
  %v1431 = vsel %vm1422, %v1279, %v1281
  %v1432 = vsel %vm1422, %v1281, %v1283
  %v1433 = vsel %vm1422, %v1285, %v1287
  %v1434 = vsel %vm1422, %v1287, %v1289
  %v1435 = vsel %vm1422, %v1291, %v1293
  %v1436 = vsel %vm1422, %v1293, %v1295
  %v1437 = vsel %vm1422, %v1297, %v1299
  %v1438 = vsel %vm1422, %v1299, %v1301
  %v1439 = vsel %vm1422, %v1303, %v1305
  %v1440 = vsel %vm1422, %v1305, %v1307
  %v1441 = vsel %vm1422, %v1309, %v1311
  %v1442 = vsel %vm1422, %v1311, %v1313
  %v1443 = vsel %vm1422, %v1315, %v1317
  %v1444 = vsel %vm1422, %v1317, %v1319
  %v1445 = vsel %vm1422, %v1321, %v1323
  %v1446 = vsel %vm1422, %v1323, %v1325
  %v1447 = vsel %vm1422, %v1327, %v1329
  %v1448 = vsel %vm1422, %v1329, %v1331
  %v1449 = vsel %vm1422, %v1333, %v1335
  %v1450 = vsel %vm1422, %v1335, %v1337
  %v1451 = vsel %vm1422, %v1339, %v1341
  %v1452 = vsel %vm1422, %v1341, %v1343
  %v1453 = vsel %vm1422, %v1345, %v1347
  %v1454 = vsel %vm1422, %v1347, %v1349
  %v1455 = vsel %vm1422, %v1351, %v1353
  %v1456 = vsel %vm1422, %v1353, %v1355
  %v1457 = vsel %vm1422, %v1357, %v1359
  %v1458 = vsel %vm1422, %v1359, %v1361
  %v1459 = vsel %vm1422, %v1363, %v1365
  %v1460 = vsel %vm1422, %v1365, %v1367
  %v1461 = vsel %vm1422, %v1369, %v1371
  %v1462 = vsel %vm1422, %v1371, %v1373
  %v1463 = vsel %vm1422, %v1375, %v1377
  %v1464 = vsel %vm1422, %v1377, %v1379
  %v1465 = vsel %vm1422, %v1381, %v1383
  %v1466 = vsel %vm1422, %v1383, %v1385
  %v1467 = vsel %vm1422, %v1387, %v1389
  %v1468 = vsel %vm1422, %v1389, %v1391
  %v1469 = vsel %vm1422, %v1393, %v1395
  %v1470 = vsel %vm1422, %v1395, %v1397
  %v1471 = vsel %vm1422, %v1399, %v1401
  %v1472 = vsel %vm1422, %v1401, %v1403
  %v1473 = vsel %vm1422, %v1405, %v1407
  %v1474 = vsel %vm1422, %v1407, %v1409
  %v1475 = vsel %vm1422, %v1411, %v1413
  %v1476 = vsel %vm1422, %v1413, %v1415
  %v1477 = vsel %vm1422, %v1417, %v1419
  %v1478 = vsel %vm1422, %v1419, %v1421
  %v1535 = vmax.f32 %v864, %v1423
  %v1536 = vmax.f32 %v943, %v1424
  %v1537 = vmax.f32 %v866, %v1425
  %v1538 = vmax.f32 %v945, %v1426
  %v1539 = vmax.f32 %v869, %v1427
  %v1540 = vmax.f32 %v948, %v1428
  %v1541 = vmax.f32 %v871, %v1429
  %v1542 = vmax.f32 %v950, %v1430
  %v1543 = vmax.f32 %v874, %v1431
  %v1544 = vmax.f32 %v953, %v1432
  %v1545 = vmax.f32 %v876, %v1433
  %v1546 = vmax.f32 %v955, %v1434
  %v1547 = vmax.f32 %v879, %v1435
  %v1548 = vmax.f32 %v958, %v1436
  %v1549 = vmax.f32 %v881, %v1437
  %v1550 = vmax.f32 %v960, %v1438
  %v1551 = vmax.f32 %v884, %v1439
  %v1552 = vmax.f32 %v963, %v1440
  %v1553 = vmax.f32 %v886, %v1441
  %v1554 = vmax.f32 %v965, %v1442
  %v1555 = vmax.f32 %v889, %v1443
  %v1556 = vmax.f32 %v968, %v1444
  %v1557 = vmax.f32 %v891, %v1445
  %v1558 = vmax.f32 %v970, %v1446
  %v1559 = vmax.f32 %v894, %v1447
  %v1560 = vmax.f32 %v973, %v1448
  %v1561 = vmax.f32 %v896, %v1449
  %v1562 = vmax.f32 %v975, %v1450
  %v1563 = vmax.f32 %v899, %v1451
  %v1564 = vmax.f32 %v978, %v1452
  %v1565 = vmax.f32 %v901, %v1453
  %v1566 = vmax.f32 %v980, %v1454
  %v1567 = vmax.f32 %v904, %v1455
  %v1568 = vmax.f32 %v983, %v1456
  %v1569 = vmax.f32 %v906, %v1457
  %v1570 = vmax.f32 %v985, %v1458
  %v1571 = vmax.f32 %v909, %v1459
  %v1572 = vmax.f32 %v988, %v1460
  %v1573 = vmax.f32 %v911, %v1461
  %v1574 = vmax.f32 %v990, %v1462
  %v1575 = vmax.f32 %v914, %v1463
  %v1576 = vmax.f32 %v993, %v1464
  %v1577 = vmax.f32 %v916, %v1465
  %v1578 = vmax.f32 %v995, %v1466
  %v1579 = vmax.f32 %v919, %v1467
  %v1580 = vmax.f32 %v998, %v1468
  %v1581 = vmax.f32 %v921, %v1469
  %v1582 = vmax.f32 %v1000, %v1470
  %v1583 = vmax.f32 %v924, %v1471
  %v1584 = vmax.f32 %v1003, %v1472
  %v1585 = vmax.f32 %v926, %v1473
  %v1586 = vmax.f32 %v1005, %v1474
  %v1587 = vmax.f32 %v929, %v1475
  %v1588 = vmax.f32 %v1008, %v1476
  %v1589 = vmax.f32 %v931, %v1477
  %v1590 = vmax.f32 %v1010, %v1478
  %v1647 = vrot.slane %v1536, 6
  %v1648 = vrot.slane %v1538, 6
  %v1649 = vrot.slane %v1540, 6
  %v1650 = vrot.slane %v1542, 6
  %v1651 = vrot.slane %v1544, 6
  %v1652 = vrot.slane %v1546, 6
  %v1653 = vrot.slane %v1548, 6
  %v1654 = vrot.slane %v1550, 6
  %v1655 = vrot.slane %v1552, 6
  %v1656 = vrot.slane %v1554, 6
  %v1657 = vrot.slane %v1556, 6
  %v1658 = vrot.slane %v1558, 6
  %v1659 = vrot.slane %v1560, 6
  %v1660 = vrot.slane %v1562, 6
  %v1661 = vrot.slane %v1564, 6
  %v1662 = vrot.slane %v1566, 6
  %v1663 = vrot.slane %v1568, 6
  %v1664 = vrot.slane %v1570, 6
  %v1665 = vrot.slane %v1572, 6
  %v1666 = vrot.slane %v1574, 6
  %v1667 = vrot.slane %v1576, 6
  %v1668 = vrot.slane %v1578, 6
  %v1669 = vrot.slane %v1580, 6
  %v1670 = vrot.slane %v1582, 6
  %v1671 = vrot.slane %v1584, 6
  %v1672 = vrot.slane %v1586, 6
  %v1673 = vrot.slane %v1588, 6
  %v1674 = vrot.slane %v1590, 6
  %vm1675 = vcmask 1041408
  %v1676 = vsel %vm1675, %v1535, %v1647
  %vm1677 = vcmask 1043458
  %v1678 = vsel %vm1677, %v1535, %v1647
  %v1679 = vrot.slane %v1678, 2
  %vm1680 = vcmask 1045508
  %v1681 = vsel %vm1680, %v1535, %v1647
  %v1682 = vrot.slane %v1681, 4
  %v1683 = vsel %vm250, %v1647, %v1535
  %v1684 = vrot.slane %v1683, 6
  %v1685 = vsel %vm1675, %v1537, %v1648
  %v1686 = vsel %vm1677, %v1537, %v1648
  %v1687 = vrot.slane %v1686, 2
  %v1688 = vsel %vm1680, %v1537, %v1648
  %v1689 = vrot.slane %v1688, 4
  %v1690 = vsel %vm250, %v1648, %v1537
  %v1691 = vrot.slane %v1690, 6
  %v1692 = vsel %vm1675, %v1539, %v1649
  %v1693 = vsel %vm1677, %v1539, %v1649
  %v1694 = vrot.slane %v1693, 2
  %v1695 = vsel %vm1680, %v1539, %v1649
  %v1696 = vrot.slane %v1695, 4
  %v1697 = vsel %vm250, %v1649, %v1539
  %v1698 = vrot.slane %v1697, 6
  %v1699 = vsel %vm1675, %v1541, %v1650
  %v1700 = vsel %vm1677, %v1541, %v1650
  %v1701 = vrot.slane %v1700, 2
  %v1702 = vsel %vm1680, %v1541, %v1650
  %v1703 = vrot.slane %v1702, 4
  %v1704 = vsel %vm250, %v1650, %v1541
  %v1705 = vrot.slane %v1704, 6
  %v1706 = vsel %vm1675, %v1543, %v1651
  %v1707 = vsel %vm1677, %v1543, %v1651
  %v1708 = vrot.slane %v1707, 2
  %v1709 = vsel %vm1680, %v1543, %v1651
  %v1710 = vrot.slane %v1709, 4
  %v1711 = vsel %vm250, %v1651, %v1543
  %v1712 = vrot.slane %v1711, 6
  %v1713 = vsel %vm1675, %v1545, %v1652
  %v1714 = vsel %vm1677, %v1545, %v1652
  %v1715 = vrot.slane %v1714, 2
  %v1716 = vsel %vm1680, %v1545, %v1652
  %v1717 = vrot.slane %v1716, 4
  %v1718 = vsel %vm250, %v1652, %v1545
  %v1719 = vrot.slane %v1718, 6
  %v1720 = vsel %vm1675, %v1547, %v1653
  %v1721 = vsel %vm1677, %v1547, %v1653
  %v1722 = vrot.slane %v1721, 2
  %v1723 = vsel %vm1680, %v1547, %v1653
  %v1724 = vrot.slane %v1723, 4
  %v1725 = vsel %vm250, %v1653, %v1547
  %v1726 = vrot.slane %v1725, 6
  %v1727 = vsel %vm1675, %v1549, %v1654
  %v1728 = vsel %vm1677, %v1549, %v1654
  %v1729 = vrot.slane %v1728, 2
  %v1730 = vsel %vm1680, %v1549, %v1654
  %v1731 = vrot.slane %v1730, 4
  %v1732 = vsel %vm250, %v1654, %v1549
  %v1733 = vrot.slane %v1732, 6
  %v1734 = vsel %vm1675, %v1551, %v1655
  %v1735 = vsel %vm1677, %v1551, %v1655
  %v1736 = vrot.slane %v1735, 2
  %v1737 = vsel %vm1680, %v1551, %v1655
  %v1738 = vrot.slane %v1737, 4
  %v1739 = vsel %vm250, %v1655, %v1551
  %v1740 = vrot.slane %v1739, 6
  %v1741 = vsel %vm1675, %v1553, %v1656
  %v1742 = vsel %vm1677, %v1553, %v1656
  %v1743 = vrot.slane %v1742, 2
  %v1744 = vsel %vm1680, %v1553, %v1656
  %v1745 = vrot.slane %v1744, 4
  %v1746 = vsel %vm250, %v1656, %v1553
  %v1747 = vrot.slane %v1746, 6
  %v1748 = vsel %vm1675, %v1555, %v1657
  %v1749 = vsel %vm1677, %v1555, %v1657
  %v1750 = vrot.slane %v1749, 2
  %v1751 = vsel %vm1680, %v1555, %v1657
  %v1752 = vrot.slane %v1751, 4
  %v1753 = vsel %vm250, %v1657, %v1555
  %v1754 = vrot.slane %v1753, 6
  %v1755 = vsel %vm1675, %v1557, %v1658
  %v1756 = vsel %vm1677, %v1557, %v1658
  %v1757 = vrot.slane %v1756, 2
  %v1758 = vsel %vm1680, %v1557, %v1658
  %v1759 = vrot.slane %v1758, 4
  %v1760 = vsel %vm250, %v1658, %v1557
  %v1761 = vrot.slane %v1760, 6
  %v1762 = vsel %vm1675, %v1559, %v1659
  %v1763 = vsel %vm1677, %v1559, %v1659
  %v1764 = vrot.slane %v1763, 2
  %v1765 = vsel %vm1680, %v1559, %v1659
  %v1766 = vrot.slane %v1765, 4
  %v1767 = vsel %vm250, %v1659, %v1559
  %v1768 = vrot.slane %v1767, 6
  %v1769 = vsel %vm1675, %v1561, %v1660
  %v1770 = vsel %vm1677, %v1561, %v1660
  %v1771 = vrot.slane %v1770, 2
  %v1772 = vsel %vm1680, %v1561, %v1660
  %v1773 = vrot.slane %v1772, 4
  %v1774 = vsel %vm250, %v1660, %v1561
  %v1775 = vrot.slane %v1774, 6
  %v1776 = vsel %vm1675, %v1563, %v1661
  %v1777 = vsel %vm1677, %v1563, %v1661
  %v1778 = vrot.slane %v1777, 2
  %v1779 = vsel %vm1680, %v1563, %v1661
  %v1780 = vrot.slane %v1779, 4
  %v1781 = vsel %vm250, %v1661, %v1563
  %v1782 = vrot.slane %v1781, 6
  %v1783 = vsel %vm1675, %v1565, %v1662
  %v1784 = vsel %vm1677, %v1565, %v1662
  %v1785 = vrot.slane %v1784, 2
  %v1786 = vsel %vm1680, %v1565, %v1662
  %v1787 = vrot.slane %v1786, 4
  %v1788 = vsel %vm250, %v1662, %v1565
  %v1789 = vrot.slane %v1788, 6
  %v1790 = vsel %vm1675, %v1567, %v1663
  %v1791 = vsel %vm1677, %v1567, %v1663
  %v1792 = vrot.slane %v1791, 2
  %v1793 = vsel %vm1680, %v1567, %v1663
  %v1794 = vrot.slane %v1793, 4
  %v1795 = vsel %vm250, %v1663, %v1567
  %v1796 = vrot.slane %v1795, 6
  %v1797 = vsel %vm1675, %v1569, %v1664
  %v1798 = vsel %vm1677, %v1569, %v1664
  %v1799 = vrot.slane %v1798, 2
  %v1800 = vsel %vm1680, %v1569, %v1664
  %v1801 = vrot.slane %v1800, 4
  %v1802 = vsel %vm250, %v1664, %v1569
  %v1803 = vrot.slane %v1802, 6
  %v1804 = vsel %vm1675, %v1571, %v1665
  %v1805 = vsel %vm1677, %v1571, %v1665
  %v1806 = vrot.slane %v1805, 2
  %v1807 = vsel %vm1680, %v1571, %v1665
  %v1808 = vrot.slane %v1807, 4
  %v1809 = vsel %vm250, %v1665, %v1571
  %v1810 = vrot.slane %v1809, 6
  %v1811 = vsel %vm1675, %v1573, %v1666
  %v1812 = vsel %vm1677, %v1573, %v1666
  %v1813 = vrot.slane %v1812, 2
  %v1814 = vsel %vm1680, %v1573, %v1666
  %v1815 = vrot.slane %v1814, 4
  %v1816 = vsel %vm250, %v1666, %v1573
  %v1817 = vrot.slane %v1816, 6
  %v1818 = vsel %vm1675, %v1575, %v1667
  %v1819 = vsel %vm1677, %v1575, %v1667
  %v1820 = vrot.slane %v1819, 2
  %v1821 = vsel %vm1680, %v1575, %v1667
  %v1822 = vrot.slane %v1821, 4
  %v1823 = vsel %vm250, %v1667, %v1575
  %v1824 = vrot.slane %v1823, 6
  %v1825 = vsel %vm1675, %v1577, %v1668
  %v1826 = vsel %vm1677, %v1577, %v1668
  %v1827 = vrot.slane %v1826, 2
  %v1828 = vsel %vm1680, %v1577, %v1668
  %v1829 = vrot.slane %v1828, 4
  %v1830 = vsel %vm250, %v1668, %v1577
  %v1831 = vrot.slane %v1830, 6
  %v1832 = vsel %vm1675, %v1579, %v1669
  %v1833 = vsel %vm1677, %v1579, %v1669
  %v1834 = vrot.slane %v1833, 2
  %v1835 = vsel %vm1680, %v1579, %v1669
  %v1836 = vrot.slane %v1835, 4
  %v1837 = vsel %vm250, %v1669, %v1579
  %v1838 = vrot.slane %v1837, 6
  %v1839 = vsel %vm1675, %v1581, %v1670
  %v1840 = vsel %vm1677, %v1581, %v1670
  %v1841 = vrot.slane %v1840, 2
  %v1842 = vsel %vm1680, %v1581, %v1670
  %v1843 = vrot.slane %v1842, 4
  %v1844 = vsel %vm250, %v1670, %v1581
  %v1845 = vrot.slane %v1844, 6
  %v1846 = vsel %vm1675, %v1583, %v1671
  %v1847 = vsel %vm1677, %v1583, %v1671
  %v1848 = vrot.slane %v1847, 2
  %v1849 = vsel %vm1680, %v1583, %v1671
  %v1850 = vrot.slane %v1849, 4
  %v1851 = vsel %vm250, %v1671, %v1583
  %v1852 = vrot.slane %v1851, 6
  %v1853 = vsel %vm1675, %v1585, %v1672
  %v1854 = vsel %vm1677, %v1585, %v1672
  %v1855 = vrot.slane %v1854, 2
  %v1856 = vsel %vm1680, %v1585, %v1672
  %v1857 = vrot.slane %v1856, 4
  %v1858 = vsel %vm250, %v1672, %v1585
  %v1859 = vrot.slane %v1858, 6
  %v1860 = vsel %vm1675, %v1587, %v1673
  %v1861 = vsel %vm1677, %v1587, %v1673
  %v1862 = vrot.slane %v1861, 2
  %v1863 = vsel %vm1680, %v1587, %v1673
  %v1864 = vrot.slane %v1863, 4
  %v1865 = vsel %vm250, %v1673, %v1587
  %v1866 = vrot.slane %v1865, 6
  %v1867 = vsel %vm1675, %v1589, %v1674
  %v1868 = vsel %vm1677, %v1589, %v1674
  %v1869 = vrot.slane %v1868, 2
  %v1870 = vsel %vm1680, %v1589, %v1674
  %v1871 = vrot.slane %v1870, 4
  %v1872 = vsel %vm250, %v1674, %v1589
  %v1873 = vrot.slane %v1872, 6
  %v1986 = vrot.slane %v1676, 7
  %v1987 = vrot.slane %v1986, 2
  %v1988 = vrot.slane %v1679, 7
  %v1989 = vrot.slane %v1988, 2
  %v1990 = vrot.slane %v1682, 7
  %v1991 = vrot.slane %v1990, 2
  %v1992 = vrot.slane %v1684, 7
  %v1993 = vrot.slane %v1992, 2
  %v1994 = vrot.slane %v1685, 7
  %v1995 = vrot.slane %v1994, 2
  %v1996 = vrot.slane %v1687, 7
  %v1997 = vrot.slane %v1996, 2
  %v1998 = vrot.slane %v1689, 7
  %v1999 = vrot.slane %v1998, 2
  %v2000 = vrot.slane %v1691, 7
  %v2001 = vrot.slane %v2000, 2
  %v2002 = vrot.slane %v1692, 7
  %v2003 = vrot.slane %v2002, 2
  %v2004 = vrot.slane %v1694, 7
  %v2005 = vrot.slane %v2004, 2
  %v2006 = vrot.slane %v1696, 7
  %v2007 = vrot.slane %v2006, 2
  %v2008 = vrot.slane %v1698, 7
  %v2009 = vrot.slane %v2008, 2
  %v2010 = vrot.slane %v1699, 7
  %v2011 = vrot.slane %v2010, 2
  %v2012 = vrot.slane %v1701, 7
  %v2013 = vrot.slane %v2012, 2
  %v2014 = vrot.slane %v1703, 7
  %v2015 = vrot.slane %v2014, 2
  %v2016 = vrot.slane %v1705, 7
  %v2017 = vrot.slane %v2016, 2
  %v2018 = vrot.slane %v1706, 7
  %v2019 = vrot.slane %v2018, 2
  %v2020 = vrot.slane %v1708, 7
  %v2021 = vrot.slane %v2020, 2
  %v2022 = vrot.slane %v1710, 7
  %v2023 = vrot.slane %v2022, 2
  %v2024 = vrot.slane %v1712, 7
  %v2025 = vrot.slane %v2024, 2
  %v2026 = vrot.slane %v1713, 7
  %v2027 = vrot.slane %v2026, 2
  %v2028 = vrot.slane %v1715, 7
  %v2029 = vrot.slane %v2028, 2
  %v2030 = vrot.slane %v1717, 7
  %v2031 = vrot.slane %v2030, 2
  %v2032 = vrot.slane %v1719, 7
  %v2033 = vrot.slane %v2032, 2
  %v2034 = vrot.slane %v1720, 7
  %v2035 = vrot.slane %v2034, 2
  %v2036 = vrot.slane %v1722, 7
  %v2037 = vrot.slane %v2036, 2
  %v2038 = vrot.slane %v1724, 7
  %v2039 = vrot.slane %v2038, 2
  %v2040 = vrot.slane %v1726, 7
  %v2041 = vrot.slane %v2040, 2
  %v2042 = vrot.slane %v1727, 7
  %v2043 = vrot.slane %v2042, 2
  %v2044 = vrot.slane %v1729, 7
  %v2045 = vrot.slane %v2044, 2
  %v2046 = vrot.slane %v1731, 7
  %v2047 = vrot.slane %v2046, 2
  %v2048 = vrot.slane %v1733, 7
  %v2049 = vrot.slane %v2048, 2
  %v2050 = vrot.slane %v1734, 7
  %v2051 = vrot.slane %v2050, 2
  %v2052 = vrot.slane %v1736, 7
  %v2053 = vrot.slane %v2052, 2
  %v2054 = vrot.slane %v1738, 7
  %v2055 = vrot.slane %v2054, 2
  %v2056 = vrot.slane %v1740, 7
  %v2057 = vrot.slane %v2056, 2
  %v2058 = vrot.slane %v1741, 7
  %v2059 = vrot.slane %v2058, 2
  %v2060 = vrot.slane %v1743, 7
  %v2061 = vrot.slane %v2060, 2
  %v2062 = vrot.slane %v1745, 7
  %v2063 = vrot.slane %v2062, 2
  %v2064 = vrot.slane %v1747, 7
  %v2065 = vrot.slane %v2064, 2
  %v2066 = vrot.slane %v1748, 7
  %v2067 = vrot.slane %v2066, 2
  %v2068 = vrot.slane %v1750, 7
  %v2069 = vrot.slane %v2068, 2
  %v2070 = vrot.slane %v1752, 7
  %v2071 = vrot.slane %v2070, 2
  %v2072 = vrot.slane %v1754, 7
  %v2073 = vrot.slane %v2072, 2
  %v2074 = vrot.slane %v1755, 7
  %v2075 = vrot.slane %v2074, 2
  %v2076 = vrot.slane %v1757, 7
  %v2077 = vrot.slane %v2076, 2
  %v2078 = vrot.slane %v1759, 7
  %v2079 = vrot.slane %v2078, 2
  %v2080 = vrot.slane %v1761, 7
  %v2081 = vrot.slane %v2080, 2
  %v2082 = vrot.slane %v1762, 7
  %v2083 = vrot.slane %v2082, 2
  %v2084 = vrot.slane %v1764, 7
  %v2085 = vrot.slane %v2084, 2
  %v2086 = vrot.slane %v1766, 7
  %v2087 = vrot.slane %v2086, 2
  %v2088 = vrot.slane %v1768, 7
  %v2089 = vrot.slane %v2088, 2
  %v2090 = vrot.slane %v1769, 7
  %v2091 = vrot.slane %v2090, 2
  %v2092 = vrot.slane %v1771, 7
  %v2093 = vrot.slane %v2092, 2
  %v2094 = vrot.slane %v1773, 7
  %v2095 = vrot.slane %v2094, 2
  %v2096 = vrot.slane %v1775, 7
  %v2097 = vrot.slane %v2096, 2
  %v2098 = vrot.slane %v1776, 7
  %v2099 = vrot.slane %v2098, 2
  %v2100 = vrot.slane %v1778, 7
  %v2101 = vrot.slane %v2100, 2
  %v2102 = vrot.slane %v1780, 7
  %v2103 = vrot.slane %v2102, 2
  %v2104 = vrot.slane %v1782, 7
  %v2105 = vrot.slane %v2104, 2
  %v2106 = vrot.slane %v1783, 7
  %v2107 = vrot.slane %v2106, 2
  %v2108 = vrot.slane %v1785, 7
  %v2109 = vrot.slane %v2108, 2
  %v2110 = vrot.slane %v1787, 7
  %v2111 = vrot.slane %v2110, 2
  %v2112 = vrot.slane %v1789, 7
  %v2113 = vrot.slane %v2112, 2
  %v2114 = vrot.slane %v1790, 7
  %v2115 = vrot.slane %v2114, 2
  %v2116 = vrot.slane %v1792, 7
  %v2117 = vrot.slane %v2116, 2
  %v2118 = vrot.slane %v1794, 7
  %v2119 = vrot.slane %v2118, 2
  %v2120 = vrot.slane %v1796, 7
  %v2121 = vrot.slane %v2120, 2
  %v2122 = vrot.slane %v1797, 7
  %v2123 = vrot.slane %v2122, 2
  %v2124 = vrot.slane %v1799, 7
  %v2125 = vrot.slane %v2124, 2
  %v2126 = vrot.slane %v1801, 7
  %v2127 = vrot.slane %v2126, 2
  %v2128 = vrot.slane %v1803, 7
  %v2129 = vrot.slane %v2128, 2
  %v2130 = vrot.slane %v1804, 7
  %v2131 = vrot.slane %v2130, 2
  %v2132 = vrot.slane %v1806, 7
  %v2133 = vrot.slane %v2132, 2
  %v2134 = vrot.slane %v1808, 7
  %v2135 = vrot.slane %v2134, 2
  %v2136 = vrot.slane %v1810, 7
  %v2137 = vrot.slane %v2136, 2
  %v2138 = vrot.slane %v1811, 7
  %v2139 = vrot.slane %v2138, 2
  %v2140 = vrot.slane %v1813, 7
  %v2141 = vrot.slane %v2140, 2
  %v2142 = vrot.slane %v1815, 7
  %v2143 = vrot.slane %v2142, 2
  %v2144 = vrot.slane %v1817, 7
  %v2145 = vrot.slane %v2144, 2
  %v2146 = vrot.slane %v1818, 7
  %v2147 = vrot.slane %v2146, 2
  %v2148 = vrot.slane %v1820, 7
  %v2149 = vrot.slane %v2148, 2
  %v2150 = vrot.slane %v1822, 7
  %v2151 = vrot.slane %v2150, 2
  %v2152 = vrot.slane %v1824, 7
  %v2153 = vrot.slane %v2152, 2
  %v2154 = vrot.slane %v1825, 7
  %v2155 = vrot.slane %v2154, 2
  %v2156 = vrot.slane %v1827, 7
  %v2157 = vrot.slane %v2156, 2
  %v2158 = vrot.slane %v1829, 7
  %v2159 = vrot.slane %v2158, 2
  %v2160 = vrot.slane %v1831, 7
  %v2161 = vrot.slane %v2160, 2
  %v2162 = vrot.slane %v1832, 7
  %v2163 = vrot.slane %v2162, 2
  %v2164 = vrot.slane %v1834, 7
  %v2165 = vrot.slane %v2164, 2
  %v2166 = vrot.slane %v1836, 7
  %v2167 = vrot.slane %v2166, 2
  %v2168 = vrot.slane %v1838, 7
  %v2169 = vrot.slane %v2168, 2
  %v2170 = vrot.slane %v1839, 7
  %v2171 = vrot.slane %v2170, 2
  %v2172 = vrot.slane %v1841, 7
  %v2173 = vrot.slane %v2172, 2
  %v2174 = vrot.slane %v1843, 7
  %v2175 = vrot.slane %v2174, 2
  %v2176 = vrot.slane %v1845, 7
  %v2177 = vrot.slane %v2176, 2
  %v2178 = vrot.slane %v1846, 7
  %v2179 = vrot.slane %v2178, 2
  %v2180 = vrot.slane %v1848, 7
  %v2181 = vrot.slane %v2180, 2
  %v2182 = vrot.slane %v1850, 7
  %v2183 = vrot.slane %v2182, 2
  %v2184 = vrot.slane %v1852, 7
  %v2185 = vrot.slane %v2184, 2
  %v2186 = vrot.slane %v1853, 7
  %v2187 = vrot.slane %v2186, 2
  %v2188 = vrot.slane %v1855, 7
  %v2189 = vrot.slane %v2188, 2
  %v2190 = vrot.slane %v1857, 7
  %v2191 = vrot.slane %v2190, 2
  %v2192 = vrot.slane %v1859, 7
  %v2193 = vrot.slane %v2192, 2
  %v2194 = vrot.slane %v1860, 7
  %v2195 = vrot.slane %v2194, 2
  %v2196 = vrot.slane %v1862, 7
  %v2197 = vrot.slane %v2196, 2
  %v2198 = vrot.slane %v1864, 7
  %v2199 = vrot.slane %v2198, 2
  %v2200 = vrot.slane %v1866, 7
  %v2201 = vrot.slane %v2200, 2
  %v2202 = vrot.slane %v1867, 7
  %v2203 = vrot.slane %v2202, 2
  %v2204 = vrot.slane %v1869, 7
  %v2205 = vrot.slane %v2204, 2
  %v2206 = vrot.slane %v1871, 7
  %v2207 = vrot.slane %v2206, 2
  %v2208 = vrot.slane %v1873, 7
  %v2209 = vrot.slane %v2208, 2
  %v2322 = vmax.f32 %v1676, %v1987
  %v2323 = vmax.f32 %v1679, %v1989
  %v2324 = vmax.f32 %v1682, %v1991
  %v2325 = vmax.f32 %v1684, %v1993
  %v2326 = vmax.f32 %v1685, %v1995
  %v2327 = vmax.f32 %v1687, %v1997
  %v2328 = vmax.f32 %v1689, %v1999
  %v2329 = vmax.f32 %v1691, %v2001
  %v2330 = vmax.f32 %v1692, %v2003
  %v2331 = vmax.f32 %v1694, %v2005
  %v2332 = vmax.f32 %v1696, %v2007
  %v2333 = vmax.f32 %v1698, %v2009
  %v2334 = vmax.f32 %v1699, %v2011
  %v2335 = vmax.f32 %v1701, %v2013
  %v2336 = vmax.f32 %v1703, %v2015
  %v2337 = vmax.f32 %v1705, %v2017
  %v2338 = vmax.f32 %v1706, %v2019
  %v2339 = vmax.f32 %v1708, %v2021
  %v2340 = vmax.f32 %v1710, %v2023
  %v2341 = vmax.f32 %v1712, %v2025
  %v2342 = vmax.f32 %v1713, %v2027
  %v2343 = vmax.f32 %v1715, %v2029
  %v2344 = vmax.f32 %v1717, %v2031
  %v2345 = vmax.f32 %v1719, %v2033
  %v2346 = vmax.f32 %v1720, %v2035
  %v2347 = vmax.f32 %v1722, %v2037
  %v2348 = vmax.f32 %v1724, %v2039
  %v2349 = vmax.f32 %v1726, %v2041
  %v2350 = vmax.f32 %v1727, %v2043
  %v2351 = vmax.f32 %v1729, %v2045
  %v2352 = vmax.f32 %v1731, %v2047
  %v2353 = vmax.f32 %v1733, %v2049
  %v2354 = vmax.f32 %v1734, %v2051
  %v2355 = vmax.f32 %v1736, %v2053
  %v2356 = vmax.f32 %v1738, %v2055
  %v2357 = vmax.f32 %v1740, %v2057
  %v2358 = vmax.f32 %v1741, %v2059
  %v2359 = vmax.f32 %v1743, %v2061
  %v2360 = vmax.f32 %v1745, %v2063
  %v2361 = vmax.f32 %v1747, %v2065
  %v2362 = vmax.f32 %v1748, %v2067
  %v2363 = vmax.f32 %v1750, %v2069
  %v2364 = vmax.f32 %v1752, %v2071
  %v2365 = vmax.f32 %v1754, %v2073
  %v2366 = vmax.f32 %v1755, %v2075
  %v2367 = vmax.f32 %v1757, %v2077
  %v2368 = vmax.f32 %v1759, %v2079
  %v2369 = vmax.f32 %v1761, %v2081
  %v2370 = vmax.f32 %v1762, %v2083
  %v2371 = vmax.f32 %v1764, %v2085
  %v2372 = vmax.f32 %v1766, %v2087
  %v2373 = vmax.f32 %v1768, %v2089
  %v2374 = vmax.f32 %v1769, %v2091
  %v2375 = vmax.f32 %v1771, %v2093
  %v2376 = vmax.f32 %v1773, %v2095
  %v2377 = vmax.f32 %v1775, %v2097
  %v2378 = vmax.f32 %v1776, %v2099
  %v2379 = vmax.f32 %v1778, %v2101
  %v2380 = vmax.f32 %v1780, %v2103
  %v2381 = vmax.f32 %v1782, %v2105
  %v2382 = vmax.f32 %v1783, %v2107
  %v2383 = vmax.f32 %v1785, %v2109
  %v2384 = vmax.f32 %v1787, %v2111
  %v2385 = vmax.f32 %v1789, %v2113
  %v2386 = vmax.f32 %v1790, %v2115
  %v2387 = vmax.f32 %v1792, %v2117
  %v2388 = vmax.f32 %v1794, %v2119
  %v2389 = vmax.f32 %v1796, %v2121
  %v2390 = vmax.f32 %v1797, %v2123
  %v2391 = vmax.f32 %v1799, %v2125
  %v2392 = vmax.f32 %v1801, %v2127
  %v2393 = vmax.f32 %v1803, %v2129
  %v2394 = vmax.f32 %v1804, %v2131
  %v2395 = vmax.f32 %v1806, %v2133
  %v2396 = vmax.f32 %v1808, %v2135
  %v2397 = vmax.f32 %v1810, %v2137
  %v2398 = vmax.f32 %v1811, %v2139
  %v2399 = vmax.f32 %v1813, %v2141
  %v2400 = vmax.f32 %v1815, %v2143
  %v2401 = vmax.f32 %v1817, %v2145
  %v2402 = vmax.f32 %v1818, %v2147
  %v2403 = vmax.f32 %v1820, %v2149
  %v2404 = vmax.f32 %v1822, %v2151
  %v2405 = vmax.f32 %v1824, %v2153
  %v2406 = vmax.f32 %v1825, %v2155
  %v2407 = vmax.f32 %v1827, %v2157
  %v2408 = vmax.f32 %v1829, %v2159
  %v2409 = vmax.f32 %v1831, %v2161
  %v2410 = vmax.f32 %v1832, %v2163
  %v2411 = vmax.f32 %v1834, %v2165
  %v2412 = vmax.f32 %v1836, %v2167
  %v2413 = vmax.f32 %v1838, %v2169
  %v2414 = vmax.f32 %v1839, %v2171
  %v2415 = vmax.f32 %v1841, %v2173
  %v2416 = vmax.f32 %v1843, %v2175
  %v2417 = vmax.f32 %v1845, %v2177
  %v2418 = vmax.f32 %v1846, %v2179
  %v2419 = vmax.f32 %v1848, %v2181
  %v2420 = vmax.f32 %v1850, %v2183
  %v2421 = vmax.f32 %v1852, %v2185
  %v2422 = vmax.f32 %v1853, %v2187
  %v2423 = vmax.f32 %v1855, %v2189
  %v2424 = vmax.f32 %v1857, %v2191
  %v2425 = vmax.f32 %v1859, %v2193
  %v2426 = vmax.f32 %v1860, %v2195
  %v2427 = vmax.f32 %v1862, %v2197
  %v2428 = vmax.f32 %v1864, %v2199
  %v2429 = vmax.f32 %v1866, %v2201
  %v2430 = vmax.f32 %v1867, %v2203
  %v2431 = vmax.f32 %v1869, %v2205
  %v2432 = vmax.f32 %v1871, %v2207
  %v2433 = vmax.f32 %v1873, %v2209
  %v2434 = vld [vmem:[%s2] sm:$0x3]
  %v2436 = vperm.slane %v2434, 0
  %v2437 = vperm.slane %v2434, 1
  %v2438 = vrot.slane %v2437, 6
  %v2439 = vsel %vm1675, %v2436, %v2438
  %v2440 = vsel %vm1677, %v2436, %v2438
  %v2441 = vrot.slane %v2440, 2
  %v2442 = vsel %vm1680, %v2436, %v2438
  %v2443 = vrot.slane %v2442, 4
  %v2444 = vsel %vm250, %v2438, %v2436
  %v2445 = vrot.slane %v2444, 6
  %v2446 = vrot.slane %v2439, 1
  %v2447 = vrot.slane %v2441, 1
  %v2448 = vrot.slane %v2443, 1
  %v2449 = vrot.slane %v2445, 1
  %v2458 = vadd.f32 %v2322, %v2439
  %v2459 = vadd.f32 %v2323, %v2446
  %v2460 = vadd.f32 %v2324, %v2441
  %v2461 = vadd.f32 %v2325, %v2447
  %v2462 = vadd.f32 %v2326, %v2443
  %v2463 = vadd.f32 %v2327, %v2448
  %v2464 = vadd.f32 %v2328, %v2445
  %v2465 = vadd.f32 %v2329, %v2449
  %v2466 = vadd.f32 %v2330, %v2439
  %v2467 = vadd.f32 %v2331, %v2446
  %v2468 = vadd.f32 %v2332, %v2441
  %v2469 = vadd.f32 %v2333, %v2447
  %v2470 = vadd.f32 %v2334, %v2443
  %v2471 = vadd.f32 %v2335, %v2448
  %v2472 = vadd.f32 %v2336, %v2439
  %v2473 = vadd.f32 %v2337, %v2446
  %v2474 = vadd.f32 %v2338, %v2441
  %v2475 = vadd.f32 %v2339, %v2447
  %v2476 = vadd.f32 %v2340, %v2443
  %v2477 = vadd.f32 %v2341, %v2448
  %v2478 = vadd.f32 %v2342, %v2445
  %v2479 = vadd.f32 %v2343, %v2449
  %v2480 = vadd.f32 %v2344, %v2439
  %v2481 = vadd.f32 %v2345, %v2446
  %v2482 = vadd.f32 %v2346, %v2441
  %v2483 = vadd.f32 %v2347, %v2447
  %v2484 = vadd.f32 %v2348, %v2443
  %v2485 = vadd.f32 %v2349, %v2448
  %v2486 = vadd.f32 %v2350, %v2439
  %v2487 = vadd.f32 %v2351, %v2446
  %v2488 = vadd.f32 %v2352, %v2441
  %v2489 = vadd.f32 %v2353, %v2447
  %v2490 = vadd.f32 %v2354, %v2443
  %v2491 = vadd.f32 %v2355, %v2448
  %v2492 = vadd.f32 %v2356, %v2445
  %v2493 = vadd.f32 %v2357, %v2449
  %v2494 = vadd.f32 %v2358, %v2439
  %v2495 = vadd.f32 %v2359, %v2446
  %v2496 = vadd.f32 %v2360, %v2441
  %v2497 = vadd.f32 %v2361, %v2447
  %v2498 = vadd.f32 %v2362, %v2443
  %v2499 = vadd.f32 %v2363, %v2448
  %v2500 = vadd.f32 %v2364, %v2439
  %v2501 = vadd.f32 %v2365, %v2446
  %v2502 = vadd.f32 %v2366, %v2441
  %v2503 = vadd.f32 %v2367, %v2447
  %v2504 = vadd.f32 %v2368, %v2443
  %v2505 = vadd.f32 %v2369, %v2448
  %v2506 = vadd.f32 %v2370, %v2445
  %v2507 = vadd.f32 %v2371, %v2449
  %v2508 = vadd.f32 %v2372, %v2439
  %v2509 = vadd.f32 %v2373, %v2446
  %v2510 = vadd.f32 %v2374, %v2441
  %v2511 = vadd.f32 %v2375, %v2447
  %v2512 = vadd.f32 %v2376, %v2443
  %v2513 = vadd.f32 %v2377, %v2448
  %v2514 = vadd.f32 %v2378, %v2439
  %v2515 = vadd.f32 %v2379, %v2446
  %v2516 = vadd.f32 %v2380, %v2441
  %v2517 = vadd.f32 %v2381, %v2447
  %v2518 = vadd.f32 %v2382, %v2443
  %v2519 = vadd.f32 %v2383, %v2448
  %v2520 = vadd.f32 %v2384, %v2445
  %v2521 = vadd.f32 %v2385, %v2449
  %v2522 = vadd.f32 %v2386, %v2439
  %v2523 = vadd.f32 %v2387, %v2446
  %v2524 = vadd.f32 %v2388, %v2441
  %v2525 = vadd.f32 %v2389, %v2447
  %v2526 = vadd.f32 %v2390, %v2443
  %v2527 = vadd.f32 %v2391, %v2448
  %v2528 = vadd.f32 %v2392, %v2439
  %v2529 = vadd.f32 %v2393, %v2446
  %v2530 = vadd.f32 %v2394, %v2441
  %v2531 = vadd.f32 %v2395, %v2447
  %v2532 = vadd.f32 %v2396, %v2443
  %v2533 = vadd.f32 %v2397, %v2448
  %v2534 = vadd.f32 %v2398, %v2445
  %v2535 = vadd.f32 %v2399, %v2449
  %v2536 = vadd.f32 %v2400, %v2439
  %v2537 = vadd.f32 %v2401, %v2446
  %v2538 = vadd.f32 %v2402, %v2441
  %v2539 = vadd.f32 %v2403, %v2447
  %v2540 = vadd.f32 %v2404, %v2443
  %v2541 = vadd.f32 %v2405, %v2448
  %v2542 = vadd.f32 %v2406, %v2439
  %v2543 = vadd.f32 %v2407, %v2446
  %v2544 = vadd.f32 %v2408, %v2441
  %v2545 = vadd.f32 %v2409, %v2447
  %v2546 = vadd.f32 %v2410, %v2443
  %v2547 = vadd.f32 %v2411, %v2448
  %v2548 = vadd.f32 %v2412, %v2445
  %v2549 = vadd.f32 %v2413, %v2449
  %v2550 = vadd.f32 %v2414, %v2439
  %v2551 = vadd.f32 %v2415, %v2446
  %v2552 = vadd.f32 %v2416, %v2441
  %v2553 = vadd.f32 %v2417, %v2447
  %v2554 = vadd.f32 %v2418, %v2443
  %v2555 = vadd.f32 %v2419, %v2448
  %v2556 = vadd.f32 %v2420, %v2439
  %v2557 = vadd.f32 %v2421, %v2446
  %v2558 = vadd.f32 %v2422, %v2441
  %v2559 = vadd.f32 %v2423, %v2447
  %v2560 = vadd.f32 %v2424, %v2443
  %v2561 = vadd.f32 %v2425, %v2448
  %v2562 = vadd.f32 %v2426, %v2445
  %v2563 = vadd.f32 %v2427, %v2449
  %v2564 = vadd.f32 %v2428, %v2439
  %v2565 = vadd.f32 %v2429, %v2446
  %v2566 = vadd.f32 %v2430, %v2441
  %v2567 = vadd.f32 %v2431, %v2447
  %v2568 = vadd.f32 %v2432, %v2443
  %v2569 = vadd.f32 %v2433, %v2448
  %v2570 = vmax.f32 %v2458, 0.0
  %v2571 = vmax.f32 %v2459, 0.0
  %v2572 = vmax.f32 %v2460, 0.0
  %v2573 = vmax.f32 %v2461, 0.0
  %v2574 = vmax.f32 %v2462, 0.0
  %v2575 = vmax.f32 %v2463, 0.0
  %v2576 = vmax.f32 %v2464, 0.0
  %v2577 = vmax.f32 %v2465, 0.0
  %v2578 = vmax.f32 %v2466, 0.0
  %v2579 = vmax.f32 %v2467, 0.0
  %v2580 = vmax.f32 %v2468, 0.0
  %v2581 = vmax.f32 %v2469, 0.0
  %v2582 = vmax.f32 %v2470, 0.0
  %v2583 = vmax.f32 %v2471, 0.0
  %v2584 = vmax.f32 %v2472, 0.0
  %v2585 = vmax.f32 %v2473, 0.0
  %v2586 = vmax.f32 %v2474, 0.0
  %v2587 = vmax.f32 %v2475, 0.0
  %v2588 = vmax.f32 %v2476, 0.0
  %v2589 = vmax.f32 %v2477, 0.0
  %v2590 = vmax.f32 %v2478, 0.0
  %v2591 = vmax.f32 %v2479, 0.0
  %v2592 = vmax.f32 %v2480, 0.0
  %v2593 = vmax.f32 %v2481, 0.0
  %v2594 = vmax.f32 %v2482, 0.0
  %v2595 = vmax.f32 %v2483, 0.0
  %v2596 = vmax.f32 %v2484, 0.0
  %v2597 = vmax.f32 %v2485, 0.0
  %v2598 = vmax.f32 %v2486, 0.0
  %v2599 = vmax.f32 %v2487, 0.0
  %v2600 = vmax.f32 %v2488, 0.0
  %v2601 = vmax.f32 %v2489, 0.0
  %v2602 = vmax.f32 %v2490, 0.0
  %v2603 = vmax.f32 %v2491, 0.0
  %v2604 = vmax.f32 %v2492, 0.0
  %v2605 = vmax.f32 %v2493, 0.0
  %v2606 = vmax.f32 %v2494, 0.0
  %v2607 = vmax.f32 %v2495, 0.0
  %v2608 = vmax.f32 %v2496, 0.0
  %v2609 = vmax.f32 %v2497, 0.0
  %v2610 = vmax.f32 %v2498, 0.0
  %v2611 = vmax.f32 %v2499, 0.0
  %v2612 = vmax.f32 %v2500, 0.0
  %v2613 = vmax.f32 %v2501, 0.0
  %v2614 = vmax.f32 %v2502, 0.0
  %v2615 = vmax.f32 %v2503, 0.0
  %v2616 = vmax.f32 %v2504, 0.0
  %v2617 = vmax.f32 %v2505, 0.0
  %v2618 = vmax.f32 %v2506, 0.0
  %v2619 = vmax.f32 %v2507, 0.0
  %v2620 = vmax.f32 %v2508, 0.0
  %v2621 = vmax.f32 %v2509, 0.0
  %v2622 = vmax.f32 %v2510, 0.0
  %v2623 = vmax.f32 %v2511, 0.0
  %v2624 = vmax.f32 %v2512, 0.0
  %v2625 = vmax.f32 %v2513, 0.0
  %v2626 = vmax.f32 %v2514, 0.0
  %v2627 = vmax.f32 %v2515, 0.0
  %v2628 = vmax.f32 %v2516, 0.0
  %v2629 = vmax.f32 %v2517, 0.0
  %v2630 = vmax.f32 %v2518, 0.0
  %v2631 = vmax.f32 %v2519, 0.0
  %v2632 = vmax.f32 %v2520, 0.0
  %v2633 = vmax.f32 %v2521, 0.0
  %v2634 = vmax.f32 %v2522, 0.0
  %v2635 = vmax.f32 %v2523, 0.0
  %v2636 = vmax.f32 %v2524, 0.0
  %v2637 = vmax.f32 %v2525, 0.0
  %v2638 = vmax.f32 %v2526, 0.0
  %v2639 = vmax.f32 %v2527, 0.0
  %v2640 = vmax.f32 %v2528, 0.0
  %v2641 = vmax.f32 %v2529, 0.0
  %v2642 = vmax.f32 %v2530, 0.0
  %v2643 = vmax.f32 %v2531, 0.0
  %v2644 = vmax.f32 %v2532, 0.0
  %v2645 = vmax.f32 %v2533, 0.0
  %v2646 = vmax.f32 %v2534, 0.0
  %v2647 = vmax.f32 %v2535, 0.0
  %v2648 = vmax.f32 %v2536, 0.0
  %v2649 = vmax.f32 %v2537, 0.0
  %v2650 = vmax.f32 %v2538, 0.0
  %v2651 = vmax.f32 %v2539, 0.0
  %v2652 = vmax.f32 %v2540, 0.0
  %v2653 = vmax.f32 %v2541, 0.0
  %v2654 = vmax.f32 %v2542, 0.0
  %v2655 = vmax.f32 %v2543, 0.0
  %v2656 = vmax.f32 %v2544, 0.0
  %v2657 = vmax.f32 %v2545, 0.0
  %v2658 = vmax.f32 %v2546, 0.0
  %v2659 = vmax.f32 %v2547, 0.0
  %v2660 = vmax.f32 %v2548, 0.0
  %v2661 = vmax.f32 %v2549, 0.0
  %v2662 = vmax.f32 %v2550, 0.0
  %v2663 = vmax.f32 %v2551, 0.0
  %v2664 = vmax.f32 %v2552, 0.0
  %v2665 = vmax.f32 %v2553, 0.0
  %v2666 = vmax.f32 %v2554, 0.0
  %v2667 = vmax.f32 %v2555, 0.0
  %v2668 = vmax.f32 %v2556, 0.0
  %v2669 = vmax.f32 %v2557, 0.0
  %v2670 = vmax.f32 %v2558, 0.0
  %v2671 = vmax.f32 %v2559, 0.0
  %v2672 = vmax.f32 %v2560, 0.0
  %v2673 = vmax.f32 %v2561, 0.0
  %v2674 = vmax.f32 %v2562, 0.0
  %v2675 = vmax.f32 %v2563, 0.0
  %v2676 = vmax.f32 %v2564, 0.0
  %v2677 = vmax.f32 %v2565, 0.0
  %v2678 = vmax.f32 %v2566, 0.0
  %v2679 = vmax.f32 %v2567, 0.0
  %v2680 = vmax.f32 %v2568, 0.0
  %v2681 = vmax.f32 %v2569, 0.0
  %v2682 = vlaneseq
  %vm2683 = vcmp.ge.s32.totalorder %v2682, 0
  %vm2684 = vcmp.lt.s32.totalorder %v2682, 256
  %vm2685 = vmand %vm2683, %vm2684
  %2686 = vst.msk [vmem:[#allocation2] ss:$8 sm:$0x3] %vm2685, 0.0
  %2687 = vst.msk [vmem:[#allocation2] ss:$8 sm:$0x0] %vm2685, 0.0
  %s2688 = scalar_lea.vmem [#allocation2], 32
  %2689 = vst.msk [vmem:[%s2688] ss:$8 sm:$0x3] %vm2685, 0.0
  %2690 = vst.msk [vmem:[%s2688] ss:$8 sm:$0x0] %vm2685, 0.0
  %s2691 = scalar_lea.vmem [#allocation2], 64
  %2692 = vst.msk [vmem:[%s2691] ss:$8 sm:$0x3] %vm2685, 0.0
  %2693 = vst.msk [vmem:[%s2691] ss:$8 sm:$0x0] %vm2685, 0.0
  %s2694 = scalar_lea.vmem [#allocation2], 96
  %2695 = vst.msk [vmem:[%s2694] ss:$8 sm:$0x3] %vm2685, 0.0
  %2696 = vst.msk [vmem:[%s2694] ss:$8 sm:$0x0] %vm2685, 0.0
  %s2697 = scalar_lea.vmem [#allocation2], 128
  %2698 = vst.msk [vmem:[%s2697] ss:$8 sm:$0x3] %vm2685, 0.0
  %2699 = vst.msk [vmem:[%s2697] ss:$8 sm:$0x0] %vm2685, 0.0
  %s2700 = scalar_lea.vmem [#allocation2], 160
  %2701 = vst.msk [vmem:[%s2700] ss:$8 sm:$0x3] %vm2685, 0.0
  %2702 = vst.msk [vmem:[%s2700] ss:$8 sm:$0x0] %vm2685, 0.0
  %s2703 = scalar_lea.vmem [#allocation2], 192
  %2704 = vst.msk [vmem:[%s2703] ss:$8 sm:$0x3] %vm2685, 0.0
  %2705 = vst.msk [vmem:[%s2703] ss:$8 sm:$0x0] %vm2685, 0.0
  %s2706 = scalar_lea.vmem [#allocation2], 224
  %2707 = vst.msk [vmem:[%s2706] ss:$8 sm:$0x3] %vm2685, 0.0
  %2708 = vst.msk [vmem:[%s2706] ss:$8 sm:$0x0] %vm2685, 0.0
  %s2709 = scalar_lea.vmem [#allocation2], 23
  %2710 = vst.msk [vmem:[%s2709] ss:$8 sm:$0x3] %vm2685, 0.0
  %2711 = vst.msk [vmem:[%s2709] ss:$8 sm:$0x0] %vm2685, 0.0
  %s2712 = scalar_lea.vmem [#allocation2], 55
  %2713 = vst.msk [vmem:[%s2712] ss:$8 sm:$0x3] %vm2685, 0.0
  %2714 = vst.msk [vmem:[%s2712] ss:$8 sm:$0x0] %vm2685, 0.0
  %s2715 = scalar_lea.vmem [#allocation2], 87
  %2716 = vst.msk [vmem:[%s2715] ss:$8 sm:$0x3] %vm2685, 0.0
  %2717 = vst.msk [vmem:[%s2715] ss:$8 sm:$0x0] %vm2685, 0.0
  %s2718 = scalar_lea.vmem [#allocation2], 119
  %2719 = vst.msk [vmem:[%s2718] ss:$8 sm:$0x3] %vm2685, 0.0
  %2720 = vst.msk [vmem:[%s2718] ss:$8 sm:$0x0] %vm2685, 0.0
  %s2721 = scalar_lea.vmem [#allocation2], 151
  %2722 = vst.msk [vmem:[%s2721] ss:$8 sm:$0x3] %vm2685, 0.0
  %2723 = vst.msk [vmem:[%s2721] ss:$8 sm:$0x0] %vm2685, 0.0
  %s2724 = scalar_lea.vmem [#allocation2], 183
  %2725 = vst.msk [vmem:[%s2724] ss:$8 sm:$0x3] %vm2685, 0.0
  %2726 = vst.msk [vmem:[%s2724] ss:$8 sm:$0x0] %vm2685, 0.0
  %s2727 = scalar_lea.vmem [#allocation2], 215
  %2728 = vst.msk [vmem:[%s2727] ss:$8 sm:$0x3] %vm2685, 0.0
  %2729 = vst.msk [vmem:[%s2727] ss:$8 sm:$0x0] %vm2685, 0.0
  %s2730 = scalar_lea.vmem [#allocation2], 247
  %2731 = vst.msk [vmem:[%s2730] ss:$8 sm:$0x3] %vm2685, 0.0
  %2732 = vst.msk [vmem:[%s2730] ss:$8 sm:$0x0] %vm2685, 0.0
  %vm2733 = vcmask 130048
  %2734 = vst.msk [vmem:[#allocation2] sm:$0xff] %vm2733, 0.0
  %2735 = vst.msk [vmem:[#allocation2 + $0x10] sm:$0xff] %vm2733, 0.0
  %2736 = vst.msk [vmem:[#allocation2 + $0x20] sm:$0xff] %vm2733, 0.0
  %2737 = vst.msk [vmem:[#allocation2 + $0x30] sm:$0xff] %vm2733, 0.0
  %2738 = vst.msk [vmem:[#allocation2 + $0x40] sm:$0xff] %vm2733, 0.0
  %2739 = vst.msk [vmem:[#allocation2 + $0x50] sm:$0xff] %vm2733, 0.0
  %2740 = vst.msk [vmem:[#allocation2 + $0x60] sm:$0xff] %vm2733, 0.0
  %2741 = vst.msk [vmem:[#allocation2 + $0x70] sm:$0xff] %vm2733, 0.0
  %2742 = vst.msk [vmem:[#allocation2 + $0x80] sm:$0xff] %vm2733, 0.0
  %2743 = vst.msk [vmem:[#allocation2 + $0x90] sm:$0xff] %vm2733, 0.0
  %2744 = vst.msk [vmem:[#allocation2 + $0xa0] sm:$0xff] %vm2733, 0.0
  %2745 = vst.msk [vmem:[#allocation2 + $0xb0] sm:$0xff] %vm2733, 0.0
  %2746 = vst.msk [vmem:[#allocation2 + $0xc0] sm:$0xff] %vm2733, 0.0
  %2747 = vst.msk [vmem:[#allocation2 + $0xd0] sm:$0xff] %vm2733, 0.0
  %2748 = vst.msk [vmem:[#allocation2 + $0xe0] sm:$0xff] %vm2733, 0.0
  %2749 = vst.msk [vmem:[#allocation2 + $0xf0] sm:$0xff] %vm2733, 0.0
  %vm2750 = vcmask 1048448
  %2751 = vst.msk [vmem:[#allocation2 + $0x8] sm:$0xff] %vm2750, 0.0
  %2752 = vst.msk [vmem:[#allocation2 + $0x18] sm:$0xff] %vm2750, 0.0
  %2753 = vst.msk [vmem:[#allocation2 + $0x28] sm:$0xff] %vm2750, 0.0
  %2754 = vst.msk [vmem:[#allocation2 + $0x38] sm:$0xff] %vm2750, 0.0
  %2755 = vst.msk [vmem:[#allocation2 + $0x48] sm:$0xff] %vm2750, 0.0
  %2756 = vst.msk [vmem:[#allocation2 + $0x58] sm:$0xff] %vm2750, 0.0
  %2757 = vst.msk [vmem:[#allocation2 + $0x68] sm:$0xff] %vm2750, 0.0
  %2758 = vst.msk [vmem:[#allocation2 + $0x78] sm:$0xff] %vm2750, 0.0
  %2759 = vst.msk [vmem:[#allocation2 + $0x88] sm:$0xff] %vm2750, 0.0
  %2760 = vst.msk [vmem:[#allocation2 + $0x98] sm:$0xff] %vm2750, 0.0
  %2761 = vst.msk [vmem:[#allocation2 + $0xa8] sm:$0xff] %vm2750, 0.0
  %2762 = vst.msk [vmem:[#allocation2 + $0xb8] sm:$0xff] %vm2750, 0.0
  %2763 = vst.msk [vmem:[#allocation2 + $0xc8] sm:$0xff] %vm2750, 0.0
  %2764 = vst.msk [vmem:[#allocation2 + $0xd8] sm:$0xff] %vm2750, 0.0
  %2765 = vst.msk [vmem:[#allocation2 + $0xe8] sm:$0xff] %vm2750, 0.0
  %2766 = vst.msk [vmem:[#allocation2 + $0xf8] sm:$0xff] %vm2750, 0.0
  %v2879 = vperm.slane %v2570, 0
  %v2880 = vperm.slane %v2570, 2
  %v2881 = vperm.slane %v2571, 0
  %v2882 = vperm.slane %v2571, 2
  %v2883 = vperm.slane %v2572, 0
  %v2884 = vperm.slane %v2572, 2
  %v2885 = vperm.slane %v2573, 0
  %v2886 = vperm.slane %v2573, 2
  %v2887 = vperm.slane %v2574, 0
  %v2888 = vperm.slane %v2574, 2
  %v2889 = vperm.slane %v2575, 0
  %v2890 = vperm.slane %v2575, 2
  %v2891 = vperm.slane %v2576, 0
  %v2892 = vperm.slane %v2576, 2
  %v2893 = vperm.slane %v2577, 0
  %v2894 = vperm.slane %v2577, 2
  %v2895 = vperm.slane %v2578, 0
  %v2896 = vperm.slane %v2578, 2
  %v2897 = vperm.slane %v2579, 0
  %v2898 = vperm.slane %v2579, 2
  %v2899 = vperm.slane %v2580, 0
  %v2900 = vperm.slane %v2580, 2
  %v2901 = vperm.slane %v2581, 0
  %v2902 = vperm.slane %v2581, 2
  %v2903 = vperm.slane %v2582, 0
  %v2904 = vperm.slane %v2582, 2
  %v2905 = vperm.slane %v2583, 0
  %v2906 = vperm.slane %v2583, 2
  %v2907 = vperm.slane %v2584, 0
  %v2908 = vperm.slane %v2584, 2
  %v2909 = vperm.slane %v2585, 0
  %v2910 = vperm.slane %v2585, 2
  %v2911 = vperm.slane %v2586, 0
  %v2912 = vperm.slane %v2586, 2
  %v2913 = vperm.slane %v2587, 0
  %v2914 = vperm.slane %v2587, 2
  %v2915 = vperm.slane %v2588, 0
  %v2916 = vperm.slane %v2588, 2
  %v2917 = vperm.slane %v2589, 0
  %v2918 = vperm.slane %v2589, 2
  %v2919 = vperm.slane %v2590, 0
  %v2920 = vperm.slane %v2590, 2
  %v2921 = vperm.slane %v2591, 0
  %v2922 = vperm.slane %v2591, 2
  %v2923 = vperm.slane %v2592, 0
  %v2924 = vperm.slane %v2592, 2
  %v2925 = vperm.slane %v2593, 0
  %v2926 = vperm.slane %v2593, 2
  %v2927 = vperm.slane %v2594, 0
  %v2928 = vperm.slane %v2594, 2
  %v2929 = vperm.slane %v2595, 0
  %v2930 = vperm.slane %v2595, 2
  %v2931 = vperm.slane %v2596, 0
  %v2932 = vperm.slane %v2596, 2
  %v2933 = vperm.slane %v2597, 0
  %v2934 = vperm.slane %v2597, 2
  %v2935 = vperm.slane %v2598, 0
  %v2936 = vperm.slane %v2598, 2
  %v2937 = vperm.slane %v2599, 0
  %v2938 = vperm.slane %v2599, 2
  %v2939 = vperm.slane %v2600, 0
  %v2940 = vperm.slane %v2600, 2
  %v2941 = vperm.slane %v2601, 0
  %v2942 = vperm.slane %v2601, 2
  %v2943 = vperm.slane %v2602, 0
  %v2944 = vperm.slane %v2602, 2
  %v2945 = vperm.slane %v2603, 0
  %v2946 = vperm.slane %v2603, 2
  %v2947 = vperm.slane %v2604, 0
  %v2948 = vperm.slane %v2604, 2
  %v2949 = vperm.slane %v2605, 0
  %v2950 = vperm.slane %v2605, 2
  %v2951 = vperm.slane %v2606, 0
  %v2952 = vperm.slane %v2606, 2
  %v2953 = vperm.slane %v2607, 0
  %v2954 = vperm.slane %v2607, 2
  %v2955 = vperm.slane %v2608, 0
  %v2956 = vperm.slane %v2608, 2
  %v2957 = vperm.slane %v2609, 0
  %v2958 = vperm.slane %v2609, 2
  %v2959 = vperm.slane %v2610, 0
  %v2960 = vperm.slane %v2610, 2
  %v2961 = vperm.slane %v2611, 0
  %v2962 = vperm.slane %v2611, 2
  %v2963 = vperm.slane %v2612, 0
  %v2964 = vperm.slane %v2612, 2
  %v2965 = vperm.slane %v2613, 0
  %v2966 = vperm.slane %v2613, 2
  %v2967 = vperm.slane %v2614, 0
  %v2968 = vperm.slane %v2614, 2
  %v2969 = vperm.slane %v2615, 0
  %v2970 = vperm.slane %v2615, 2
  %v2971 = vperm.slane %v2616, 0
  %v2972 = vperm.slane %v2616, 2
  %v2973 = vperm.slane %v2617, 0
  %v2974 = vperm.slane %v2617, 2
  %v2975 = vperm.slane %v2618, 0
  %v2976 = vperm.slane %v2618, 2
  %v2977 = vperm.slane %v2619, 0
  %v2978 = vperm.slane %v2619, 2
  %v2979 = vperm.slane %v2620, 0
  %v2980 = vperm.slane %v2620, 2
  %v2981 = vperm.slane %v2621, 0
  %v2982 = vperm.slane %v2621, 2
  %v2983 = vperm.slane %v2622, 0
  %v2984 = vperm.slane %v2622, 2
  %v2985 = vperm.slane %v2623, 0
  %v2986 = vperm.slane %v2623, 2
  %v2987 = vperm.slane %v2624, 0
  %v2988 = vperm.slane %v2624, 2
  %v2989 = vperm.slane %v2625, 0
  %v2990 = vperm.slane %v2625, 2
  %v2991 = vperm.slane %v2626, 0
  %v2992 = vperm.slane %v2626, 2
  %v2993 = vperm.slane %v2627, 0
  %v2994 = vperm.slane %v2627, 2
  %v2995 = vperm.slane %v2628, 0
  %v2996 = vperm.slane %v2628, 2
  %v2997 = vperm.slane %v2629, 0
  %v2998 = vperm.slane %v2629, 2
  %v2999 = vperm.slane %v2630, 0
  %v3000 = vperm.slane %v2630, 2
  %v3001 = vperm.slane %v2631, 0
  %v3002 = vperm.slane %v2631, 2
  %v3003 = vperm.slane %v2632, 0
  %v3004 = vperm.slane %v2632, 2
  %v3005 = vperm.slane %v2633, 0
  %v3006 = vperm.slane %v2633, 2
  %v3007 = vperm.slane %v2634, 0
  %v3008 = vperm.slane %v2634, 2
  %v3009 = vperm.slane %v2635, 0
  %v3010 = vperm.slane %v2635, 2
  %v3011 = vperm.slane %v2636, 0
  %v3012 = vperm.slane %v2636, 2
  %v3013 = vperm.slane %v2637, 0
  %v3014 = vperm.slane %v2637, 2
  %v3015 = vperm.slane %v2638, 0
  %v3016 = vperm.slane %v2638, 2
  %v3017 = vperm.slane %v2639, 0
  %v3018 = vperm.slane %v2639, 2
  %v3019 = vperm.slane %v2640, 0
  %v3020 = vperm.slane %v2640, 2
  %v3021 = vperm.slane %v2641, 0
  %v3022 = vperm.slane %v2641, 2
  %v3023 = vperm.slane %v2642, 0
  %v3024 = vperm.slane %v2642, 2
  %v3025 = vperm.slane %v2643, 0
  %v3026 = vperm.slane %v2643, 2
  %v3027 = vperm.slane %v2644, 0
  %v3028 = vperm.slane %v2644, 2
  %v3029 = vperm.slane %v2645, 0
  %v3030 = vperm.slane %v2645, 2
  %v3031 = vperm.slane %v2646, 0
  %v3032 = vperm.slane %v2646, 2
  %v3033 = vperm.slane %v2647, 0
  %v3034 = vperm.slane %v2647, 2
  %v3035 = vperm.slane %v2648, 0
  %v3036 = vperm.slane %v2648, 2
  %v3037 = vperm.slane %v2649, 0
  %v3038 = vperm.slane %v2649, 2
  %v3039 = vperm.slane %v2650, 0
  %v3040 = vperm.slane %v2650, 2
  %v3041 = vperm.slane %v2651, 0
  %v3042 = vperm.slane %v2651, 2
  %v3043 = vperm.slane %v2652, 0
  %v3044 = vperm.slane %v2652, 2
  %v3045 = vperm.slane %v2653, 0
  %v3046 = vperm.slane %v2653, 2
  %v3047 = vperm.slane %v2654, 0
  %v3048 = vperm.slane %v2654, 2
  %v3049 = vperm.slane %v2655, 0
  %v3050 = vperm.slane %v2655, 2
  %v3051 = vperm.slane %v2656, 0
  %v3052 = vperm.slane %v2656, 2
  %v3053 = vperm.slane %v2657, 0
  %v3054 = vperm.slane %v2657, 2
  %v3055 = vperm.slane %v2658, 0
  %v3056 = vperm.slane %v2658, 2
  %v3057 = vperm.slane %v2659, 0
  %v3058 = vperm.slane %v2659, 2
  %v3059 = vperm.slane %v2660, 0
  %v3060 = vperm.slane %v2660, 2
  %v3061 = vperm.slane %v2661, 0
  %v3062 = vperm.slane %v2661, 2
  %v3063 = vperm.slane %v2662, 0
  %v3064 = vperm.slane %v2662, 2
  %v3065 = vperm.slane %v2663, 0
  %v3066 = vperm.slane %v2663, 2
  %v3067 = vperm.slane %v2664, 0
  %v3068 = vperm.slane %v2664, 2
  %v3069 = vperm.slane %v2665, 0
  %v3070 = vperm.slane %v2665, 2
  %v3071 = vperm.slane %v2666, 0
  %v3072 = vperm.slane %v2666, 2
  %v3073 = vperm.slane %v2667, 0
  %v3074 = vperm.slane %v2667, 2
  %v3075 = vperm.slane %v2668, 0
  %v3076 = vperm.slane %v2668, 2
  %v3077 = vperm.slane %v2669, 0
  %v3078 = vperm.slane %v2669, 2
  %v3079 = vperm.slane %v2670, 0
  %v3080 = vperm.slane %v2670, 2
  %v3081 = vperm.slane %v2671, 0
  %v3082 = vperm.slane %v2671, 2
  %v3083 = vperm.slane %v2672, 0
  %v3084 = vperm.slane %v2672, 2
  %v3085 = vperm.slane %v2673, 0
  %v3086 = vperm.slane %v2673, 2
  %v3087 = vperm.slane %v2674, 0
  %v3088 = vperm.slane %v2674, 2
  %v3089 = vperm.slane %v2675, 0
  %v3090 = vperm.slane %v2675, 2
  %v3091 = vperm.slane %v2676, 0
  %v3092 = vperm.slane %v2676, 2
  %v3093 = vperm.slane %v2677, 0
  %v3094 = vperm.slane %v2677, 2
  %v3095 = vperm.slane %v2678, 0
  %v3096 = vperm.slane %v2678, 2
  %v3097 = vperm.slane %v2679, 0
  %v3098 = vperm.slane %v2679, 2
  %v3099 = vperm.slane %v2680, 0
  %v3100 = vperm.slane %v2680, 2
  %v3101 = vperm.slane %v2681, 0
  %v3102 = vperm.slane %v2681, 2
  %vm3103 = vcmask 1042434
  %v3104 = vsel %vm3103, %v2881, %v2879
  %vm3105 = vcmask 1043459
  %v3106 = vsel %vm3105, %v2883, %v3104
  %vm3107 = vcmask 1044484
  %v3108 = vsel %vm3107, %v2885, %v3106
  %vm3109 = vcmask 1045509
  %v3110 = vsel %vm3109, %v2887, %v3108
  %vm3111 = vcmask 1046534
  %v3112 = vsel %vm3111, %v2889, %v3110
  %vm3113 = vcmask 1047559
  %v3114 = vsel %vm3113, %v2891, %v3112
  %v3115 = vsel %vm3103, %v2882, %v2880
  %v3116 = vsel %vm3105, %v2884, %v3115
  %v3117 = vsel %vm3107, %v2886, %v3116
  %v3118 = vsel %vm3109, %v2888, %v3117
  %v3119 = vsel %vm3111, %v2890, %v3118
  %v3120 = vsel %vm3113, %v2892, %v3119
  %vm3121 = vcmask 1041409
  %v3122 = vsel %vm3121, %v2895, %v2893
  %v3123 = vsel %vm3103, %v2897, %v3122
  %v3124 = vsel %vm3105, %v2899, %v3123
  %v3125 = vsel %vm3107, %v2901, %v3124
  %v3126 = vsel %vm3109, %v2903, %v3125
  %v3127 = vsel %vm3111, %v2905, %v3126
  %v3128 = vsel %vm3121, %v2896, %v2894
  %v3129 = vsel %vm3103, %v2898, %v3128
  %v3130 = vsel %vm3105, %v2900, %v3129
  %v3131 = vsel %vm3107, %v2902, %v3130
  %v3132 = vsel %vm3109, %v2904, %v3131
  %v3133 = vsel %vm3111, %v2906, %v3132
  %v3134 = vsel %vm3103, %v2909, %v2907
  %v3135 = vsel %vm3105, %v2911, %v3134
  %v3136 = vsel %vm3107, %v2913, %v3135
  %v3137 = vsel %vm3109, %v2915, %v3136
  %v3138 = vsel %vm3111, %v2917, %v3137
  %v3139 = vsel %vm3113, %v2919, %v3138
  %v3140 = vsel %vm3103, %v2910, %v2908
  %v3141 = vsel %vm3105, %v2912, %v3140
  %v3142 = vsel %vm3107, %v2914, %v3141
  %v3143 = vsel %vm3109, %v2916, %v3142
  %v3144 = vsel %vm3111, %v2918, %v3143
  %v3145 = vsel %vm3113, %v2920, %v3144
  %v3146 = vsel %vm3121, %v2923, %v2921
  %v3147 = vsel %vm3103, %v2925, %v3146
  %v3148 = vsel %vm3105, %v2927, %v3147
  %v3149 = vsel %vm3107, %v2929, %v3148
  %v3150 = vsel %vm3109, %v2931, %v3149
  %v3151 = vsel %vm3111, %v2933, %v3150
  %v3152 = vsel %vm3121, %v2924, %v2922
  %v3153 = vsel %vm3103, %v2926, %v3152
  %v3154 = vsel %vm3105, %v2928, %v3153
  %v3155 = vsel %vm3107, %v2930, %v3154
  %v3156 = vsel %vm3109, %v2932, %v3155
  %v3157 = vsel %vm3111, %v2934, %v3156
  %v3158 = vsel %vm3103, %v2937, %v2935
  %v3159 = vsel %vm3105, %v2939, %v3158
  %v3160 = vsel %vm3107, %v2941, %v3159
  %v3161 = vsel %vm3109, %v2943, %v3160
  %v3162 = vsel %vm3111, %v2945, %v3161
  %v3163 = vsel %vm3113, %v2947, %v3162
  %v3164 = vsel %vm3103, %v2938, %v2936
  %v3165 = vsel %vm3105, %v2940, %v3164
  %v3166 = vsel %vm3107, %v2942, %v3165
  %v3167 = vsel %vm3109, %v2944, %v3166
  %v3168 = vsel %vm3111, %v2946, %v3167
  %v3169 = vsel %vm3113, %v2948, %v3168
  %v3170 = vsel %vm3121, %v2951, %v2949
  %v3171 = vsel %vm3103, %v2953, %v3170
  %v3172 = vsel %vm3105, %v2955, %v3171
  %v3173 = vsel %vm3107, %v2957, %v3172
  %v3174 = vsel %vm3109, %v2959, %v3173
  %v3175 = vsel %vm3111, %v2961, %v3174
  %v3176 = vsel %vm3121, %v2952, %v2950
  %v3177 = vsel %vm3103, %v2954, %v3176
  %v3178 = vsel %vm3105, %v2956, %v3177
  %v3179 = vsel %vm3107, %v2958, %v3178
  %v3180 = vsel %vm3109, %v2960, %v3179
  %v3181 = vsel %vm3111, %v2962, %v3180
  %v3182 = vsel %vm3103, %v2965, %v2963
  %v3183 = vsel %vm3105, %v2967, %v3182
  %v3184 = vsel %vm3107, %v2969, %v3183
  %v3185 = vsel %vm3109, %v2971, %v3184
  %v3186 = vsel %vm3111, %v2973, %v3185
  %v3187 = vsel %vm3113, %v2975, %v3186
  %v3188 = vsel %vm3103, %v2966, %v2964
  %v3189 = vsel %vm3105, %v2968, %v3188
  %v3190 = vsel %vm3107, %v2970, %v3189
  %v3191 = vsel %vm3109, %v2972, %v3190
  %v3192 = vsel %vm3111, %v2974, %v3191
  %v3193 = vsel %vm3113, %v2976, %v3192
  %v3194 = vsel %vm3121, %v2979, %v2977
  %v3195 = vsel %vm3103, %v2981, %v3194
  %v3196 = vsel %vm3105, %v2983, %v3195
  %v3197 = vsel %vm3107, %v2985, %v3196
  %v3198 = vsel %vm3109, %v2987, %v3197
  %v3199 = vsel %vm3111, %v2989, %v3198
  %v3200 = vsel %vm3121, %v2980, %v2978
  %v3201 = vsel %vm3103, %v2982, %v3200
  %v3202 = vsel %vm3105, %v2984, %v3201
  %v3203 = vsel %vm3107, %v2986, %v3202
  %v3204 = vsel %vm3109, %v2988, %v3203
  %v3205 = vsel %vm3111, %v2990, %v3204
  %v3206 = vsel %vm3103, %v2993, %v2991
  %v3207 = vsel %vm3105, %v2995, %v3206
  %v3208 = vsel %vm3107, %v2997, %v3207
  %v3209 = vsel %vm3109, %v2999, %v3208
  %v3210 = vsel %vm3111, %v3001, %v3209
  %v3211 = vsel %vm3113, %v3003, %v3210
  %v3212 = vsel %vm3103, %v2994, %v2992
  %v3213 = vsel %vm3105, %v2996, %v3212
  %v3214 = vsel %vm3107, %v2998, %v3213
  %v3215 = vsel %vm3109, %v3000, %v3214
  %v3216 = vsel %vm3111, %v3002, %v3215
  %v3217 = vsel %vm3113, %v3004, %v3216
  %v3218 = vsel %vm3121, %v3007, %v3005
  %v3219 = vsel %vm3103, %v3009, %v3218
  %v3220 = vsel %vm3105, %v3011, %v3219
  %v3221 = vsel %vm3107, %v3013, %v3220
  %v3222 = vsel %vm3109, %v3015, %v3221
  %v3223 = vsel %vm3111, %v3017, %v3222
  %v3224 = vsel %vm3121, %v3008, %v3006
  %v3225 = vsel %vm3103, %v3010, %v3224
  %v3226 = vsel %vm3105, %v3012, %v3225
  %v3227 = vsel %vm3107, %v3014, %v3226
  %v3228 = vsel %vm3109, %v3016, %v3227
  %v3229 = vsel %vm3111, %v3018, %v3228
  %v3230 = vsel %vm3103, %v3021, %v3019
  %v3231 = vsel %vm3105, %v3023, %v3230
  %v3232 = vsel %vm3107, %v3025, %v3231
  %v3233 = vsel %vm3109, %v3027, %v3232
  %v3234 = vsel %vm3111, %v3029, %v3233
  %v3235 = vsel %vm3113, %v3031, %v3234
  %v3236 = vsel %vm3103, %v3022, %v3020
  %v3237 = vsel %vm3105, %v3024, %v3236
  %v3238 = vsel %vm3107, %v3026, %v3237
  %v3239 = vsel %vm3109, %v3028, %v3238
  %v3240 = vsel %vm3111, %v3030, %v3239
  %v3241 = vsel %vm3113, %v3032, %v3240
  %v3242 = vsel %vm3121, %v3035, %v3033
  %v3243 = vsel %vm3103, %v3037, %v3242
  %v3244 = vsel %vm3105, %v3039, %v3243
  %v3245 = vsel %vm3107, %v3041, %v3244
  %v3246 = vsel %vm3109, %v3043, %v3245
  %v3247 = vsel %vm3111, %v3045, %v3246
  %v3248 = vsel %vm3121, %v3036, %v3034
  %v3249 = vsel %vm3103, %v3038, %v3248
  %v3250 = vsel %vm3105, %v3040, %v3249
  %v3251 = vsel %vm3107, %v3042, %v3250
  %v3252 = vsel %vm3109, %v3044, %v3251
  %v3253 = vsel %vm3111, %v3046, %v3252
  %v3254 = vsel %vm3103, %v3049, %v3047
  %v3255 = vsel %vm3105, %v3051, %v3254
  %v3256 = vsel %vm3107, %v3053, %v3255
  %v3257 = vsel %vm3109, %v3055, %v3256
  %v3258 = vsel %vm3111, %v3057, %v3257
  %v3259 = vsel %vm3113, %v3059, %v3258
  %v3260 = vsel %vm3103, %v3050, %v3048
  %v3261 = vsel %vm3105, %v3052, %v3260
  %v3262 = vsel %vm3107, %v3054, %v3261
  %v3263 = vsel %vm3109, %v3056, %v3262
  %v3264 = vsel %vm3111, %v3058, %v3263
  %v3265 = vsel %vm3113, %v3060, %v3264
  %v3266 = vsel %vm3121, %v3063, %v3061
  %v3267 = vsel %vm3103, %v3065, %v3266
  %v3268 = vsel %vm3105, %v3067, %v3267
  %v3269 = vsel %vm3107, %v3069, %v3268
  %v3270 = vsel %vm3109, %v3071, %v3269
  %v3271 = vsel %vm3111, %v3073, %v3270
  %v3272 = vsel %vm3121, %v3064, %v3062
  %v3273 = vsel %vm3103, %v3066, %v3272
  %v3274 = vsel %vm3105, %v3068, %v3273
  %v3275 = vsel %vm3107, %v3070, %v3274
  %v3276 = vsel %vm3109, %v3072, %v3275
  %v3277 = vsel %vm3111, %v3074, %v3276
  %v3278 = vsel %vm3103, %v3077, %v3075
  %v3279 = vsel %vm3105, %v3079, %v3278
  %v3280 = vsel %vm3107, %v3081, %v3279
  %v3281 = vsel %vm3109, %v3083, %v3280
  %v3282 = vsel %vm3111, %v3085, %v3281
  %v3283 = vsel %vm3113, %v3087, %v3282
  %v3284 = vsel %vm3103, %v3078, %v3076
  %v3285 = vsel %vm3105, %v3080, %v3284
  %v3286 = vsel %vm3107, %v3082, %v3285
  %v3287 = vsel %vm3109, %v3084, %v3286
  %v3288 = vsel %vm3111, %v3086, %v3287
  %v3289 = vsel %vm3113, %v3088, %v3288
  %v3290 = vsel %vm3121, %v3091, %v3089
  %v3291 = vsel %vm3103, %v3093, %v3290
  %v3292 = vsel %vm3105, %v3095, %v3291
  %v3293 = vsel %vm3107, %v3097, %v3292
  %v3294 = vsel %vm3109, %v3099, %v3293
  %v3295 = vsel %vm3111, %v3101, %v3294
  %v3296 = vsel %vm3121, %v3092, %v3090
  %v3297 = vsel %vm3103, %v3094, %v3296
  %v3298 = vsel %vm3105, %v3096, %v3297
  %v3299 = vsel %vm3107, %v3098, %v3298
  %v3300 = vsel %vm3109, %v3100, %v3299
  %v3301 = vsel %vm3111, %v3102, %v3300
  %3302 = vrot.lane.b32.xlu0 %v3114, 16
  %v3303 = vpop.permute.xlu0 %3302
  %3304 = vrot.lane.b32.xlu0 %v3120, 16
  %v3305 = vpop.permute.xlu0 %3304
  %3306 = vrot.lane.b32.xlu0 %v3127, 16
  %v3307 = vpop.permute.xlu0 %3306
  %3308 = vrot.lane.b32.xlu0 %v3133, 16
  %v3309 = vpop.permute.xlu0 %3308
  %3310 = vrot.lane.b32.xlu0 %v3139, 16
  %v3311 = vpop.permute.xlu0 %3310
  %3312 = vrot.lane.b32.xlu0 %v3145, 16
  %v3313 = vpop.permute.xlu0 %3312
  %3314 = vrot.lane.b32.xlu0 %v3151, 16
  %v3315 = vpop.permute.xlu0 %3314
  %3316 = vrot.lane.b32.xlu0 %v3157, 16
  %v3317 = vpop.permute.xlu0 %3316
  %3318 = vrot.lane.b32.xlu0 %v3163, 16
  %v3319 = vpop.permute.xlu0 %3318
  %3320 = vrot.lane.b32.xlu0 %v3169, 16
  %v3321 = vpop.permute.xlu0 %3320
  %3322 = vrot.lane.b32.xlu0 %v3175, 16
  %v3323 = vpop.permute.xlu0 %3322
  %3324 = vrot.lane.b32.xlu0 %v3181, 16
  %v3325 = vpop.permute.xlu0 %3324
  %3326 = vrot.lane.b32.xlu0 %v3187, 16
  %v3327 = vpop.permute.xlu0 %3326
  %3328 = vrot.lane.b32.xlu0 %v3193, 16
  %v3329 = vpop.permute.xlu0 %3328
  %3330 = vrot.lane.b32.xlu0 %v3199, 16
  %v3331 = vpop.permute.xlu0 %3330
  %3332 = vrot.lane.b32.xlu0 %v3205, 16
  %v3333 = vpop.permute.xlu0 %3332
  %3334 = vrot.lane.b32.xlu0 %v3211, 16
  %v3335 = vpop.permute.xlu0 %3334
  %3336 = vrot.lane.b32.xlu0 %v3217, 16
  %v3337 = vpop.permute.xlu0 %3336
  %3338 = vrot.lane.b32.xlu0 %v3223, 16
  %v3339 = vpop.permute.xlu0 %3338
  %3340 = vrot.lane.b32.xlu0 %v3229, 16
  %v3341 = vpop.permute.xlu0 %3340
  %3342 = vrot.lane.b32.xlu0 %v3235, 16
  %v3343 = vpop.permute.xlu0 %3342
  %3344 = vrot.lane.b32.xlu0 %v3241, 16
  %v3345 = vpop.permute.xlu0 %3344
  %3346 = vrot.lane.b32.xlu0 %v3247, 16
  %v3347 = vpop.permute.xlu0 %3346
  %3348 = vrot.lane.b32.xlu0 %v3253, 16
  %v3349 = vpop.permute.xlu0 %3348
  %3350 = vrot.lane.b32.xlu0 %v3259, 16
  %v3351 = vpop.permute.xlu0 %3350
  %3352 = vrot.lane.b32.xlu0 %v3265, 16
  %v3353 = vpop.permute.xlu0 %3352
  %3354 = vrot.lane.b32.xlu0 %v3271, 16
  %v3355 = vpop.permute.xlu0 %3354
  %3356 = vrot.lane.b32.xlu0 %v3277, 16
  %v3357 = vpop.permute.xlu0 %3356
  %3358 = vrot.lane.b32.xlu0 %v3283, 16
  %v3359 = vpop.permute.xlu0 %3358
  %3360 = vrot.lane.b32.xlu0 %v3289, 16
  %v3361 = vpop.permute.xlu0 %3360
  %3362 = vrot.lane.b32.xlu0 %v3295, 16
  %v3363 = vpop.permute.xlu0 %3362
  %3364 = vrot.lane.b32.xlu0 %v3301, 16
  %v3365 = vpop.permute.xlu0 %3364
  %v3366 = vsel %vm2733, %v3303, %v3305
  %v3367 = vsel %vm2733, %v3307, %v3309
  %v3368 = vsel %vm2733, %v3311, %v3313
  %v3369 = vsel %vm2733, %v3315, %v3317
  %v3370 = vsel %vm2733, %v3319, %v3321
  %v3371 = vsel %vm2733, %v3323, %v3325
  %v3372 = vsel %vm2733, %v3327, %v3329
  %v3373 = vsel %vm2733, %v3331, %v3333
  %v3374 = vsel %vm2733, %v3335, %v3337
  %v3375 = vsel %vm2733, %v3339, %v3341
  %v3376 = vsel %vm2733, %v3343, %v3345
  %v3377 = vsel %vm2733, %v3347, %v3349
  %v3378 = vsel %vm2733, %v3351, %v3353
  %v3379 = vsel %vm2733, %v3355, %v3357
  %v3380 = vsel %vm2733, %v3359, %v3361
  %v3381 = vsel %vm2733, %v3363, %v3365
  %vm3414 = vcmask 1047681
  %3415 = vst.msk [vmem:[#allocation2] sm:$0xfe] %vm3414, %v3303
  %vm3416 = vcmask 916481
  %3417 = vst.msk [vmem:[#allocation2 + $0x8] sm:$0xfe] %vm3416, %v3366
  %vm3418 = vcmask 1046656
  %3419 = vst.msk [vmem:[#allocation2 + $0x10] sm:$0x7f] %vm3418, %v3307
  %vm3420 = vcmask 915456
  %3421 = vst.msk [vmem:[#allocation2 + $0x18] sm:$0x7f] %vm3420, %v3367
  %3422 = vst.msk [vmem:[#allocation2 + $0x20] sm:$0xfe] %vm3414, %v3311
  %3423 = vst.msk [vmem:[#allocation2 + $0x28] sm:$0xfe] %vm3416, %v3368
  %3424 = vst.msk [vmem:[#allocation2 + $0x30] sm:$0x7f] %vm3418, %v3315
  %3425 = vst.msk [vmem:[#allocation2 + $0x38] sm:$0x7f] %vm3420, %v3369
  %3426 = vst.msk [vmem:[#allocation2 + $0x40] sm:$0xfe] %vm3414, %v3319
  %3427 = vst.msk [vmem:[#allocation2 + $0x48] sm:$0xfe] %vm3416, %v3370
  %3428 = vst.msk [vmem:[#allocation2 + $0x50] sm:$0x7f] %vm3418, %v3323
  %3429 = vst.msk [vmem:[#allocation2 + $0x58] sm:$0x7f] %vm3420, %v3371
  %3430 = vst.msk [vmem:[#allocation2 + $0x60] sm:$0xfe] %vm3414, %v3327
  %3431 = vst.msk [vmem:[#allocation2 + $0x68] sm:$0xfe] %vm3416, %v3372
  %3432 = vst.msk [vmem:[#allocation2 + $0x70] sm:$0x7f] %vm3418, %v3331
  %3433 = vst.msk [vmem:[#allocation2 + $0x78] sm:$0x7f] %vm3420, %v3373
  %3434 = vst.msk [vmem:[#allocation2 + $0x80] sm:$0xfe] %vm3414, %v3335
  %3435 = vst.msk [vmem:[#allocation2 + $0x88] sm:$0xfe] %vm3416, %v3374
  %3436 = vst.msk [vmem:[#allocation2 + $0x90] sm:$0x7f] %vm3418, %v3339
  %3437 = vst.msk [vmem:[#allocation2 + $0x98] sm:$0x7f] %vm3420, %v3375
  %3438 = vst.msk [vmem:[#allocation2 + $0xa0] sm:$0xfe] %vm3414, %v3343
  %3439 = vst.msk [vmem:[#allocation2 + $0xa8] sm:$0xfe] %vm3416, %v3376
  %3440 = vst.msk [vmem:[#allocation2 + $0xb0] sm:$0x7f] %vm3418, %v3347
  %3441 = vst.msk [vmem:[#allocation2 + $0xb8] sm:$0x7f] %vm3420, %v3377
  %3442 = vst.msk [vmem:[#allocation2 + $0xc0] sm:$0xfe] %vm3414, %v3351
  %3443 = vst.msk [vmem:[#allocation2 + $0xc8] sm:$0xfe] %vm3416, %v3378
  %3444 = vst.msk [vmem:[#allocation2 + $0xd0] sm:$0x7f] %vm3418, %v3355
  %3445 = vst.msk [vmem:[#allocation2 + $0xd8] sm:$0x7f] %vm3420, %v3379
  %3446 = vst.msk [vmem:[#allocation2 + $0xe0] sm:$0xfe] %vm3414, %v3359
  %3447 = vst.msk [vmem:[#allocation2 + $0xe8] sm:$0xfe] %vm3416, %v3380
  %3448 = vst.msk [vmem:[#allocation2 + $0xf0] sm:$0x7f] %vm3418, %v3363
  %3449 = vst.msk [vmem:[#allocation2 + $0xf8] sm:$0x7f] %vm3420, %v3381
  %v3450 = vld [vmem:[#allocation2] sm:$0xff]
  %v3451 = vld [vmem:[#allocation2 + $0x8] sm:$0xff]
  %v3452 = vld [vmem:[#allocation2 + $0x10] sm:$0x3f]
  %v3453 = vld [vmem:[#allocation2 + $0x18] sm:$0x3f]
  %v3454 = vld [vmem:[#allocation2 + $0x20] sm:$0xff]
  %v3455 = vld [vmem:[#allocation2 + $0x28] sm:$0xff]
  %v3456 = vld [vmem:[#allocation2 + $0x30] sm:$0x3f]
  %v3457 = vld [vmem:[#allocation2 + $0x38] sm:$0x3f]
  %v3458 = vld [vmem:[#allocation2 + $0x40] sm:$0xff]
  %v3459 = vld [vmem:[#allocation2 + $0x48] sm:$0xff]
  %v3460 = vld [vmem:[#allocation2 + $0x50] sm:$0x3f]
  %v3461 = vld [vmem:[#allocation2 + $0x58] sm:$0x3f]
  %v3462 = vld [vmem:[#allocation2 + $0x60] sm:$0xff]
  %v3463 = vld [vmem:[#allocation2 + $0x68] sm:$0xff]
  %v3464 = vld [vmem:[#allocation2 + $0x70] sm:$0x3f]
  %v3465 = vld [vmem:[#allocation2 + $0x78] sm:$0x3f]
  %v3466 = vld [vmem:[#allocation2 + $0x80] sm:$0xff]
  %v3467 = vld [vmem:[#allocation2 + $0x88] sm:$0xff]
  %v3468 = vld [vmem:[#allocation2 + $0x90] sm:$0x3f]
  %v3469 = vld [vmem:[#allocation2 + $0x98] sm:$0x3f]
  %v3470 = vld [vmem:[#allocation2 + $0xa0] sm:$0xff]
  %v3471 = vld [vmem:[#allocation2 + $0xa8] sm:$0xff]
  %v3472 = vld [vmem:[#allocation2 + $0xb0] sm:$0x3f]
  %v3473 = vld [vmem:[#allocation2 + $0xb8] sm:$0x3f]
  %v3474 = vld [vmem:[#allocation2 + $0xc0] sm:$0xff]
  %v3475 = vld [vmem:[#allocation2 + $0xc8] sm:$0xff]
  %v3476 = vld [vmem:[#allocation2 + $0xd0] sm:$0x3f]
  %v3477 = vld [vmem:[#allocation2 + $0xd8] sm:$0x3f]
  %v3478 = vld [vmem:[#allocation2 + $0xe0] sm:$0xff]
  %v3479 = vld [vmem:[#allocation2 + $0xe8] sm:$0xff]
  %v3480 = vld [vmem:[#allocation2 + $0xf0] sm:$0x3f]
  %v3481 = vld [vmem:[#allocation2 + $0xf8] sm:$0x3f]
  %v3482 = vld [vmem:[#allocation2] sm:$0xfe]
  %v3483 = vld [vmem:[#allocation2 + $0x8] sm:$0xfe]
  %v3484 = vld [vmem:[#allocation2 + $0x10] sm:$0x7f]
  %v3485 = vld [vmem:[#allocation2 + $0x18] sm:$0x7f]
  %v3486 = vld [vmem:[#allocation2 + $0x20] sm:$0xfe]
  %v3487 = vld [vmem:[#allocation2 + $0x28] sm:$0xfe]
  %v3488 = vld [vmem:[#allocation2 + $0x30] sm:$0x7f]
  %v3489 = vld [vmem:[#allocation2 + $0x38] sm:$0x7f]
  %v3490 = vld [vmem:[#allocation2 + $0x40] sm:$0xfe]
  %v3491 = vld [vmem:[#allocation2 + $0x48] sm:$0xfe]
  %v3492 = vld [vmem:[#allocation2 + $0x50] sm:$0x7f]
  %v3493 = vld [vmem:[#allocation2 + $0x58] sm:$0x7f]
  %v3494 = vld [vmem:[#allocation2 + $0x60] sm:$0xfe]
  %v3495 = vld [vmem:[#allocation2 + $0x68] sm:$0xfe]
  %v3496 = vld [vmem:[#allocation2 + $0x70] sm:$0x7f]
  %v3497 = vld [vmem:[#allocation2 + $0x78] sm:$0x7f]
  %v3498 = vld [vmem:[#allocation2 + $0x80] sm:$0xfe]
  %v3499 = vld [vmem:[#allocation2 + $0x88] sm:$0xfe]
  %v3500 = vld [vmem:[#allocation2 + $0x90] sm:$0x7f]
  %v3501 = vld [vmem:[#allocation2 + $0x98] sm:$0x7f]
  %v3502 = vld [vmem:[#allocation2 + $0xa0] sm:$0xfe]
  %v3503 = vld [vmem:[#allocation2 + $0xa8] sm:$0xfe]
  %v3504 = vld [vmem:[#allocation2 + $0xb0] sm:$0x7f]
  %v3505 = vld [vmem:[#allocation2 + $0xb8] sm:$0x7f]
  %v3506 = vld [vmem:[#allocation2 + $0xc0] sm:$0xfe]
  %v3507 = vld [vmem:[#allocation2 + $0xc8] sm:$0xfe]
  %v3508 = vld [vmem:[#allocation2 + $0xd0] sm:$0x7f]
  %v3509 = vld [vmem:[#allocation2 + $0xd8] sm:$0x7f]
  %v3510 = vld [vmem:[#allocation2 + $0xe0] sm:$0xfe]
  %v3511 = vld [vmem:[#allocation2 + $0xe8] sm:$0xfe]
  %v3512 = vld [vmem:[#allocation2 + $0xf0] sm:$0x7f]
  %v3513 = vld [vmem:[#allocation2 + $0xf8] sm:$0x7f]
  %v3514 = vld [vmem:[#allocation2] sm:$0xfc]
  %v3515 = vld [vmem:[#allocation2 + $0x8] sm:$0xfc]
  %v3516 = vld [vmem:[#allocation2 + $0x10] sm:$0xff]
  %v3517 = vld [vmem:[#allocation2 + $0x18] sm:$0xff]
  %v3518 = vld [vmem:[#allocation2 + $0x20] sm:$0xfc]
  %v3519 = vld [vmem:[#allocation2 + $0x28] sm:$0xfc]
  %v3520 = vld [vmem:[#allocation2 + $0x30] sm:$0xff]
  %v3521 = vld [vmem:[#allocation2 + $0x38] sm:$0xff]
  %v3522 = vld [vmem:[#allocation2 + $0x40] sm:$0xfc]
  %v3523 = vld [vmem:[#allocation2 + $0x48] sm:$0xfc]
  %v3524 = vld [vmem:[#allocation2 + $0x50] sm:$0xff]
  %v3525 = vld [vmem:[#allocation2 + $0x58] sm:$0xff]
  %v3526 = vld [vmem:[#allocation2 + $0x60] sm:$0xfc]
  %v3527 = vld [vmem:[#allocation2 + $0x68] sm:$0xfc]
  %v3528 = vld [vmem:[#allocation2 + $0x70] sm:$0xff]
  %v3529 = vld [vmem:[#allocation2 + $0x78] sm:$0xff]
  %v3530 = vld [vmem:[#allocation2 + $0x80] sm:$0xfc]
  %v3531 = vld [vmem:[#allocation2 + $0x88] sm:$0xfc]
  %v3532 = vld [vmem:[#allocation2 + $0x90] sm:$0xff]
  %v3533 = vld [vmem:[#allocation2 + $0x98] sm:$0xff]
  %v3534 = vld [vmem:[#allocation2 + $0xa0] sm:$0xfc]
  %v3535 = vld [vmem:[#allocation2 + $0xa8] sm:$0xfc]
  %v3536 = vld [vmem:[#allocation2 + $0xb0] sm:$0xff]
  %v3537 = vld [vmem:[#allocation2 + $0xb8] sm:$0xff]
  %v3538 = vld [vmem:[#allocation2 + $0xc0] sm:$0xfc]
  %v3539 = vld [vmem:[#allocation2 + $0xc8] sm:$0xfc]
  %v3540 = vld [vmem:[#allocation2 + $0xd0] sm:$0xff]
  %v3541 = vld [vmem:[#allocation2 + $0xd8] sm:$0xff]
  %v3542 = vld [vmem:[#allocation2 + $0xe0] sm:$0xfc]
  %v3543 = vld [vmem:[#allocation2 + $0xe8] sm:$0xfc]
  %v3544 = vld [vmem:[#allocation2 + $0xf0] sm:$0xff]
  %v3545 = vld [vmem:[#allocation2 + $0xf8] sm:$0xff]
  %v3578 = vrot.slane %v3482, 1
  %v3579 = vrot.slane %v3484, 1
  %v3580 = vsel %vm97, %v3578, %v3579
  %v3581 = vrot.slane %v3483, 1
  %v3582 = vrot.slane %v3485, 1
  %v3583 = vsel %vm97, %v3581, %v3582
  %v3584 = vrot.slane %v3486, 1
  %v3585 = vrot.slane %v3488, 1
  %v3586 = vsel %vm97, %v3584, %v3585
  %v3587 = vrot.slane %v3487, 1
  %v3588 = vrot.slane %v3489, 1
  %v3589 = vsel %vm97, %v3587, %v3588
  %v3590 = vrot.slane %v3490, 1
  %v3591 = vrot.slane %v3492, 1
  %v3592 = vsel %vm97, %v3590, %v3591
  %v3593 = vrot.slane %v3491, 1
  %v3594 = vrot.slane %v3493, 1
  %v3595 = vsel %vm97, %v3593, %v3594
  %v3596 = vrot.slane %v3494, 1
  %v3597 = vrot.slane %v3496, 1
  %v3598 = vsel %vm97, %v3596, %v3597
  %v3599 = vrot.slane %v3495, 1
  %v3600 = vrot.slane %v3497, 1
  %v3601 = vsel %vm97, %v3599, %v3600
  %v3602 = vrot.slane %v3498, 1
  %v3603 = vrot.slane %v3500, 1
  %v3604 = vsel %vm97, %v3602, %v3603
  %v3605 = vrot.slane %v3499, 1
  %v3606 = vrot.slane %v3501, 1
  %v3607 = vsel %vm97, %v3605, %v3606
  %v3608 = vrot.slane %v3502, 1
  %v3609 = vrot.slane %v3504, 1
  %v3610 = vsel %vm97, %v3608, %v3609
  %v3611 = vrot.slane %v3503, 1
  %v3612 = vrot.slane %v3505, 1
  %v3613 = vsel %vm97, %v3611, %v3612
  %v3614 = vrot.slane %v3506, 1
  %v3615 = vrot.slane %v3508, 1
  %v3616 = vsel %vm97, %v3614, %v3615
  %v3617 = vrot.slane %v3507, 1
  %v3618 = vrot.slane %v3509, 1
  %v3619 = vsel %vm97, %v3617, %v3618
  %v3620 = vrot.slane %v3510, 1
  %v3621 = vrot.slane %v3512, 1
  %v3622 = vsel %vm97, %v3620, %v3621
  %v3623 = vrot.slane %v3511, 1
  %v3624 = vrot.slane %v3513, 1
  %v3625 = vsel %vm97, %v3623, %v3624
  %v3658 = vrot.slane %v3514, 2
  %v3659 = vrot.slane %v3516, 2
  %v3660 = vsel %vm250, %v3658, %v3659
  %v3661 = vrot.slane %v3515, 2
  %v3662 = vrot.slane %v3517, 2
  %v3663 = vsel %vm250, %v3661, %v3662
  %v3664 = vrot.slane %v3518, 2
  %v3665 = vrot.slane %v3520, 2
  %v3666 = vsel %vm250, %v3664, %v3665
  %v3667 = vrot.slane %v3519, 2
  %v3668 = vrot.slane %v3521, 2
  %v3669 = vsel %vm250, %v3667, %v3668
  %v3670 = vrot.slane %v3522, 2
  %v3671 = vrot.slane %v3524, 2
  %v3672 = vsel %vm250, %v3670, %v3671
  %v3673 = vrot.slane %v3523, 2
  %v3674 = vrot.slane %v3525, 2
  %v3675 = vsel %vm250, %v3673, %v3674
  %v3676 = vrot.slane %v3526, 2
  %v3677 = vrot.slane %v3528, 2
  %v3678 = vsel %vm250, %v3676, %v3677
  %v3679 = vrot.slane %v3527, 2
  %v3680 = vrot.slane %v3529, 2
  %v3681 = vsel %vm250, %v3679, %v3680
  %v3682 = vrot.slane %v3530, 2
  %v3683 = vrot.slane %v3532, 2
  %v3684 = vsel %vm250, %v3682, %v3683
  %v3685 = vrot.slane %v3531, 2
  %v3686 = vrot.slane %v3533, 2
  %v3687 = vsel %vm250, %v3685, %v3686
  %v3688 = vrot.slane %v3534, 2
  %v3689 = vrot.slane %v3536, 2
  %v3690 = vsel %vm250, %v3688, %v3689
  %v3691 = vrot.slane %v3535, 2
  %v3692 = vrot.slane %v3537, 2
  %v3693 = vsel %vm250, %v3691, %v3692
  %v3694 = vrot.slane %v3538, 2
  %v3695 = vrot.slane %v3540, 2
  %v3696 = vsel %vm250, %v3694, %v3695
  %v3697 = vrot.slane %v3539, 2
  %v3698 = vrot.slane %v3541, 2
  %v3699 = vsel %vm250, %v3697, %v3698
  %v3700 = vrot.slane %v3542, 2
  %v3701 = vrot.slane %v3544, 2
  %v3702 = vsel %vm250, %v3700, %v3701
  %v3703 = vrot.slane %v3543, 2
  %v3704 = vrot.slane %v3545, 2
  %v3705 = vsel %vm250, %v3703, %v3704
  %v3738 = vrot.slane %v3451, 6
  %v3739 = vrot.slane %v3580, 4
  %v3740 = vrot.slane %v3583, 2
  %v3741 = vrot.slane %v3663, 6
  %v3742 = vrot.slane %v3453, 6
  %v3743 = vrot.slane %v3579, 4
  %v3744 = vrot.slane %v3582, 2
  %v3745 = vrot.slane %v3662, 6
  %v3746 = vrot.slane %v3455, 6
  %v3747 = vrot.slane %v3586, 4
  %v3748 = vrot.slane %v3589, 2
  %v3749 = vrot.slane %v3669, 6
  %v3750 = vrot.slane %v3457, 6
  %v3751 = vrot.slane %v3585, 4
  %v3752 = vrot.slane %v3588, 2
  %v3753 = vrot.slane %v3668, 6
  %v3754 = vrot.slane %v3459, 6
  %v3755 = vrot.slane %v3592, 4
  %v3756 = vrot.slane %v3595, 2
  %v3757 = vrot.slane %v3675, 6
  %v3758 = vrot.slane %v3461, 6
  %v3759 = vrot.slane %v3591, 4
  %v3760 = vrot.slane %v3594, 2
  %v3761 = vrot.slane %v3674, 6
  %v3762 = vrot.slane %v3463, 6
  %v3763 = vrot.slane %v3598, 4
  %v3764 = vrot.slane %v3601, 2
  %v3765 = vrot.slane %v3681, 6
  %v3766 = vrot.slane %v3465, 6
  %v3767 = vrot.slane %v3597, 4
  %v3768 = vrot.slane %v3600, 2
  %v3769 = vrot.slane %v3680, 6
  %v3770 = vrot.slane %v3467, 6
  %v3771 = vrot.slane %v3604, 4
  %v3772 = vrot.slane %v3607, 2
  %v3773 = vrot.slane %v3687, 6
  %v3774 = vrot.slane %v3469, 6
  %v3775 = vrot.slane %v3603, 4
  %v3776 = vrot.slane %v3606, 2
  %v3777 = vrot.slane %v3686, 6
  %v3778 = vrot.slane %v3471, 6
  %v3779 = vrot.slane %v3610, 4
  %v3780 = vrot.slane %v3613, 2
  %v3781 = vrot.slane %v3693, 6
  %v3782 = vrot.slane %v3473, 6
  %v3783 = vrot.slane %v3609, 4
  %v3784 = vrot.slane %v3612, 2
  %v3785 = vrot.slane %v3692, 6
  %v3786 = vrot.slane %v3475, 6
  %v3787 = vrot.slane %v3616, 4
  %v3788 = vrot.slane %v3619, 2
  %v3789 = vrot.slane %v3699, 6
  %v3790 = vrot.slane %v3477, 6
  %v3791 = vrot.slane %v3615, 4
  %v3792 = vrot.slane %v3618, 2
  %v3793 = vrot.slane %v3698, 6
  %v3794 = vrot.slane %v3479, 6
  %v3795 = vrot.slane %v3622, 4
  %v3796 = vrot.slane %v3625, 2
  %v3797 = vrot.slane %v3705, 6
  %v3798 = vrot.slane %v3481, 6
  %v3799 = vrot.slane %v3621, 4
  %v3800 = vrot.slane %v3624, 2
  %v3801 = vrot.slane %v3704, 6
  %v3802 = vsel %vm1675, %v3450, %v3738
  %v3803 = vsel %vm1680, %v3739, %v3740
  %vm3804 = vcmask 1043456
  %v3805 = vsel %vm3804, %v3802, %v3803
  %v3806 = vsel %vm1675, %v3660, %v3741
  %v3807 = vsel %vm1677, %v3450, %v3738
  %v3808 = vsel %vm250, %v3740, %v3739
  %vm3809 = vcmask 1045506
  %v3810 = vsel %vm3809, %v3807, %v3808
  %v3811 = vrot.slane %v3810, 2
  %v3812 = vsel %vm1677, %v3660, %v3741
  %v3813 = vrot.slane %v3812, 2
  %v3814 = vsel %vm1680, %v3450, %v3738
  %v3815 = vsel %vm1675, %v3739, %v3740
  %v3816 = vsel %vm3804, %v3815, %v3814
  %v3817 = vrot.slane %v3816, 4
  %v3818 = vsel %vm1680, %v3660, %v3741
  %v3819 = vrot.slane %v3818, 4
  %v3820 = vsel %vm250, %v3738, %v3450
  %v3821 = vsel %vm1677, %v3739, %v3740
  %v3822 = vsel %vm3809, %v3821, %v3820
  %v3823 = vrot.slane %v3822, 6
  %v3824 = vsel %vm250, %v3741, %v3660
  %v3825 = vrot.slane %v3824, 6
  %v3826 = vsel %vm1675, %v3452, %v3742
  %v3827 = vsel %vm1680, %v3743, %v3744
  %v3828 = vsel %vm3804, %v3826, %v3827
  %v3829 = vsel %vm1675, %v3659, %v3745
  %v3830 = vsel %vm1677, %v3452, %v3742
  %v3831 = vsel %vm250, %v3744, %v3743
  %v3832 = vsel %vm3809, %v3830, %v3831
  %v3833 = vrot.slane %v3832, 2
  %v3834 = vsel %vm1677, %v3659, %v3745
  %v3835 = vrot.slane %v3834, 2
  %v3836 = vsel %vm1680, %v3452, %v3742
  %v3837 = vsel %vm1675, %v3743, %v3744
  %v3838 = vsel %vm3804, %v3837, %v3836
  %v3839 = vrot.slane %v3838, 4
  %v3840 = vsel %vm1680, %v3659, %v3745
  %v3841 = vrot.slane %v3840, 4
  %v3842 = vsel %vm1675, %v3454, %v3746
  %v3843 = vsel %vm1680, %v3747, %v3748
  %v3844 = vsel %vm3804, %v3842, %v3843
  %v3845 = vsel %vm1675, %v3666, %v3749
  %v3846 = vsel %vm1677, %v3454, %v3746
  %v3847 = vsel %vm250, %v3748, %v3747
  %v3848 = vsel %vm3809, %v3846, %v3847
  %v3849 = vrot.slane %v3848, 2
  %v3850 = vsel %vm1677, %v3666, %v3749
  %v3851 = vrot.slane %v3850, 2
  %v3852 = vsel %vm1680, %v3454, %v3746
  %v3853 = vsel %vm1675, %v3747, %v3748
  %v3854 = vsel %vm3804, %v3853, %v3852
  %v3855 = vrot.slane %v3854, 4
  %v3856 = vsel %vm1680, %v3666, %v3749
  %v3857 = vrot.slane %v3856, 4
  %v3858 = vsel %vm250, %v3746, %v3454
  %v3859 = vsel %vm1677, %v3747, %v3748
  %v3860 = vsel %vm3809, %v3859, %v3858
  %v3861 = vrot.slane %v3860, 6
  %v3862 = vsel %vm250, %v3749, %v3666
  %v3863 = vrot.slane %v3862, 6
  %v3864 = vsel %vm1675, %v3456, %v3750
  %v3865 = vsel %vm1680, %v3751, %v3752
  %v3866 = vsel %vm3804, %v3864, %v3865
  %v3867 = vsel %vm1675, %v3665, %v3753
  %v3868 = vsel %vm1677, %v3456, %v3750
  %v3869 = vsel %vm250, %v3752, %v3751
  %v3870 = vsel %vm3809, %v3868, %v3869
  %v3871 = vrot.slane %v3870, 2
  %v3872 = vsel %vm1677, %v3665, %v3753
  %v3873 = vrot.slane %v3872, 2
  %v3874 = vsel %vm1680, %v3456, %v3750
  %v3875 = vsel %vm1675, %v3751, %v3752
  %v3876 = vsel %vm3804, %v3875, %v3874
  %v3877 = vrot.slane %v3876, 4
  %v3878 = vsel %vm1680, %v3665, %v3753
  %v3879 = vrot.slane %v3878, 4
  %v3880 = vsel %vm1675, %v3458, %v3754
  %v3881 = vsel %vm1680, %v3755, %v3756
  %v3882 = vsel %vm3804, %v3880, %v3881
  %v3883 = vsel %vm1675, %v3672, %v3757
  %v3884 = vsel %vm1677, %v3458, %v3754
  %v3885 = vsel %vm250, %v3756, %v3755
  %v3886 = vsel %vm3809, %v3884, %v3885
  %v3887 = vrot.slane %v3886, 2
  %v3888 = vsel %vm1677, %v3672, %v3757
  %v3889 = vrot.slane %v3888, 2
  %v3890 = vsel %vm1680, %v3458, %v3754
  %v3891 = vsel %vm1675, %v3755, %v3756
  %v3892 = vsel %vm3804, %v3891, %v3890
  %v3893 = vrot.slane %v3892, 4
  %v3894 = vsel %vm1680, %v3672, %v3757
  %v3895 = vrot.slane %v3894, 4
  %v3896 = vsel %vm250, %v3754, %v3458
  %v3897 = vsel %vm1677, %v3755, %v3756
  %v3898 = vsel %vm3809, %v3897, %v3896
  %v3899 = vrot.slane %v3898, 6
  %v3900 = vsel %vm250, %v3757, %v3672
  %v3901 = vrot.slane %v3900, 6
  %v3902 = vsel %vm1675, %v3460, %v3758
  %v3903 = vsel %vm1680, %v3759, %v3760
  %v3904 = vsel %vm3804, %v3902, %v3903
  %v3905 = vsel %vm1675, %v3671, %v3761
  %v3906 = vsel %vm1677, %v3460, %v3758
  %v3907 = vsel %vm250, %v3760, %v3759
  %v3908 = vsel %vm3809, %v3906, %v3907
  %v3909 = vrot.slane %v3908, 2
  %v3910 = vsel %vm1677, %v3671, %v3761
  %v3911 = vrot.slane %v3910, 2
  %v3912 = vsel %vm1680, %v3460, %v3758
  %v3913 = vsel %vm1675, %v3759, %v3760
  %v3914 = vsel %vm3804, %v3913, %v3912
  %v3915 = vrot.slane %v3914, 4
  %v3916 = vsel %vm1680, %v3671, %v3761
  %v3917 = vrot.slane %v3916, 4
  %v3918 = vsel %vm1675, %v3462, %v3762
  %v3919 = vsel %vm1680, %v3763, %v3764
  %v3920 = vsel %vm3804, %v3918, %v3919
  %v3921 = vsel %vm1675, %v3678, %v3765
  %v3922 = vsel %vm1677, %v3462, %v3762
  %v3923 = vsel %vm250, %v3764, %v3763
  %v3924 = vsel %vm3809, %v3922, %v3923
  %v3925 = vrot.slane %v3924, 2
  %v3926 = vsel %vm1677, %v3678, %v3765
  %v3927 = vrot.slane %v3926, 2
  %v3928 = vsel %vm1680, %v3462, %v3762
  %v3929 = vsel %vm1675, %v3763, %v3764
  %v3930 = vsel %vm3804, %v3929, %v3928
  %v3931 = vrot.slane %v3930, 4
  %v3932 = vsel %vm1680, %v3678, %v3765
  %v3933 = vrot.slane %v3932, 4
  %v3934 = vsel %vm250, %v3762, %v3462
  %v3935 = vsel %vm1677, %v3763, %v3764
  %v3936 = vsel %vm3809, %v3935, %v3934
  %v3937 = vrot.slane %v3936, 6
  %v3938 = vsel %vm250, %v3765, %v3678
  %v3939 = vrot.slane %v3938, 6
  %v3940 = vsel %vm1675, %v3464, %v3766
  %v3941 = vsel %vm1680, %v3767, %v3768
  %v3942 = vsel %vm3804, %v3940, %v3941
  %v3943 = vsel %vm1675, %v3677, %v3769
  %v3944 = vsel %vm1677, %v3464, %v3766
  %v3945 = vsel %vm250, %v3768, %v3767
  %v3946 = vsel %vm3809, %v3944, %v3945
  %v3947 = vrot.slane %v3946, 2
  %v3948 = vsel %vm1677, %v3677, %v3769
  %v3949 = vrot.slane %v3948, 2
  %v3950 = vsel %vm1680, %v3464, %v3766
  %v3951 = vsel %vm1675, %v3767, %v3768
  %v3952 = vsel %vm3804, %v3951, %v3950
  %v3953 = vrot.slane %v3952, 4
  %v3954 = vsel %vm1680, %v3677, %v3769
  %v3955 = vrot.slane %v3954, 4
  %v3956 = vsel %vm1675, %v3466, %v3770
  %v3957 = vsel %vm1680, %v3771, %v3772
  %v3958 = vsel %vm3804, %v3956, %v3957
  %v3959 = vsel %vm1675, %v3684, %v3773
  %v3960 = vsel %vm1677, %v3466, %v3770
  %v3961 = vsel %vm250, %v3772, %v3771
  %v3962 = vsel %vm3809, %v3960, %v3961
  %v3963 = vrot.slane %v3962, 2
  %v3964 = vsel %vm1677, %v3684, %v3773
  %v3965 = vrot.slane %v3964, 2
  %v3966 = vsel %vm1680, %v3466, %v3770
  %v3967 = vsel %vm1675, %v3771, %v3772
  %v3968 = vsel %vm3804, %v3967, %v3966
  %v3969 = vrot.slane %v3968, 4
  %v3970 = vsel %vm1680, %v3684, %v3773
  %v3971 = vrot.slane %v3970, 4
  %v3972 = vsel %vm250, %v3770, %v3466
  %v3973 = vsel %vm1677, %v3771, %v3772
  %v3974 = vsel %vm3809, %v3973, %v3972
  %v3975 = vrot.slane %v3974, 6
  %v3976 = vsel %vm250, %v3773, %v3684
  %v3977 = vrot.slane %v3976, 6
  %v3978 = vsel %vm1675, %v3468, %v3774
  %v3979 = vsel %vm1680, %v3775, %v3776
  %v3980 = vsel %vm3804, %v3978, %v3979
  %v3981 = vsel %vm1675, %v3683, %v3777
  %v3982 = vsel %vm1677, %v3468, %v3774
  %v3983 = vsel %vm250, %v3776, %v3775
  %v3984 = vsel %vm3809, %v3982, %v3983
  %v3985 = vrot.slane %v3984, 2
  %v3986 = vsel %vm1677, %v3683, %v3777
  %v3987 = vrot.slane %v3986, 2
  %v3988 = vsel %vm1680, %v3468, %v3774
  %v3989 = vsel %vm1675, %v3775, %v3776
  %v3990 = vsel %vm3804, %v3989, %v3988
  %v3991 = vrot.slane %v3990, 4
  %v3992 = vsel %vm1680, %v3683, %v3777
  %v3993 = vrot.slane %v3992, 4
  %v3994 = vsel %vm1675, %v3470, %v3778
  %v3995 = vsel %vm1680, %v3779, %v3780
  %v3996 = vsel %vm3804, %v3994, %v3995
  %v3997 = vsel %vm1675, %v3690, %v3781
  %v3998 = vsel %vm1677, %v3470, %v3778
  %v3999 = vsel %vm250, %v3780, %v3779
  %v4000 = vsel %vm3809, %v3998, %v3999
  %v4001 = vrot.slane %v4000, 2
  %v4002 = vsel %vm1677, %v3690, %v3781
  %v4003 = vrot.slane %v4002, 2
  %v4004 = vsel %vm1680, %v3470, %v3778
  %v4005 = vsel %vm1675, %v3779, %v3780
  %v4006 = vsel %vm3804, %v4005, %v4004
  %v4007 = vrot.slane %v4006, 4
  %v4008 = vsel %vm1680, %v3690, %v3781
  %v4009 = vrot.slane %v4008, 4
  %v4010 = vsel %vm250, %v3778, %v3470
  %v4011 = vsel %vm1677, %v3779, %v3780
  %v4012 = vsel %vm3809, %v4011, %v4010
  %v4013 = vrot.slane %v4012, 6
  %v4014 = vsel %vm250, %v3781, %v3690
  %v4015 = vrot.slane %v4014, 6
  %v4016 = vsel %vm1675, %v3472, %v3782
  %v4017 = vsel %vm1680, %v3783, %v3784
  %v4018 = vsel %vm3804, %v4016, %v4017
  %v4019 = vsel %vm1675, %v3689, %v3785
  %v4020 = vsel %vm1677, %v3472, %v3782
  %v4021 = vsel %vm250, %v3784, %v3783
  %v4022 = vsel %vm3809, %v4020, %v4021
  %v4023 = vrot.slane %v4022, 2
  %v4024 = vsel %vm1677, %v3689, %v3785
  %v4025 = vrot.slane %v4024, 2
  %v4026 = vsel %vm1680, %v3472, %v3782
  %v4027 = vsel %vm1675, %v3783, %v3784
  %v4028 = vsel %vm3804, %v4027, %v4026
  %v4029 = vrot.slane %v4028, 4
  %v4030 = vsel %vm1680, %v3689, %v3785
  %v4031 = vrot.slane %v4030, 4
  %v4032 = vsel %vm1675, %v3474, %v3786
  %v4033 = vsel %vm1680, %v3787, %v3788
  %v4034 = vsel %vm3804, %v4032, %v4033
  %v4035 = vsel %vm1675, %v3696, %v3789
  %v4036 = vsel %vm1677, %v3474, %v3786
  %v4037 = vsel %vm250, %v3788, %v3787
  %v4038 = vsel %vm3809, %v4036, %v4037
  %v4039 = vrot.slane %v4038, 2
  %v4040 = vsel %vm1677, %v3696, %v3789
  %v4041 = vrot.slane %v4040, 2
  %v4042 = vsel %vm1680, %v3474, %v3786
  %v4043 = vsel %vm1675, %v3787, %v3788
  %v4044 = vsel %vm3804, %v4043, %v4042
  %v4045 = vrot.slane %v4044, 4
  %v4046 = vsel %vm1680, %v3696, %v3789
  %v4047 = vrot.slane %v4046, 4
  %v4048 = vsel %vm250, %v3786, %v3474
  %v4049 = vsel %vm1677, %v3787, %v3788
  %v4050 = vsel %vm3809, %v4049, %v4048
  %v4051 = vrot.slane %v4050, 6
  %v4052 = vsel %vm250, %v3789, %v3696
  %v4053 = vrot.slane %v4052, 6
  %v4054 = vsel %vm1675, %v3476, %v3790
  %v4055 = vsel %vm1680, %v3791, %v3792
  %v4056 = vsel %vm3804, %v4054, %v4055
  %v4057 = vsel %vm1675, %v3695, %v3793
  %v4058 = vsel %vm1677, %v3476, %v3790
  %v4059 = vsel %vm250, %v3792, %v3791
  %v4060 = vsel %vm3809, %v4058, %v4059
  %v4061 = vrot.slane %v4060, 2
  %v4062 = vsel %vm1677, %v3695, %v3793
  %v4063 = vrot.slane %v4062, 2
  %v4064 = vsel %vm1680, %v3476, %v3790
  %v4065 = vsel %vm1675, %v3791, %v3792
  %v4066 = vsel %vm3804, %v4065, %v4064
  %v4067 = vrot.slane %v4066, 4
  %v4068 = vsel %vm1680, %v3695, %v3793
  %v4069 = vrot.slane %v4068, 4
  %v4070 = vsel %vm1675, %v3478, %v3794
  %v4071 = vsel %vm1680, %v3795, %v3796
  %v4072 = vsel %vm3804, %v4070, %v4071
  %v4073 = vsel %vm1675, %v3702, %v3797
  %v4074 = vsel %vm1677, %v3478, %v3794
  %v4075 = vsel %vm250, %v3796, %v3795
  %v4076 = vsel %vm3809, %v4074, %v4075
  %v4077 = vrot.slane %v4076, 2
  %v4078 = vsel %vm1677, %v3702, %v3797
  %v4079 = vrot.slane %v4078, 2
  %v4080 = vsel %vm1680, %v3478, %v3794
  %v4081 = vsel %vm1675, %v3795, %v3796
  %v4082 = vsel %vm3804, %v4081, %v4080
  %v4083 = vrot.slane %v4082, 4
  %v4084 = vsel %vm1680, %v3702, %v3797
  %v4085 = vrot.slane %v4084, 4
  %v4086 = vsel %vm250, %v3794, %v3478
  %v4087 = vsel %vm1677, %v3795, %v3796
  %v4088 = vsel %vm3809, %v4087, %v4086
  %v4089 = vrot.slane %v4088, 6
  %v4090 = vsel %vm250, %v3797, %v3702
  %v4091 = vrot.slane %v4090, 6
  %v4092 = vsel %vm1675, %v3480, %v3798
  %v4093 = vsel %vm1680, %v3799, %v3800
  %v4094 = vsel %vm3804, %v4092, %v4093
  %v4095 = vsel %vm1675, %v3701, %v3801
  %v4096 = vsel %vm1677, %v3480, %v3798
  %v4097 = vsel %vm250, %v3800, %v3799
  %v4098 = vsel %vm3809, %v4096, %v4097
  %v4099 = vrot.slane %v4098, 2
  %v4100 = vsel %vm1677, %v3701, %v3801
  %v4101 = vrot.slane %v4100, 2
  %v4102 = vsel %vm1680, %v3480, %v3798
  %v4103 = vsel %vm1675, %v3799, %v3800
  %v4104 = vsel %vm3804, %v4103, %v4102
  %v4105 = vrot.slane %v4104, 4
  %v4106 = vsel %vm1680, %v3701, %v3801
  %v4107 = vrot.slane %v4106, 4
  %4108 = vst [vmem:[#allocation1] ss:$4 sm:$0xff] %v3805
  %s4109 = scalar_lea.vmem [#allocation1], 1
  %4110 = vst [vmem:[%s4109] ss:$4 sm:$0xff] %v3811
  %s4111 = scalar_lea.vmem [#allocation1], 2
  %4112 = vst [vmem:[%s4111] ss:$4 sm:$0xff] %v3817
  %s4113 = scalar_lea.vmem [#allocation1], 3
  %4114 = vst [vmem:[%s4113] ss:$4 sm:$0xff] %v3823
  %s4115 = scalar_lea.vmem [#allocation1], 32
  %4116 = vst [vmem:[%s4115] ss:$4 sm:$0xff] %v3806
  %s4117 = scalar_lea.vmem [#allocation1], 33
  %4118 = vst [vmem:[%s4117] ss:$4 sm:$0xff] %v3813
  %s4119 = scalar_lea.vmem [#allocation1], 34
  %4120 = vst [vmem:[%s4119] ss:$4 sm:$0xff] %v3819
  %s4121 = scalar_lea.vmem [#allocation1], 35
  %4122 = vst [vmem:[%s4121] ss:$4 sm:$0xff] %v3825
  %v4123 = vld.sshfl [vmem:[#allocation1] sm:$0xff pattern:$0x73625140]
  %v4124 = vld.sshfl [vmem:[#allocation1 + $0x8] sm:$0xff pattern:$0x73625140]
  %v4125 = vld.sshfl [vmem:[#allocation1 + $0x10] sm:$0xff pattern:$0x73625140]
  %v4126 = vld.sshfl [vmem:[#allocation1 + $0x18] sm:$0xff pattern:$0x73625140]
  %v4127 = vld.sshfl [vmem:[#allocation1 + $0x20] sm:$0xff pattern:$0x73625140]
  %v4128 = vld.sshfl [vmem:[#allocation1 + $0x28] sm:$0xff pattern:$0x73625140]
  %4129 = vst [vmem:[#allocation1] ss:$4 sm:$0xff] %v3828
  %4130 = vst [vmem:[%s4109] ss:$4 sm:$0xff] %v3833
  %4131 = vst [vmem:[%s4111] ss:$4 sm:$0xff] %v3839
  %4132 = vst [vmem:[%s4113] ss:$4 sm:$0xff] %v3844
  %4133 = vst [vmem:[%s4115] ss:$4 sm:$0xff] %v3829
  %4134 = vst [vmem:[%s4117] ss:$4 sm:$0xff] %v3835
  %4135 = vst [vmem:[%s4119] ss:$4 sm:$0xff] %v3841
  %4136 = vst [vmem:[%s4121] ss:$4 sm:$0xff] %v3845
  %v4137 = vld.sshfl [vmem:[#allocation1] sm:$0xff pattern:$0x73625140]
  %v4138 = vld.sshfl [vmem:[#allocation1 + $0x8] sm:$0xff pattern:$0x73625140]
  %v4139 = vld.sshfl [vmem:[#allocation1 + $0x10] sm:$0xff pattern:$0x73625140]
  %v4140 = vld.sshfl [vmem:[#allocation1 + $0x18] sm:$0xff pattern:$0x73625140]
  %v4141 = vld.sshfl [vmem:[#allocation1 + $0x20] sm:$0xff pattern:$0x73625140]
  %v4142 = vld.sshfl [vmem:[#allocation1 + $0x28] sm:$0xff pattern:$0x73625140]
  %4143 = vst [vmem:[#allocation1] ss:$4 sm:$0xff] %v3849
  %4144 = vst [vmem:[%s4109] ss:$4 sm:$0xff] %v3855
  %4145 = vst [vmem:[%s4111] ss:$4 sm:$0xff] %v3861
  %4146 = vst [vmem:[%s4113] ss:$4 sm:$0xff] %v3866
  %4147 = vst [vmem:[%s4115] ss:$4 sm:$0xff] %v3851
  %4148 = vst [vmem:[%s4117] ss:$4 sm:$0xff] %v3857
  %4149 = vst [vmem:[%s4119] ss:$4 sm:$0xff] %v3863
  %4150 = vst [vmem:[%s4121] ss:$4 sm:$0xff] %v3867
  %v4151 = vld.sshfl [vmem:[#allocation1] sm:$0xff pattern:$0x73625140]
  %v4152 = vld.sshfl [vmem:[#allocation1 + $0x8] sm:$0xff pattern:$0x73625140]
  %v4153 = vld.sshfl [vmem:[#allocation1 + $0x10] sm:$0xff pattern:$0x73625140]
  %v4154 = vld.sshfl [vmem:[#allocation1 + $0x18] sm:$0xff pattern:$0x73625140]
  %v4155 = vld.sshfl [vmem:[#allocation1 + $0x20] sm:$0xff pattern:$0x73625140]
  %v4156 = vld.sshfl [vmem:[#allocation1 + $0x28] sm:$0xff pattern:$0x73625140]
  %4157 = vst [vmem:[#allocation1] ss:$4 sm:$0xff] %v3871
  %4158 = vst [vmem:[%s4109] ss:$4 sm:$0xff] %v3877
  %4159 = vst [vmem:[%s4111] ss:$4 sm:$0xff] %v3882
  %4160 = vst [vmem:[%s4113] ss:$4 sm:$0xff] %v3887
  %4161 = vst [vmem:[%s4115] ss:$4 sm:$0xff] %v3873
  %4162 = vst [vmem:[%s4117] ss:$4 sm:$0xff] %v3879
  %4163 = vst [vmem:[%s4119] ss:$4 sm:$0xff] %v3883
  %4164 = vst [vmem:[%s4121] ss:$4 sm:$0xff] %v3889
  %v4165 = vld.sshfl [vmem:[#allocation1] sm:$0xff pattern:$0x73625140]
  %v4166 = vld.sshfl [vmem:[#allocation1 + $0x8] sm:$0xff pattern:$0x73625140]
  %v4167 = vld.sshfl [vmem:[#allocation1 + $0x10] sm:$0xff pattern:$0x73625140]
  %v4168 = vld.sshfl [vmem:[#allocation1 + $0x18] sm:$0xff pattern:$0x73625140]
  %v4169 = vld.sshfl [vmem:[#allocation1 + $0x20] sm:$0xff pattern:$0x73625140]
  %v4170 = vld.sshfl [vmem:[#allocation1 + $0x28] sm:$0xff pattern:$0x73625140]
  %4171 = vst [vmem:[#allocation1] ss:$4 sm:$0xff] %v3893
  %4172 = vst [vmem:[%s4109] ss:$4 sm:$0xff] %v3899
  %4173 = vst [vmem:[%s4111] ss:$4 sm:$0xff] %v3904
  %4174 = vst [vmem:[%s4113] ss:$4 sm:$0xff] %v3909
  %4175 = vst [vmem:[%s4115] ss:$4 sm:$0xff] %v3895
  %4176 = vst [vmem:[%s4117] ss:$4 sm:$0xff] %v3901
  %4177 = vst [vmem:[%s4119] ss:$4 sm:$0xff] %v3905
  %4178 = vst [vmem:[%s4121] ss:$4 sm:$0xff] %v3911
  %v4179 = vld.sshfl [vmem:[#allocation1] sm:$0xff pattern:$0x73625140]
  %v4180 = vld.sshfl [vmem:[#allocation1 + $0x8] sm:$0xff pattern:$0x73625140]
  %v4181 = vld.sshfl [vmem:[#allocation1 + $0x10] sm:$0xff pattern:$0x73625140]
  %v4182 = vld.sshfl [vmem:[#allocation1 + $0x18] sm:$0xff pattern:$0x73625140]
  %v4183 = vld.sshfl [vmem:[#allocation1 + $0x20] sm:$0xff pattern:$0x73625140]
  %v4184 = vld.sshfl [vmem:[#allocation1 + $0x28] sm:$0xff pattern:$0x73625140]
  %4185 = vst [vmem:[#allocation1] ss:$4 sm:$0xff] %v3915
  %4186 = vst [vmem:[%s4109] ss:$4 sm:$0xff] %v3920
  %4187 = vst [vmem:[%s4111] ss:$4 sm:$0xff] %v3925
  %4188 = vst [vmem:[%s4113] ss:$4 sm:$0xff] %v3931
  %4189 = vst [vmem:[%s4115] ss:$4 sm:$0xff] %v3917
  %4190 = vst [vmem:[%s4117] ss:$4 sm:$0xff] %v3921
  %4191 = vst [vmem:[%s4119] ss:$4 sm:$0xff] %v3927
  %4192 = vst [vmem:[%s4121] ss:$4 sm:$0xff] %v3933
  %v4193 = vld.sshfl [vmem:[#allocation1] sm:$0xff pattern:$0x73625140]
  %v4194 = vld.sshfl [vmem:[#allocation1 + $0x8] sm:$0xff pattern:$0x73625140]
  %v4195 = vld.sshfl [vmem:[#allocation1 + $0x10] sm:$0xff pattern:$0x73625140]
  %v4196 = vld.sshfl [vmem:[#allocation1 + $0x18] sm:$0xff pattern:$0x73625140]
  %v4197 = vld.sshfl [vmem:[#allocation1 + $0x20] sm:$0xff pattern:$0x73625140]
  %v4198 = vld.sshfl [vmem:[#allocation1 + $0x28] sm:$0xff pattern:$0x73625140]
  %4199 = vst [vmem:[#allocation1] ss:$4 sm:$0xff] %v3937
  %4200 = vst [vmem:[%s4109] ss:$4 sm:$0xff] %v3942
  %4201 = vst [vmem:[%s4111] ss:$4 sm:$0xff] %v3947
  %4202 = vst [vmem:[%s4113] ss:$4 sm:$0xff] %v3953
  %4203 = vst [vmem:[%s4115] ss:$4 sm:$0xff] %v3939
  %4204 = vst [vmem:[%s4117] ss:$4 sm:$0xff] %v3943
  %4205 = vst [vmem:[%s4119] ss:$4 sm:$0xff] %v3949
  %4206 = vst [vmem:[%s4121] ss:$4 sm:$0xff] %v3955
  %v4207 = vld.sshfl [vmem:[#allocation1] sm:$0xff pattern:$0x73625140]
  %v4208 = vld.sshfl [vmem:[#allocation1 + $0x8] sm:$0xff pattern:$0x73625140]
  %v4209 = vld.sshfl [vmem:[#allocation1 + $0x10] sm:$0xff pattern:$0x73625140]
  %v4210 = vld.sshfl [vmem:[#allocation1 + $0x18] sm:$0xff pattern:$0x73625140]
  %v4211 = vld.sshfl [vmem:[#allocation1 + $0x20] sm:$0xff pattern:$0x73625140]
  %v4212 = vld.sshfl [vmem:[#allocation1 + $0x28] sm:$0xff pattern:$0x73625140]
  %4213 = vst [vmem:[#allocation1] ss:$4 sm:$0xff] %v3958
  %4214 = vst [vmem:[%s4109] ss:$4 sm:$0xff] %v3963
  %4215 = vst [vmem:[%s4111] ss:$4 sm:$0xff] %v3969
  %4216 = vst [vmem:[%s4113] ss:$4 sm:$0xff] %v3975
  %4217 = vst [vmem:[%s4115] ss:$4 sm:$0xff] %v3959
  %4218 = vst [vmem:[%s4117] ss:$4 sm:$0xff] %v3965
  %4219 = vst [vmem:[%s4119] ss:$4 sm:$0xff] %v3971
  %4220 = vst [vmem:[%s4121] ss:$4 sm:$0xff] %v3977
  %v4221 = vld.sshfl [vmem:[#allocation1] sm:$0xff pattern:$0x73625140]
  %v4222 = vld.sshfl [vmem:[#allocation1 + $0x8] sm:$0xff pattern:$0x73625140]
  %v4223 = vld.sshfl [vmem:[#allocation1 + $0x10] sm:$0xff pattern:$0x73625140]
  %v4224 = vld.sshfl [vmem:[#allocation1 + $0x18] sm:$0xff pattern:$0x73625140]
  %v4225 = vld.sshfl [vmem:[#allocation1 + $0x20] sm:$0xff pattern:$0x73625140]
  %v4226 = vld.sshfl [vmem:[#allocation1 + $0x28] sm:$0xff pattern:$0x73625140]
  %4227 = vst [vmem:[#allocation1] ss:$4 sm:$0xff] %v3980
  %4228 = vst [vmem:[%s4109] ss:$4 sm:$0xff] %v3985
  %4229 = vst [vmem:[%s4111] ss:$4 sm:$0xff] %v3991
  %4230 = vst [vmem:[%s4113] ss:$4 sm:$0xff] %v3996
  %4231 = vst [vmem:[%s4115] ss:$4 sm:$0xff] %v3981
  %4232 = vst [vmem:[%s4117] ss:$4 sm:$0xff] %v3987
  %4233 = vst [vmem:[%s4119] ss:$4 sm:$0xff] %v3993
  %4234 = vst [vmem:[%s4121] ss:$4 sm:$0xff] %v3997
  %v4235 = vld.sshfl [vmem:[#allocation1] sm:$0xff pattern:$0x73625140]
  %v4236 = vld.sshfl [vmem:[#allocation1 + $0x8] sm:$0xff pattern:$0x73625140]
  %v4237 = vld.sshfl [vmem:[#allocation1 + $0x10] sm:$0xff pattern:$0x73625140]
  %v4238 = vld.sshfl [vmem:[#allocation1 + $0x18] sm:$0xff pattern:$0x73625140]
  %v4239 = vld.sshfl [vmem:[#allocation1 + $0x20] sm:$0xff pattern:$0x73625140]
  %v4240 = vld.sshfl [vmem:[#allocation1 + $0x28] sm:$0xff pattern:$0x73625140]
  %4241 = vst [vmem:[#allocation1] ss:$4 sm:$0xff] %v4001
  %4242 = vst [vmem:[%s4109] ss:$4 sm:$0xff] %v4007
  %4243 = vst [vmem:[%s4111] ss:$4 sm:$0xff] %v4013
  %4244 = vst [vmem:[%s4113] ss:$4 sm:$0xff] %v4018
  %4245 = vst [vmem:[%s4115] ss:$4 sm:$0xff] %v4003
  %4246 = vst [vmem:[%s4117] ss:$4 sm:$0xff] %v4009
  %4247 = vst [vmem:[%s4119] ss:$4 sm:$0xff] %v4015
  %4248 = vst [vmem:[%s4121] ss:$4 sm:$0xff] %v4019
  %v4249 = vld.sshfl [vmem:[#allocation1] sm:$0xff pattern:$0x73625140]
  %v4250 = vld.sshfl [vmem:[#allocation1 + $0x8] sm:$0xff pattern:$0x73625140]
  %v4251 = vld.sshfl [vmem:[#allocation1 + $0x10] sm:$0xff pattern:$0x73625140]
  %v4252 = vld.sshfl [vmem:[#allocation1 + $0x18] sm:$0xff pattern:$0x73625140]
  %v4253 = vld.sshfl [vmem:[#allocation1 + $0x20] sm:$0xff pattern:$0x73625140]
  %v4254 = vld.sshfl [vmem:[#allocation1 + $0x28] sm:$0xff pattern:$0x73625140]
  %4255 = vst [vmem:[#allocation1] ss:$4 sm:$0xff] %v4023
  %4256 = vst [vmem:[%s4109] ss:$4 sm:$0xff] %v4029
  %4257 = vst [vmem:[%s4111] ss:$4 sm:$0xff] %v4034
  %4258 = vst [vmem:[%s4113] ss:$4 sm:$0xff] %v4039
  %4259 = vst [vmem:[%s4115] ss:$4 sm:$0xff] %v4025
  %4260 = vst [vmem:[%s4117] ss:$4 sm:$0xff] %v4031
  %4261 = vst [vmem:[%s4119] ss:$4 sm:$0xff] %v4035
  %4262 = vst [vmem:[%s4121] ss:$4 sm:$0xff] %v4041
  %v4263 = vld.sshfl [vmem:[#allocation1] sm:$0xff pattern:$0x73625140]
  %v4264 = vld.sshfl [vmem:[#allocation1 + $0x8] sm:$0xff pattern:$0x73625140]
  %v4265 = vld.sshfl [vmem:[#allocation1 + $0x10] sm:$0xff pattern:$0x73625140]
  %v4266 = vld.sshfl [vmem:[#allocation1 + $0x18] sm:$0xff pattern:$0x73625140]
  %v4267 = vld.sshfl [vmem:[#allocation1 + $0x20] sm:$0xff pattern:$0x73625140]
  %v4268 = vld.sshfl [vmem:[#allocation1 + $0x28] sm:$0xff pattern:$0x73625140]
  %4269 = vst [vmem:[#allocation1] ss:$4 sm:$0xff] %v4045
  %4270 = vst [vmem:[%s4109] ss:$4 sm:$0xff] %v4051
  %4271 = vst [vmem:[%s4111] ss:$4 sm:$0xff] %v4056
  %4272 = vst [vmem:[%s4113] ss:$4 sm:$0xff] %v4061
  %4273 = vst [vmem:[%s4115] ss:$4 sm:$0xff] %v4047
  %4274 = vst [vmem:[%s4117] ss:$4 sm:$0xff] %v4053
  %4275 = vst [vmem:[%s4119] ss:$4 sm:$0xff] %v4057
  %4276 = vst [vmem:[%s4121] ss:$4 sm:$0xff] %v4063
  %v4277 = vld.sshfl [vmem:[#allocation1] sm:$0xff pattern:$0x73625140]
  %v4278 = vld.sshfl [vmem:[#allocation1 + $0x8] sm:$0xff pattern:$0x73625140]
  %v4279 = vld.sshfl [vmem:[#allocation1 + $0x10] sm:$0xff pattern:$0x73625140]
  %v4280 = vld.sshfl [vmem:[#allocation1 + $0x18] sm:$0xff pattern:$0x73625140]
  %v4281 = vld.sshfl [vmem:[#allocation1 + $0x20] sm:$0xff pattern:$0x73625140]
  %v4282 = vld.sshfl [vmem:[#allocation1 + $0x28] sm:$0xff pattern:$0x73625140]
  %4283 = vst [vmem:[#allocation1] ss:$4 sm:$0xff] %v4067
  %4284 = vst [vmem:[%s4109] ss:$4 sm:$0xff] %v4072
  %4285 = vst [vmem:[%s4111] ss:$4 sm:$0xff] %v4077
  %4286 = vst [vmem:[%s4113] ss:$4 sm:$0xff] %v4083
  %4287 = vst [vmem:[%s4115] ss:$4 sm:$0xff] %v4069
  %4288 = vst [vmem:[%s4117] ss:$4 sm:$0xff] %v4073
  %4289 = vst [vmem:[%s4119] ss:$4 sm:$0xff] %v4079
  %4290 = vst [vmem:[%s4121] ss:$4 sm:$0xff] %v4085
  %v4291 = vld.sshfl [vmem:[#allocation1] sm:$0xff pattern:$0x73625140]
  %v4292 = vld.sshfl [vmem:[#allocation1 + $0x8] sm:$0xff pattern:$0x73625140]
  %v4293 = vld.sshfl [vmem:[#allocation1 + $0x10] sm:$0xff pattern:$0x73625140]
  %v4294 = vld.sshfl [vmem:[#allocation1 + $0x18] sm:$0xff pattern:$0x73625140]
  %v4295 = vld.sshfl [vmem:[#allocation1 + $0x20] sm:$0xff pattern:$0x73625140]
  %v4296 = vld.sshfl [vmem:[#allocation1 + $0x28] sm:$0xff pattern:$0x73625140]
  %4297 = vst [vmem:[#allocation1] ss:$4 sm:$0xff] %v4089
  %4298 = vst [vmem:[%s4109] ss:$4 sm:$0xff] %v4094
  %4299 = vst [vmem:[%s4111] ss:$4 sm:$0xff] %v4099
  %4300 = vst [vmem:[%s4113] ss:$4 sm:$0xff] %v4105
  %4301 = vst [vmem:[%s4115] ss:$4 sm:$0xff] %v4091
  %4302 = vst [vmem:[%s4117] ss:$4 sm:$0xff] %v4095
  %4303 = vst [vmem:[%s4119] ss:$4 sm:$0xff] %v4101
  %4304 = vst [vmem:[%s4121] ss:$4 sm:$0xff] %v4107
  %v4305 = vld.sshfl [vmem:[#allocation1] sm:$0xff pattern:$0x73625140]
  %v4306 = vld.sshfl [vmem:[#allocation1 + $0x8] sm:$0xff pattern:$0x73625140]
  %v4307 = vld.sshfl [vmem:[#allocation1 + $0x10] sm:$0xff pattern:$0x73625140]
  %v4308 = vld.sshfl [vmem:[#allocation1 + $0x18] sm:$0xff pattern:$0x73625140]
  %v4309 = vld.sshfl [vmem:[#allocation1 + $0x20] sm:$0xff pattern:$0x73625140]
  %v4310 = vld.sshfl [vmem:[#allocation1 + $0x28] sm:$0xff pattern:$0x73625140]
  %v4395 = vpack.c.bf16 %v4137, %v4123
  %v4396 = vpack.c.bf16 %v4138, %v4124
  %v4397 = vpack.c.bf16 %v4139, %v4125
  %v4398 = vpack.c.bf16 %v4140, %v4126
  %v4399 = vpack.c.bf16 %v4141, %v4127
  %v4400 = vpack.c.bf16 %v4142, %v4128
  %v4401 = vpack.c.bf16 %v4165, %v4151
  %v4402 = vpack.c.bf16 %v4166, %v4152
  %v4403 = vpack.c.bf16 %v4167, %v4153
  %v4404 = vpack.c.bf16 %v4168, %v4154
  %v4405 = vpack.c.bf16 %v4169, %v4155
  %v4406 = vpack.c.bf16 %v4170, %v4156
  %v4407 = vpack.c.bf16 %v4193, %v4179
  %v4408 = vpack.c.bf16 %v4194, %v4180
  %v4409 = vpack.c.bf16 %v4195, %v4181
  %v4410 = vpack.c.bf16 %v4196, %v4182
  %v4411 = vpack.c.bf16 %v4197, %v4183
  %v4412 = vpack.c.bf16 %v4198, %v4184
  %v4413 = vpack.c.bf16 %v4221, %v4207
  %v4414 = vpack.c.bf16 %v4222, %v4208
  %v4415 = vpack.c.bf16 %v4223, %v4209
  %v4416 = vpack.c.bf16 %v4224, %v4210
  %v4417 = vpack.c.bf16 %v4225, %v4211
  %v4418 = vpack.c.bf16 %v4226, %v4212
  %v4419 = vpack.c.bf16 %v4249, %v4235
  %v4420 = vpack.c.bf16 %v4250, %v4236
  %v4421 = vpack.c.bf16 %v4251, %v4237
  %v4422 = vpack.c.bf16 %v4252, %v4238
  %v4423 = vpack.c.bf16 %v4253, %v4239
  %v4424 = vpack.c.bf16 %v4254, %v4240
  %v4425 = vpack.c.bf16 %v4277, %v4263
  %v4426 = vpack.c.bf16 %v4278, %v4264
  %v4427 = vpack.c.bf16 %v4279, %v4265
  %v4428 = vpack.c.bf16 %v4280, %v4266
  %v4429 = vpack.c.bf16 %v4281, %v4267
  %v4430 = vpack.c.bf16 %v4282, %v4268
  %v4431 = vpack.c.bf16 %v4305, %v4291
  %v4432 = vpack.c.bf16 %v4306, %v4292
  %v4433 = vpack.c.bf16 %v4307, %v4293
  %v4434 = vpack.c.bf16 %v4308, %v4294
  %v4435 = vpack.c.bf16 %v4309, %v4295
  %v4436 = vpack.c.bf16 %v4310, %v4296
  %v4437 = vld [vmem:[%s3] sm:$0xff]
  %v4438 = vld [vmem:[%s3 + $0x8] sm:$0xff]
  %v4439 = vld [vmem:[%s3 + $0x10] sm:$0xff]
  %v4440 = vld [vmem:[%s3 + $0x18] sm:$0xff]
  %v4441 = vld [vmem:[%s3 + $0x20] sm:$0xff]
  %v4442 = vld [vmem:[%s3 + $0x28] sm:$0xff]
  %v4443 = vld [vmem:[%s3 + $0x30] sm:$0xff]
  %v4444 = vld [vmem:[%s3 + $0x38] sm:$0xff]
  %v4445 = vld [vmem:[%s3 + $0x40] sm:$0xff]
  %v4446 = vld [vmem:[%s3 + $0x48] sm:$0xff]
  %v4447 = vld [vmem:[%s3 + $0x50] sm:$0xff]
  %v4448 = vld [vmem:[%s3 + $0x58] sm:$0xff]
  %v4449 = vld [vmem:[%s3 + $0x60] sm:$0xff]
  %v4450 = vld [vmem:[%s3 + $0x68] sm:$0xff]
  %v4451 = vld [vmem:[%s3 + $0x70] sm:$0xff]
  %v4452 = vld [vmem:[%s3 + $0x78] sm:$0xff]
  %v4453 = vld [vmem:[%s3 + $0x80] sm:$0xff]
  %v4454 = vld [vmem:[%s3 + $0x88] sm:$0xff]
  %v4455 = vld [vmem:[%s3 + $0x90] sm:$0xff]
  %v4456 = vld [vmem:[%s3 + $0x98] sm:$0xff]
  %v4457 = vld [vmem:[%s3 + $0xa0] sm:$0xff]
  %v4458 = vld [vmem:[%s3 + $0xa8] sm:$0xff]
  %v4459 = vld [vmem:[%s3 + $0xb0] sm:$0xff]
  %v4460 = vld [vmem:[%s3 + $0xb8] sm:$0xff]
  %v4461 = vld [vmem:[%s3 + $0xc0] sm:$0xff]
  %v4462 = vld [vmem:[%s3 + $0xc8] sm:$0xff]
  %v4463 = vld [vmem:[%s3 + $0xd0] sm:$0xff]
  %v4464 = vld [vmem:[%s3 + $0xd8] sm:$0xff]
  %v4465 = vld [vmem:[%s3 + $0xe0] sm:$0xff]
  %v4466 = vld [vmem:[%s3 + $0xe8] sm:$0xff]
  %v4467 = vld [vmem:[%s3 + $0xf0] sm:$0xff]
  %v4468 = vld [vmem:[%s3 + $0xf8] sm:$0xff]
  %v4469 = vld [vmem:[%s3 + $0x100] sm:$0xff]
  %v4470 = vld [vmem:[%s3 + $0x108] sm:$0xff]
  %v4471 = vld [vmem:[%s3 + $0x110] sm:$0xff]
  %v4472 = vld [vmem:[%s3 + $0x118] sm:$0xff]
  %v4473 = vld [vmem:[%s3 + $0x120] sm:$0xff]
  %v4474 = vld [vmem:[%s3 + $0x128] sm:$0xff]
  %v4475 = vld [vmem:[%s3 + $0x130] sm:$0xff]
  %v4476 = vld [vmem:[%s3 + $0x138] sm:$0xff]
  %v4477 = vld [vmem:[%s3 + $0x140] sm:$0xff]
  %v4478 = vld [vmem:[%s3 + $0x148] sm:$0xff]
  %v4479 = vld [vmem:[%s3 + $0x150] sm:$0xff]
  %v4480 = vld [vmem:[%s3 + $0x158] sm:$0xff]
  %v4481 = vld [vmem:[%s3 + $0x160] sm:$0xff]
  %v4482 = vld [vmem:[%s3 + $0x168] sm:$0xff]
  %v4483 = vld [vmem:[%s3 + $0x170] sm:$0xff]
  %v4484 = vld [vmem:[%s3 + $0x178] sm:$0xff]
  %v4485 = vld [vmem:[%s3 + $0x180] sm:$0xff]
  %v4486 = vld [vmem:[%s3 + $0x188] sm:$0xff]
  %v4487 = vld [vmem:[%s3 + $0x190] sm:$0xff]
  %v4488 = vld [vmem:[%s3 + $0x198] sm:$0xff]
  %v4489 = vld [vmem:[%s3 + $0x1a0] sm:$0xff]
  %v4490 = vld [vmem:[%s3 + $0x1a8] sm:$0xff]
  %v4491 = vld [vmem:[%s3 + $0x1b0] sm:$0xff]
  %v4492 = vld [vmem:[%s3 + $0x1b8] sm:$0xff]
  %v4493 = vld [vmem:[%s3 + $0x1c0] sm:$0xff]
  %v4494 = vld [vmem:[%s3 + $0x1c8] sm:$0xff]
  %v4495 = vld [vmem:[%s3 + $0x1d0] sm:$0xff]
  %v4496 = vld [vmem:[%s3 + $0x1d8] sm:$0xff]
  %v4497 = vld [vmem:[%s3 + $0x1e0] sm:$0xff]
  %v4498 = vld [vmem:[%s3 + $0x1e8] sm:$0xff]
  %v4499 = vld [vmem:[%s3 + $0x1f0] sm:$0xff]
  %v4500 = vld [vmem:[%s3 + $0x1f8] sm:$0xff]
  %v4501 = vld [vmem:[%s3 + $0x200] sm:$0xff]
  %v4502 = vld [vmem:[%s3 + $0x208] sm:$0xff]
  %v4503 = vld [vmem:[%s3 + $0x210] sm:$0xff]
  %v4504 = vld [vmem:[%s3 + $0x218] sm:$0xff]
  %v4505 = vld [vmem:[%s3 + $0x220] sm:$0xff]
  %v4506 = vld [vmem:[%s3 + $0x228] sm:$0xff]
  %v4507 = vld [vmem:[%s3 + $0x230] sm:$0xff]
  %v4508 = vld [vmem:[%s3 + $0x238] sm:$0xff]
  %v4509 = vld [vmem:[%s3 + $0x240] sm:$0xff]
  %v4510 = vld [vmem:[%s3 + $0x248] sm:$0xff]
  %v4511 = vld [vmem:[%s3 + $0x250] sm:$0xff]
  %v4512 = vld [vmem:[%s3 + $0x258] sm:$0xff]
  %v4513 = vld [vmem:[%s3 + $0x260] sm:$0xff]
  %v4514 = vld [vmem:[%s3 + $0x268] sm:$0xff]
  %v4515 = vld [vmem:[%s3 + $0x270] sm:$0xff]
  %v4516 = vld [vmem:[%s3 + $0x278] sm:$0xff]
  %v4517 = vld [vmem:[%s3 + $0x280] sm:$0xff]
  %v4518 = vld [vmem:[%s3 + $0x288] sm:$0xff]
  %v4519 = vld [vmem:[%s3 + $0x290] sm:$0xff]
  %v4520 = vld [vmem:[%s3 + $0x298] sm:$0xff]
  %v4521 = vld [vmem:[%s3 + $0x2a0] sm:$0xff]
  %v4522 = vld [vmem:[%s3 + $0x2a8] sm:$0xff]
  %v4523 = vld [vmem:[%s3 + $0x2b0] sm:$0xff]
  %v4524 = vld [vmem:[%s3 + $0x2b8] sm:$0xff]
  %v4525 = vld [vmem:[%s3 + $0x2c0] sm:$0xff]
  %v4526 = vld [vmem:[%s3 + $0x2c8] sm:$0xff]
  %v4527 = vld [vmem:[%s3 + $0x2d0] sm:$0xff]
  %v4528 = vld [vmem:[%s3 + $0x2d8] sm:$0xff]
  %v4529 = vld [vmem:[%s3 + $0x2e0] sm:$0xff]
  %v4530 = vld [vmem:[%s3 + $0x2e8] sm:$0xff]
  %v4531 = vld [vmem:[%s3 + $0x2f0] sm:$0xff]
  %v4532 = vld [vmem:[%s3 + $0x2f8] sm:$0xff]
  %v4533 = vld [vmem:[%s3 + $0x300] sm:$0xff]
  %v4534 = vld [vmem:[%s3 + $0x308] sm:$0xff]
  %v4535 = vld [vmem:[%s3 + $0x310] sm:$0xff]
  %v4536 = vld [vmem:[%s3 + $0x318] sm:$0xff]
  %v4537 = vld [vmem:[%s3 + $0x320] sm:$0xff]
  %v4538 = vld [vmem:[%s3 + $0x328] sm:$0xff]
  %v4539 = vld [vmem:[%s3 + $0x330] sm:$0xff]
  %v4540 = vld [vmem:[%s3 + $0x338] sm:$0xff]
  %v4541 = vld [vmem:[%s3 + $0x340] sm:$0xff]
  %v4542 = vld [vmem:[%s3 + $0x348] sm:$0xff]
  %v4543 = vld [vmem:[%s3 + $0x350] sm:$0xff]
  %v4544 = vld [vmem:[%s3 + $0x358] sm:$0xff]
  %v4545 = vld [vmem:[%s3 + $0x360] sm:$0xff]
  %v4546 = vld [vmem:[%s3 + $0x368] sm:$0xff]
  %v4547 = vld [vmem:[%s3 + $0x370] sm:$0xff]
  %v4548 = vld [vmem:[%s3 + $0x378] sm:$0xff]
  %v4549 = vld [vmem:[%s3 + $0x380] sm:$0xff]
  %v4550 = vld [vmem:[%s3 + $0x388] sm:$0xff]
  %v4551 = vld [vmem:[%s3 + $0x390] sm:$0xff]
  %v4552 = vld [vmem:[%s3 + $0x398] sm:$0xff]
  %v4553 = vld [vmem:[%s3 + $0x3a0] sm:$0xff]
  %v4554 = vld [vmem:[%s3 + $0x3a8] sm:$0xff]
  %v4555 = vld [vmem:[%s3 + $0x3b0] sm:$0xff]
  %v4556 = vld [vmem:[%s3 + $0x3b8] sm:$0xff]
  %v4557 = vld [vmem:[%s3 + $0x3c0] sm:$0xff]
  %v4558 = vld [vmem:[%s3 + $0x3c8] sm:$0xff]
  %v4559 = vld [vmem:[%s3 + $0x3d0] sm:$0xff]
  %v4560 = vld [vmem:[%s3 + $0x3d8] sm:$0xff]
  %v4561 = vld [vmem:[%s3 + $0x3e0] sm:$0xff]
  %v4562 = vld [vmem:[%s3 + $0x3e8] sm:$0xff]
  %v4563 = vld [vmem:[%s3 + $0x3f0] sm:$0xff]
  %v4564 = vld [vmem:[%s3 + $0x3f8] sm:$0xff]
  %v4565 = vld [vmem:[%s3 + $0x400] sm:$0xff]
  %v4566 = vld [vmem:[%s3 + $0x408] sm:$0xff]
  %v4567 = vld [vmem:[%s3 + $0x410] sm:$0xff]
  %v4568 = vld [vmem:[%s3 + $0x418] sm:$0xff]
  %v4569 = vld [vmem:[%s3 + $0x420] sm:$0xff]
  %v4570 = vld [vmem:[%s3 + $0x428] sm:$0xff]
  %v4571 = vld [vmem:[%s3 + $0x430] sm:$0xff]
  %v4572 = vld [vmem:[%s3 + $0x438] sm:$0xff]
  %v4573 = vld [vmem:[%s3 + $0x440] sm:$0xff]
  %v4574 = vld [vmem:[%s3 + $0x448] sm:$0xff]
  %v4575 = vld [vmem:[%s3 + $0x450] sm:$0xff]
  %v4576 = vld [vmem:[%s3 + $0x458] sm:$0xff]
  %v4577 = vld [vmem:[%s3 + $0x460] sm:$0xff]
  %v4578 = vld [vmem:[%s3 + $0x468] sm:$0xff]
  %v4579 = vld [vmem:[%s3 + $0x470] sm:$0xff]
  %v4580 = vld [vmem:[%s3 + $0x478] sm:$0xff]
  %v4581 = vld [vmem:[%s3 + $0x480] sm:$0xff]
  %v4582 = vld [vmem:[%s3 + $0x488] sm:$0xff]
  %v4583 = vld [vmem:[%s3 + $0x490] sm:$0xff]
  %v4584 = vld [vmem:[%s3 + $0x498] sm:$0xff]
  %v4585 = vld [vmem:[%s3 + $0x4a0] sm:$0xff]
  %v4586 = vld [vmem:[%s3 + $0x4a8] sm:$0xff]
  %v4587 = vld [vmem:[%s3 + $0x4b0] sm:$0xff]
  %v4588 = vld [vmem:[%s3 + $0x4b8] sm:$0xff]
  %v4589 = vld [vmem:[%s3 + $0x4c0] sm:$0xff]
  %v4590 = vld [vmem:[%s3 + $0x4c8] sm:$0xff]
  %v4591 = vld [vmem:[%s3 + $0x4d0] sm:$0xff]
  %v4592 = vld [vmem:[%s3 + $0x4d8] sm:$0xff]
  %v4593 = vld [vmem:[%s3 + $0x4e0] sm:$0xff]
  %v4594 = vld [vmem:[%s3 + $0x4e8] sm:$0xff]
  %v4595 = vld [vmem:[%s3 + $0x4f0] sm:$0xff]
  %v4596 = vld [vmem:[%s3 + $0x4f8] sm:$0xff]
  %v4597 = vld [vmem:[%s3 + $0x500] sm:$0xff]
  %v4598 = vld [vmem:[%s3 + $0x508] sm:$0xff]
  %v4599 = vld [vmem:[%s3 + $0x510] sm:$0xff]
  %v4600 = vld [vmem:[%s3 + $0x518] sm:$0xff]
  %v4601 = vld [vmem:[%s3 + $0x520] sm:$0xff]
  %v4602 = vld [vmem:[%s3 + $0x528] sm:$0xff]
  %v4603 = vld [vmem:[%s3 + $0x530] sm:$0xff]
  %v4604 = vld [vmem:[%s3 + $0x538] sm:$0xff]
  %v4605 = vld [vmem:[%s3 + $0x540] sm:$0xff]
  %v4606 = vld [vmem:[%s3 + $0x548] sm:$0xff]
  %v4607 = vld [vmem:[%s3 + $0x550] sm:$0xff]
  %v4608 = vld [vmem:[%s3 + $0x558] sm:$0xff]
  %v4609 = vld [vmem:[%s3 + $0x560] sm:$0xff]
  %v4610 = vld [vmem:[%s3 + $0x568] sm:$0xff]
  %v4611 = vld [vmem:[%s3 + $0x570] sm:$0xff]
  %v4612 = vld [vmem:[%s3 + $0x578] sm:$0xff]
  %v4613 = vld [vmem:[%s3 + $0x580] sm:$0xff]
  %v4614 = vld [vmem:[%s3 + $0x588] sm:$0xff]
  %v4615 = vld [vmem:[%s3 + $0x590] sm:$0xff]
  %v4616 = vld [vmem:[%s3 + $0x598] sm:$0xff]
  %v4617 = vld [vmem:[%s3 + $0x5a0] sm:$0xff]
  %v4618 = vld [vmem:[%s3 + $0x5a8] sm:$0xff]
  %v4619 = vld [vmem:[%s3 + $0x5b0] sm:$0xff]
  %v4620 = vld [vmem:[%s3 + $0x5b8] sm:$0xff]
  %v4621 = vld [vmem:[%s3 + $0x5c0] sm:$0xff]
  %v4622 = vld [vmem:[%s3 + $0x5c8] sm:$0xff]
  %v4623 = vld [vmem:[%s3 + $0x5d0] sm:$0xff]
  %v4624 = vld [vmem:[%s3 + $0x5d8] sm:$0xff]
  %v4625 = vld [vmem:[%s3 + $0x5e0] sm:$0xff]
  %v4626 = vld [vmem:[%s3 + $0x5e8] sm:$0xff]
  %v4627 = vld [vmem:[%s3 + $0x5f0] sm:$0xff]
  %v4628 = vld [vmem:[%s3 + $0x5f8] sm:$0xff]
  %v4821 = vunpack.c.l.b16 %v4437
  %v4822 = vunpack.c.h.b16 %v4437
  %v4823 = vunpack.c.l.b16 %v4438
  %v4824 = vunpack.c.h.b16 %v4438
  %v4825 = vunpack.c.l.b16 %v4439
  %v4826 = vunpack.c.h.b16 %v4439
  %v4827 = vunpack.c.l.b16 %v4440
  %v4828 = vunpack.c.h.b16 %v4440
  %v4829 = vunpack.c.l.b16 %v4441
  %v4830 = vunpack.c.h.b16 %v4441
  %v4831 = vunpack.c.l.b16 %v4442
  %v4832 = vunpack.c.h.b16 %v4442
  %v4833 = vunpack.c.l.b16 %v4443
  %v4834 = vunpack.c.h.b16 %v4443
  %v4835 = vunpack.c.l.b16 %v4444
  %v4836 = vunpack.c.h.b16 %v4444
  %v4837 = vunpack.c.l.b16 %v4445
  %v4838 = vunpack.c.h.b16 %v4445
  %v4839 = vunpack.c.l.b16 %v4446
  %v4840 = vunpack.c.h.b16 %v4446
  %v4841 = vunpack.c.l.b16 %v4447
  %v4842 = vunpack.c.h.b16 %v4447
  %v4843 = vunpack.c.l.b16 %v4448
  %v4844 = vunpack.c.h.b16 %v4448
  %v4845 = vunpack.c.l.b16 %v4449
  %v4846 = vunpack.c.h.b16 %v4449
  %v4847 = vunpack.c.l.b16 %v4450
  %v4848 = vunpack.c.h.b16 %v4450
  %v4849 = vunpack.c.l.b16 %v4451
  %v4850 = vunpack.c.h.b16 %v4451
  %v4851 = vunpack.c.l.b16 %v4452
  %v4852 = vunpack.c.h.b16 %v4452
  %v4853 = vunpack.c.l.b16 %v4453
  %v4854 = vunpack.c.h.b16 %v4453
  %v4855 = vunpack.c.l.b16 %v4454
  %v4856 = vunpack.c.h.b16 %v4454
  %v4857 = vunpack.c.l.b16 %v4455
  %v4858 = vunpack.c.h.b16 %v4455
  %v4859 = vunpack.c.l.b16 %v4456
  %v4860 = vunpack.c.h.b16 %v4456
  %v4861 = vunpack.c.l.b16 %v4457
  %v4862 = vunpack.c.h.b16 %v4457
  %v4863 = vunpack.c.l.b16 %v4458
  %v4864 = vunpack.c.h.b16 %v4458
  %v4865 = vunpack.c.l.b16 %v4459
  %v4866 = vunpack.c.h.b16 %v4459
  %v4867 = vunpack.c.l.b16 %v4460
  %v4868 = vunpack.c.h.b16 %v4460
  %v4869 = vunpack.c.l.b16 %v4461
  %v4870 = vunpack.c.h.b16 %v4461
  %v4871 = vunpack.c.l.b16 %v4462
  %v4872 = vunpack.c.h.b16 %v4462
  %v4873 = vunpack.c.l.b16 %v4463
  %v4874 = vunpack.c.h.b16 %v4463
  %v4875 = vunpack.c.l.b16 %v4464
  %v4876 = vunpack.c.h.b16 %v4464
  %v4877 = vunpack.c.l.b16 %v4465
  %v4878 = vunpack.c.h.b16 %v4465
  %v4879 = vunpack.c.l.b16 %v4466
  %v4880 = vunpack.c.h.b16 %v4466
  %v4881 = vunpack.c.l.b16 %v4467
  %v4882 = vunpack.c.h.b16 %v4467
  %v4883 = vunpack.c.l.b16 %v4468
  %v4884 = vunpack.c.h.b16 %v4468
  %v4885 = vunpack.c.l.b16 %v4469
  %v4886 = vunpack.c.h.b16 %v4469
  %v4887 = vunpack.c.l.b16 %v4470
  %v4888 = vunpack.c.h.b16 %v4470
  %v4889 = vunpack.c.l.b16 %v4471
  %v4890 = vunpack.c.h.b16 %v4471
  %v4891 = vunpack.c.l.b16 %v4472
  %v4892 = vunpack.c.h.b16 %v4472
  %v4893 = vunpack.c.l.b16 %v4473
  %v4894 = vunpack.c.h.b16 %v4473
  %v4895 = vunpack.c.l.b16 %v4474
  %v4896 = vunpack.c.h.b16 %v4474
  %v4897 = vunpack.c.l.b16 %v4475
  %v4898 = vunpack.c.h.b16 %v4475
  %v4899 = vunpack.c.l.b16 %v4476
  %v4900 = vunpack.c.h.b16 %v4476
  %v4901 = vunpack.c.l.b16 %v4477
  %v4902 = vunpack.c.h.b16 %v4477
  %v4903 = vunpack.c.l.b16 %v4478
  %v4904 = vunpack.c.h.b16 %v4478
  %v4905 = vunpack.c.l.b16 %v4479
  %v4906 = vunpack.c.h.b16 %v4479
  %v4907 = vunpack.c.l.b16 %v4480
  %v4908 = vunpack.c.h.b16 %v4480
  %v4909 = vunpack.c.l.b16 %v4481
  %v4910 = vunpack.c.h.b16 %v4481
  %v4911 = vunpack.c.l.b16 %v4482
  %v4912 = vunpack.c.h.b16 %v4482
  %v4913 = vunpack.c.l.b16 %v4483
  %v4914 = vunpack.c.h.b16 %v4483
  %v4915 = vunpack.c.l.b16 %v4484
  %v4916 = vunpack.c.h.b16 %v4484
  %v4917 = vunpack.c.l.b16 %v4485
  %v4918 = vunpack.c.h.b16 %v4485
  %v4919 = vunpack.c.l.b16 %v4486
  %v4920 = vunpack.c.h.b16 %v4486
  %v4921 = vunpack.c.l.b16 %v4487
  %v4922 = vunpack.c.h.b16 %v4487
  %v4923 = vunpack.c.l.b16 %v4488
  %v4924 = vunpack.c.h.b16 %v4488
  %v4925 = vunpack.c.l.b16 %v4489
  %v4926 = vunpack.c.h.b16 %v4489
  %v4927 = vunpack.c.l.b16 %v4490
  %v4928 = vunpack.c.h.b16 %v4490
  %v4929 = vunpack.c.l.b16 %v4491
  %v4930 = vunpack.c.h.b16 %v4491
  %v4931 = vunpack.c.l.b16 %v4492
  %v4932 = vunpack.c.h.b16 %v4492
  %v4933 = vunpack.c.l.b16 %v4493
  %v4934 = vunpack.c.h.b16 %v4493
  %v4935 = vunpack.c.l.b16 %v4494
  %v4936 = vunpack.c.h.b16 %v4494
  %v4937 = vunpack.c.l.b16 %v4495
  %v4938 = vunpack.c.h.b16 %v4495
  %v4939 = vunpack.c.l.b16 %v4496
  %v4940 = vunpack.c.h.b16 %v4496
  %v4941 = vunpack.c.l.b16 %v4497
  %v4942 = vunpack.c.h.b16 %v4497
  %v4943 = vunpack.c.l.b16 %v4498
  %v4944 = vunpack.c.h.b16 %v4498
  %v4945 = vunpack.c.l.b16 %v4499
  %v4946 = vunpack.c.h.b16 %v4499
  %v4947 = vunpack.c.l.b16 %v4500
  %v4948 = vunpack.c.h.b16 %v4500
  %v4949 = vunpack.c.l.b16 %v4501
  %v4950 = vunpack.c.h.b16 %v4501
  %v4951 = vunpack.c.l.b16 %v4502
  %v4952 = vunpack.c.h.b16 %v4502
  %v4953 = vunpack.c.l.b16 %v4503
  %v4954 = vunpack.c.h.b16 %v4503
  %v4955 = vunpack.c.l.b16 %v4504
  %v4956 = vunpack.c.h.b16 %v4504
  %v4957 = vunpack.c.l.b16 %v4505
  %v4958 = vunpack.c.h.b16 %v4505
  %v4959 = vunpack.c.l.b16 %v4506
  %v4960 = vunpack.c.h.b16 %v4506
  %v4961 = vunpack.c.l.b16 %v4507
  %v4962 = vunpack.c.h.b16 %v4507
  %v4963 = vunpack.c.l.b16 %v4508
  %v4964 = vunpack.c.h.b16 %v4508
  %v4965 = vunpack.c.l.b16 %v4509
  %v4966 = vunpack.c.h.b16 %v4509
  %v4967 = vunpack.c.l.b16 %v4510
  %v4968 = vunpack.c.h.b16 %v4510
  %v4969 = vunpack.c.l.b16 %v4511
  %v4970 = vunpack.c.h.b16 %v4511
  %v4971 = vunpack.c.l.b16 %v4512
  %v4972 = vunpack.c.h.b16 %v4512
  %v4973 = vunpack.c.l.b16 %v4513
  %v4974 = vunpack.c.h.b16 %v4513
  %v4975 = vunpack.c.l.b16 %v4514
  %v4976 = vunpack.c.h.b16 %v4514
  %v4977 = vunpack.c.l.b16 %v4515
  %v4978 = vunpack.c.h.b16 %v4515
  %v4979 = vunpack.c.l.b16 %v4516
  %v4980 = vunpack.c.h.b16 %v4516
  %v4981 = vunpack.c.l.b16 %v4517
  %v4982 = vunpack.c.h.b16 %v4517
  %v4983 = vunpack.c.l.b16 %v4518
  %v4984 = vunpack.c.h.b16 %v4518
  %v4985 = vunpack.c.l.b16 %v4519
  %v4986 = vunpack.c.h.b16 %v4519
  %v4987 = vunpack.c.l.b16 %v4520
  %v4988 = vunpack.c.h.b16 %v4520
  %v4989 = vunpack.c.l.b16 %v4521
  %v4990 = vunpack.c.h.b16 %v4521
  %v4991 = vunpack.c.l.b16 %v4522
  %v4992 = vunpack.c.h.b16 %v4522
  %v4993 = vunpack.c.l.b16 %v4523
  %v4994 = vunpack.c.h.b16 %v4523
  %v4995 = vunpack.c.l.b16 %v4524
  %v4996 = vunpack.c.h.b16 %v4524
  %v4997 = vunpack.c.l.b16 %v4525
  %v4998 = vunpack.c.h.b16 %v4525
  %v4999 = vunpack.c.l.b16 %v4526
  %v5000 = vunpack.c.h.b16 %v4526
  %v5001 = vunpack.c.l.b16 %v4527
  %v5002 = vunpack.c.h.b16 %v4527
  %v5003 = vunpack.c.l.b16 %v4528
  %v5004 = vunpack.c.h.b16 %v4528
  %v5005 = vunpack.c.l.b16 %v4529
  %v5006 = vunpack.c.h.b16 %v4529
  %v5007 = vunpack.c.l.b16 %v4530
  %v5008 = vunpack.c.h.b16 %v4530
  %v5009 = vunpack.c.l.b16 %v4531
  %v5010 = vunpack.c.h.b16 %v4531
  %v5011 = vunpack.c.l.b16 %v4532
  %v5012 = vunpack.c.h.b16 %v4532
  %v5013 = vunpack.c.l.b16 %v4533
  %v5014 = vunpack.c.h.b16 %v4533
  %v5015 = vunpack.c.l.b16 %v4534
  %v5016 = vunpack.c.h.b16 %v4534
  %v5017 = vunpack.c.l.b16 %v4535
  %v5018 = vunpack.c.h.b16 %v4535
  %v5019 = vunpack.c.l.b16 %v4536
  %v5020 = vunpack.c.h.b16 %v4536
  %v5021 = vunpack.c.l.b16 %v4537
  %v5022 = vunpack.c.h.b16 %v4537
  %v5023 = vunpack.c.l.b16 %v4538
  %v5024 = vunpack.c.h.b16 %v4538
  %v5025 = vunpack.c.l.b16 %v4539
  %v5026 = vunpack.c.h.b16 %v4539
  %v5027 = vunpack.c.l.b16 %v4540
  %v5028 = vunpack.c.h.b16 %v4540
  %v5029 = vunpack.c.l.b16 %v4541
  %v5030 = vunpack.c.h.b16 %v4541
  %v5031 = vunpack.c.l.b16 %v4542
  %v5032 = vunpack.c.h.b16 %v4542
  %v5033 = vunpack.c.l.b16 %v4543
  %v5034 = vunpack.c.h.b16 %v4543
  %v5035 = vunpack.c.l.b16 %v4544
  %v5036 = vunpack.c.h.b16 %v4544
  %v5037 = vunpack.c.l.b16 %v4545
  %v5038 = vunpack.c.h.b16 %v4545
  %v5039 = vunpack.c.l.b16 %v4546
  %v5040 = vunpack.c.h.b16 %v4546
  %v5041 = vunpack.c.l.b16 %v4547
  %v5042 = vunpack.c.h.b16 %v4547
  %v5043 = vunpack.c.l.b16 %v4548
  %v5044 = vunpack.c.h.b16 %v4548
  %v5045 = vunpack.c.l.b16 %v4549
  %v5046 = vunpack.c.h.b16 %v4549
  %v5047 = vunpack.c.l.b16 %v4550
  %v5048 = vunpack.c.h.b16 %v4550
  %v5049 = vunpack.c.l.b16 %v4551
  %v5050 = vunpack.c.h.b16 %v4551
  %v5051 = vunpack.c.l.b16 %v4552
  %v5052 = vunpack.c.h.b16 %v4552
  %v5053 = vunpack.c.l.b16 %v4553
  %v5054 = vunpack.c.h.b16 %v4553
  %v5055 = vunpack.c.l.b16 %v4554
  %v5056 = vunpack.c.h.b16 %v4554
  %v5057 = vunpack.c.l.b16 %v4555
  %v5058 = vunpack.c.h.b16 %v4555
  %v5059 = vunpack.c.l.b16 %v4556
  %v5060 = vunpack.c.h.b16 %v4556
  %v5061 = vunpack.c.l.b16 %v4557
  %v5062 = vunpack.c.h.b16 %v4557
  %v5063 = vunpack.c.l.b16 %v4558
  %v5064 = vunpack.c.h.b16 %v4558
  %v5065 = vunpack.c.l.b16 %v4559
  %v5066 = vunpack.c.h.b16 %v4559
  %v5067 = vunpack.c.l.b16 %v4560
  %v5068 = vunpack.c.h.b16 %v4560
  %v5069 = vunpack.c.l.b16 %v4561
  %v5070 = vunpack.c.h.b16 %v4561
  %v5071 = vunpack.c.l.b16 %v4562
  %v5072 = vunpack.c.h.b16 %v4562
  %v5073 = vunpack.c.l.b16 %v4563
  %v5074 = vunpack.c.h.b16 %v4563
  %v5075 = vunpack.c.l.b16 %v4564
  %v5076 = vunpack.c.h.b16 %v4564
  %v5077 = vunpack.c.l.b16 %v4565
  %v5078 = vunpack.c.h.b16 %v4565
  %v5079 = vunpack.c.l.b16 %v4566
  %v5080 = vunpack.c.h.b16 %v4566
  %v5081 = vunpack.c.l.b16 %v4567
  %v5082 = vunpack.c.h.b16 %v4567
  %v5083 = vunpack.c.l.b16 %v4568
  %v5084 = vunpack.c.h.b16 %v4568
  %v5085 = vunpack.c.l.b16 %v4569
  %v5086 = vunpack.c.h.b16 %v4569
  %v5087 = vunpack.c.l.b16 %v4570
  %v5088 = vunpack.c.h.b16 %v4570
  %v5089 = vunpack.c.l.b16 %v4571
  %v5090 = vunpack.c.h.b16 %v4571
  %v5091 = vunpack.c.l.b16 %v4572
  %v5092 = vunpack.c.h.b16 %v4572
  %v5093 = vunpack.c.l.b16 %v4573
  %v5094 = vunpack.c.h.b16 %v4573
  %v5095 = vunpack.c.l.b16 %v4574
  %v5096 = vunpack.c.h.b16 %v4574
  %v5097 = vunpack.c.l.b16 %v4575
  %v5098 = vunpack.c.h.b16 %v4575
  %v5099 = vunpack.c.l.b16 %v4576
  %v5100 = vunpack.c.h.b16 %v4576
  %v5101 = vunpack.c.l.b16 %v4577
  %v5102 = vunpack.c.h.b16 %v4577
  %v5103 = vunpack.c.l.b16 %v4578
  %v5104 = vunpack.c.h.b16 %v4578
  %v5105 = vunpack.c.l.b16 %v4579
  %v5106 = vunpack.c.h.b16 %v4579
  %v5107 = vunpack.c.l.b16 %v4580
  %v5108 = vunpack.c.h.b16 %v4580
  %v5109 = vunpack.c.l.b16 %v4581
  %v5110 = vunpack.c.h.b16 %v4581
  %v5111 = vunpack.c.l.b16 %v4582
  %v5112 = vunpack.c.h.b16 %v4582
  %v5113 = vunpack.c.l.b16 %v4583
  %v5114 = vunpack.c.h.b16 %v4583
  %v5115 = vunpack.c.l.b16 %v4584
  %v5116 = vunpack.c.h.b16 %v4584
  %v5117 = vunpack.c.l.b16 %v4585
  %v5118 = vunpack.c.h.b16 %v4585
  %v5119 = vunpack.c.l.b16 %v4586
  %v5120 = vunpack.c.h.b16 %v4586
  %v5121 = vunpack.c.l.b16 %v4587
  %v5122 = vunpack.c.h.b16 %v4587
  %v5123 = vunpack.c.l.b16 %v4588
  %v5124 = vunpack.c.h.b16 %v4588
  %v5125 = vunpack.c.l.b16 %v4589
  %v5126 = vunpack.c.h.b16 %v4589
  %v5127 = vunpack.c.l.b16 %v4590
  %v5128 = vunpack.c.h.b16 %v4590
  %v5129 = vunpack.c.l.b16 %v4591
  %v5130 = vunpack.c.h.b16 %v4591
  %v5131 = vunpack.c.l.b16 %v4592
  %v5132 = vunpack.c.h.b16 %v4592
  %v5133 = vunpack.c.l.b16 %v4593
  %v5134 = vunpack.c.h.b16 %v4593
  %v5135 = vunpack.c.l.b16 %v4594
  %v5136 = vunpack.c.h.b16 %v4594
  %v5137 = vunpack.c.l.b16 %v4595
  %v5138 = vunpack.c.h.b16 %v4595
  %v5139 = vunpack.c.l.b16 %v4596
  %v5140 = vunpack.c.h.b16 %v4596
  %v5141 = vunpack.c.l.b16 %v4597
  %v5142 = vunpack.c.h.b16 %v4597
  %v5143 = vunpack.c.l.b16 %v4598
  %v5144 = vunpack.c.h.b16 %v4598
  %v5145 = vunpack.c.l.b16 %v4599
  %v5146 = vunpack.c.h.b16 %v4599
  %v5147 = vunpack.c.l.b16 %v4600
  %v5148 = vunpack.c.h.b16 %v4600
  %v5149 = vunpack.c.l.b16 %v4601
  %v5150 = vunpack.c.h.b16 %v4601
  %v5151 = vunpack.c.l.b16 %v4602
  %v5152 = vunpack.c.h.b16 %v4602
  %v5153 = vunpack.c.l.b16 %v4603
  %v5154 = vunpack.c.h.b16 %v4603
  %v5155 = vunpack.c.l.b16 %v4604
  %v5156 = vunpack.c.h.b16 %v4604
  %v5157 = vunpack.c.l.b16 %v4605
  %v5158 = vunpack.c.h.b16 %v4605
  %v5159 = vunpack.c.l.b16 %v4606
  %v5160 = vunpack.c.h.b16 %v4606
  %v5161 = vunpack.c.l.b16 %v4607
  %v5162 = vunpack.c.h.b16 %v4607
  %v5163 = vunpack.c.l.b16 %v4608
  %v5164 = vunpack.c.h.b16 %v4608
  %v5165 = vunpack.c.l.b16 %v4609
  %v5166 = vunpack.c.h.b16 %v4609
  %v5167 = vunpack.c.l.b16 %v4610
  %v5168 = vunpack.c.h.b16 %v4610
  %v5169 = vunpack.c.l.b16 %v4611
  %v5170 = vunpack.c.h.b16 %v4611
  %v5171 = vunpack.c.l.b16 %v4612
  %v5172 = vunpack.c.h.b16 %v4612
  %v5173 = vunpack.c.l.b16 %v4613
  %v5174 = vunpack.c.h.b16 %v4613
  %v5175 = vunpack.c.l.b16 %v4614
  %v5176 = vunpack.c.h.b16 %v4614
  %v5177 = vunpack.c.l.b16 %v4615
  %v5178 = vunpack.c.h.b16 %v4615
  %v5179 = vunpack.c.l.b16 %v4616
  %v5180 = vunpack.c.h.b16 %v4616
  %v5181 = vunpack.c.l.b16 %v4617
  %v5182 = vunpack.c.h.b16 %v4617
  %v5183 = vunpack.c.l.b16 %v4618
  %v5184 = vunpack.c.h.b16 %v4618
  %v5185 = vunpack.c.l.b16 %v4619
  %v5186 = vunpack.c.h.b16 %v4619
  %v5187 = vunpack.c.l.b16 %v4620
  %v5188 = vunpack.c.h.b16 %v4620
  %v5189 = vunpack.c.l.b16 %v4621
  %v5190 = vunpack.c.h.b16 %v4621
  %v5191 = vunpack.c.l.b16 %v4622
  %v5192 = vunpack.c.h.b16 %v4622
  %v5193 = vunpack.c.l.b16 %v4623
  %v5194 = vunpack.c.h.b16 %v4623
  %v5195 = vunpack.c.l.b16 %v4624
  %v5196 = vunpack.c.h.b16 %v4624
  %v5197 = vunpack.c.l.b16 %v4625
  %v5198 = vunpack.c.h.b16 %v4625
  %v5199 = vunpack.c.l.b16 %v4626
  %v5200 = vunpack.c.h.b16 %v4626
  %v5201 = vunpack.c.l.b16 %v4627
  %v5202 = vunpack.c.h.b16 %v4627
  %v5203 = vunpack.c.l.b16 %v4628
  %v5204 = vunpack.c.h.b16 %v4628
  %v5205 = vpack.c.b16 %v4825, %v4821
  %v5206 = vpack.c.b16 %v4826, %v4822
  %v5207 = vpack.c.b16 %v4827, %v4823
  %v5208 = vpack.c.b16 %v4828, %v4824
  %v5209 = vpack.c.b16 %v4833, %v4829
  %v5210 = vpack.c.b16 %v4834, %v4830
  %v5211 = vpack.c.b16 %v4835, %v4831
  %v5212 = vpack.c.b16 %v4836, %v4832
  %v5213 = vpack.c.b16 %v4841, %v4837
  %v5214 = vpack.c.b16 %v4842, %v4838
  %v5215 = vpack.c.b16 %v4843, %v4839
  %v5216 = vpack.c.b16 %v4844, %v4840
  %v5217 = vpack.c.b16 %v4849, %v4845
  %v5218 = vpack.c.b16 %v4850, %v4846
  %v5219 = vpack.c.b16 %v4851, %v4847
  %v5220 = vpack.c.b16 %v4852, %v4848
  %v5221 = vpack.c.b16 %v4857, %v4853
  %v5222 = vpack.c.b16 %v4858, %v4854
  %v5223 = vpack.c.b16 %v4859, %v4855
  %v5224 = vpack.c.b16 %v4860, %v4856
  %v5225 = vpack.c.b16 %v4865, %v4861
  %v5226 = vpack.c.b16 %v4866, %v4862
  %v5227 = vpack.c.b16 %v4867, %v4863
  %v5228 = vpack.c.b16 %v4868, %v4864
  %v5229 = vpack.c.b16 %v4873, %v4869
  %v5230 = vpack.c.b16 %v4874, %v4870
  %v5231 = vpack.c.b16 %v4875, %v4871
  %v5232 = vpack.c.b16 %v4876, %v4872
  %v5233 = vpack.c.b16 %v4881, %v4877
  %v5234 = vpack.c.b16 %v4882, %v4878
  %v5235 = vpack.c.b16 %v4883, %v4879
  %v5236 = vpack.c.b16 %v4884, %v4880
  %v5237 = vpack.c.b16 %v4889, %v4885
  %v5238 = vpack.c.b16 %v4890, %v4886
  %v5239 = vpack.c.b16 %v4891, %v4887
  %v5240 = vpack.c.b16 %v4892, %v4888
  %v5241 = vpack.c.b16 %v4897, %v4893
  %v5242 = vpack.c.b16 %v4898, %v4894
  %v5243 = vpack.c.b16 %v4899, %v4895
  %v5244 = vpack.c.b16 %v4900, %v4896
  %v5245 = vpack.c.b16 %v4905, %v4901
  %v5246 = vpack.c.b16 %v4906, %v4902
  %v5247 = vpack.c.b16 %v4907, %v4903
  %v5248 = vpack.c.b16 %v4908, %v4904
  %v5249 = vpack.c.b16 %v4913, %v4909
  %v5250 = vpack.c.b16 %v4914, %v4910
  %v5251 = vpack.c.b16 %v4915, %v4911
  %v5252 = vpack.c.b16 %v4916, %v4912
  %v5253 = vpack.c.b16 %v4921, %v4917
  %v5254 = vpack.c.b16 %v4922, %v4918
  %v5255 = vpack.c.b16 %v4923, %v4919
  %v5256 = vpack.c.b16 %v4924, %v4920
  %v5257 = vpack.c.b16 %v4929, %v4925
  %v5258 = vpack.c.b16 %v4930, %v4926
  %v5259 = vpack.c.b16 %v4931, %v4927
  %v5260 = vpack.c.b16 %v4932, %v4928
  %v5261 = vpack.c.b16 %v4937, %v4933
  %v5262 = vpack.c.b16 %v4938, %v4934
  %v5263 = vpack.c.b16 %v4939, %v4935
  %v5264 = vpack.c.b16 %v4940, %v4936
  %v5265 = vpack.c.b16 %v4945, %v4941
  %v5266 = vpack.c.b16 %v4946, %v4942
  %v5267 = vpack.c.b16 %v4947, %v4943
  %v5268 = vpack.c.b16 %v4948, %v4944
  %v5269 = vpack.c.b16 %v4953, %v4949
  %v5270 = vpack.c.b16 %v4954, %v4950
  %v5271 = vpack.c.b16 %v4955, %v4951
  %v5272 = vpack.c.b16 %v4956, %v4952
  %v5273 = vpack.c.b16 %v4961, %v4957
  %v5274 = vpack.c.b16 %v4962, %v4958
  %v5275 = vpack.c.b16 %v4963, %v4959
  %v5276 = vpack.c.b16 %v4964, %v4960
  %v5277 = vpack.c.b16 %v4969, %v4965
  %v5278 = vpack.c.b16 %v4970, %v4966
  %v5279 = vpack.c.b16 %v4971, %v4967
  %v5280 = vpack.c.b16 %v4972, %v4968
  %v5281 = vpack.c.b16 %v4977, %v4973
  %v5282 = vpack.c.b16 %v4978, %v4974
  %v5283 = vpack.c.b16 %v4979, %v4975
  %v5284 = vpack.c.b16 %v4980, %v4976
  %v5285 = vpack.c.b16 %v4985, %v4981
  %v5286 = vpack.c.b16 %v4986, %v4982
  %v5287 = vpack.c.b16 %v4987, %v4983
  %v5288 = vpack.c.b16 %v4988, %v4984
  %v5289 = vpack.c.b16 %v4993, %v4989
  %v5290 = vpack.c.b16 %v4994, %v4990
  %v5291 = vpack.c.b16 %v4995, %v4991
  %v5292 = vpack.c.b16 %v4996, %v4992
  %v5293 = vpack.c.b16 %v5001, %v4997
  %v5294 = vpack.c.b16 %v5002, %v4998
  %v5295 = vpack.c.b16 %v5003, %v4999
  %v5296 = vpack.c.b16 %v5004, %v5000
  %v5297 = vpack.c.b16 %v5009, %v5005
  %v5298 = vpack.c.b16 %v5010, %v5006
  %v5299 = vpack.c.b16 %v5011, %v5007
  %v5300 = vpack.c.b16 %v5012, %v5008
  %v5301 = vpack.c.b16 %v5017, %v5013
  %v5302 = vpack.c.b16 %v5018, %v5014
  %v5303 = vpack.c.b16 %v5019, %v5015
  %v5304 = vpack.c.b16 %v5020, %v5016
  %v5305 = vpack.c.b16 %v5025, %v5021
  %v5306 = vpack.c.b16 %v5026, %v5022
  %v5307 = vpack.c.b16 %v5027, %v5023
  %v5308 = vpack.c.b16 %v5028, %v5024
  %v5309 = vpack.c.b16 %v5033, %v5029
  %v5310 = vpack.c.b16 %v5034, %v5030
  %v5311 = vpack.c.b16 %v5035, %v5031
  %v5312 = vpack.c.b16 %v5036, %v5032
  %v5313 = vpack.c.b16 %v5041, %v5037
  %v5314 = vpack.c.b16 %v5042, %v5038
  %v5315 = vpack.c.b16 %v5043, %v5039
  %v5316 = vpack.c.b16 %v5044, %v5040
  %v5317 = vpack.c.b16 %v5049, %v5045
  %v5318 = vpack.c.b16 %v5050, %v5046
  %v5319 = vpack.c.b16 %v5051, %v5047
  %v5320 = vpack.c.b16 %v5052, %v5048
  %v5321 = vpack.c.b16 %v5057, %v5053
  %v5322 = vpack.c.b16 %v5058, %v5054
  %v5323 = vpack.c.b16 %v5059, %v5055
  %v5324 = vpack.c.b16 %v5060, %v5056
  %v5325 = vpack.c.b16 %v5065, %v5061
  %v5326 = vpack.c.b16 %v5066, %v5062
  %v5327 = vpack.c.b16 %v5067, %v5063
  %v5328 = vpack.c.b16 %v5068, %v5064
  %v5329 = vpack.c.b16 %v5073, %v5069
  %v5330 = vpack.c.b16 %v5074, %v5070
  %v5331 = vpack.c.b16 %v5075, %v5071
  %v5332 = vpack.c.b16 %v5076, %v5072
  %v5333 = vpack.c.b16 %v5081, %v5077
  %v5334 = vpack.c.b16 %v5082, %v5078
  %v5335 = vpack.c.b16 %v5083, %v5079
  %v5336 = vpack.c.b16 %v5084, %v5080
  %v5337 = vpack.c.b16 %v5089, %v5085
  %v5338 = vpack.c.b16 %v5090, %v5086
  %v5339 = vpack.c.b16 %v5091, %v5087
  %v5340 = vpack.c.b16 %v5092, %v5088
  %v5341 = vpack.c.b16 %v5097, %v5093
  %v5342 = vpack.c.b16 %v5098, %v5094
  %v5343 = vpack.c.b16 %v5099, %v5095
  %v5344 = vpack.c.b16 %v5100, %v5096
  %v5345 = vpack.c.b16 %v5105, %v5101
  %v5346 = vpack.c.b16 %v5106, %v5102
  %v5347 = vpack.c.b16 %v5107, %v5103
  %v5348 = vpack.c.b16 %v5108, %v5104
  %v5349 = vpack.c.b16 %v5113, %v5109
  %v5350 = vpack.c.b16 %v5114, %v5110
  %v5351 = vpack.c.b16 %v5115, %v5111
  %v5352 = vpack.c.b16 %v5116, %v5112
  %v5353 = vpack.c.b16 %v5121, %v5117
  %v5354 = vpack.c.b16 %v5122, %v5118
  %v5355 = vpack.c.b16 %v5123, %v5119
  %v5356 = vpack.c.b16 %v5124, %v5120
  %v5357 = vpack.c.b16 %v5129, %v5125
  %v5358 = vpack.c.b16 %v5130, %v5126
  %v5359 = vpack.c.b16 %v5131, %v5127
  %v5360 = vpack.c.b16 %v5132, %v5128
  %v5361 = vpack.c.b16 %v5137, %v5133
  %v5362 = vpack.c.b16 %v5138, %v5134
  %v5363 = vpack.c.b16 %v5139, %v5135
  %v5364 = vpack.c.b16 %v5140, %v5136
  %v5365 = vpack.c.b16 %v5145, %v5141
  %v5366 = vpack.c.b16 %v5146, %v5142
  %v5367 = vpack.c.b16 %v5147, %v5143
  %v5368 = vpack.c.b16 %v5148, %v5144
  %v5369 = vpack.c.b16 %v5153, %v5149
  %v5370 = vpack.c.b16 %v5154, %v5150
  %v5371 = vpack.c.b16 %v5155, %v5151
  %v5372 = vpack.c.b16 %v5156, %v5152
  %v5373 = vpack.c.b16 %v5161, %v5157
  %v5374 = vpack.c.b16 %v5162, %v5158
  %v5375 = vpack.c.b16 %v5163, %v5159
  %v5376 = vpack.c.b16 %v5164, %v5160
  %v5377 = vpack.c.b16 %v5169, %v5165
  %v5378 = vpack.c.b16 %v5170, %v5166
  %v5379 = vpack.c.b16 %v5171, %v5167
  %v5380 = vpack.c.b16 %v5172, %v5168
  %v5381 = vpack.c.b16 %v5177, %v5173
  %v5382 = vpack.c.b16 %v5178, %v5174
  %v5383 = vpack.c.b16 %v5179, %v5175
  %v5384 = vpack.c.b16 %v5180, %v5176
  %v5385 = vpack.c.b16 %v5185, %v5181
  %v5386 = vpack.c.b16 %v5186, %v5182
  %v5387 = vpack.c.b16 %v5187, %v5183
  %v5388 = vpack.c.b16 %v5188, %v5184
  %v5389 = vpack.c.b16 %v5193, %v5189
  %v5390 = vpack.c.b16 %v5194, %v5190
  %v5391 = vpack.c.b16 %v5195, %v5191
  %v5392 = vpack.c.b16 %v5196, %v5192
  %v5393 = vpack.c.b16 %v5201, %v5197
  %v5394 = vpack.c.b16 %v5202, %v5198
  %v5395 = vpack.c.b16 %v5203, %v5199
  %v5396 = vpack.c.b16 %v5204, %v5200
  %5589 = vmatpush.bf16.msra.mxu0 %v5233
  %5590 = vmatpush.bf16.msra.mxu0 %v5229
  %5591 = vmatpush.bf16.msra.mxu0 %v5225
  %5592 = vmatpush.bf16.msra.mxu0 %v5221
  %5593 = vmatpush.bf16.msra.mxu0 %v5217
  %5594 = vmatpush.bf16.msra.mxu0 %v5213
  %5595 = vmatpush.bf16.msra.mxu0 %v5209
  %5596 = vmatpush.bf16.msra.mxu0 %v5205
  %5597 = vmatmul.bf16.gmra.mxu0 %v4395
  %v5598 = vpop.f32.mrf.mxu0
  %v5599 = vadd.f32 0.0, %v5598
  %v5600 = vpop.f32.mrf.mxu0
  %v5601 = vadd.f32 0.0, %v5600
  %5602 = vmatmul.bf16.gmra.mxu0 %v4401
  %v5603 = vpop.f32.mrf.mxu0
  %v5604 = vadd.f32 0.0, %v5603
  %v5605 = vpop.f32.mrf.mxu0
  %v5606 = vadd.f32 0.0, %v5605
  %5607 = vmatmul.bf16.gmra.mxu0 %v4407
  %v5608 = vpop.f32.mrf.mxu0
  %v5609 = vadd.f32 0.0, %v5608
  %v5610 = vpop.f32.mrf.mxu0
  %v5611 = vadd.f32 0.0, %v5610
  %5612 = vmatmul.bf16.gmra.mxu0 %v4413
  %v5613 = vpop.f32.mrf.mxu0
  %v5614 = vadd.f32 0.0, %v5613
  %v5615 = vpop.f32.mrf.mxu0
  %v5616 = vadd.f32 0.0, %v5615
  %5617 = vmatmul.bf16.gmra.mxu0 %v4419
  %v5618 = vpop.f32.mrf.mxu0
  %v5619 = vadd.f32 0.0, %v5618
  %v5620 = vpop.f32.mrf.mxu0
  %v5621 = vadd.f32 0.0, %v5620
  %5622 = vmatmul.bf16.gmra.mxu0 %v4425
  %v5623 = vpop.f32.mrf.mxu0
  %v5624 = vadd.f32 0.0, %v5623
  %v5625 = vpop.f32.mrf.mxu0
  %v5626 = vadd.f32 0.0, %v5625
  %5627 = vmatmul.bf16.gmra.mxu0 %v4431
  %v5628 = vpop.f32.mrf.mxu0
  %v5629 = vadd.f32 0.0, %v5628
  %v5630 = vpop.f32.mrf.mxu0
  %v5631 = vadd.f32 0.0, %v5630
  %5632 = vdwg.mxu0
  %5633 = vmatpush.bf16.msra.mxu0 %v5265
  %5634 = vmatpush.bf16.msra.mxu0 %v5261
  %5635 = vmatpush.bf16.msra.mxu0 %v5257
  %5636 = vmatpush.bf16.msra.mxu0 %v5253
  %5637 = vmatpush.bf16.msra.mxu0 %v5249
  %5638 = vmatpush.bf16.msra.mxu0 %v5245
  %5639 = vmatpush.bf16.msra.mxu0 %v5241
  %5640 = vmatpush.bf16.msra.mxu0 %v5237
  %5641 = vmatmul.bf16.gmra.mxu0 %v4396
  %v5642 = vpop.f32.mrf.mxu0
  %v5643 = vadd.f32 %v5599, %v5642
  %v5644 = vpop.f32.mrf.mxu0
  %v5645 = vadd.f32 %v5601, %v5644
  %5646 = vmatmul.bf16.gmra.mxu0 %v4402
  %v5647 = vpop.f32.mrf.mxu0
  %v5648 = vadd.f32 %v5604, %v5647
  %v5649 = vpop.f32.mrf.mxu0
  %v5650 = vadd.f32 %v5606, %v5649
  %5651 = vmatmul.bf16.gmra.mxu0 %v4408
  %v5652 = vpop.f32.mrf.mxu0
  %v5653 = vadd.f32 %v5609, %v5652
  %v5654 = vpop.f32.mrf.mxu0
  %v5655 = vadd.f32 %v5611, %v5654
  %5656 = vmatmul.bf16.gmra.mxu0 %v4414
  %v5657 = vpop.f32.mrf.mxu0
  %v5658 = vadd.f32 %v5614, %v5657
  %v5659 = vpop.f32.mrf.mxu0
  %v5660 = vadd.f32 %v5616, %v5659
  %5661 = vmatmul.bf16.gmra.mxu0 %v4420
  %v5662 = vpop.f32.mrf.mxu0
  %v5663 = vadd.f32 %v5619, %v5662
  %v5664 = vpop.f32.mrf.mxu0
  %v5665 = vadd.f32 %v5621, %v5664
  %5666 = vmatmul.bf16.gmra.mxu0 %v4426
  %v5667 = vpop.f32.mrf.mxu0
  %v5668 = vadd.f32 %v5624, %v5667
  %v5669 = vpop.f32.mrf.mxu0
  %v5670 = vadd.f32 %v5626, %v5669
  %5671 = vmatmul.bf16.gmra.mxu0 %v4432
  %v5672 = vpop.f32.mrf.mxu0
  %v5673 = vadd.f32 %v5629, %v5672
  %v5674 = vpop.f32.mrf.mxu0
  %v5675 = vadd.f32 %v5631, %v5674
  %5676 = vdwg.mxu0
  %5677 = vmatpush.bf16.msra.mxu0 %v5297
  %5678 = vmatpush.bf16.msra.mxu0 %v5293
  %5679 = vmatpush.bf16.msra.mxu0 %v5289
  %5680 = vmatpush.bf16.msra.mxu0 %v5285
  %5681 = vmatpush.bf16.msra.mxu0 %v5281
  %5682 = vmatpush.bf16.msra.mxu0 %v5277
  %5683 = vmatpush.bf16.msra.mxu0 %v5273
  %5684 = vmatpush.bf16.msra.mxu0 %v5269
  %5685 = vmatmul.bf16.gmra.mxu0 %v4397
  %v5686 = vpop.f32.mrf.mxu0
  %v5687 = vadd.f32 %v5643, %v5686
  %v5688 = vpop.f32.mrf.mxu0
  %v5689 = vadd.f32 %v5645, %v5688
  %5690 = vmatmul.bf16.gmra.mxu0 %v4403
  %v5691 = vpop.f32.mrf.mxu0
  %v5692 = vadd.f32 %v5648, %v5691
  %v5693 = vpop.f32.mrf.mxu0
  %v5694 = vadd.f32 %v5650, %v5693
  %5695 = vmatmul.bf16.gmra.mxu0 %v4409
  %v5696 = vpop.f32.mrf.mxu0
  %v5697 = vadd.f32 %v5653, %v5696
  %v5698 = vpop.f32.mrf.mxu0
  %v5699 = vadd.f32 %v5655, %v5698
  %5700 = vmatmul.bf16.gmra.mxu0 %v4415
  %v5701 = vpop.f32.mrf.mxu0
  %v5702 = vadd.f32 %v5658, %v5701
  %v5703 = vpop.f32.mrf.mxu0
  %v5704 = vadd.f32 %v5660, %v5703
  %5705 = vmatmul.bf16.gmra.mxu0 %v4421
  %v5706 = vpop.f32.mrf.mxu0
  %v5707 = vadd.f32 %v5663, %v5706
  %v5708 = vpop.f32.mrf.mxu0
  %v5709 = vadd.f32 %v5665, %v5708
  %5710 = vmatmul.bf16.gmra.mxu0 %v4427
  %v5711 = vpop.f32.mrf.mxu0
  %v5712 = vadd.f32 %v5668, %v5711
  %v5713 = vpop.f32.mrf.mxu0
  %v5714 = vadd.f32 %v5670, %v5713
  %5715 = vmatmul.bf16.gmra.mxu0 %v4433
  %v5716 = vpop.f32.mrf.mxu0
  %v5717 = vadd.f32 %v5673, %v5716
  %v5718 = vpop.f32.mrf.mxu0
  %v5719 = vadd.f32 %v5675, %v5718
  %5720 = vdwg.mxu0
  %5721 = vmatpush.bf16.msra.mxu0 %v5329
  %5722 = vmatpush.bf16.msra.mxu0 %v5325
  %5723 = vmatpush.bf16.msra.mxu0 %v5321
  %5724 = vmatpush.bf16.msra.mxu0 %v5317
  %5725 = vmatpush.bf16.msra.mxu0 %v5313
  %5726 = vmatpush.bf16.msra.mxu0 %v5309
  %5727 = vmatpush.bf16.msra.mxu0 %v5305
  %5728 = vmatpush.bf16.msra.mxu0 %v5301
  %5729 = vmatmul.bf16.gmra.mxu0 %v4398
  %v5730 = vpop.f32.mrf.mxu0
  %v5731 = vadd.f32 %v5687, %v5730
  %v5732 = vpop.f32.mrf.mxu0
  %v5733 = vadd.f32 %v5689, %v5732
  %5734 = vmatmul.bf16.gmra.mxu0 %v4404
  %v5735 = vpop.f32.mrf.mxu0
  %v5736 = vadd.f32 %v5692, %v5735
  %v5737 = vpop.f32.mrf.mxu0
  %v5738 = vadd.f32 %v5694, %v5737
  %5739 = vmatmul.bf16.gmra.mxu0 %v4410
  %v5740 = vpop.f32.mrf.mxu0
  %v5741 = vadd.f32 %v5697, %v5740
  %v5742 = vpop.f32.mrf.mxu0
  %v5743 = vadd.f32 %v5699, %v5742
  %5744 = vmatmul.bf16.gmra.mxu0 %v4416
  %v5745 = vpop.f32.mrf.mxu0
  %v5746 = vadd.f32 %v5702, %v5745
  %v5747 = vpop.f32.mrf.mxu0
  %v5748 = vadd.f32 %v5704, %v5747
  %5749 = vmatmul.bf16.gmra.mxu0 %v4422
  %v5750 = vpop.f32.mrf.mxu0
  %v5751 = vadd.f32 %v5707, %v5750
  %v5752 = vpop.f32.mrf.mxu0
  %v5753 = vadd.f32 %v5709, %v5752
  %5754 = vmatmul.bf16.gmra.mxu0 %v4428
  %v5755 = vpop.f32.mrf.mxu0
  %v5756 = vadd.f32 %v5712, %v5755
  %v5757 = vpop.f32.mrf.mxu0
  %v5758 = vadd.f32 %v5714, %v5757
  %5759 = vmatmul.bf16.gmra.mxu0 %v4434
  %v5760 = vpop.f32.mrf.mxu0
  %v5761 = vadd.f32 %v5717, %v5760
  %v5762 = vpop.f32.mrf.mxu0
  %v5763 = vadd.f32 %v5719, %v5762
  %5764 = vdwg.mxu0
  %5765 = vmatpush.bf16.msra.mxu0 %v5361
  %5766 = vmatpush.bf16.msra.mxu0 %v5357
  %5767 = vmatpush.bf16.msra.mxu0 %v5353
  %5768 = vmatpush.bf16.msra.mxu0 %v5349
  %5769 = vmatpush.bf16.msra.mxu0 %v5345
  %5770 = vmatpush.bf16.msra.mxu0 %v5341
  %5771 = vmatpush.bf16.msra.mxu0 %v5337
  %5772 = vmatpush.bf16.msra.mxu0 %v5333
  %5773 = vmatmul.bf16.gmra.mxu0 %v4399
  %v5774 = vpop.f32.mrf.mxu0
  %v5775 = vadd.f32 %v5731, %v5774
  %v5776 = vpop.f32.mrf.mxu0
  %v5777 = vadd.f32 %v5733, %v5776
  %5778 = vmatmul.bf16.gmra.mxu0 %v4405
  %v5779 = vpop.f32.mrf.mxu0
  %v5780 = vadd.f32 %v5736, %v5779
  %v5781 = vpop.f32.mrf.mxu0
  %v5782 = vadd.f32 %v5738, %v5781
  %5783 = vmatmul.bf16.gmra.mxu0 %v4411
  %v5784 = vpop.f32.mrf.mxu0
  %v5785 = vadd.f32 %v5741, %v5784
  %v5786 = vpop.f32.mrf.mxu0
  %v5787 = vadd.f32 %v5743, %v5786
  %5788 = vmatmul.bf16.gmra.mxu0 %v4417
  %v5789 = vpop.f32.mrf.mxu0
  %v5790 = vadd.f32 %v5746, %v5789
  %v5791 = vpop.f32.mrf.mxu0
  %v5792 = vadd.f32 %v5748, %v5791
  %5793 = vmatmul.bf16.gmra.mxu0 %v4423
  %v5794 = vpop.f32.mrf.mxu0
  %v5795 = vadd.f32 %v5751, %v5794
  %v5796 = vpop.f32.mrf.mxu0
  %v5797 = vadd.f32 %v5753, %v5796
  %5798 = vmatmul.bf16.gmra.mxu0 %v4429
  %v5799 = vpop.f32.mrf.mxu0
  %v5800 = vadd.f32 %v5756, %v5799
  %v5801 = vpop.f32.mrf.mxu0
  %v5802 = vadd.f32 %v5758, %v5801
  %5803 = vmatmul.bf16.gmra.mxu0 %v4435
  %v5804 = vpop.f32.mrf.mxu0
  %v5805 = vadd.f32 %v5761, %v5804
  %v5806 = vpop.f32.mrf.mxu0
  %v5807 = vadd.f32 %v5763, %v5806
  %5808 = vdwg.mxu0
  %5809 = vmatpush.bf16.msra.mxu0 %v5393
  %5810 = vmatpush.bf16.msra.mxu0 %v5389
  %5811 = vmatpush.bf16.msra.mxu0 %v5385
  %5812 = vmatpush.bf16.msra.mxu0 %v5381
  %5813 = vmatpush.bf16.msra.mxu0 %v5377
  %5814 = vmatpush.bf16.msra.mxu0 %v5373
  %5815 = vmatpush.bf16.msra.mxu0 %v5369
  %5816 = vmatpush.bf16.msra.mxu0 %v5365
  %5817 = vmatmul.bf16.gmra.mxu0 %v4400
  %v5818 = vpop.f32.mrf.mxu0
  %v5819 = vadd.f32 %v5775, %v5818
  %v5820 = vpop.f32.mrf.mxu0
  %v5821 = vadd.f32 %v5777, %v5820
  %5822 = vmatmul.bf16.gmra.mxu0 %v4406
  %v5823 = vpop.f32.mrf.mxu0
  %v5824 = vadd.f32 %v5780, %v5823
  %v5825 = vpop.f32.mrf.mxu0
  %v5826 = vadd.f32 %v5782, %v5825
  %5827 = vmatmul.bf16.gmra.mxu0 %v4412
  %v5828 = vpop.f32.mrf.mxu0
  %v5829 = vadd.f32 %v5785, %v5828
  %v5830 = vpop.f32.mrf.mxu0
  %v5831 = vadd.f32 %v5787, %v5830
  %5832 = vmatmul.bf16.gmra.mxu0 %v4418
  %v5833 = vpop.f32.mrf.mxu0
  %v5834 = vadd.f32 %v5790, %v5833
  %v5835 = vpop.f32.mrf.mxu0
  %v5836 = vadd.f32 %v5792, %v5835
  %5837 = vmatmul.bf16.gmra.mxu0 %v4424
  %v5838 = vpop.f32.mrf.mxu0
  %v5839 = vadd.f32 %v5795, %v5838
  %v5840 = vpop.f32.mrf.mxu0
  %v5841 = vadd.f32 %v5797, %v5840
  %5842 = vmatmul.bf16.gmra.mxu0 %v4430
  %v5843 = vpop.f32.mrf.mxu0
  %v5844 = vadd.f32 %v5800, %v5843
  %v5845 = vpop.f32.mrf.mxu0
  %v5846 = vadd.f32 %v5802, %v5845
  %5847 = vmatmul.bf16.gmra.mxu0 %v4436
  %v5848 = vpop.f32.mrf.mxu0
  %v5849 = vadd.f32 %v5805, %v5848
  %v5850 = vpop.f32.mrf.mxu0
  %v5851 = vadd.f32 %v5807, %v5850
  %5852 = vdwg.mxu0
  %5853 = vmatpush.bf16.msra.mxu0 %v5234
  %5854 = vmatpush.bf16.msra.mxu0 %v5230
  %5855 = vmatpush.bf16.msra.mxu0 %v5226
  %5856 = vmatpush.bf16.msra.mxu0 %v5222
  %5857 = vmatpush.bf16.msra.mxu0 %v5218
  %5858 = vmatpush.bf16.msra.mxu0 %v5214
  %5859 = vmatpush.bf16.msra.mxu0 %v5210
  %5860 = vmatpush.bf16.msra.mxu0 %v5206
  %5861 = vmatmul.bf16.gmra.mxu0 %v4395
  %v5862 = vpop.f32.mrf.mxu0
  %v5863 = vadd.f32 0.0, %v5862
  %v5864 = vpop.f32.mrf.mxu0
  %v5865 = vadd.f32 0.0, %v5864
  %5866 = vmatmul.bf16.gmra.mxu0 %v4401
  %v5867 = vpop.f32.mrf.mxu0
  %v5868 = vadd.f32 0.0, %v5867
  %v5869 = vpop.f32.mrf.mxu0
  %v5870 = vadd.f32 0.0, %v5869
  %5871 = vmatmul.bf16.gmra.mxu0 %v4407
  %v5872 = vpop.f32.mrf.mxu0
  %v5873 = vadd.f32 0.0, %v5872
  %v5874 = vpop.f32.mrf.mxu0
  %v5875 = vadd.f32 0.0, %v5874
  %5876 = vmatmul.bf16.gmra.mxu0 %v4413
  %v5877 = vpop.f32.mrf.mxu0
  %v5878 = vadd.f32 0.0, %v5877
  %v5879 = vpop.f32.mrf.mxu0
  %v5880 = vadd.f32 0.0, %v5879
  %5881 = vmatmul.bf16.gmra.mxu0 %v4419
  %v5882 = vpop.f32.mrf.mxu0
  %v5883 = vadd.f32 0.0, %v5882
  %v5884 = vpop.f32.mrf.mxu0
  %v5885 = vadd.f32 0.0, %v5884
  %5886 = vmatmul.bf16.gmra.mxu0 %v4425
  %v5887 = vpop.f32.mrf.mxu0
  %v5888 = vadd.f32 0.0, %v5887
  %v5889 = vpop.f32.mrf.mxu0
  %v5890 = vadd.f32 0.0, %v5889
  %5891 = vmatmul.bf16.gmra.mxu0 %v4431
  %v5892 = vpop.f32.mrf.mxu0
  %v5893 = vadd.f32 0.0, %v5892
  %v5894 = vpop.f32.mrf.mxu0
  %v5895 = vadd.f32 0.0, %v5894
  %5896 = vdwg.mxu0
  %5897 = vmatpush.bf16.msra.mxu0 %v5266
  %5898 = vmatpush.bf16.msra.mxu0 %v5262
  %5899 = vmatpush.bf16.msra.mxu0 %v5258
  %5900 = vmatpush.bf16.msra.mxu0 %v5254
  %5901 = vmatpush.bf16.msra.mxu0 %v5250
  %5902 = vmatpush.bf16.msra.mxu0 %v5246
  %5903 = vmatpush.bf16.msra.mxu0 %v5242
  %5904 = vmatpush.bf16.msra.mxu0 %v5238
  %5905 = vmatmul.bf16.gmra.mxu0 %v4396
  %v5906 = vpop.f32.mrf.mxu0
  %v5907 = vadd.f32 %v5863, %v5906
  %v5908 = vpop.f32.mrf.mxu0
  %v5909 = vadd.f32 %v5865, %v5908
  %5910 = vmatmul.bf16.gmra.mxu0 %v4402
  %v5911 = vpop.f32.mrf.mxu0
  %v5912 = vadd.f32 %v5868, %v5911
  %v5913 = vpop.f32.mrf.mxu0
  %v5914 = vadd.f32 %v5870, %v5913
  %5915 = vmatmul.bf16.gmra.mxu0 %v4408
  %v5916 = vpop.f32.mrf.mxu0
  %v5917 = vadd.f32 %v5873, %v5916
  %v5918 = vpop.f32.mrf.mxu0
  %v5919 = vadd.f32 %v5875, %v5918
  %5920 = vmatmul.bf16.gmra.mxu0 %v4414
  %v5921 = vpop.f32.mrf.mxu0
  %v5922 = vadd.f32 %v5878, %v5921
  %v5923 = vpop.f32.mrf.mxu0
  %v5924 = vadd.f32 %v5880, %v5923
  %5925 = vmatmul.bf16.gmra.mxu0 %v4420
  %v5926 = vpop.f32.mrf.mxu0
  %v5927 = vadd.f32 %v5883, %v5926
  %v5928 = vpop.f32.mrf.mxu0
  %v5929 = vadd.f32 %v5885, %v5928
  %5930 = vmatmul.bf16.gmra.mxu0 %v4426
  %v5931 = vpop.f32.mrf.mxu0
  %v5932 = vadd.f32 %v5888, %v5931
  %v5933 = vpop.f32.mrf.mxu0
  %v5934 = vadd.f32 %v5890, %v5933
  %5935 = vmatmul.bf16.gmra.mxu0 %v4432
  %v5936 = vpop.f32.mrf.mxu0
  %v5937 = vadd.f32 %v5893, %v5936
  %v5938 = vpop.f32.mrf.mxu0
  %v5939 = vadd.f32 %v5895, %v5938
  %5940 = vdwg.mxu0
  %5941 = vmatpush.bf16.msra.mxu0 %v5298
  %5942 = vmatpush.bf16.msra.mxu0 %v5294
  %5943 = vmatpush.bf16.msra.mxu0 %v5290
  %5944 = vmatpush.bf16.msra.mxu0 %v5286
  %5945 = vmatpush.bf16.msra.mxu0 %v5282
  %5946 = vmatpush.bf16.msra.mxu0 %v5278
  %5947 = vmatpush.bf16.msra.mxu0 %v5274
  %5948 = vmatpush.bf16.msra.mxu0 %v5270
  %5949 = vmatmul.bf16.gmra.mxu0 %v4397
  %v5950 = vpop.f32.mrf.mxu0
  %v5951 = vadd.f32 %v5907, %v5950
  %v5952 = vpop.f32.mrf.mxu0
  %v5953 = vadd.f32 %v5909, %v5952
  %5954 = vmatmul.bf16.gmra.mxu0 %v4403
  %v5955 = vpop.f32.mrf.mxu0
  %v5956 = vadd.f32 %v5912, %v5955
  %v5957 = vpop.f32.mrf.mxu0
  %v5958 = vadd.f32 %v5914, %v5957
  %5959 = vmatmul.bf16.gmra.mxu0 %v4409
  %v5960 = vpop.f32.mrf.mxu0
  %v5961 = vadd.f32 %v5917, %v5960
  %v5962 = vpop.f32.mrf.mxu0
  %v5963 = vadd.f32 %v5919, %v5962
  %5964 = vmatmul.bf16.gmra.mxu0 %v4415
  %v5965 = vpop.f32.mrf.mxu0
  %v5966 = vadd.f32 %v5922, %v5965
  %v5967 = vpop.f32.mrf.mxu0
  %v5968 = vadd.f32 %v5924, %v5967
  %5969 = vmatmul.bf16.gmra.mxu0 %v4421
  %v5970 = vpop.f32.mrf.mxu0
  %v5971 = vadd.f32 %v5927, %v5970
  %v5972 = vpop.f32.mrf.mxu0
  %v5973 = vadd.f32 %v5929, %v5972
  %5974 = vmatmul.bf16.gmra.mxu0 %v4427
  %v5975 = vpop.f32.mrf.mxu0
  %v5976 = vadd.f32 %v5932, %v5975
  %v5977 = vpop.f32.mrf.mxu0
  %v5978 = vadd.f32 %v5934, %v5977
  %5979 = vmatmul.bf16.gmra.mxu0 %v4433
  %v5980 = vpop.f32.mrf.mxu0
  %v5981 = vadd.f32 %v5937, %v5980
  %v5982 = vpop.f32.mrf.mxu0
  %v5983 = vadd.f32 %v5939, %v5982
  %5984 = vdwg.mxu0
  %5985 = vmatpush.bf16.msra.mxu0 %v5330
  %5986 = vmatpush.bf16.msra.mxu0 %v5326
  %5987 = vmatpush.bf16.msra.mxu0 %v5322
  %5988 = vmatpush.bf16.msra.mxu0 %v5318
  %5989 = vmatpush.bf16.msra.mxu0 %v5314
  %5990 = vmatpush.bf16.msra.mxu0 %v5310
  %5991 = vmatpush.bf16.msra.mxu0 %v5306
  %5992 = vmatpush.bf16.msra.mxu0 %v5302
  %5993 = vmatmul.bf16.gmra.mxu0 %v4398
  %v5994 = vpop.f32.mrf.mxu0
  %v5995 = vadd.f32 %v5951, %v5994
  %v5996 = vpop.f32.mrf.mxu0
  %v5997 = vadd.f32 %v5953, %v5996
  %5998 = vmatmul.bf16.gmra.mxu0 %v4404
  %v5999 = vpop.f32.mrf.mxu0
  %v6000 = vadd.f32 %v5956, %v5999
  %v6001 = vpop.f32.mrf.mxu0
  %v6002 = vadd.f32 %v5958, %v6001
  %6003 = vmatmul.bf16.gmra.mxu0 %v4410
  %v6004 = vpop.f32.mrf.mxu0
  %v6005 = vadd.f32 %v5961, %v6004
  %v6006 = vpop.f32.mrf.mxu0
  %v6007 = vadd.f32 %v5963, %v6006
  %6008 = vmatmul.bf16.gmra.mxu0 %v4416
  %v6009 = vpop.f32.mrf.mxu0
  %v6010 = vadd.f32 %v5966, %v6009
  %v6011 = vpop.f32.mrf.mxu0
  %v6012 = vadd.f32 %v5968, %v6011
  %6013 = vmatmul.bf16.gmra.mxu0 %v4422
  %v6014 = vpop.f32.mrf.mxu0
  %v6015 = vadd.f32 %v5971, %v6014
  %v6016 = vpop.f32.mrf.mxu0
  %v6017 = vadd.f32 %v5973, %v6016
  %6018 = vmatmul.bf16.gmra.mxu0 %v4428
  %v6019 = vpop.f32.mrf.mxu0
  %v6020 = vadd.f32 %v5976, %v6019
  %v6021 = vpop.f32.mrf.mxu0
  %v6022 = vadd.f32 %v5978, %v6021
  %6023 = vmatmul.bf16.gmra.mxu0 %v4434
  %v6024 = vpop.f32.mrf.mxu0
  %v6025 = vadd.f32 %v5981, %v6024
  %v6026 = vpop.f32.mrf.mxu0
  %v6027 = vadd.f32 %v5983, %v6026
  %6028 = vdwg.mxu0
  %6029 = vmatpush.bf16.msra.mxu0 %v5362
  %6030 = vmatpush.bf16.msra.mxu0 %v5358
  %6031 = vmatpush.bf16.msra.mxu0 %v5354
  %6032 = vmatpush.bf16.msra.mxu0 %v5350
  %6033 = vmatpush.bf16.msra.mxu0 %v5346
  %6034 = vmatpush.bf16.msra.mxu0 %v5342
  %6035 = vmatpush.bf16.msra.mxu0 %v5338
  %6036 = vmatpush.bf16.msra.mxu0 %v5334
  %6037 = vmatmul.bf16.gmra.mxu0 %v4399
  %v6038 = vpop.f32.mrf.mxu0
  %v6039 = vadd.f32 %v5995, %v6038
  %v6040 = vpop.f32.mrf.mxu0
  %v6041 = vadd.f32 %v5997, %v6040
  %6042 = vmatmul.bf16.gmra.mxu0 %v4405
  %v6043 = vpop.f32.mrf.mxu0
  %v6044 = vadd.f32 %v6000, %v6043
  %v6045 = vpop.f32.mrf.mxu0
  %v6046 = vadd.f32 %v6002, %v6045
  %6047 = vmatmul.bf16.gmra.mxu0 %v4411
  %v6048 = vpop.f32.mrf.mxu0
  %v6049 = vadd.f32 %v6005, %v6048
  %v6050 = vpop.f32.mrf.mxu0
  %v6051 = vadd.f32 %v6007, %v6050
  %6052 = vmatmul.bf16.gmra.mxu0 %v4417
  %v6053 = vpop.f32.mrf.mxu0
  %v6054 = vadd.f32 %v6010, %v6053
  %v6055 = vpop.f32.mrf.mxu0
  %v6056 = vadd.f32 %v6012, %v6055
  %6057 = vmatmul.bf16.gmra.mxu0 %v4423
  %v6058 = vpop.f32.mrf.mxu0
  %v6059 = vadd.f32 %v6015, %v6058
  %v6060 = vpop.f32.mrf.mxu0
  %v6061 = vadd.f32 %v6017, %v6060
  %6062 = vmatmul.bf16.gmra.mxu0 %v4429
  %v6063 = vpop.f32.mrf.mxu0
  %v6064 = vadd.f32 %v6020, %v6063
  %v6065 = vpop.f32.mrf.mxu0
  %v6066 = vadd.f32 %v6022, %v6065
  %6067 = vmatmul.bf16.gmra.mxu0 %v4435
  %v6068 = vpop.f32.mrf.mxu0
  %v6069 = vadd.f32 %v6025, %v6068
  %v6070 = vpop.f32.mrf.mxu0
  %v6071 = vadd.f32 %v6027, %v6070
  %6072 = vdwg.mxu0
  %6073 = vmatpush.bf16.msra.mxu0 %v5394
  %6074 = vmatpush.bf16.msra.mxu0 %v5390
  %6075 = vmatpush.bf16.msra.mxu0 %v5386
  %6076 = vmatpush.bf16.msra.mxu0 %v5382
  %6077 = vmatpush.bf16.msra.mxu0 %v5378
  %6078 = vmatpush.bf16.msra.mxu0 %v5374
  %6079 = vmatpush.bf16.msra.mxu0 %v5370
  %6080 = vmatpush.bf16.msra.mxu0 %v5366
  %6081 = vmatmul.bf16.gmra.mxu0 %v4400
  %v6082 = vpop.f32.mrf.mxu0
  %v6083 = vadd.f32 %v6039, %v6082
  %v6084 = vpop.f32.mrf.mxu0
  %v6085 = vadd.f32 %v6041, %v6084
  %6086 = vmatmul.bf16.gmra.mxu0 %v4406
  %v6087 = vpop.f32.mrf.mxu0
  %v6088 = vadd.f32 %v6044, %v6087
  %v6089 = vpop.f32.mrf.mxu0
  %v6090 = vadd.f32 %v6046, %v6089
  %6091 = vmatmul.bf16.gmra.mxu0 %v4412
  %v6092 = vpop.f32.mrf.mxu0
  %v6093 = vadd.f32 %v6049, %v6092
  %v6094 = vpop.f32.mrf.mxu0
  %v6095 = vadd.f32 %v6051, %v6094
  %6096 = vmatmul.bf16.gmra.mxu0 %v4418
  %v6097 = vpop.f32.mrf.mxu0
  %v6098 = vadd.f32 %v6054, %v6097
  %v6099 = vpop.f32.mrf.mxu0
  %v6100 = vadd.f32 %v6056, %v6099
  %6101 = vmatmul.bf16.gmra.mxu0 %v4424
  %v6102 = vpop.f32.mrf.mxu0
  %v6103 = vadd.f32 %v6059, %v6102
  %v6104 = vpop.f32.mrf.mxu0
  %v6105 = vadd.f32 %v6061, %v6104
  %6106 = vmatmul.bf16.gmra.mxu0 %v4430
  %v6107 = vpop.f32.mrf.mxu0
  %v6108 = vadd.f32 %v6064, %v6107
  %v6109 = vpop.f32.mrf.mxu0
  %v6110 = vadd.f32 %v6066, %v6109
  %6111 = vmatmul.bf16.gmra.mxu0 %v4436
  %v6112 = vpop.f32.mrf.mxu0
  %v6113 = vadd.f32 %v6069, %v6112
  %v6114 = vpop.f32.mrf.mxu0
  %v6115 = vadd.f32 %v6071, %v6114
  %6116 = vdwg.mxu0
  %6117 = vmatpush.bf16.msra.mxu0 %v5235
  %6118 = vmatpush.bf16.msra.mxu0 %v5231
  %6119 = vmatpush.bf16.msra.mxu0 %v5227
  %6120 = vmatpush.bf16.msra.mxu0 %v5223
  %6121 = vmatpush.bf16.msra.mxu0 %v5219
  %6122 = vmatpush.bf16.msra.mxu0 %v5215
  %6123 = vmatpush.bf16.msra.mxu0 %v5211
  %6124 = vmatpush.bf16.msra.mxu0 %v5207
  %6125 = vmatmul.bf16.gmra.mxu0 %v4395
  %v6126 = vpop.f32.mrf.mxu0
  %v6127 = vadd.f32 0.0, %v6126
  %v6128 = vpop.f32.mrf.mxu0
  %v6129 = vadd.f32 0.0, %v6128
  %6130 = vmatmul.bf16.gmra.mxu0 %v4401
  %v6131 = vpop.f32.mrf.mxu0
  %v6132 = vadd.f32 0.0, %v6131
  %v6133 = vpop.f32.mrf.mxu0
  %v6134 = vadd.f32 0.0, %v6133
  %6135 = vmatmul.bf16.gmra.mxu0 %v4407
  %v6136 = vpop.f32.mrf.mxu0
  %v6137 = vadd.f32 0.0, %v6136
  %v6138 = vpop.f32.mrf.mxu0
  %v6139 = vadd.f32 0.0, %v6138
  %6140 = vmatmul.bf16.gmra.mxu0 %v4413
  %v6141 = vpop.f32.mrf.mxu0
  %v6142 = vadd.f32 0.0, %v6141
  %v6143 = vpop.f32.mrf.mxu0
  %v6144 = vadd.f32 0.0, %v6143
  %6145 = vmatmul.bf16.gmra.mxu0 %v4419
  %v6146 = vpop.f32.mrf.mxu0
  %v6147 = vadd.f32 0.0, %v6146
  %v6148 = vpop.f32.mrf.mxu0
  %v6149 = vadd.f32 0.0, %v6148
  %6150 = vmatmul.bf16.gmra.mxu0 %v4425
  %v6151 = vpop.f32.mrf.mxu0
  %v6152 = vadd.f32 0.0, %v6151
  %v6153 = vpop.f32.mrf.mxu0
  %v6154 = vadd.f32 0.0, %v6153
  %6155 = vmatmul.bf16.gmra.mxu0 %v4431
  %v6156 = vpop.f32.mrf.mxu0
  %v6157 = vadd.f32 0.0, %v6156
  %v6158 = vpop.f32.mrf.mxu0
  %v6159 = vadd.f32 0.0, %v6158
  %6160 = vdwg.mxu0
  %6161 = vmatpush.bf16.msra.mxu0 %v5267
  %6162 = vmatpush.bf16.msra.mxu0 %v5263
  %6163 = vmatpush.bf16.msra.mxu0 %v5259
  %6164 = vmatpush.bf16.msra.mxu0 %v5255
  %6165 = vmatpush.bf16.msra.mxu0 %v5251
  %6166 = vmatpush.bf16.msra.mxu0 %v5247
  %6167 = vmatpush.bf16.msra.mxu0 %v5243
  %6168 = vmatpush.bf16.msra.mxu0 %v5239
  %6169 = vmatmul.bf16.gmra.mxu0 %v4396
  %v6170 = vpop.f32.mrf.mxu0
  %v6171 = vadd.f32 %v6127, %v6170
  %v6172 = vpop.f32.mrf.mxu0
  %v6173 = vadd.f32 %v6129, %v6172
  %6174 = vmatmul.bf16.gmra.mxu0 %v4402
  %v6175 = vpop.f32.mrf.mxu0
  %v6176 = vadd.f32 %v6132, %v6175
  %v6177 = vpop.f32.mrf.mxu0
  %v6178 = vadd.f32 %v6134, %v6177
  %6179 = vmatmul.bf16.gmra.mxu0 %v4408
  %v6180 = vpop.f32.mrf.mxu0
  %v6181 = vadd.f32 %v6137, %v6180
  %v6182 = vpop.f32.mrf.mxu0
  %v6183 = vadd.f32 %v6139, %v6182
  %6184 = vmatmul.bf16.gmra.mxu0 %v4414
  %v6185 = vpop.f32.mrf.mxu0
  %v6186 = vadd.f32 %v6142, %v6185
  %v6187 = vpop.f32.mrf.mxu0
  %v6188 = vadd.f32 %v6144, %v6187
  %6189 = vmatmul.bf16.gmra.mxu0 %v4420
  %v6190 = vpop.f32.mrf.mxu0
  %v6191 = vadd.f32 %v6147, %v6190
  %v6192 = vpop.f32.mrf.mxu0
  %v6193 = vadd.f32 %v6149, %v6192
  %6194 = vmatmul.bf16.gmra.mxu0 %v4426
  %v6195 = vpop.f32.mrf.mxu0
  %v6196 = vadd.f32 %v6152, %v6195
  %v6197 = vpop.f32.mrf.mxu0
  %v6198 = vadd.f32 %v6154, %v6197
  %6199 = vmatmul.bf16.gmra.mxu0 %v4432
  %v6200 = vpop.f32.mrf.mxu0
  %v6201 = vadd.f32 %v6157, %v6200
  %v6202 = vpop.f32.mrf.mxu0
  %v6203 = vadd.f32 %v6159, %v6202
  %6204 = vdwg.mxu0
  %6205 = vmatpush.bf16.msra.mxu0 %v5299
  %6206 = vmatpush.bf16.msra.mxu0 %v5295
  %6207 = vmatpush.bf16.msra.mxu0 %v5291
  %6208 = vmatpush.bf16.msra.mxu0 %v5287
  %6209 = vmatpush.bf16.msra.mxu0 %v5283
  %6210 = vmatpush.bf16.msra.mxu0 %v5279
  %6211 = vmatpush.bf16.msra.mxu0 %v5275
  %6212 = vmatpush.bf16.msra.mxu0 %v5271
  %6213 = vmatmul.bf16.gmra.mxu0 %v4397
  %v6214 = vpop.f32.mrf.mxu0
  %v6215 = vadd.f32 %v6171, %v6214
  %v6216 = vpop.f32.mrf.mxu0
  %v6217 = vadd.f32 %v6173, %v6216
  %6218 = vmatmul.bf16.gmra.mxu0 %v4403
  %v6219 = vpop.f32.mrf.mxu0
  %v6220 = vadd.f32 %v6176, %v6219
  %v6221 = vpop.f32.mrf.mxu0
  %v6222 = vadd.f32 %v6178, %v6221
  %6223 = vmatmul.bf16.gmra.mxu0 %v4409
  %v6224 = vpop.f32.mrf.mxu0
  %v6225 = vadd.f32 %v6181, %v6224
  %v6226 = vpop.f32.mrf.mxu0
  %v6227 = vadd.f32 %v6183, %v6226
  %6228 = vmatmul.bf16.gmra.mxu0 %v4415
  %v6229 = vpop.f32.mrf.mxu0
  %v6230 = vadd.f32 %v6186, %v6229
  %v6231 = vpop.f32.mrf.mxu0
  %v6232 = vadd.f32 %v6188, %v6231
  %6233 = vmatmul.bf16.gmra.mxu0 %v4421
  %v6234 = vpop.f32.mrf.mxu0
  %v6235 = vadd.f32 %v6191, %v6234
  %v6236 = vpop.f32.mrf.mxu0
  %v6237 = vadd.f32 %v6193, %v6236
  %6238 = vmatmul.bf16.gmra.mxu0 %v4427
  %v6239 = vpop.f32.mrf.mxu0
  %v6240 = vadd.f32 %v6196, %v6239
  %v6241 = vpop.f32.mrf.mxu0
  %v6242 = vadd.f32 %v6198, %v6241
  %6243 = vmatmul.bf16.gmra.mxu0 %v4433
  %v6244 = vpop.f32.mrf.mxu0
  %v6245 = vadd.f32 %v6201, %v6244
  %v6246 = vpop.f32.mrf.mxu0
  %v6247 = vadd.f32 %v6203, %v6246
  %6248 = vdwg.mxu0
  %6249 = vmatpush.bf16.msra.mxu0 %v5331
  %6250 = vmatpush.bf16.msra.mxu0 %v5327
  %6251 = vmatpush.bf16.msra.mxu0 %v5323
  %6252 = vmatpush.bf16.msra.mxu0 %v5319
  %6253 = vmatpush.bf16.msra.mxu0 %v5315
  %6254 = vmatpush.bf16.msra.mxu0 %v5311
  %6255 = vmatpush.bf16.msra.mxu0 %v5307
  %6256 = vmatpush.bf16.msra.mxu0 %v5303
  %6257 = vmatmul.bf16.gmra.mxu0 %v4398
  %v6258 = vpop.f32.mrf.mxu0
  %v6259 = vadd.f32 %v6215, %v6258
  %v6260 = vpop.f32.mrf.mxu0
  %v6261 = vadd.f32 %v6217, %v6260
  %6262 = vmatmul.bf16.gmra.mxu0 %v4404
  %v6263 = vpop.f32.mrf.mxu0
  %v6264 = vadd.f32 %v6220, %v6263
  %v6265 = vpop.f32.mrf.mxu0
  %v6266 = vadd.f32 %v6222, %v6265
  %6267 = vmatmul.bf16.gmra.mxu0 %v4410
  %v6268 = vpop.f32.mrf.mxu0
  %v6269 = vadd.f32 %v6225, %v6268
  %v6270 = vpop.f32.mrf.mxu0
  %v6271 = vadd.f32 %v6227, %v6270
  %6272 = vmatmul.bf16.gmra.mxu0 %v4416
  %v6273 = vpop.f32.mrf.mxu0
  %v6274 = vadd.f32 %v6230, %v6273
  %v6275 = vpop.f32.mrf.mxu0
  %v6276 = vadd.f32 %v6232, %v6275
  %6277 = vmatmul.bf16.gmra.mxu0 %v4422
  %v6278 = vpop.f32.mrf.mxu0
  %v6279 = vadd.f32 %v6235, %v6278
  %v6280 = vpop.f32.mrf.mxu0
  %v6281 = vadd.f32 %v6237, %v6280
  %6282 = vmatmul.bf16.gmra.mxu0 %v4428
  %v6283 = vpop.f32.mrf.mxu0
  %v6284 = vadd.f32 %v6240, %v6283
  %v6285 = vpop.f32.mrf.mxu0
  %v6286 = vadd.f32 %v6242, %v6285
  %6287 = vmatmul.bf16.gmra.mxu0 %v4434
  %v6288 = vpop.f32.mrf.mxu0
  %v6289 = vadd.f32 %v6245, %v6288
  %v6290 = vpop.f32.mrf.mxu0
  %v6291 = vadd.f32 %v6247, %v6290
  %6292 = vdwg.mxu0
  %6293 = vmatpush.bf16.msra.mxu0 %v5363
  %6294 = vmatpush.bf16.msra.mxu0 %v5359
  %6295 = vmatpush.bf16.msra.mxu0 %v5355
  %6296 = vmatpush.bf16.msra.mxu0 %v5351
  %6297 = vmatpush.bf16.msra.mxu0 %v5347
  %6298 = vmatpush.bf16.msra.mxu0 %v5343
  %6299 = vmatpush.bf16.msra.mxu0 %v5339
  %6300 = vmatpush.bf16.msra.mxu0 %v5335
  %6301 = vmatmul.bf16.gmra.mxu0 %v4399
  %v6302 = vpop.f32.mrf.mxu0
  %v6303 = vadd.f32 %v6259, %v6302
  %v6304 = vpop.f32.mrf.mxu0
  %v6305 = vadd.f32 %v6261, %v6304
  %6306 = vmatmul.bf16.gmra.mxu0 %v4405
  %v6307 = vpop.f32.mrf.mxu0
  %v6308 = vadd.f32 %v6264, %v6307
  %v6309 = vpop.f32.mrf.mxu0
  %v6310 = vadd.f32 %v6266, %v6309
  %6311 = vmatmul.bf16.gmra.mxu0 %v4411
  %v6312 = vpop.f32.mrf.mxu0
  %v6313 = vadd.f32 %v6269, %v6312
  %v6314 = vpop.f32.mrf.mxu0
  %v6315 = vadd.f32 %v6271, %v6314
  %6316 = vmatmul.bf16.gmra.mxu0 %v4417
  %v6317 = vpop.f32.mrf.mxu0
  %v6318 = vadd.f32 %v6274, %v6317
  %v6319 = vpop.f32.mrf.mxu0
  %v6320 = vadd.f32 %v6276, %v6319
  %6321 = vmatmul.bf16.gmra.mxu0 %v4423
  %v6322 = vpop.f32.mrf.mxu0
  %v6323 = vadd.f32 %v6279, %v6322
  %v6324 = vpop.f32.mrf.mxu0
  %v6325 = vadd.f32 %v6281, %v6324
  %6326 = vmatmul.bf16.gmra.mxu0 %v4429
  %v6327 = vpop.f32.mrf.mxu0
  %v6328 = vadd.f32 %v6284, %v6327
  %v6329 = vpop.f32.mrf.mxu0
  %v6330 = vadd.f32 %v6286, %v6329
  %6331 = vmatmul.bf16.gmra.mxu0 %v4435
  %v6332 = vpop.f32.mrf.mxu0
  %v6333 = vadd.f32 %v6289, %v6332
  %v6334 = vpop.f32.mrf.mxu0
  %v6335 = vadd.f32 %v6291, %v6334
  %6336 = vdwg.mxu0
  %6337 = vmatpush.bf16.msra.mxu0 %v5395
  %6338 = vmatpush.bf16.msra.mxu0 %v5391
  %6339 = vmatpush.bf16.msra.mxu0 %v5387
  %6340 = vmatpush.bf16.msra.mxu0 %v5383
  %6341 = vmatpush.bf16.msra.mxu0 %v5379
  %6342 = vmatpush.bf16.msra.mxu0 %v5375
  %6343 = vmatpush.bf16.msra.mxu0 %v5371
  %6344 = vmatpush.bf16.msra.mxu0 %v5367
  %6345 = vmatmul.bf16.gmra.mxu0 %v4400
  %v6346 = vpop.f32.mrf.mxu0
  %v6347 = vadd.f32 %v6303, %v6346
  %v6348 = vpop.f32.mrf.mxu0
  %v6349 = vadd.f32 %v6305, %v6348
  %6350 = vmatmul.bf16.gmra.mxu0 %v4406
  %v6351 = vpop.f32.mrf.mxu0
  %v6352 = vadd.f32 %v6308, %v6351
  %v6353 = vpop.f32.mrf.mxu0
  %v6354 = vadd.f32 %v6310, %v6353
  %6355 = vmatmul.bf16.gmra.mxu0 %v4412
  %v6356 = vpop.f32.mrf.mxu0
  %v6357 = vadd.f32 %v6313, %v6356
  %v6358 = vpop.f32.mrf.mxu0
  %v6359 = vadd.f32 %v6315, %v6358
  %6360 = vmatmul.bf16.gmra.mxu0 %v4418
  %v6361 = vpop.f32.mrf.mxu0
  %v6362 = vadd.f32 %v6318, %v6361
  %v6363 = vpop.f32.mrf.mxu0
  %v6364 = vadd.f32 %v6320, %v6363
  %6365 = vmatmul.bf16.gmra.mxu0 %v4424
  %v6366 = vpop.f32.mrf.mxu0
  %v6367 = vadd.f32 %v6323, %v6366
  %v6368 = vpop.f32.mrf.mxu0
  %v6369 = vadd.f32 %v6325, %v6368
  %6370 = vmatmul.bf16.gmra.mxu0 %v4430
  %v6371 = vpop.f32.mrf.mxu0
  %v6372 = vadd.f32 %v6328, %v6371
  %v6373 = vpop.f32.mrf.mxu0
  %v6374 = vadd.f32 %v6330, %v6373
  %6375 = vmatmul.bf16.gmra.mxu0 %v4436
  %v6376 = vpop.f32.mrf.mxu0
  %v6377 = vadd.f32 %v6333, %v6376
  %v6378 = vpop.f32.mrf.mxu0
  %v6379 = vadd.f32 %v6335, %v6378
  %6380 = vdwg.mxu0
  %6381 = vmatpush.bf16.msra.mxu0 %v5236
  %6382 = vmatpush.bf16.msra.mxu0 %v5232
  %6383 = vmatpush.bf16.msra.mxu0 %v5228
  %6384 = vmatpush.bf16.msra.mxu0 %v5224
  %6385 = vmatpush.bf16.msra.mxu0 %v5220
  %6386 = vmatpush.bf16.msra.mxu0 %v5216
  %6387 = vmatpush.bf16.msra.mxu0 %v5212
  %6388 = vmatpush.bf16.msra.mxu0 %v5208
  %6389 = vmatmul.bf16.gmra.mxu0 %v4395
  %v6390 = vpop.f32.mrf.mxu0
  %v6391 = vadd.f32 0.0, %v6390
  %v6392 = vpop.f32.mrf.mxu0
  %v6393 = vadd.f32 0.0, %v6392
  %6394 = vmatmul.bf16.gmra.mxu0 %v4401
  %v6395 = vpop.f32.mrf.mxu0
  %v6396 = vadd.f32 0.0, %v6395
  %v6397 = vpop.f32.mrf.mxu0
  %v6398 = vadd.f32 0.0, %v6397
  %6399 = vmatmul.bf16.gmra.mxu0 %v4407
  %v6400 = vpop.f32.mrf.mxu0
  %v6401 = vadd.f32 0.0, %v6400
  %v6402 = vpop.f32.mrf.mxu0
  %v6403 = vadd.f32 0.0, %v6402
  %6404 = vmatmul.bf16.gmra.mxu0 %v4413
  %v6405 = vpop.f32.mrf.mxu0
  %v6406 = vadd.f32 0.0, %v6405
  %v6407 = vpop.f32.mrf.mxu0
  %v6408 = vadd.f32 0.0, %v6407
  %6409 = vmatmul.bf16.gmra.mxu0 %v4419
  %v6410 = vpop.f32.mrf.mxu0
  %v6411 = vadd.f32 0.0, %v6410
  %v6412 = vpop.f32.mrf.mxu0
  %v6413 = vadd.f32 0.0, %v6412
  %6414 = vmatmul.bf16.gmra.mxu0 %v4425
  %v6415 = vpop.f32.mrf.mxu0
  %v6416 = vadd.f32 0.0, %v6415
  %v6417 = vpop.f32.mrf.mxu0
  %v6418 = vadd.f32 0.0, %v6417
  %6419 = vmatmul.bf16.gmra.mxu0 %v4431
  %v6420 = vpop.f32.mrf.mxu0
  %v6421 = vadd.f32 0.0, %v6420
  %v6422 = vpop.f32.mrf.mxu0
  %v6423 = vadd.f32 0.0, %v6422
  %6424 = vdwg.mxu0
  %6425 = vmatpush.bf16.msra.mxu0 %v5268
  %6426 = vmatpush.bf16.msra.mxu0 %v5264
  %6427 = vmatpush.bf16.msra.mxu0 %v5260
  %6428 = vmatpush.bf16.msra.mxu0 %v5256
  %6429 = vmatpush.bf16.msra.mxu0 %v5252
  %6430 = vmatpush.bf16.msra.mxu0 %v5248
  %6431 = vmatpush.bf16.msra.mxu0 %v5244
  %6432 = vmatpush.bf16.msra.mxu0 %v5240
  %6433 = vmatmul.bf16.gmra.mxu0 %v4396
  %v6434 = vpop.f32.mrf.mxu0
  %v6435 = vadd.f32 %v6391, %v6434
  %v6436 = vpop.f32.mrf.mxu0
  %v6437 = vadd.f32 %v6393, %v6436
  %6438 = vmatmul.bf16.gmra.mxu0 %v4402
  %v6439 = vpop.f32.mrf.mxu0
  %v6440 = vadd.f32 %v6396, %v6439
  %v6441 = vpop.f32.mrf.mxu0
  %v6442 = vadd.f32 %v6398, %v6441
  %6443 = vmatmul.bf16.gmra.mxu0 %v4408
  %v6444 = vpop.f32.mrf.mxu0
  %v6445 = vadd.f32 %v6401, %v6444
  %v6446 = vpop.f32.mrf.mxu0
  %v6447 = vadd.f32 %v6403, %v6446
  %6448 = vmatmul.bf16.gmra.mxu0 %v4414
  %v6449 = vpop.f32.mrf.mxu0
  %v6450 = vadd.f32 %v6406, %v6449
  %v6451 = vpop.f32.mrf.mxu0
  %v6452 = vadd.f32 %v6408, %v6451
  %6453 = vmatmul.bf16.gmra.mxu0 %v4420
  %v6454 = vpop.f32.mrf.mxu0
  %v6455 = vadd.f32 %v6411, %v6454
  %v6456 = vpop.f32.mrf.mxu0
  %v6457 = vadd.f32 %v6413, %v6456
  %6458 = vmatmul.bf16.gmra.mxu0 %v4426
  %v6459 = vpop.f32.mrf.mxu0
  %v6460 = vadd.f32 %v6416, %v6459
  %v6461 = vpop.f32.mrf.mxu0
  %v6462 = vadd.f32 %v6418, %v6461
  %6463 = vmatmul.bf16.gmra.mxu0 %v4432
  %v6464 = vpop.f32.mrf.mxu0
  %v6465 = vadd.f32 %v6421, %v6464
  %v6466 = vpop.f32.mrf.mxu0
  %v6467 = vadd.f32 %v6423, %v6466
  %6468 = vdwg.mxu0
  %6469 = vmatpush.bf16.msra.mxu0 %v5300
  %6470 = vmatpush.bf16.msra.mxu0 %v5296
  %6471 = vmatpush.bf16.msra.mxu0 %v5292
  %6472 = vmatpush.bf16.msra.mxu0 %v5288
  %6473 = vmatpush.bf16.msra.mxu0 %v5284
  %6474 = vmatpush.bf16.msra.mxu0 %v5280
  %6475 = vmatpush.bf16.msra.mxu0 %v5276
  %6476 = vmatpush.bf16.msra.mxu0 %v5272
  %6477 = vmatmul.bf16.gmra.mxu0 %v4397
  %v6478 = vpop.f32.mrf.mxu0
  %v6479 = vadd.f32 %v6435, %v6478
  %v6480 = vpop.f32.mrf.mxu0
  %v6481 = vadd.f32 %v6437, %v6480
  %6482 = vmatmul.bf16.gmra.mxu0 %v4403
  %v6483 = vpop.f32.mrf.mxu0
  %v6484 = vadd.f32 %v6440, %v6483
  %v6485 = vpop.f32.mrf.mxu0
  %v6486 = vadd.f32 %v6442, %v6485
  %6487 = vmatmul.bf16.gmra.mxu0 %v4409
  %v6488 = vpop.f32.mrf.mxu0
  %v6489 = vadd.f32 %v6445, %v6488
  %v6490 = vpop.f32.mrf.mxu0
  %v6491 = vadd.f32 %v6447, %v6490
  %6492 = vmatmul.bf16.gmra.mxu0 %v4415
  %v6493 = vpop.f32.mrf.mxu0
  %v6494 = vadd.f32 %v6450, %v6493
  %v6495 = vpop.f32.mrf.mxu0
  %v6496 = vadd.f32 %v6452, %v6495
  %6497 = vmatmul.bf16.gmra.mxu0 %v4421
  %v6498 = vpop.f32.mrf.mxu0
  %v6499 = vadd.f32 %v6455, %v6498
  %v6500 = vpop.f32.mrf.mxu0
  %v6501 = vadd.f32 %v6457, %v6500
  %6502 = vmatmul.bf16.gmra.mxu0 %v4427
  %v6503 = vpop.f32.mrf.mxu0
  %v6504 = vadd.f32 %v6460, %v6503
  %v6505 = vpop.f32.mrf.mxu0
  %v6506 = vadd.f32 %v6462, %v6505
  %6507 = vmatmul.bf16.gmra.mxu0 %v4433
  %v6508 = vpop.f32.mrf.mxu0
  %v6509 = vadd.f32 %v6465, %v6508
  %v6510 = vpop.f32.mrf.mxu0
  %v6511 = vadd.f32 %v6467, %v6510
  %6512 = vdwg.mxu0
  %6513 = vmatpush.bf16.msra.mxu0 %v5332
  %6514 = vmatpush.bf16.msra.mxu0 %v5328
  %6515 = vmatpush.bf16.msra.mxu0 %v5324
  %6516 = vmatpush.bf16.msra.mxu0 %v5320
  %6517 = vmatpush.bf16.msra.mxu0 %v5316
  %6518 = vmatpush.bf16.msra.mxu0 %v5312
  %6519 = vmatpush.bf16.msra.mxu0 %v5308
  %6520 = vmatpush.bf16.msra.mxu0 %v5304
  %6521 = vmatmul.bf16.gmra.mxu0 %v4398
  %v6522 = vpop.f32.mrf.mxu0
  %v6523 = vadd.f32 %v6479, %v6522
  %v6524 = vpop.f32.mrf.mxu0
  %v6525 = vadd.f32 %v6481, %v6524
  %6526 = vmatmul.bf16.gmra.mxu0 %v4404
  %v6527 = vpop.f32.mrf.mxu0
  %v6528 = vadd.f32 %v6484, %v6527
  %v6529 = vpop.f32.mrf.mxu0
  %v6530 = vadd.f32 %v6486, %v6529
  %6531 = vmatmul.bf16.gmra.mxu0 %v4410
  %v6532 = vpop.f32.mrf.mxu0
  %v6533 = vadd.f32 %v6489, %v6532
  %v6534 = vpop.f32.mrf.mxu0
  %v6535 = vadd.f32 %v6491, %v6534
  %6536 = vmatmul.bf16.gmra.mxu0 %v4416
  %v6537 = vpop.f32.mrf.mxu0
  %v6538 = vadd.f32 %v6494, %v6537
  %v6539 = vpop.f32.mrf.mxu0
  %v6540 = vadd.f32 %v6496, %v6539
  %6541 = vmatmul.bf16.gmra.mxu0 %v4422
  %v6542 = vpop.f32.mrf.mxu0
  %v6543 = vadd.f32 %v6499, %v6542
  %v6544 = vpop.f32.mrf.mxu0
  %v6545 = vadd.f32 %v6501, %v6544
  %6546 = vmatmul.bf16.gmra.mxu0 %v4428
  %v6547 = vpop.f32.mrf.mxu0
  %v6548 = vadd.f32 %v6504, %v6547
  %v6549 = vpop.f32.mrf.mxu0
  %v6550 = vadd.f32 %v6506, %v6549
  %6551 = vmatmul.bf16.gmra.mxu0 %v4434
  %v6552 = vpop.f32.mrf.mxu0
  %v6553 = vadd.f32 %v6509, %v6552
  %v6554 = vpop.f32.mrf.mxu0
  %v6555 = vadd.f32 %v6511, %v6554
  %6556 = vdwg.mxu0
  %6557 = vmatpush.bf16.msra.mxu0 %v5364
  %6558 = vmatpush.bf16.msra.mxu0 %v5360
  %6559 = vmatpush.bf16.msra.mxu0 %v5356
  %6560 = vmatpush.bf16.msra.mxu0 %v5352
  %6561 = vmatpush.bf16.msra.mxu0 %v5348
  %6562 = vmatpush.bf16.msra.mxu0 %v5344
  %6563 = vmatpush.bf16.msra.mxu0 %v5340
  %6564 = vmatpush.bf16.msra.mxu0 %v5336
  %6565 = vmatmul.bf16.gmra.mxu0 %v4399
  %v6566 = vpop.f32.mrf.mxu0
  %v6567 = vadd.f32 %v6523, %v6566
  %v6568 = vpop.f32.mrf.mxu0
  %v6569 = vadd.f32 %v6525, %v6568
  %6570 = vmatmul.bf16.gmra.mxu0 %v4405
  %v6571 = vpop.f32.mrf.mxu0
  %v6572 = vadd.f32 %v6528, %v6571
  %v6573 = vpop.f32.mrf.mxu0
  %v6574 = vadd.f32 %v6530, %v6573
  %6575 = vmatmul.bf16.gmra.mxu0 %v4411
  %v6576 = vpop.f32.mrf.mxu0
  %v6577 = vadd.f32 %v6533, %v6576
  %v6578 = vpop.f32.mrf.mxu0
  %v6579 = vadd.f32 %v6535, %v6578
  %6580 = vmatmul.bf16.gmra.mxu0 %v4417
  %v6581 = vpop.f32.mrf.mxu0
  %v6582 = vadd.f32 %v6538, %v6581
  %v6583 = vpop.f32.mrf.mxu0
  %v6584 = vadd.f32 %v6540, %v6583
  %6585 = vmatmul.bf16.gmra.mxu0 %v4423
  %v6586 = vpop.f32.mrf.mxu0
  %v6587 = vadd.f32 %v6543, %v6586
  %v6588 = vpop.f32.mrf.mxu0
  %v6589 = vadd.f32 %v6545, %v6588
  %6590 = vmatmul.bf16.gmra.mxu0 %v4429
  %v6591 = vpop.f32.mrf.mxu0
  %v6592 = vadd.f32 %v6548, %v6591
  %v6593 = vpop.f32.mrf.mxu0
  %v6594 = vadd.f32 %v6550, %v6593
  %6595 = vmatmul.bf16.gmra.mxu0 %v4435
  %v6596 = vpop.f32.mrf.mxu0
  %v6597 = vadd.f32 %v6553, %v6596
  %v6598 = vpop.f32.mrf.mxu0
  %v6599 = vadd.f32 %v6555, %v6598
  %6600 = vdwg.mxu0
  %6601 = vmatpush.bf16.msra.mxu0 %v5396
  %6602 = vmatpush.bf16.msra.mxu0 %v5392
  %6603 = vmatpush.bf16.msra.mxu0 %v5388
  %6604 = vmatpush.bf16.msra.mxu0 %v5384
  %6605 = vmatpush.bf16.msra.mxu0 %v5380
  %6606 = vmatpush.bf16.msra.mxu0 %v5376
  %6607 = vmatpush.bf16.msra.mxu0 %v5372
  %6608 = vmatpush.bf16.msra.mxu0 %v5368
  %6609 = vmatmul.bf16.gmra.mxu0 %v4400
  %v6610 = vpop.f32.mrf.mxu0
  %v6611 = vadd.f32 %v6567, %v6610
  %v6612 = vpop.f32.mrf.mxu0
  %v6613 = vadd.f32 %v6569, %v6612
  %6614 = vmatmul.bf16.gmra.mxu0 %v4406
  %v6615 = vpop.f32.mrf.mxu0
  %v6616 = vadd.f32 %v6572, %v6615
  %v6617 = vpop.f32.mrf.mxu0
  %v6618 = vadd.f32 %v6574, %v6617
  %6619 = vmatmul.bf16.gmra.mxu0 %v4412
  %v6620 = vpop.f32.mrf.mxu0
  %v6621 = vadd.f32 %v6577, %v6620
  %v6622 = vpop.f32.mrf.mxu0
  %v6623 = vadd.f32 %v6579, %v6622
  %6624 = vmatmul.bf16.gmra.mxu0 %v4418
  %v6625 = vpop.f32.mrf.mxu0
  %v6626 = vadd.f32 %v6582, %v6625
  %v6627 = vpop.f32.mrf.mxu0
  %v6628 = vadd.f32 %v6584, %v6627
  %6629 = vmatmul.bf16.gmra.mxu0 %v4424
  %v6630 = vpop.f32.mrf.mxu0
  %v6631 = vadd.f32 %v6587, %v6630
  %v6632 = vpop.f32.mrf.mxu0
  %v6633 = vadd.f32 %v6589, %v6632
  %6634 = vmatmul.bf16.gmra.mxu0 %v4430
  %v6635 = vpop.f32.mrf.mxu0
  %v6636 = vadd.f32 %v6592, %v6635
  %v6637 = vpop.f32.mrf.mxu0
  %v6638 = vadd.f32 %v6594, %v6637
  %6639 = vmatmul.bf16.gmra.mxu0 %v4436
  %v6640 = vpop.f32.mrf.mxu0
  %v6641 = vadd.f32 %v6597, %v6640
  %v6642 = vpop.f32.mrf.mxu0
  %v6643 = vadd.f32 %v6599, %v6642
  %6644 = vdwg.mxu0
  %6687 = vrot.lane.b32.xlu0 %v6083, 32
  %v6688 = vpop.permute.xlu0 %6687
  %6689 = vrot.lane.b32.xlu0 %v6347, 32
  %v6690 = vpop.permute.xlu0 %6689
  %6691 = vrot.lane.b32.xlu0 %v6611, 32
  %v6692 = vpop.permute.xlu0 %6691
  %6693 = vrot.lane.b32.xlu0 %v6085, 32
  %v6694 = vpop.permute.xlu0 %6693
  %6695 = vrot.lane.b32.xlu0 %v6349, 32
  %v6696 = vpop.permute.xlu0 %6695
  %6697 = vrot.lane.b32.xlu0 %v6613, 32
  %v6698 = vpop.permute.xlu0 %6697
  %6699 = vrot.lane.b32.xlu0 %v6088, 32
  %v6700 = vpop.permute.xlu0 %6699
  %6701 = vrot.lane.b32.xlu0 %v6352, 32
  %v6702 = vpop.permute.xlu0 %6701
  %6703 = vrot.lane.b32.xlu0 %v6616, 32
  %v6704 = vpop.permute.xlu0 %6703
  %6705 = vrot.lane.b32.xlu0 %v6090, 32
  %v6706 = vpop.permute.xlu0 %6705
  %6707 = vrot.lane.b32.xlu0 %v6354, 32
  %v6708 = vpop.permute.xlu0 %6707
  %6709 = vrot.lane.b32.xlu0 %v6618, 32
  %v6710 = vpop.permute.xlu0 %6709
  %6711 = vrot.lane.b32.xlu0 %v6093, 32
  %v6712 = vpop.permute.xlu0 %6711
  %6713 = vrot.lane.b32.xlu0 %v6357, 32
  %v6714 = vpop.permute.xlu0 %6713
  %6715 = vrot.lane.b32.xlu0 %v6621, 32
  %v6716 = vpop.permute.xlu0 %6715
  %6717 = vrot.lane.b32.xlu0 %v6095, 32
  %v6718 = vpop.permute.xlu0 %6717
  %6719 = vrot.lane.b32.xlu0 %v6359, 32
  %v6720 = vpop.permute.xlu0 %6719
  %6721 = vrot.lane.b32.xlu0 %v6623, 32
  %v6722 = vpop.permute.xlu0 %6721
  %6723 = vrot.lane.b32.xlu0 %v6098, 32
  %v6724 = vpop.permute.xlu0 %6723
  %6725 = vrot.lane.b32.xlu0 %v6362, 32
  %v6726 = vpop.permute.xlu0 %6725
  %6727 = vrot.lane.b32.xlu0 %v6626, 32
  %v6728 = vpop.permute.xlu0 %6727
  %6729 = vrot.lane.b32.xlu0 %v6100, 32
  %v6730 = vpop.permute.xlu0 %6729
  %6731 = vrot.lane.b32.xlu0 %v6364, 32
  %v6732 = vpop.permute.xlu0 %6731
  %6733 = vrot.lane.b32.xlu0 %v6628, 32
  %v6734 = vpop.permute.xlu0 %6733
  %6735 = vrot.lane.b32.xlu0 %v6103, 32
  %v6736 = vpop.permute.xlu0 %6735
  %6737 = vrot.lane.b32.xlu0 %v6367, 32
  %v6738 = vpop.permute.xlu0 %6737
  %6739 = vrot.lane.b32.xlu0 %v6631, 32
  %v6740 = vpop.permute.xlu0 %6739
  %6741 = vrot.lane.b32.xlu0 %v6105, 32
  %v6742 = vpop.permute.xlu0 %6741
  %6743 = vrot.lane.b32.xlu0 %v6369, 32
  %v6744 = vpop.permute.xlu0 %6743
  %6745 = vrot.lane.b32.xlu0 %v6633, 32
  %v6746 = vpop.permute.xlu0 %6745
  %6747 = vrot.lane.b32.xlu0 %v6108, 32
  %v6748 = vpop.permute.xlu0 %6747
  %6749 = vrot.lane.b32.xlu0 %v6372, 32
  %v6750 = vpop.permute.xlu0 %6749
  %6751 = vrot.lane.b32.xlu0 %v6636, 32
  %v6752 = vpop.permute.xlu0 %6751
  %6753 = vrot.lane.b32.xlu0 %v6110, 32
  %v6754 = vpop.permute.xlu0 %6753
  %6755 = vrot.lane.b32.xlu0 %v6374, 32
  %v6756 = vpop.permute.xlu0 %6755
  %6757 = vrot.lane.b32.xlu0 %v6638, 32
  %v6758 = vpop.permute.xlu0 %6757
  %6759 = vrot.lane.b32.xlu0 %v6113, 32
  %v6760 = vpop.permute.xlu0 %6759
  %6761 = vrot.lane.b32.xlu0 %v6377, 32
  %v6762 = vpop.permute.xlu0 %6761
  %6763 = vrot.lane.b32.xlu0 %v6641, 32
  %v6764 = vpop.permute.xlu0 %6763
  %6765 = vrot.lane.b32.xlu0 %v6115, 32
  %v6766 = vpop.permute.xlu0 %6765
  %6767 = vrot.lane.b32.xlu0 %v6379, 32
  %v6768 = vpop.permute.xlu0 %6767
  %6769 = vrot.lane.b32.xlu0 %v6643, 32
  %v6770 = vpop.permute.xlu0 %6769
  %v6771 = vsel %vm1422, %v6688, %v6690
  %v6772 = vsel %vm1422, %v6690, %v6692
  %v6773 = vsel %vm1422, %v6694, %v6696
  %v6774 = vsel %vm1422, %v6696, %v6698
  %v6775 = vsel %vm1422, %v6700, %v6702
  %v6776 = vsel %vm1422, %v6702, %v6704
  %v6777 = vsel %vm1422, %v6706, %v6708
  %v6778 = vsel %vm1422, %v6708, %v6710
  %v6779 = vsel %vm1422, %v6712, %v6714
  %v6780 = vsel %vm1422, %v6714, %v6716
  %v6781 = vsel %vm1422, %v6718, %v6720
  %v6782 = vsel %vm1422, %v6720, %v6722
  %v6783 = vsel %vm1422, %v6724, %v6726
  %v6784 = vsel %vm1422, %v6726, %v6728
  %v6785 = vsel %vm1422, %v6730, %v6732
  %v6786 = vsel %vm1422, %v6732, %v6734
  %v6787 = vsel %vm1422, %v6736, %v6738
  %v6788 = vsel %vm1422, %v6738, %v6740
  %v6789 = vsel %vm1422, %v6742, %v6744
  %v6790 = vsel %vm1422, %v6744, %v6746
  %v6791 = vsel %vm1422, %v6748, %v6750
  %v6792 = vsel %vm1422, %v6750, %v6752
  %v6793 = vsel %vm1422, %v6754, %v6756
  %v6794 = vsel %vm1422, %v6756, %v6758
  %v6795 = vsel %vm1422, %v6760, %v6762
  %v6796 = vsel %vm1422, %v6762, %v6764
  %v6797 = vsel %vm1422, %v6766, %v6768
  %v6798 = vsel %vm1422, %v6768, %v6770
  %v6827 = vmax.f32 %v5819, %v6771
  %v6828 = vmax.f32 %v6083, %v6772
  %v6829 = vmax.f32 %v5821, %v6773
  %v6830 = vmax.f32 %v6085, %v6774
  %v6831 = vmax.f32 %v5824, %v6775
  %v6832 = vmax.f32 %v6088, %v6776
  %v6833 = vmax.f32 %v5826, %v6777
  %v6834 = vmax.f32 %v6090, %v6778
  %v6835 = vmax.f32 %v5829, %v6779
  %v6836 = vmax.f32 %v6093, %v6780
  %v6837 = vmax.f32 %v5831, %v6781
  %v6838 = vmax.f32 %v6095, %v6782
  %v6839 = vmax.f32 %v5834, %v6783
  %v6840 = vmax.f32 %v6098, %v6784
  %v6841 = vmax.f32 %v5836, %v6785
  %v6842 = vmax.f32 %v6100, %v6786
  %v6843 = vmax.f32 %v5839, %v6787
  %v6844 = vmax.f32 %v6103, %v6788
  %v6845 = vmax.f32 %v5841, %v6789
  %v6846 = vmax.f32 %v6105, %v6790
  %v6847 = vmax.f32 %v5844, %v6791
  %v6848 = vmax.f32 %v6108, %v6792
  %v6849 = vmax.f32 %v5846, %v6793
  %v6850 = vmax.f32 %v6110, %v6794
  %v6851 = vmax.f32 %v5849, %v6795
  %v6852 = vmax.f32 %v6113, %v6796
  %v6853 = vmax.f32 %v5851, %v6797
  %v6854 = vmax.f32 %v6115, %v6798
  %v6883 = vrot.slane %v6828, 6
  %v6884 = vrot.slane %v6830, 6
  %v6885 = vrot.slane %v6832, 6
  %v6886 = vrot.slane %v6834, 6
  %v6887 = vrot.slane %v6836, 6
  %v6888 = vrot.slane %v6838, 6
  %v6889 = vrot.slane %v6840, 6
  %v6890 = vrot.slane %v6842, 6
  %v6891 = vrot.slane %v6844, 6
  %v6892 = vrot.slane %v6846, 6
  %v6893 = vrot.slane %v6848, 6
  %v6894 = vrot.slane %v6850, 6
  %v6895 = vrot.slane %v6852, 6
  %v6896 = vrot.slane %v6854, 6
  %v6897 = vsel %vm1675, %v6827, %v6883
  %v6898 = vsel %vm1677, %v6827, %v6883
  %v6899 = vrot.slane %v6898, 2
  %v6900 = vsel %vm1680, %v6827, %v6883
  %v6901 = vrot.slane %v6900, 4
  %v6902 = vsel %vm250, %v6883, %v6827
  %v6903 = vrot.slane %v6902, 6
  %v6904 = vsel %vm1675, %v6829, %v6884
  %v6905 = vsel %vm1677, %v6829, %v6884
  %v6906 = vrot.slane %v6905, 2
  %v6907 = vsel %vm1680, %v6829, %v6884
  %v6908 = vrot.slane %v6907, 4
  %v6909 = vsel %vm250, %v6884, %v6829
  %v6910 = vrot.slane %v6909, 6
  %v6911 = vsel %vm1675, %v6831, %v6885
  %v6912 = vsel %vm1677, %v6831, %v6885
  %v6913 = vrot.slane %v6912, 2
  %v6914 = vsel %vm1680, %v6831, %v6885
  %v6915 = vrot.slane %v6914, 4
  %v6916 = vsel %vm250, %v6885, %v6831
  %v6917 = vrot.slane %v6916, 6
  %v6918 = vsel %vm1675, %v6833, %v6886
  %v6919 = vsel %vm1677, %v6833, %v6886
  %v6920 = vrot.slane %v6919, 2
  %v6921 = vsel %vm1680, %v6833, %v6886
  %v6922 = vrot.slane %v6921, 4
  %v6923 = vsel %vm250, %v6886, %v6833
  %v6924 = vrot.slane %v6923, 6
  %v6925 = vsel %vm1675, %v6835, %v6887
  %v6926 = vsel %vm1677, %v6835, %v6887
  %v6927 = vrot.slane %v6926, 2
  %v6928 = vsel %vm1680, %v6835, %v6887
  %v6929 = vrot.slane %v6928, 4
  %v6930 = vsel %vm250, %v6887, %v6835
  %v6931 = vrot.slane %v6930, 6
  %v6932 = vsel %vm1675, %v6837, %v6888
  %v6933 = vsel %vm1677, %v6837, %v6888
  %v6934 = vrot.slane %v6933, 2
  %v6935 = vsel %vm1680, %v6837, %v6888
  %v6936 = vrot.slane %v6935, 4
  %v6937 = vsel %vm250, %v6888, %v6837
  %v6938 = vrot.slane %v6937, 6
  %v6939 = vsel %vm1675, %v6839, %v6889
  %v6940 = vsel %vm1677, %v6839, %v6889
  %v6941 = vrot.slane %v6940, 2
  %v6942 = vsel %vm1680, %v6839, %v6889
  %v6943 = vrot.slane %v6942, 4
  %v6944 = vsel %vm250, %v6889, %v6839
  %v6945 = vrot.slane %v6944, 6
  %v6946 = vsel %vm1675, %v6841, %v6890
  %v6947 = vsel %vm1677, %v6841, %v6890
  %v6948 = vrot.slane %v6947, 2
  %v6949 = vsel %vm1680, %v6841, %v6890
  %v6950 = vrot.slane %v6949, 4
  %v6951 = vsel %vm250, %v6890, %v6841
  %v6952 = vrot.slane %v6951, 6
  %v6953 = vsel %vm1675, %v6843, %v6891
  %v6954 = vsel %vm1677, %v6843, %v6891
  %v6955 = vrot.slane %v6954, 2
  %v6956 = vsel %vm1680, %v6843, %v6891
  %v6957 = vrot.slane %v6956, 4
  %v6958 = vsel %vm250, %v6891, %v6843
  %v6959 = vrot.slane %v6958, 6
  %v6960 = vsel %vm1675, %v6845, %v6892
  %v6961 = vsel %vm1677, %v6845, %v6892
  %v6962 = vrot.slane %v6961, 2
  %v6963 = vsel %vm1680, %v6845, %v6892
  %v6964 = vrot.slane %v6963, 4
  %v6965 = vsel %vm250, %v6892, %v6845
  %v6966 = vrot.slane %v6965, 6
  %v6967 = vsel %vm1675, %v6847, %v6893
  %v6968 = vsel %vm1677, %v6847, %v6893
  %v6969 = vrot.slane %v6968, 2
  %v6970 = vsel %vm1680, %v6847, %v6893
  %v6971 = vrot.slane %v6970, 4
  %v6972 = vsel %vm250, %v6893, %v6847
  %v6973 = vrot.slane %v6972, 6
  %v6974 = vsel %vm1675, %v6849, %v6894
  %v6975 = vsel %vm1677, %v6849, %v6894
  %v6976 = vrot.slane %v6975, 2
  %v6977 = vsel %vm1680, %v6849, %v6894
  %v6978 = vrot.slane %v6977, 4
  %v6979 = vsel %vm250, %v6894, %v6849
  %v6980 = vrot.slane %v6979, 6
  %v6981 = vsel %vm1675, %v6851, %v6895
  %v6982 = vsel %vm1677, %v6851, %v6895
  %v6983 = vrot.slane %v6982, 2
  %v6984 = vsel %vm1680, %v6851, %v6895
  %v6985 = vrot.slane %v6984, 4
  %v6986 = vsel %vm250, %v6895, %v6851
  %v6987 = vrot.slane %v6986, 6
  %v6988 = vsel %vm1675, %v6853, %v6896
  %v6989 = vsel %vm1677, %v6853, %v6896
  %v6990 = vrot.slane %v6989, 2
  %v6991 = vsel %vm1680, %v6853, %v6896
  %v6992 = vrot.slane %v6991, 4
  %v6993 = vsel %vm250, %v6896, %v6853
  %v6994 = vrot.slane %v6993, 6
  %v7051 = vrot.slane %v6897, 7
  %v7052 = vrot.slane %v7051, 2
  %v7053 = vrot.slane %v6899, 7
  %v7054 = vrot.slane %v7053, 2
  %v7055 = vrot.slane %v6901, 7
  %v7056 = vrot.slane %v7055, 2
  %v7057 = vrot.slane %v6903, 7
  %v7058 = vrot.slane %v7057, 2
  %v7059 = vrot.slane %v6904, 7
  %v7060 = vrot.slane %v7059, 2
  %v7061 = vrot.slane %v6906, 7
  %v7062 = vrot.slane %v7061, 2
  %v7063 = vrot.slane %v6908, 7
  %v7064 = vrot.slane %v7063, 2
  %v7065 = vrot.slane %v6910, 7
  %v7066 = vrot.slane %v7065, 2
  %v7067 = vrot.slane %v6911, 7
  %v7068 = vrot.slane %v7067, 2
  %v7069 = vrot.slane %v6913, 7
  %v7070 = vrot.slane %v7069, 2
  %v7071 = vrot.slane %v6915, 7
  %v7072 = vrot.slane %v7071, 2
  %v7073 = vrot.slane %v6917, 7
  %v7074 = vrot.slane %v7073, 2
  %v7075 = vrot.slane %v6918, 7
  %v7076 = vrot.slane %v7075, 2
  %v7077 = vrot.slane %v6920, 7
  %v7078 = vrot.slane %v7077, 2
  %v7079 = vrot.slane %v6922, 7
  %v7080 = vrot.slane %v7079, 2
  %v7081 = vrot.slane %v6924, 7
  %v7082 = vrot.slane %v7081, 2
  %v7083 = vrot.slane %v6925, 7
  %v7084 = vrot.slane %v7083, 2
  %v7085 = vrot.slane %v6927, 7
  %v7086 = vrot.slane %v7085, 2
  %v7087 = vrot.slane %v6929, 7
  %v7088 = vrot.slane %v7087, 2
  %v7089 = vrot.slane %v6931, 7
  %v7090 = vrot.slane %v7089, 2
  %v7091 = vrot.slane %v6932, 7
  %v7092 = vrot.slane %v7091, 2
  %v7093 = vrot.slane %v6934, 7
  %v7094 = vrot.slane %v7093, 2
  %v7095 = vrot.slane %v6936, 7
  %v7096 = vrot.slane %v7095, 2
  %v7097 = vrot.slane %v6938, 7
  %v7098 = vrot.slane %v7097, 2
  %v7099 = vrot.slane %v6939, 7
  %v7100 = vrot.slane %v7099, 2
  %v7101 = vrot.slane %v6941, 7
  %v7102 = vrot.slane %v7101, 2
  %v7103 = vrot.slane %v6943, 7
  %v7104 = vrot.slane %v7103, 2
  %v7105 = vrot.slane %v6945, 7
  %v7106 = vrot.slane %v7105, 2
  %v7107 = vrot.slane %v6946, 7
  %v7108 = vrot.slane %v7107, 2
  %v7109 = vrot.slane %v6948, 7
  %v7110 = vrot.slane %v7109, 2
  %v7111 = vrot.slane %v6950, 7
  %v7112 = vrot.slane %v7111, 2
  %v7113 = vrot.slane %v6952, 7
  %v7114 = vrot.slane %v7113, 2
  %v7115 = vrot.slane %v6953, 7
  %v7116 = vrot.slane %v7115, 2
  %v7117 = vrot.slane %v6955, 7
  %v7118 = vrot.slane %v7117, 2
  %v7119 = vrot.slane %v6957, 7
  %v7120 = vrot.slane %v7119, 2
  %v7121 = vrot.slane %v6959, 7
  %v7122 = vrot.slane %v7121, 2
  %v7123 = vrot.slane %v6960, 7
  %v7124 = vrot.slane %v7123, 2
  %v7125 = vrot.slane %v6962, 7
  %v7126 = vrot.slane %v7125, 2
  %v7127 = vrot.slane %v6964, 7
  %v7128 = vrot.slane %v7127, 2
  %v7129 = vrot.slane %v6966, 7
  %v7130 = vrot.slane %v7129, 2
  %v7131 = vrot.slane %v6967, 7
  %v7132 = vrot.slane %v7131, 2
  %v7133 = vrot.slane %v6969, 7
  %v7134 = vrot.slane %v7133, 2
  %v7135 = vrot.slane %v6971, 7
  %v7136 = vrot.slane %v7135, 2
  %v7137 = vrot.slane %v6973, 7
  %v7138 = vrot.slane %v7137, 2
  %v7139 = vrot.slane %v6974, 7
  %v7140 = vrot.slane %v7139, 2
  %v7141 = vrot.slane %v6976, 7
  %v7142 = vrot.slane %v7141, 2
  %v7143 = vrot.slane %v6978, 7
  %v7144 = vrot.slane %v7143, 2
  %v7145 = vrot.slane %v6980, 7
  %v7146 = vrot.slane %v7145, 2
  %v7147 = vrot.slane %v6981, 7
  %v7148 = vrot.slane %v7147, 2
  %v7149 = vrot.slane %v6983, 7
  %v7150 = vrot.slane %v7149, 2
  %v7151 = vrot.slane %v6985, 7
  %v7152 = vrot.slane %v7151, 2
  %v7153 = vrot.slane %v6987, 7
  %v7154 = vrot.slane %v7153, 2
  %v7155 = vrot.slane %v6988, 7
  %v7156 = vrot.slane %v7155, 2
  %v7157 = vrot.slane %v6990, 7
  %v7158 = vrot.slane %v7157, 2
  %v7159 = vrot.slane %v6992, 7
  %v7160 = vrot.slane %v7159, 2
  %v7161 = vrot.slane %v6994, 7
  %v7162 = vrot.slane %v7161, 2
  %v7219 = vmax.f32 %v6897, %v7052
  %v7220 = vmax.f32 %v6899, %v7054
  %v7221 = vmax.f32 %v6901, %v7056
  %v7222 = vmax.f32 %v6903, %v7058
  %v7223 = vmax.f32 %v6904, %v7060
  %v7224 = vmax.f32 %v6906, %v7062
  %v7225 = vmax.f32 %v6908, %v7064
  %v7226 = vmax.f32 %v6910, %v7066
  %v7227 = vmax.f32 %v6911, %v7068
  %v7228 = vmax.f32 %v6913, %v7070
  %v7229 = vmax.f32 %v6915, %v7072
  %v7230 = vmax.f32 %v6917, %v7074
  %v7231 = vmax.f32 %v6918, %v7076
  %v7232 = vmax.f32 %v6920, %v7078
  %v7233 = vmax.f32 %v6922, %v7080
  %v7234 = vmax.f32 %v6924, %v7082
  %v7235 = vmax.f32 %v6925, %v7084
  %v7236 = vmax.f32 %v6927, %v7086
  %v7237 = vmax.f32 %v6929, %v7088
  %v7238 = vmax.f32 %v6931, %v7090
  %v7239 = vmax.f32 %v6932, %v7092
  %v7240 = vmax.f32 %v6934, %v7094
  %v7241 = vmax.f32 %v6936, %v7096
  %v7242 = vmax.f32 %v6938, %v7098
  %v7243 = vmax.f32 %v6939, %v7100
  %v7244 = vmax.f32 %v6941, %v7102
  %v7245 = vmax.f32 %v6943, %v7104
  %v7246 = vmax.f32 %v6945, %v7106
  %v7247 = vmax.f32 %v6946, %v7108
  %v7248 = vmax.f32 %v6948, %v7110
  %v7249 = vmax.f32 %v6950, %v7112
  %v7250 = vmax.f32 %v6952, %v7114
  %v7251 = vmax.f32 %v6953, %v7116
  %v7252 = vmax.f32 %v6955, %v7118
  %v7253 = vmax.f32 %v6957, %v7120
  %v7254 = vmax.f32 %v6959, %v7122
  %v7255 = vmax.f32 %v6960, %v7124
  %v7256 = vmax.f32 %v6962, %v7126
  %v7257 = vmax.f32 %v6964, %v7128
  %v7258 = vmax.f32 %v6966, %v7130
  %v7259 = vmax.f32 %v6967, %v7132
  %v7260 = vmax.f32 %v6969, %v7134
  %v7261 = vmax.f32 %v6971, %v7136
  %v7262 = vmax.f32 %v6973, %v7138
  %v7263 = vmax.f32 %v6974, %v7140
  %v7264 = vmax.f32 %v6976, %v7142
  %v7265 = vmax.f32 %v6978, %v7144
  %v7266 = vmax.f32 %v6980, %v7146
  %v7267 = vmax.f32 %v6981, %v7148
  %v7268 = vmax.f32 %v6983, %v7150
  %v7269 = vmax.f32 %v6985, %v7152
  %v7270 = vmax.f32 %v6987, %v7154
  %v7271 = vmax.f32 %v6988, %v7156
  %v7272 = vmax.f32 %v6990, %v7158
  %v7273 = vmax.f32 %v6992, %v7160
  %v7274 = vmax.f32 %v6994, %v7162
  %v7275 = vld [vmem:[%s4] sm:$0x3]
  %v7277 = vperm.slane %v7275, 0
  %v7278 = vperm.slane %v7275, 1
  %v7279 = vrot.slane %v7278, 6
  %v7280 = vsel %vm1675, %v7277, %v7279
  %v7281 = vsel %vm1677, %v7277, %v7279
  %v7282 = vrot.slane %v7281, 2
  %v7283 = vsel %vm1680, %v7277, %v7279
  %v7284 = vrot.slane %v7283, 4
  %v7285 = vsel %vm250, %v7279, %v7277
  %v7286 = vrot.slane %v7285, 6
  %v7287 = vrot.slane %v7280, 1
  %v7288 = vrot.slane %v7282, 1
  %v7289 = vrot.slane %v7284, 1
  %v7297 = vadd.f32 %v7219, %v7280
  %v7298 = vadd.f32 %v7220, %v7287
  %v7299 = vadd.f32 %v7221, %v7282
  %v7300 = vadd.f32 %v7222, %v7288
  %v7301 = vadd.f32 %v7223, %v7284
  %v7302 = vadd.f32 %v7224, %v7289
  %v7303 = vadd.f32 %v7225, %v7286
  %v7304 = vadd.f32 %v7226, %v7280
  %v7305 = vadd.f32 %v7227, %v7287
  %v7306 = vadd.f32 %v7228, %v7282
  %v7307 = vadd.f32 %v7229, %v7288
  %v7308 = vadd.f32 %v7230, %v7284
  %v7309 = vadd.f32 %v7231, %v7289
  %v7310 = vadd.f32 %v7232, %v7286
  %v7311 = vadd.f32 %v7233, %v7280
  %v7312 = vadd.f32 %v7234, %v7287
  %v7313 = vadd.f32 %v7235, %v7282
  %v7314 = vadd.f32 %v7236, %v7288
  %v7315 = vadd.f32 %v7237, %v7284
  %v7316 = vadd.f32 %v7238, %v7289
  %v7317 = vadd.f32 %v7239, %v7286
  %v7318 = vadd.f32 %v7240, %v7280
  %v7319 = vadd.f32 %v7241, %v7287
  %v7320 = vadd.f32 %v7242, %v7282
  %v7321 = vadd.f32 %v7243, %v7288
  %v7322 = vadd.f32 %v7244, %v7284
  %v7323 = vadd.f32 %v7245, %v7289
  %v7324 = vadd.f32 %v7246, %v7286
  %v7325 = vadd.f32 %v7247, %v7280
  %v7326 = vadd.f32 %v7248, %v7287
  %v7327 = vadd.f32 %v7249, %v7282
  %v7328 = vadd.f32 %v7250, %v7288
  %v7329 = vadd.f32 %v7251, %v7284
  %v7330 = vadd.f32 %v7252, %v7289
  %v7331 = vadd.f32 %v7253, %v7286
  %v7332 = vadd.f32 %v7254, %v7280
  %v7333 = vadd.f32 %v7255, %v7287
  %v7334 = vadd.f32 %v7256, %v7282
  %v7335 = vadd.f32 %v7257, %v7288
  %v7336 = vadd.f32 %v7258, %v7284
  %v7337 = vadd.f32 %v7259, %v7289
  %v7338 = vadd.f32 %v7260, %v7286
  %v7339 = vadd.f32 %v7261, %v7280
  %v7340 = vadd.f32 %v7262, %v7287
  %v7341 = vadd.f32 %v7263, %v7282
  %v7342 = vadd.f32 %v7264, %v7288
  %v7343 = vadd.f32 %v7265, %v7284
  %v7344 = vadd.f32 %v7266, %v7289
  %v7345 = vadd.f32 %v7267, %v7286
  %v7346 = vadd.f32 %v7268, %v7280
  %v7347 = vadd.f32 %v7269, %v7287
  %v7348 = vadd.f32 %v7270, %v7282
  %v7349 = vadd.f32 %v7271, %v7288
  %v7350 = vadd.f32 %v7272, %v7284
  %v7351 = vadd.f32 %v7273, %v7289
  %v7352 = vadd.f32 %v7274, %v7286
  %v7353 = vmax.f32 %v7297, 0.0
  %v7354 = vmax.f32 %v7298, 0.0
  %v7355 = vmax.f32 %v7299, 0.0
  %v7356 = vmax.f32 %v7300, 0.0
  %v7357 = vmax.f32 %v7301, 0.0
  %v7358 = vmax.f32 %v7302, 0.0
  %v7359 = vmax.f32 %v7303, 0.0
  %v7360 = vmax.f32 %v7304, 0.0
  %v7361 = vmax.f32 %v7305, 0.0
  %v7362 = vmax.f32 %v7306, 0.0
  %v7363 = vmax.f32 %v7307, 0.0
  %v7364 = vmax.f32 %v7308, 0.0
  %v7365 = vmax.f32 %v7309, 0.0
  %v7366 = vmax.f32 %v7310, 0.0
  %v7367 = vmax.f32 %v7311, 0.0
  %v7368 = vmax.f32 %v7312, 0.0
  %v7369 = vmax.f32 %v7313, 0.0
  %v7370 = vmax.f32 %v7314, 0.0
  %v7371 = vmax.f32 %v7315, 0.0
  %v7372 = vmax.f32 %v7316, 0.0
  %v7373 = vmax.f32 %v7317, 0.0
  %v7374 = vmax.f32 %v7318, 0.0
  %v7375 = vmax.f32 %v7319, 0.0
  %v7376 = vmax.f32 %v7320, 0.0
  %v7377 = vmax.f32 %v7321, 0.0
  %v7378 = vmax.f32 %v7322, 0.0
  %v7379 = vmax.f32 %v7323, 0.0
  %v7380 = vmax.f32 %v7324, 0.0
  %v7381 = vmax.f32 %v7325, 0.0
  %v7382 = vmax.f32 %v7326, 0.0
  %v7383 = vmax.f32 %v7327, 0.0
  %v7384 = vmax.f32 %v7328, 0.0
  %v7385 = vmax.f32 %v7329, 0.0
  %v7386 = vmax.f32 %v7330, 0.0
  %v7387 = vmax.f32 %v7331, 0.0
  %v7388 = vmax.f32 %v7332, 0.0
  %v7389 = vmax.f32 %v7333, 0.0
  %v7390 = vmax.f32 %v7334, 0.0
  %v7391 = vmax.f32 %v7335, 0.0
  %v7392 = vmax.f32 %v7336, 0.0
  %v7393 = vmax.f32 %v7337, 0.0
  %v7394 = vmax.f32 %v7338, 0.0
  %v7395 = vmax.f32 %v7339, 0.0
  %v7396 = vmax.f32 %v7340, 0.0
  %v7397 = vmax.f32 %v7341, 0.0
  %v7398 = vmax.f32 %v7342, 0.0
  %v7399 = vmax.f32 %v7343, 0.0
  %v7400 = vmax.f32 %v7344, 0.0
  %v7401 = vmax.f32 %v7345, 0.0
  %v7402 = vmax.f32 %v7346, 0.0
  %v7403 = vmax.f32 %v7347, 0.0
  %v7404 = vmax.f32 %v7348, 0.0
  %v7405 = vmax.f32 %v7349, 0.0
  %v7406 = vmax.f32 %v7350, 0.0
  %v7407 = vmax.f32 %v7351, 0.0
  %v7408 = vmax.f32 %v7352, 0.0
  %v7465 = vsel %vm3107, %v7353, %v7353
  %v7466 = vsel %vm3111, %v7353, %v7465
  %v7467 = vrot.slane %v7354, 7
  %v7468 = vsel %vm3121, %v7467, %v7466
  %v7469 = vsel %vm3105, %v7467, %v7468
  %v7470 = vsel %vm3109, %v7467, %v7469
  %v7471 = vsel %vm3113, %v7467, %v7470
  %v7472 = vsel %vm3107, %v7355, %v7355
  %v7473 = vsel %vm3111, %v7355, %v7472
  %v7474 = vrot.slane %v7356, 7
  %v7475 = vsel %vm3121, %v7474, %v7473
  %v7476 = vsel %vm3105, %v7474, %v7475
  %v7477 = vsel %vm3109, %v7474, %v7476
  %v7478 = vsel %vm3113, %v7474, %v7477
  %v7479 = vsel %vm3107, %v7357, %v7357
  %v7480 = vsel %vm3111, %v7357, %v7479
  %v7481 = vrot.slane %v7358, 7
  %v7482 = vsel %vm3121, %v7481, %v7480
  %v7483 = vsel %vm3105, %v7481, %v7482
  %v7484 = vsel %vm3109, %v7481, %v7483
  %v7485 = vsel %vm3113, %v7481, %v7484
  %v7486 = vsel %vm3107, %v7359, %v7359
  %v7487 = vsel %vm3111, %v7359, %v7486
  %v7488 = vsel %vm3107, %v7360, %v7360
  %v7489 = vsel %vm3111, %v7360, %v7488
  %v7490 = vrot.slane %v7361, 7
  %v7491 = vsel %vm3121, %v7490, %v7489
  %v7492 = vsel %vm3105, %v7490, %v7491
  %v7493 = vsel %vm3109, %v7490, %v7492
  %v7494 = vsel %vm3113, %v7490, %v7493
  %v7495 = vsel %vm3107, %v7362, %v7362
  %v7496 = vsel %vm3111, %v7362, %v7495
  %v7497 = vrot.slane %v7363, 7
  %v7498 = vsel %vm3121, %v7497, %v7496
  %v7499 = vsel %vm3105, %v7497, %v7498
  %v7500 = vsel %vm3109, %v7497, %v7499
  %v7501 = vsel %vm3113, %v7497, %v7500
  %v7502 = vsel %vm3107, %v7364, %v7364
  %v7503 = vsel %vm3111, %v7364, %v7502
  %v7504 = vrot.slane %v7365, 7
  %v7505 = vsel %vm3121, %v7504, %v7503
  %v7506 = vsel %vm3105, %v7504, %v7505
  %v7507 = vsel %vm3109, %v7504, %v7506
  %v7508 = vsel %vm3113, %v7504, %v7507
  %v7509 = vsel %vm3107, %v7366, %v7366
  %v7510 = vsel %vm3111, %v7366, %v7509
  %v7511 = vsel %vm3107, %v7367, %v7367
  %v7512 = vsel %vm3111, %v7367, %v7511
  %v7513 = vrot.slane %v7368, 7
  %v7514 = vsel %vm3121, %v7513, %v7512
  %v7515 = vsel %vm3105, %v7513, %v7514
  %v7516 = vsel %vm3109, %v7513, %v7515
  %v7517 = vsel %vm3113, %v7513, %v7516
  %v7518 = vsel %vm3107, %v7369, %v7369
  %v7519 = vsel %vm3111, %v7369, %v7518
  %v7520 = vrot.slane %v7370, 7
  %v7521 = vsel %vm3121, %v7520, %v7519
  %v7522 = vsel %vm3105, %v7520, %v7521
  %v7523 = vsel %vm3109, %v7520, %v7522
  %v7524 = vsel %vm3113, %v7520, %v7523
  %v7525 = vsel %vm3107, %v7371, %v7371
  %v7526 = vsel %vm3111, %v7371, %v7525
  %v7527 = vrot.slane %v7372, 7
  %v7528 = vsel %vm3121, %v7527, %v7526
  %v7529 = vsel %vm3105, %v7527, %v7528
  %v7530 = vsel %vm3109, %v7527, %v7529
  %v7531 = vsel %vm3113, %v7527, %v7530
  %v7532 = vsel %vm3107, %v7373, %v7373
  %v7533 = vsel %vm3111, %v7373, %v7532
  %v7534 = vsel %vm3107, %v7374, %v7374
  %v7535 = vsel %vm3111, %v7374, %v7534
  %v7536 = vrot.slane %v7375, 7
  %v7537 = vsel %vm3121, %v7536, %v7535
  %v7538 = vsel %vm3105, %v7536, %v7537
  %v7539 = vsel %vm3109, %v7536, %v7538
  %v7540 = vsel %vm3113, %v7536, %v7539
  %v7541 = vsel %vm3107, %v7376, %v7376
  %v7542 = vsel %vm3111, %v7376, %v7541
  %v7543 = vrot.slane %v7377, 7
  %v7544 = vsel %vm3121, %v7543, %v7542
  %v7545 = vsel %vm3105, %v7543, %v7544
  %v7546 = vsel %vm3109, %v7543, %v7545
  %v7547 = vsel %vm3113, %v7543, %v7546
  %v7548 = vsel %vm3107, %v7378, %v7378
  %v7549 = vsel %vm3111, %v7378, %v7548
  %v7550 = vrot.slane %v7379, 7
  %v7551 = vsel %vm3121, %v7550, %v7549
  %v7552 = vsel %vm3105, %v7550, %v7551
  %v7553 = vsel %vm3109, %v7550, %v7552
  %v7554 = vsel %vm3113, %v7550, %v7553
  %v7555 = vsel %vm3107, %v7380, %v7380
  %v7556 = vsel %vm3111, %v7380, %v7555
  %v7557 = vsel %vm3107, %v7381, %v7381
  %v7558 = vsel %vm3111, %v7381, %v7557
  %v7559 = vrot.slane %v7382, 7
  %v7560 = vsel %vm3121, %v7559, %v7558
  %v7561 = vsel %vm3105, %v7559, %v7560
  %v7562 = vsel %vm3109, %v7559, %v7561
  %v7563 = vsel %vm3113, %v7559, %v7562
  %v7564 = vsel %vm3107, %v7383, %v7383
  %v7565 = vsel %vm3111, %v7383, %v7564
  %v7566 = vrot.slane %v7384, 7
  %v7567 = vsel %vm3121, %v7566, %v7565
  %v7568 = vsel %vm3105, %v7566, %v7567
  %v7569 = vsel %vm3109, %v7566, %v7568
  %v7570 = vsel %vm3113, %v7566, %v7569
  %v7571 = vsel %vm3107, %v7385, %v7385
  %v7572 = vsel %vm3111, %v7385, %v7571
  %v7573 = vrot.slane %v7386, 7
  %v7574 = vsel %vm3121, %v7573, %v7572
  %v7575 = vsel %vm3105, %v7573, %v7574
  %v7576 = vsel %vm3109, %v7573, %v7575
  %v7577 = vsel %vm3113, %v7573, %v7576
  %v7578 = vsel %vm3107, %v7387, %v7387
  %v7579 = vsel %vm3111, %v7387, %v7578
  %v7580 = vsel %vm3107, %v7388, %v7388
  %v7581 = vsel %vm3111, %v7388, %v7580
  %v7582 = vrot.slane %v7389, 7
  %v7583 = vsel %vm3121, %v7582, %v7581
  %v7584 = vsel %vm3105, %v7582, %v7583
  %v7585 = vsel %vm3109, %v7582, %v7584
  %v7586 = vsel %vm3113, %v7582, %v7585
  %v7587 = vsel %vm3107, %v7390, %v7390
  %v7588 = vsel %vm3111, %v7390, %v7587
  %v7589 = vrot.slane %v7391, 7
  %v7590 = vsel %vm3121, %v7589, %v7588
  %v7591 = vsel %vm3105, %v7589, %v7590
  %v7592 = vsel %vm3109, %v7589, %v7591
  %v7593 = vsel %vm3113, %v7589, %v7592
  %v7594 = vsel %vm3107, %v7392, %v7392
  %v7595 = vsel %vm3111, %v7392, %v7594
  %v7596 = vrot.slane %v7393, 7
  %v7597 = vsel %vm3121, %v7596, %v7595
  %v7598 = vsel %vm3105, %v7596, %v7597
  %v7599 = vsel %vm3109, %v7596, %v7598
  %v7600 = vsel %vm3113, %v7596, %v7599
  %v7601 = vsel %vm3107, %v7394, %v7394
  %v7602 = vsel %vm3111, %v7394, %v7601
  %v7603 = vsel %vm3107, %v7395, %v7395
  %v7604 = vsel %vm3111, %v7395, %v7603
  %v7605 = vrot.slane %v7396, 7
  %v7606 = vsel %vm3121, %v7605, %v7604
  %v7607 = vsel %vm3105, %v7605, %v7606
  %v7608 = vsel %vm3109, %v7605, %v7607
  %v7609 = vsel %vm3113, %v7605, %v7608
  %v7610 = vsel %vm3107, %v7397, %v7397
  %v7611 = vsel %vm3111, %v7397, %v7610
  %v7612 = vrot.slane %v7398, 7
  %v7613 = vsel %vm3121, %v7612, %v7611
  %v7614 = vsel %vm3105, %v7612, %v7613
  %v7615 = vsel %vm3109, %v7612, %v7614
  %v7616 = vsel %vm3113, %v7612, %v7615
  %v7617 = vsel %vm3107, %v7399, %v7399
  %v7618 = vsel %vm3111, %v7399, %v7617
  %v7619 = vrot.slane %v7400, 7
  %v7620 = vsel %vm3121, %v7619, %v7618
  %v7621 = vsel %vm3105, %v7619, %v7620
  %v7622 = vsel %vm3109, %v7619, %v7621
  %v7623 = vsel %vm3113, %v7619, %v7622
  %v7624 = vsel %vm3107, %v7401, %v7401
  %v7625 = vsel %vm3111, %v7401, %v7624
  %v7626 = vsel %vm3107, %v7402, %v7402
  %v7627 = vsel %vm3111, %v7402, %v7626
  %v7628 = vrot.slane %v7403, 7
  %v7629 = vsel %vm3121, %v7628, %v7627
  %v7630 = vsel %vm3105, %v7628, %v7629
  %v7631 = vsel %vm3109, %v7628, %v7630
  %v7632 = vsel %vm3113, %v7628, %v7631
  %v7633 = vsel %vm3107, %v7404, %v7404
  %v7634 = vsel %vm3111, %v7404, %v7633
  %v7635 = vrot.slane %v7405, 7
  %v7636 = vsel %vm3121, %v7635, %v7634
  %v7637 = vsel %vm3105, %v7635, %v7636
  %v7638 = vsel %vm3109, %v7635, %v7637
  %v7639 = vsel %vm3113, %v7635, %v7638
  %v7640 = vsel %vm3107, %v7406, %v7406
  %v7641 = vsel %vm3111, %v7406, %v7640
  %v7642 = vrot.slane %v7407, 7
  %v7643 = vsel %vm3121, %v7642, %v7641
  %v7644 = vsel %vm3105, %v7642, %v7643
  %v7645 = vsel %vm3109, %v7642, %v7644
  %v7646 = vsel %vm3113, %v7642, %v7645
  %v7647 = vsel %vm3107, %v7408, %v7408
  %v7648 = vsel %vm3111, %v7408, %v7647
  %v7681 = vrot.slane %v7494, 4
  %vm7682 = vcmask 1047556
  %v7683 = vsel %vm7682, %v7681, %v7471
  %v7685 = vunpack.c.l.s4 1934713408
  %v7686 = vunpack.c.0.s8 %v7685
  %v7687 = vperm.slane %v7683, %v7686
  %v7688 = vrot.slane %v7687, 4
  %v7689 = vsel %vm7682, 0.0, %v7688
  %v7690 = vrot.slane %v7540, 4
  %v7691 = vsel %vm7682, %v7690, %v7517
  %v7693 = vunpack.c.l.s4 1934713408
  %v7694 = vunpack.c.0.s8 %v7693
  %v7695 = vperm.slane %v7691, %v7694
  %v7696 = vrot.slane %v7695, 4
  %v7697 = vsel %vm7682, 0.0, %v7696
  %v7698 = vrot.slane %v7586, 4
  %v7699 = vsel %vm7682, %v7698, %v7563
  %v7701 = vunpack.c.l.s4 1934713408
  %v7702 = vunpack.c.0.s8 %v7701
  %v7703 = vperm.slane %v7699, %v7702
  %v7704 = vrot.slane %v7703, 4
  %v7705 = vsel %vm7682, 0.0, %v7704
  %v7706 = vrot.slane %v7632, 4
  %v7707 = vsel %vm7682, %v7706, %v7609
  %v7709 = vunpack.c.l.s4 1934713408
  %v7710 = vunpack.c.0.s8 %v7709
  %v7711 = vperm.slane %v7707, %v7710
  %v7712 = vrot.slane %v7711, 4
  %v7713 = vsel %vm7682, 0.0, %v7712
  %v7714 = vrot.slane %v7501, 4
  %v7715 = vsel %vm7682, %v7714, %v7478
  %v7717 = vunpack.c.l.s4 1934713408
  %v7718 = vunpack.c.0.s8 %v7717
  %v7719 = vperm.slane %v7715, %v7718
  %v7720 = vrot.slane %v7719, 4
  %v7721 = vsel %vm7682, 0.0, %v7720
  %v7722 = vrot.slane %v7547, 4
  %v7723 = vsel %vm7682, %v7722, %v7524
  %v7725 = vunpack.c.l.s4 1934713408
  %v7726 = vunpack.c.0.s8 %v7725
  %v7727 = vperm.slane %v7723, %v7726
  %v7728 = vrot.slane %v7727, 4
  %v7729 = vsel %vm7682, 0.0, %v7728
  %v7730 = vrot.slane %v7593, 4
  %v7731 = vsel %vm7682, %v7730, %v7570
  %v7733 = vunpack.c.l.s4 1934713408
  %v7734 = vunpack.c.0.s8 %v7733
  %v7735 = vperm.slane %v7731, %v7734
  %v7736 = vrot.slane %v7735, 4
  %v7737 = vsel %vm7682, 0.0, %v7736
  %v7738 = vrot.slane %v7639, 4
  %v7739 = vsel %vm7682, %v7738, %v7616
  %v7741 = vunpack.c.l.s4 1934713408
  %v7742 = vunpack.c.0.s8 %v7741
  %v7743 = vperm.slane %v7739, %v7742
  %v7744 = vrot.slane %v7743, 4
  %v7745 = vsel %vm7682, 0.0, %v7744
  %v7746 = vrot.slane %v7508, 4
  %v7747 = vsel %vm7682, %v7746, %v7485
  %v7749 = vunpack.c.l.s4 1934713408
  %v7750 = vunpack.c.0.s8 %v7749
  %v7751 = vperm.slane %v7747, %v7750
  %v7752 = vrot.slane %v7751, 4
  %v7753 = vsel %vm7682, 0.0, %v7752
  %v7754 = vrot.slane %v7554, 4
  %v7755 = vsel %vm7682, %v7754, %v7531
  %v7757 = vunpack.c.l.s4 1934713408
  %v7758 = vunpack.c.0.s8 %v7757
  %v7759 = vperm.slane %v7755, %v7758
  %v7760 = vrot.slane %v7759, 4
  %v7761 = vsel %vm7682, 0.0, %v7760
  %v7762 = vrot.slane %v7600, 4
  %v7763 = vsel %vm7682, %v7762, %v7577
  %v7765 = vunpack.c.l.s4 1934713408
  %v7766 = vunpack.c.0.s8 %v7765
  %v7767 = vperm.slane %v7763, %v7766
  %v7768 = vrot.slane %v7767, 4
  %v7769 = vsel %vm7682, 0.0, %v7768
  %v7770 = vrot.slane %v7646, 4
  %v7771 = vsel %vm7682, %v7770, %v7623
  %v7773 = vunpack.c.l.s4 1934713408
  %v7774 = vunpack.c.0.s8 %v7773
  %v7775 = vperm.slane %v7771, %v7774
  %v7776 = vrot.slane %v7775, 4
  %v7777 = vsel %vm7682, 0.0, %v7776
  %v7778 = vrot.slane %v7510, 4
  %v7779 = vsel %vm7682, %v7778, %v7487
  %v7781 = vunpack.c.l.s4 1934713408
  %v7782 = vunpack.c.0.s8 %v7781
  %v7783 = vperm.slane %v7779, %v7782
  %v7784 = vrot.slane %v7556, 4
  %v7785 = vsel %vm7682, %v7784, %v7533
  %v7787 = vunpack.c.l.s4 1934713408
  %v7788 = vunpack.c.0.s8 %v7787
  %v7789 = vperm.slane %v7785, %v7788
  %v7790 = vrot.slane %v7602, 4
  %v7791 = vsel %vm7682, %v7790, %v7579
  %v7793 = vunpack.c.l.s4 1934713408
  %v7794 = vunpack.c.0.s8 %v7793
  %v7795 = vperm.slane %v7791, %v7794
  %v7796 = vrot.slane %v7648, 4
  %v7797 = vsel %vm7682, %v7796, %v7625
  %v7799 = vunpack.c.l.s4 1934713408
  %v7800 = vunpack.c.0.s8 %v7799
  %v7801 = vperm.slane %v7797, %v7800
  %7806 = vst [vmem:[#allocation1] ss:$4 sm:$0xff] %v7687
  %s7807 = scalar_lea.vmem [#allocation1], 1
  %7808 = vst [vmem:[%s7807] ss:$4 sm:$0xff] %v7695
  %s7809 = scalar_lea.vmem [#allocation1], 2
  %7810 = vst [vmem:[%s7809] ss:$4 sm:$0xff] %v7703
  %s7811 = scalar_lea.vmem [#allocation1], 3
  %7812 = vst [vmem:[%s7811] ss:$4 sm:$0xff] %v7711
  %v7813 = vld.sshfl [vmem:[#allocation1] sm:$0xff pattern:$0x73625140]
  %v7814 = vld.sshfl [vmem:[#allocation1 + $0x8] sm:$0xff pattern:$0x73625140]
  %7821 = vst [vmem:[#allocation1] ss:$4 sm:$0xff] %v7689
  %s7822 = scalar_lea.vmem [#allocation1], 1
  %7823 = vst [vmem:[%s7822] ss:$4 sm:$0xff] %v7697
  %s7824 = scalar_lea.vmem [#allocation1], 2
  %7825 = vst [vmem:[%s7824] ss:$4 sm:$0xff] %v7705
  %s7826 = scalar_lea.vmem [#allocation1], 3
  %7827 = vst [vmem:[%s7826] ss:$4 sm:$0xff] %v7713
  %v7828 = vld.sshfl [vmem:[#allocation1] sm:$0xff pattern:$0x73625140]
  %v7829 = vld.sshfl [vmem:[#allocation1 + $0x8] sm:$0xff pattern:$0x73625140]
  %7830 = vrot.lane.b32.xlu0 %v7828, 96
  %v7831 = vpop.permute.xlu0 %7830
  %7832 = vrot.lane.b32.xlu0 %v7829, 96
  %v7833 = vpop.permute.xlu0 %7832
  %vm7834 = vcmask 785408
  %v7835 = vsel %vm7834, %v7831, %v7833
  %7843 = vst [vmem:[#allocation1] ss:$4 sm:$0xff] %v7719
  %s7844 = scalar_lea.vmem [#allocation1], 1
  %7845 = vst [vmem:[%s7844] ss:$4 sm:$0xff] %v7727
  %s7846 = scalar_lea.vmem [#allocation1], 2
  %7847 = vst [vmem:[%s7846] ss:$4 sm:$0xff] %v7735
  %s7848 = scalar_lea.vmem [#allocation1], 3
  %7849 = vst [vmem:[%s7848] ss:$4 sm:$0xff] %v7743
  %v7850 = vld.sshfl [vmem:[#allocation1] sm:$0xff pattern:$0x73625140]
  %v7851 = vld.sshfl [vmem:[#allocation1 + $0x8] sm:$0xff pattern:$0x73625140]
  %7852 = vrot.lane.b32.xlu0 %v7850, 64
  %v7853 = vpop.permute.xlu0 %7852
  %7854 = vrot.lane.b32.xlu0 %v7851, 64
  %v7855 = vpop.permute.xlu0 %7854
  %vm7856 = vcmask 523264
  %v7857 = vsel %vm7856, %v7853, %v7855
  %7865 = vst [vmem:[#allocation1] ss:$4 sm:$0xff] %v7721
  %s7866 = scalar_lea.vmem [#allocation1], 1
  %7867 = vst [vmem:[%s7866] ss:$4 sm:$0xff] %v7729
  %s7868 = scalar_lea.vmem [#allocation1], 2
  %7869 = vst [vmem:[%s7868] ss:$4 sm:$0xff] %v7737
  %s7870 = scalar_lea.vmem [#allocation1], 3
  %7871 = vst [vmem:[%s7870] ss:$4 sm:$0xff] %v7745
  %v7872 = vld.sshfl [vmem:[#allocation1] sm:$0xff pattern:$0x73625140]
  %v7873 = vld.sshfl [vmem:[#allocation1 + $0x8] sm:$0xff pattern:$0x73625140]
  %7874 = vrot.lane.b32.xlu0 %v7872, 32
  %v7875 = vpop.permute.xlu0 %7874
  %7876 = vrot.lane.b32.xlu0 %v7873, 32
  %v7877 = vpop.permute.xlu0 %7876
  %v7878 = vsel %vm1422, %v7875, %v7877
  %7885 = vst [vmem:[#allocation1] ss:$4 sm:$0xff] %v7751
  %s7886 = scalar_lea.vmem [#allocation1], 1
  %7887 = vst [vmem:[%s7886] ss:$4 sm:$0xff] %v7759
  %s7888 = scalar_lea.vmem [#allocation1], 2
  %7889 = vst [vmem:[%s7888] ss:$4 sm:$0xff] %v7767
  %s7890 = scalar_lea.vmem [#allocation1], 3
  %7891 = vst [vmem:[%s7890] ss:$4 sm:$0xff] %v7775
  %v7892 = vld.sshfl [vmem:[#allocation1] sm:$0xff pattern:$0x73625140]
  %v7893 = vld.sshfl [vmem:[#allocation1 + $0x8] sm:$0xff pattern:$0x73625140]
  %7900 = vst [vmem:[#allocation1] ss:$4 sm:$0xff] %v7753
  %s7901 = scalar_lea.vmem [#allocation1], 1
  %7902 = vst [vmem:[%s7901] ss:$4 sm:$0xff] %v7761
  %s7903 = scalar_lea.vmem [#allocation1], 2
  %7904 = vst [vmem:[%s7903] ss:$4 sm:$0xff] %v7769
  %s7905 = scalar_lea.vmem [#allocation1], 3
  %7906 = vst [vmem:[%s7905] ss:$4 sm:$0xff] %v7777
  %v7907 = vld.sshfl [vmem:[#allocation1] sm:$0xff pattern:$0x73625140]
  %v7908 = vld.sshfl [vmem:[#allocation1 + $0x8] sm:$0xff pattern:$0x73625140]
  %7909 = vrot.lane.b32.xlu0 %v7907, 96
  %v7910 = vpop.permute.xlu0 %7909
  %7911 = vrot.lane.b32.xlu0 %v7908, 96
  %v7912 = vpop.permute.xlu0 %7911
  %v7913 = vsel %vm7834, %v7910, %v7912
  %7921 = vst [vmem:[#allocation1] ss:$4 sm:$0xff] %v7783
  %s7922 = scalar_lea.vmem [#allocation1], 1
  %7923 = vst [vmem:[%s7922] ss:$4 sm:$0xff] %v7789
  %s7924 = scalar_lea.vmem [#allocation1], 2
  %7925 = vst [vmem:[%s7924] ss:$4 sm:$0xff] %v7795
  %s7926 = scalar_lea.vmem [#allocation1], 3
  %7927 = vst [vmem:[%s7926] ss:$4 sm:$0xff] %v7801
  %v7928 = vld.sshfl [vmem:[#allocation1] sm:$0xff pattern:$0x73625140]
  %v7929 = vld.sshfl [vmem:[#allocation1 + $0x8] sm:$0xff pattern:$0x73625140]
  %7930 = vrot.lane.b32.xlu0 %v7928, 64
  %v7931 = vpop.permute.xlu0 %7930
  %7932 = vrot.lane.b32.xlu0 %v7929, 64
  %v7933 = vpop.permute.xlu0 %7932
  %v7934 = vsel %vm7856, %v7931, %v7933
  %v7938 = vsel %vm7834, %v7814, %v7831
  %v7939 = vsel %vm7856, %v7833, %v7853
  %v7940 = vsel %vm1422, %v7855, %v7875
  %v7941 = vsel %vm7834, %v7893, %v7910
  %v7942 = vsel %vm7856, %v7912, %v7931
  %v7943 = vpack.c.bf16 %v7813, %v7813
  %v7944 = vpack.c.bf16 %v7938, %v7938
  %v7945 = vpack.c.bf16 %v7835, %v7835
  %v7946 = vpack.c.bf16 %v7939, %v7939
  %v7947 = vpack.c.bf16 %v7857, %v7857
  %v7948 = vpack.c.bf16 %v7940, %v7940
  %v7949 = vpack.c.bf16 %v7878, %v7878
  %v7950 = vpack.c.bf16 %v7892, %v7892
  %v7951 = vpack.c.bf16 %v7941, %v7941
  %v7952 = vpack.c.bf16 %v7913, %v7913
  %v7953 = vpack.c.bf16 %v7942, %v7942
  %v7954 = vpack.c.bf16 %v7934, %v7934
  %v7955 = vpack.c.bf16 %v7933, %v7933
  %v7956 = vld [vmem:[%s5] sm:$0xf]
  %v7957 = vld [vmem:[%s5 + $0x4] sm:$0xf]
  %v7958 = vld [vmem:[%s5 + $0x8] sm:$0xf]
  %v7959 = vld [vmem:[%s5 + $0xc] sm:$0xf]
  %v7960 = vld [vmem:[%s5 + $0x10] sm:$0xf]
  %v7961 = vld [vmem:[%s5 + $0x14] sm:$0xf]
  %v7962 = vld [vmem:[%s5 + $0x18] sm:$0xf]
  %v7963 = vld [vmem:[%s5 + $0x1c] sm:$0xf]
  %v7964 = vld [vmem:[%s5 + $0x20] sm:$0xf]
  %v7965 = vld [vmem:[%s5 + $0x24] sm:$0xf]
  %v7966 = vld [vmem:[%s5 + $0x28] sm:$0xf]
  %v7967 = vld [vmem:[%s5 + $0x2c] sm:$0xf]
  %v7968 = vld [vmem:[%s5 + $0x30] sm:$0xf]
  %v7969 = vld [vmem:[%s5 + $0x34] sm:$0xf]
  %v7970 = vld [vmem:[%s5 + $0x38] sm:$0xf]
  %v7971 = vld [vmem:[%s5 + $0x3c] sm:$0xf]
  %v7972 = vld [vmem:[%s5 + $0x40] sm:$0xf]
  %v7973 = vld [vmem:[%s5 + $0x44] sm:$0xf]
  %v7974 = vld [vmem:[%s5 + $0x48] sm:$0xf]
  %v7975 = vld [vmem:[%s5 + $0x4c] sm:$0xf]
  %v7976 = vld [vmem:[%s5 + $0x50] sm:$0xf]
  %v7977 = vld [vmem:[%s5 + $0x54] sm:$0xf]
  %v7978 = vld [vmem:[%s5 + $0x58] sm:$0xf]
  %v7979 = vld [vmem:[%s5 + $0x5c] sm:$0xf]
  %v7980 = vld [vmem:[%s5 + $0x60] sm:$0xf]
  %v7981 = vld [vmem:[%s5 + $0x64] sm:$0xf]
  %v7982 = vld [vmem:[%s5 + $0x68] sm:$0xf]
  %v7983 = vld [vmem:[%s5 + $0x6c] sm:$0xf]
  %v7984 = vld [vmem:[%s5 + $0x70] sm:$0xf]
  %v7985 = vld [vmem:[%s5 + $0x74] sm:$0xf]
  %v7986 = vld [vmem:[%s5 + $0x78] sm:$0xf]
  %v7987 = vld [vmem:[%s5 + $0x7c] sm:$0xf]
  %v7988 = vld [vmem:[%s5 + $0x80] sm:$0xf]
  %v7989 = vld [vmem:[%s5 + $0x84] sm:$0xf]
  %v7990 = vld [vmem:[%s5 + $0x88] sm:$0xf]
  %v7991 = vld [vmem:[%s5 + $0x8c] sm:$0xf]
  %v7992 = vld [vmem:[%s5 + $0x90] sm:$0xf]
  %v7993 = vld [vmem:[%s5 + $0x94] sm:$0xf]
  %v7994 = vld [vmem:[%s5 + $0x98] sm:$0xf]
  %v7995 = vld [vmem:[%s5 + $0x9c] sm:$0xf]
  %v7996 = vld [vmem:[%s5 + $0xa0] sm:$0xf]
  %v7997 = vld [vmem:[%s5 + $0xa4] sm:$0xf]
  %v7998 = vld [vmem:[%s5 + $0xa8] sm:$0xf]
  %v7999 = vld [vmem:[%s5 + $0xac] sm:$0xf]
  %v8000 = vld [vmem:[%s5 + $0xb0] sm:$0xf]
  %v8001 = vld [vmem:[%s5 + $0xb4] sm:$0xf]
  %v8002 = vld [vmem:[%s5 + $0xb8] sm:$0xf]
  %v8003 = vld [vmem:[%s5 + $0xbc] sm:$0xf]
  %v8004 = vld [vmem:[%s5 + $0xc0] sm:$0xf]
  %v8005 = vld [vmem:[%s5 + $0xc4] sm:$0xf]
  %v8006 = vld [vmem:[%s5 + $0xc8] sm:$0xf]
  %v8007 = vld [vmem:[%s5 + $0xcc] sm:$0xf]
  %v8008 = vld [vmem:[%s5 + $0xd0] sm:$0xf]
  %v8009 = vld [vmem:[%s5 + $0xd4] sm:$0xf]
  %v8010 = vld [vmem:[%s5 + $0xd8] sm:$0xf]
  %v8011 = vld [vmem:[%s5 + $0xdc] sm:$0xf]
  %v8012 = vld [vmem:[%s5 + $0xe0] sm:$0xf]
  %v8013 = vld [vmem:[%s5 + $0xe4] sm:$0xf]
  %v8014 = vld [vmem:[%s5 + $0xe8] sm:$0xf]
  %v8015 = vld [vmem:[%s5 + $0xec] sm:$0xf]
  %v8016 = vld [vmem:[%s5 + $0xf0] sm:$0xf]
  %v8017 = vld [vmem:[%s5 + $0xf4] sm:$0xf]
  %v8018 = vld [vmem:[%s5 + $0xf8] sm:$0xf]
  %v8019 = vld [vmem:[%s5 + $0xfc] sm:$0xf]
  %v8020 = vld [vmem:[%s5 + $0x100] sm:$0xf]
  %v8021 = vld [vmem:[%s5 + $0x104] sm:$0xf]
  %v8022 = vld [vmem:[%s5 + $0x108] sm:$0xf]
  %v8023 = vld [vmem:[%s5 + $0x10c] sm:$0xf]
  %v8024 = vld [vmem:[%s5 + $0x110] sm:$0xf]
  %v8025 = vld [vmem:[%s5 + $0x114] sm:$0xf]
  %v8026 = vld [vmem:[%s5 + $0x118] sm:$0xf]
  %v8027 = vld [vmem:[%s5 + $0x11c] sm:$0xf]
  %v8028 = vld [vmem:[%s5 + $0x120] sm:$0xf]
  %v8029 = vld [vmem:[%s5 + $0x124] sm:$0xf]
  %v8030 = vld [vmem:[%s5 + $0x128] sm:$0xf]
  %v8031 = vld [vmem:[%s5 + $0x12c] sm:$0xf]
  %v8032 = vld [vmem:[%s5 + $0x130] sm:$0xf]
  %v8033 = vld [vmem:[%s5 + $0x134] sm:$0xf]
  %v8034 = vld [vmem:[%s5 + $0x138] sm:$0xf]
  %v8035 = vld [vmem:[%s5 + $0x13c] sm:$0xf]
  %v8036 = vld [vmem:[%s5 + $0x140] sm:$0xf]
  %v8037 = vld [vmem:[%s5 + $0x144] sm:$0xf]
  %v8038 = vld [vmem:[%s5 + $0x148] sm:$0xf]
  %v8039 = vld [vmem:[%s5 + $0x14c] sm:$0xf]
  %v8040 = vld [vmem:[%s5 + $0x150] sm:$0xf]
  %v8041 = vld [vmem:[%s5 + $0x154] sm:$0xf]
  %v8042 = vld [vmem:[%s5 + $0x158] sm:$0xf]
  %v8043 = vld [vmem:[%s5 + $0x15c] sm:$0xf]
  %v8044 = vld [vmem:[%s5 + $0x160] sm:$0xf]
  %v8045 = vld [vmem:[%s5 + $0x164] sm:$0xf]
  %v8046 = vld [vmem:[%s5 + $0x168] sm:$0xf]
  %v8047 = vld [vmem:[%s5 + $0x16c] sm:$0xf]
  %v8048 = vld [vmem:[%s5 + $0x170] sm:$0xf]
  %v8049 = vld [vmem:[%s5 + $0x174] sm:$0xf]
  %v8050 = vld [vmem:[%s5 + $0x178] sm:$0xf]
  %v8051 = vld [vmem:[%s5 + $0x17c] sm:$0xf]
  %v8052 = vld [vmem:[%s5 + $0x180] sm:$0xf]
  %v8053 = vld [vmem:[%s5 + $0x184] sm:$0xf]
  %v8054 = vld [vmem:[%s5 + $0x188] sm:$0xf]
  %v8055 = vld [vmem:[%s5 + $0x18c] sm:$0xf]
  %v8056 = vld [vmem:[%s5 + $0x190] sm:$0xf]
  %v8057 = vld [vmem:[%s5 + $0x194] sm:$0xf]
  %v8058 = vld [vmem:[%s5 + $0x198] sm:$0xf]
  %v8059 = vld [vmem:[%s5 + $0x19c] sm:$0xf]
  %v8060 = vld [vmem:[%s5 + $0x1a0] sm:$0xf]
  %v8061 = vld [vmem:[%s5 + $0x1a4] sm:$0xf]
  %v8062 = vld [vmem:[%s5 + $0x1a8] sm:$0xf]
  %v8063 = vld [vmem:[%s5 + $0x1ac] sm:$0xf]
  %v8064 = vld [vmem:[%s5 + $0x1b0] sm:$0xf]
  %v8065 = vld [vmem:[%s5 + $0x1b4] sm:$0xf]
  %v8066 = vld [vmem:[%s5 + $0x1b8] sm:$0xf]
  %v8067 = vld [vmem:[%s5 + $0x1bc] sm:$0xf]
  %v8068 = vld [vmem:[%s5 + $0x1c0] sm:$0xf]
  %v8069 = vld [vmem:[%s5 + $0x1c4] sm:$0xf]
  %v8070 = vld [vmem:[%s5 + $0x1c8] sm:$0xf]
  %v8071 = vld [vmem:[%s5 + $0x1cc] sm:$0xf]
  %v8072 = vld [vmem:[%s5 + $0x1d0] sm:$0xf]
  %v8073 = vld [vmem:[%s5 + $0x1d4] sm:$0xf]
  %v8074 = vld [vmem:[%s5 + $0x1d8] sm:$0xf]
  %v8075 = vld [vmem:[%s5 + $0x1dc] sm:$0xf]
  %v8076 = vld [vmem:[%s5 + $0x1e0] sm:$0xf]
  %v8077 = vld [vmem:[%s5 + $0x1e4] sm:$0xf]
  %v8078 = vld [vmem:[%s5 + $0x1e8] sm:$0xf]
  %v8079 = vld [vmem:[%s5 + $0x1ec] sm:$0xf]
  %v8080 = vld [vmem:[%s5 + $0x1f0] sm:$0xf]
  %v8081 = vld [vmem:[%s5 + $0x1f4] sm:$0xf]
  %v8082 = vld [vmem:[%s5 + $0x1f8] sm:$0xf]
  %v8083 = vld [vmem:[%s5 + $0x1fc] sm:$0xf]
  %v8084 = vld [vmem:[%s5 + $0x200] sm:$0xf]
  %v8085 = vld [vmem:[%s5 + $0x204] sm:$0xf]
  %v8086 = vld [vmem:[%s5 + $0x208] sm:$0xf]
  %v8087 = vld [vmem:[%s5 + $0x20c] sm:$0xf]
  %v8088 = vld [vmem:[%s5 + $0x210] sm:$0xf]
  %v8089 = vld [vmem:[%s5 + $0x214] sm:$0xf]
  %v8090 = vld [vmem:[%s5 + $0x218] sm:$0xf]
  %v8091 = vld [vmem:[%s5 + $0x21c] sm:$0xf]
  %v8092 = vld [vmem:[%s5 + $0x220] sm:$0xf]
  %v8093 = vld [vmem:[%s5 + $0x224] sm:$0xf]
  %v8094 = vld [vmem:[%s5 + $0x228] sm:$0xf]
  %v8095 = vld [vmem:[%s5 + $0x22c] sm:$0xf]
  %v8096 = vld [vmem:[%s5 + $0x230] sm:$0xf]
  %v8097 = vld [vmem:[%s5 + $0x234] sm:$0xf]
  %v8098 = vld [vmem:[%s5 + $0x238] sm:$0xf]
  %v8099 = vld [vmem:[%s5 + $0x23c] sm:$0xf]
  %v8100 = vld [vmem:[%s5 + $0x240] sm:$0xf]
  %v8101 = vld [vmem:[%s5 + $0x244] sm:$0xf]
  %v8102 = vld [vmem:[%s5 + $0x248] sm:$0xf]
  %v8103 = vld [vmem:[%s5 + $0x24c] sm:$0xf]
  %v8104 = vld [vmem:[%s5 + $0x250] sm:$0xf]
  %v8105 = vld [vmem:[%s5 + $0x254] sm:$0xf]
  %v8106 = vld [vmem:[%s5 + $0x258] sm:$0xf]
  %v8107 = vld [vmem:[%s5 + $0x25c] sm:$0xf]
  %v8108 = vld [vmem:[%s5 + $0x260] sm:$0xf]
  %v8109 = vld [vmem:[%s5 + $0x264] sm:$0xf]
  %v8110 = vld [vmem:[%s5 + $0x268] sm:$0xf]
  %v8111 = vld [vmem:[%s5 + $0x26c] sm:$0xf]
  %v8112 = vld [vmem:[%s5 + $0x270] sm:$0xf]
  %v8113 = vld [vmem:[%s5 + $0x274] sm:$0xf]
  %v8114 = vld [vmem:[%s5 + $0x278] sm:$0xf]
  %v8115 = vld [vmem:[%s5 + $0x27c] sm:$0xf]
  %v8116 = vld [vmem:[%s5 + $0x280] sm:$0xf]
  %v8117 = vld [vmem:[%s5 + $0x284] sm:$0xf]
  %v8118 = vld [vmem:[%s5 + $0x288] sm:$0xf]
  %v8119 = vld [vmem:[%s5 + $0x28c] sm:$0xf]
  %v8120 = vld [vmem:[%s5 + $0x290] sm:$0xf]
  %v8121 = vld [vmem:[%s5 + $0x294] sm:$0xf]
  %v8122 = vld [vmem:[%s5 + $0x298] sm:$0xf]
  %v8123 = vld [vmem:[%s5 + $0x29c] sm:$0xf]
  %v8124 = vld [vmem:[%s5 + $0x2a0] sm:$0xf]
  %v8125 = vld [vmem:[%s5 + $0x2a4] sm:$0xf]
  %v8126 = vld [vmem:[%s5 + $0x2a8] sm:$0xf]
  %v8127 = vld [vmem:[%s5 + $0x2ac] sm:$0xf]
  %v8128 = vld [vmem:[%s5 + $0x2b0] sm:$0xf]
  %v8129 = vld [vmem:[%s5 + $0x2b4] sm:$0xf]
  %v8130 = vld [vmem:[%s5 + $0x2b8] sm:$0xf]
  %v8131 = vld [vmem:[%s5 + $0x2bc] sm:$0xf]
  %v8132 = vld [vmem:[%s5 + $0x2c0] sm:$0xf]
  %v8133 = vld [vmem:[%s5 + $0x2c4] sm:$0xf]
  %v8134 = vld [vmem:[%s5 + $0x2c8] sm:$0xf]
  %v8135 = vld [vmem:[%s5 + $0x2cc] sm:$0xf]
  %v8136 = vld [vmem:[%s5 + $0x2d0] sm:$0xf]
  %v8137 = vld [vmem:[%s5 + $0x2d4] sm:$0xf]
  %v8138 = vld [vmem:[%s5 + $0x2d8] sm:$0xf]
  %v8139 = vld [vmem:[%s5 + $0x2dc] sm:$0xf]
  %v8140 = vld [vmem:[%s5 + $0x2e0] sm:$0xf]
  %v8141 = vld [vmem:[%s5 + $0x2e4] sm:$0xf]
  %v8142 = vld [vmem:[%s5 + $0x2e8] sm:$0xf]
  %v8143 = vld [vmem:[%s5 + $0x2ec] sm:$0xf]
  %v8144 = vld [vmem:[%s5 + $0x2f0] sm:$0xf]
  %v8145 = vld [vmem:[%s5 + $0x2f4] sm:$0xf]
  %v8146 = vld [vmem:[%s5 + $0x2f8] sm:$0xf]
  %v8147 = vld [vmem:[%s5 + $0x2fc] sm:$0xf]
  %v8148 = vld [vmem:[%s5 + $0x300] sm:$0xf]
  %v8149 = vld [vmem:[%s5 + $0x304] sm:$0xf]
  %v8150 = vld [vmem:[%s5 + $0x308] sm:$0xf]
  %v8151 = vld [vmem:[%s5 + $0x30c] sm:$0xf]
  %v8152 = vld [vmem:[%s6] sm:$0x1]
  %v8154 = vperm.slane %v8152, 0
  %v8352 = vunpack.c.l.b16 %v7956
  %v8353 = vunpack.c.l.b16 %v7957
  %v8354 = vunpack.c.l.b16 %v7958
  %v8355 = vunpack.c.l.b16 %v7959
  %v8356 = vunpack.c.l.b16 %v7960
  %v8357 = vunpack.c.l.b16 %v7961
  %v8358 = vunpack.c.l.b16 %v7962
  %v8359 = vunpack.c.l.b16 %v7963
  %v8360 = vunpack.c.l.b16 %v7964
  %v8361 = vunpack.c.l.b16 %v7965
  %v8362 = vunpack.c.l.b16 %v7966
  %v8363 = vunpack.c.l.b16 %v7967
  %v8364 = vunpack.c.l.b16 %v7968
  %v8365 = vunpack.c.l.b16 %v7969
  %v8366 = vunpack.c.l.b16 %v7970
  %v8367 = vunpack.c.l.b16 %v7971
  %v8368 = vunpack.c.l.b16 %v7972
  %v8369 = vunpack.c.l.b16 %v7973
  %v8370 = vunpack.c.l.b16 %v7974
  %v8371 = vunpack.c.l.b16 %v7975
  %v8372 = vunpack.c.l.b16 %v7976
  %v8373 = vunpack.c.l.b16 %v7977
  %v8374 = vunpack.c.l.b16 %v7978
  %v8375 = vunpack.c.l.b16 %v7979
  %v8376 = vunpack.c.l.b16 %v7980
  %v8377 = vunpack.c.l.b16 %v7981
  %v8378 = vunpack.c.l.b16 %v7982
  %v8379 = vunpack.c.l.b16 %v7983
  %v8380 = vunpack.c.l.b16 %v7984
  %v8381 = vunpack.c.l.b16 %v7985
  %v8382 = vunpack.c.l.b16 %v7986
  %v8383 = vunpack.c.l.b16 %v7987
  %v8384 = vunpack.c.l.b16 %v7988
  %v8385 = vunpack.c.l.b16 %v7989
  %v8386 = vunpack.c.l.b16 %v7990
  %v8387 = vunpack.c.l.b16 %v7991
  %v8388 = vunpack.c.l.b16 %v7992
  %v8389 = vunpack.c.l.b16 %v7993
  %v8390 = vunpack.c.l.b16 %v7994
  %v8391 = vunpack.c.l.b16 %v7995
  %v8392 = vunpack.c.l.b16 %v7996
  %v8393 = vunpack.c.l.b16 %v7997
  %v8394 = vunpack.c.l.b16 %v7998
  %v8395 = vunpack.c.l.b16 %v7999
  %v8396 = vunpack.c.l.b16 %v8000
  %v8397 = vunpack.c.l.b16 %v8001
  %v8398 = vunpack.c.l.b16 %v8002
  %v8399 = vunpack.c.l.b16 %v8003
  %v8400 = vunpack.c.l.b16 %v8004
  %v8401 = vunpack.c.l.b16 %v8005
  %v8402 = vunpack.c.l.b16 %v8006
  %v8403 = vunpack.c.l.b16 %v8007
  %v8404 = vunpack.c.l.b16 %v8008
  %v8405 = vunpack.c.l.b16 %v8009
  %v8406 = vunpack.c.l.b16 %v8010
  %v8407 = vunpack.c.l.b16 %v8011
  %v8408 = vunpack.c.l.b16 %v8012
  %v8409 = vunpack.c.l.b16 %v8013
  %v8410 = vunpack.c.l.b16 %v8014
  %v8411 = vunpack.c.l.b16 %v8015
  %v8412 = vunpack.c.l.b16 %v8016
  %v8413 = vunpack.c.l.b16 %v8017
  %v8414 = vunpack.c.l.b16 %v8018
  %v8415 = vunpack.c.l.b16 %v8019
  %v8416 = vunpack.c.l.b16 %v8020
  %v8417 = vunpack.c.l.b16 %v8021
  %v8418 = vunpack.c.l.b16 %v8022
  %v8419 = vunpack.c.l.b16 %v8023
  %v8420 = vunpack.c.l.b16 %v8024
  %v8421 = vunpack.c.l.b16 %v8025
  %v8422 = vunpack.c.l.b16 %v8026
  %v8423 = vunpack.c.l.b16 %v8027
  %v8424 = vunpack.c.l.b16 %v8028
  %v8425 = vunpack.c.l.b16 %v8029
  %v8426 = vunpack.c.l.b16 %v8030
  %v8427 = vunpack.c.l.b16 %v8031
  %v8428 = vunpack.c.l.b16 %v8032
  %v8429 = vunpack.c.l.b16 %v8033
  %v8430 = vunpack.c.l.b16 %v8034
  %v8431 = vunpack.c.l.b16 %v8035
  %v8432 = vunpack.c.l.b16 %v8036
  %v8433 = vunpack.c.l.b16 %v8037
  %v8434 = vunpack.c.l.b16 %v8038
  %v8435 = vunpack.c.l.b16 %v8039
  %v8436 = vunpack.c.l.b16 %v8040
  %v8437 = vunpack.c.l.b16 %v8041
  %v8438 = vunpack.c.l.b16 %v8042
  %v8439 = vunpack.c.l.b16 %v8043
  %v8440 = vunpack.c.l.b16 %v8044
  %v8441 = vunpack.c.l.b16 %v8045
  %v8442 = vunpack.c.l.b16 %v8046
  %v8443 = vunpack.c.l.b16 %v8047
  %v8444 = vunpack.c.l.b16 %v8048
  %v8445 = vunpack.c.l.b16 %v8049
  %v8446 = vunpack.c.l.b16 %v8050
  %v8447 = vunpack.c.l.b16 %v8051
  %v8448 = vunpack.c.l.b16 %v8052
  %v8449 = vunpack.c.l.b16 %v8053
  %v8450 = vunpack.c.l.b16 %v8054
  %v8451 = vunpack.c.l.b16 %v8055
  %v8452 = vunpack.c.l.b16 %v8056
  %v8453 = vunpack.c.l.b16 %v8057
  %v8454 = vunpack.c.l.b16 %v8058
  %v8455 = vunpack.c.l.b16 %v8059
  %v8456 = vunpack.c.l.b16 %v8060
  %v8457 = vunpack.c.l.b16 %v8061
  %v8458 = vunpack.c.l.b16 %v8062
  %v8459 = vunpack.c.l.b16 %v8063
  %v8460 = vunpack.c.l.b16 %v8064
  %v8461 = vunpack.c.l.b16 %v8065
  %v8462 = vunpack.c.l.b16 %v8066
  %v8463 = vunpack.c.l.b16 %v8067
  %v8464 = vunpack.c.l.b16 %v8068
  %v8465 = vunpack.c.l.b16 %v8069
  %v8466 = vunpack.c.l.b16 %v8070
  %v8467 = vunpack.c.l.b16 %v8071
  %v8468 = vunpack.c.l.b16 %v8072
  %v8469 = vunpack.c.l.b16 %v8073
  %v8470 = vunpack.c.l.b16 %v8074
  %v8471 = vunpack.c.l.b16 %v8075
  %v8472 = vunpack.c.l.b16 %v8076
  %v8473 = vunpack.c.l.b16 %v8077
  %v8474 = vunpack.c.l.b16 %v8078
  %v8475 = vunpack.c.l.b16 %v8079
  %v8476 = vunpack.c.l.b16 %v8080
  %v8477 = vunpack.c.l.b16 %v8081
  %v8478 = vunpack.c.l.b16 %v8082
  %v8479 = vunpack.c.l.b16 %v8083
  %v8480 = vunpack.c.l.b16 %v8084
  %v8481 = vunpack.c.l.b16 %v8085
  %v8482 = vunpack.c.l.b16 %v8086
  %v8483 = vunpack.c.l.b16 %v8087
  %v8484 = vunpack.c.l.b16 %v8088
  %v8485 = vunpack.c.l.b16 %v8089
  %v8486 = vunpack.c.l.b16 %v8090
  %v8487 = vunpack.c.l.b16 %v8091
  %v8488 = vunpack.c.l.b16 %v8092
  %v8489 = vunpack.c.l.b16 %v8093
  %v8490 = vunpack.c.l.b16 %v8094
  %v8491 = vunpack.c.l.b16 %v8095
  %v8492 = vunpack.c.l.b16 %v8096
  %v8493 = vunpack.c.l.b16 %v8097
  %v8494 = vunpack.c.l.b16 %v8098
  %v8495 = vunpack.c.l.b16 %v8099
  %v8496 = vunpack.c.l.b16 %v8100
  %v8497 = vunpack.c.l.b16 %v8101
  %v8498 = vunpack.c.l.b16 %v8102
  %v8499 = vunpack.c.l.b16 %v8103
  %v8500 = vunpack.c.l.b16 %v8104
  %v8501 = vunpack.c.l.b16 %v8105
  %v8502 = vunpack.c.l.b16 %v8106
  %v8503 = vunpack.c.l.b16 %v8107
  %v8504 = vunpack.c.l.b16 %v8108
  %v8505 = vunpack.c.l.b16 %v8109
  %v8506 = vunpack.c.l.b16 %v8110
  %v8507 = vunpack.c.l.b16 %v8111
  %v8508 = vunpack.c.l.b16 %v8112
  %v8509 = vunpack.c.l.b16 %v8113
  %v8510 = vunpack.c.l.b16 %v8114
  %v8511 = vunpack.c.l.b16 %v8115
  %v8512 = vunpack.c.l.b16 %v8116
  %v8513 = vunpack.c.l.b16 %v8117
  %v8514 = vunpack.c.l.b16 %v8118
  %v8515 = vunpack.c.l.b16 %v8119
  %v8516 = vunpack.c.l.b16 %v8120
  %v8517 = vunpack.c.l.b16 %v8121
  %v8518 = vunpack.c.l.b16 %v8122
  %v8519 = vunpack.c.l.b16 %v8123
  %v8520 = vunpack.c.l.b16 %v8124
  %v8521 = vunpack.c.l.b16 %v8125
  %v8522 = vunpack.c.l.b16 %v8126
  %v8523 = vunpack.c.l.b16 %v8127
  %v8524 = vunpack.c.l.b16 %v8128
  %v8525 = vunpack.c.l.b16 %v8129
  %v8526 = vunpack.c.l.b16 %v8130
  %v8527 = vunpack.c.l.b16 %v8131
  %v8528 = vunpack.c.l.b16 %v8132
  %v8529 = vunpack.c.l.b16 %v8133
  %v8530 = vunpack.c.l.b16 %v8134
  %v8531 = vunpack.c.l.b16 %v8135
  %v8532 = vunpack.c.l.b16 %v8136
  %v8533 = vunpack.c.l.b16 %v8137
  %v8534 = vunpack.c.l.b16 %v8138
  %v8535 = vunpack.c.l.b16 %v8139
  %v8536 = vunpack.c.l.b16 %v8140
  %v8537 = vunpack.c.l.b16 %v8141
  %v8538 = vunpack.c.l.b16 %v8142
  %v8539 = vunpack.c.l.b16 %v8143
  %v8540 = vunpack.c.l.b16 %v8144
  %v8541 = vunpack.c.l.b16 %v8145
  %v8542 = vunpack.c.l.b16 %v8146
  %v8543 = vunpack.c.l.b16 %v8147
  %v8544 = vunpack.c.l.b16 %v8148
  %v8545 = vunpack.c.l.b16 %v8149
  %v8546 = vunpack.c.l.b16 %v8150
  %v8547 = vunpack.c.l.b16 %v8151
  %v8548 = vpack.c.b16 %v8353, %v8352
  %v8549 = vpack.c.b16 %v8355, %v8354
  %v8550 = vpack.c.b16 %v8357, %v8356
  %v8551 = vpack.c.b16 %v8359, %v8358
  %v8552 = vpack.c.b16 %v8361, %v8360
  %v8553 = vpack.c.b16 %v8363, %v8362
  %v8554 = vpack.c.b16 %v8365, %v8364
  %v8555 = vpack.c.b16 %v8367, %v8366
  %v8556 = vpack.c.b16 %v8369, %v8368
  %v8557 = vpack.c.b16 %v8371, %v8370
  %v8558 = vpack.c.b16 %v8373, %v8372
  %v8559 = vpack.c.b16 %v8375, %v8374
  %v8560 = vpack.c.b16 %v8377, %v8376
  %v8561 = vpack.c.b16 %v8379, %v8378
  %v8562 = vpack.c.b16 %v8381, %v8380
  %v8563 = vpack.c.b16 %v8383, %v8382
  %v8564 = vpack.c.b16 %v8385, %v8384
  %v8565 = vpack.c.b16 %v8387, %v8386
  %v8566 = vpack.c.b16 %v8389, %v8388
  %v8567 = vpack.c.b16 %v8391, %v8390
  %v8568 = vpack.c.b16 %v8393, %v8392
  %v8569 = vpack.c.b16 %v8395, %v8394
  %v8570 = vpack.c.b16 %v8397, %v8396
  %v8571 = vpack.c.b16 %v8399, %v8398
  %v8572 = vpack.c.b16 %v8401, %v8400
  %v8573 = vpack.c.b16 %v8403, %v8402
  %v8574 = vpack.c.b16 %v8405, %v8404
  %v8575 = vpack.c.b16 %v8407, %v8406
  %v8576 = vpack.c.b16 %v8409, %v8408
  %v8577 = vpack.c.b16 %v8411, %v8410
  %v8578 = vpack.c.b16 %v8413, %v8412
  %v8579 = vpack.c.b16 %v8415, %v8414
  %v8580 = vpack.c.b16 %v8417, %v8416
  %v8581 = vpack.c.b16 %v8419, %v8418
  %v8582 = vpack.c.b16 %v8421, %v8420
  %v8583 = vpack.c.b16 %v8423, %v8422
  %v8584 = vpack.c.b16 %v8425, %v8424
  %v8585 = vpack.c.b16 %v8427, %v8426
  %v8586 = vpack.c.b16 %v8429, %v8428
  %v8587 = vpack.c.b16 %v8431, %v8430
  %v8588 = vpack.c.b16 %v8433, %v8432
  %v8589 = vpack.c.b16 %v8435, %v8434
  %v8590 = vpack.c.b16 %v8437, %v8436
  %v8591 = vpack.c.b16 %v8439, %v8438
  %v8592 = vpack.c.b16 %v8441, %v8440
  %v8593 = vpack.c.b16 %v8443, %v8442
  %v8594 = vpack.c.b16 %v8445, %v8444
  %v8595 = vpack.c.b16 %v8447, %v8446
  %v8596 = vpack.c.b16 %v8449, %v8448
  %v8597 = vpack.c.b16 %v8451, %v8450
  %v8598 = vpack.c.b16 %v8453, %v8452
  %v8599 = vpack.c.b16 %v8455, %v8454
  %v8600 = vpack.c.b16 %v8457, %v8456
  %v8601 = vpack.c.b16 %v8459, %v8458
  %v8602 = vpack.c.b16 %v8461, %v8460
  %v8603 = vpack.c.b16 %v8463, %v8462
  %v8604 = vpack.c.b16 %v8465, %v8464
  %v8605 = vpack.c.b16 %v8467, %v8466
  %v8606 = vpack.c.b16 %v8469, %v8468
  %v8607 = vpack.c.b16 %v8471, %v8470
  %v8608 = vpack.c.b16 %v8473, %v8472
  %v8609 = vpack.c.b16 %v8475, %v8474
  %v8610 = vpack.c.b16 %v8477, %v8476
  %v8611 = vpack.c.b16 %v8479, %v8478
  %v8612 = vpack.c.b16 %v8481, %v8480
  %v8613 = vpack.c.b16 %v8483, %v8482
  %v8614 = vpack.c.b16 %v8485, %v8484
  %v8615 = vpack.c.b16 %v8487, %v8486
  %v8616 = vpack.c.b16 %v8489, %v8488
  %v8617 = vpack.c.b16 %v8491, %v8490
  %v8618 = vpack.c.b16 %v8493, %v8492
  %v8619 = vpack.c.b16 %v8495, %v8494
  %v8620 = vpack.c.b16 %v8497, %v8496
  %v8621 = vpack.c.b16 %v8499, %v8498
  %v8622 = vpack.c.b16 %v8501, %v8500
  %v8623 = vpack.c.b16 %v8503, %v8502
  %v8624 = vpack.c.b16 %v8505, %v8504
  %v8625 = vpack.c.b16 %v8507, %v8506
  %v8626 = vpack.c.b16 %v8509, %v8508
  %v8627 = vpack.c.b16 %v8511, %v8510
  %v8628 = vpack.c.b16 %v8513, %v8512
  %v8629 = vpack.c.b16 %v8515, %v8514
  %v8630 = vpack.c.b16 %v8517, %v8516
  %v8631 = vpack.c.b16 %v8519, %v8518
  %v8632 = vpack.c.b16 %v8521, %v8520
  %v8633 = vpack.c.b16 %v8523, %v8522
  %v8634 = vpack.c.b16 %v8525, %v8524
  %v8635 = vpack.c.b16 %v8527, %v8526
  %v8636 = vpack.c.b16 %v8529, %v8528
  %v8637 = vpack.c.b16 %v8531, %v8530
  %v8638 = vpack.c.b16 %v8533, %v8532
  %v8639 = vpack.c.b16 %v8535, %v8534
  %v8640 = vpack.c.b16 %v8537, %v8536
  %v8641 = vpack.c.b16 %v8539, %v8538
  %v8642 = vpack.c.b16 %v8541, %v8540
  %v8643 = vpack.c.b16 %v8543, %v8542
  %v8644 = vpack.c.b16 %v8545, %v8544
  %v8645 = vpack.c.b16 %v8547, %v8546
  %v8745 = vsel %vm1422, %v7955, 0
  %8747 = vmatpush.bf16.msra.mxu0 %v8555
  %8748 = vmatpush.bf16.msra.mxu0 %v8554
  %8749 = vmatpush.bf16.msra.mxu0 %v8553
  %8750 = vmatpush.bf16.msra.mxu0 %v8552
  %8751 = vmatpush.bf16.msra.mxu0 %v8551
  %8752 = vmatpush.bf16.msra.mxu0 %v8550
  %8753 = vmatpush.bf16.msra.mxu0 %v8549
  %8754 = vmatpush.bf16.msra.mxu0 %v8548
  %8755 = vmatmul.bf16.gmra.mxu0 %v7943
  %v8756 = vpop.f32.mrf.mxu0
  %v8757 = vadd.f32 %v8154, %v8756
  %v8758 = vpop.f32.mrf.mxu0
  %8759 = vdwg.mxu0
  %8760 = vmatpush.bf16.msra.mxu0 %v8563
  %8761 = vmatpush.bf16.msra.mxu0 %v8562
  %8762 = vmatpush.bf16.msra.mxu0 %v8561
  %8763 = vmatpush.bf16.msra.mxu0 %v8560
  %8764 = vmatpush.bf16.msra.mxu0 %v8559
  %8765 = vmatpush.bf16.msra.mxu0 %v8558
  %8766 = vmatpush.bf16.msra.mxu0 %v8557
  %8767 = vmatpush.bf16.msra.mxu0 %v8556
  %8768 = vmatmul.bf16.gmra.mxu0 %v7944
  %v8769 = vpop.f32.mrf.mxu0
  %v8770 = vadd.f32 %v8757, %v8769
  %v8771 = vpop.f32.mrf.mxu0
  %8772 = vdwg.mxu0
  %8773 = vmatpush.bf16.msra.mxu0 %v8571
  %8774 = vmatpush.bf16.msra.mxu0 %v8570
  %8775 = vmatpush.bf16.msra.mxu0 %v8569
  %8776 = vmatpush.bf16.msra.mxu0 %v8568
  %8777 = vmatpush.bf16.msra.mxu0 %v8567
  %8778 = vmatpush.bf16.msra.mxu0 %v8566
  %8779 = vmatpush.bf16.msra.mxu0 %v8565
  %8780 = vmatpush.bf16.msra.mxu0 %v8564
  %8781 = vmatmul.bf16.gmra.mxu0 %v7945
  %v8782 = vpop.f32.mrf.mxu0
  %v8783 = vadd.f32 %v8770, %v8782
  %v8784 = vpop.f32.mrf.mxu0
  %8785 = vdwg.mxu0
  %8786 = vmatpush.bf16.msra.mxu0 %v8579
  %8787 = vmatpush.bf16.msra.mxu0 %v8578
  %8788 = vmatpush.bf16.msra.mxu0 %v8577
  %8789 = vmatpush.bf16.msra.mxu0 %v8576
  %8790 = vmatpush.bf16.msra.mxu0 %v8575
  %8791 = vmatpush.bf16.msra.mxu0 %v8574
  %8792 = vmatpush.bf16.msra.mxu0 %v8573
  %8793 = vmatpush.bf16.msra.mxu0 %v8572
  %8794 = vmatmul.bf16.gmra.mxu0 %v7946
  %v8795 = vpop.f32.mrf.mxu0
  %v8796 = vadd.f32 %v8783, %v8795
  %v8797 = vpop.f32.mrf.mxu0
  %8798 = vdwg.mxu0
  %8799 = vmatpush.bf16.msra.mxu0 %v8587
  %8800 = vmatpush.bf16.msra.mxu0 %v8586
  %8801 = vmatpush.bf16.msra.mxu0 %v8585
  %8802 = vmatpush.bf16.msra.mxu0 %v8584
  %8803 = vmatpush.bf16.msra.mxu0 %v8583
  %8804 = vmatpush.bf16.msra.mxu0 %v8582
  %8805 = vmatpush.bf16.msra.mxu0 %v8581
  %8806 = vmatpush.bf16.msra.mxu0 %v8580
  %8807 = vmatmul.bf16.gmra.mxu0 %v7947
  %v8808 = vpop.f32.mrf.mxu0
  %v8809 = vadd.f32 %v8796, %v8808
  %v8810 = vpop.f32.mrf.mxu0
  %8811 = vdwg.mxu0
  %8812 = vmatpush.bf16.msra.mxu0 %v8595
  %8813 = vmatpush.bf16.msra.mxu0 %v8594
  %8814 = vmatpush.bf16.msra.mxu0 %v8593
  %8815 = vmatpush.bf16.msra.mxu0 %v8592
  %8816 = vmatpush.bf16.msra.mxu0 %v8591
  %8817 = vmatpush.bf16.msra.mxu0 %v8590
  %8818 = vmatpush.bf16.msra.mxu0 %v8589
  %8819 = vmatpush.bf16.msra.mxu0 %v8588
  %8820 = vmatmul.bf16.gmra.mxu0 %v7948
  %v8821 = vpop.f32.mrf.mxu0
  %v8822 = vadd.f32 %v8809, %v8821
  %v8823 = vpop.f32.mrf.mxu0
  %8824 = vdwg.mxu0
  %8825 = vmatpush.bf16.msra.mxu0 %v8603
  %8826 = vmatpush.bf16.msra.mxu0 %v8602
  %8827 = vmatpush.bf16.msra.mxu0 %v8601
  %8828 = vmatpush.bf16.msra.mxu0 %v8600
  %8829 = vmatpush.bf16.msra.mxu0 %v8599
  %8830 = vmatpush.bf16.msra.mxu0 %v8598
  %8831 = vmatpush.bf16.msra.mxu0 %v8597
  %8832 = vmatpush.bf16.msra.mxu0 %v8596
  %8833 = vmatmul.bf16.gmra.mxu0 %v7949
  %v8834 = vpop.f32.mrf.mxu0
  %v8835 = vadd.f32 %v8822, %v8834
  %v8836 = vpop.f32.mrf.mxu0
  %8837 = vdwg.mxu0
  %8838 = vmatpush.bf16.msra.mxu0 %v8611
  %8839 = vmatpush.bf16.msra.mxu0 %v8610
  %8840 = vmatpush.bf16.msra.mxu0 %v8609
  %8841 = vmatpush.bf16.msra.mxu0 %v8608
  %8842 = vmatpush.bf16.msra.mxu0 %v8607
  %8843 = vmatpush.bf16.msra.mxu0 %v8606
  %8844 = vmatpush.bf16.msra.mxu0 %v8605
  %8845 = vmatpush.bf16.msra.mxu0 %v8604
  %8846 = vmatmul.bf16.gmra.mxu0 %v7950
  %v8847 = vpop.f32.mrf.mxu0
  %v8848 = vadd.f32 %v8835, %v8847
  %v8849 = vpop.f32.mrf.mxu0
  %8850 = vdwg.mxu0
  %8851 = vmatpush.bf16.msra.mxu0 %v8619
  %8852 = vmatpush.bf16.msra.mxu0 %v8618
  %8853 = vmatpush.bf16.msra.mxu0 %v8617
  %8854 = vmatpush.bf16.msra.mxu0 %v8616
  %8855 = vmatpush.bf16.msra.mxu0 %v8615
  %8856 = vmatpush.bf16.msra.mxu0 %v8614
  %8857 = vmatpush.bf16.msra.mxu0 %v8613
  %8858 = vmatpush.bf16.msra.mxu0 %v8612
  %8859 = vmatmul.bf16.gmra.mxu0 %v7951
  %v8860 = vpop.f32.mrf.mxu0
  %v8861 = vadd.f32 %v8848, %v8860
  %v8862 = vpop.f32.mrf.mxu0
  %8863 = vdwg.mxu0
  %8864 = vmatpush.bf16.msra.mxu0 %v8627
  %8865 = vmatpush.bf16.msra.mxu0 %v8626
  %8866 = vmatpush.bf16.msra.mxu0 %v8625
  %8867 = vmatpush.bf16.msra.mxu0 %v8624
  %8868 = vmatpush.bf16.msra.mxu0 %v8623
  %8869 = vmatpush.bf16.msra.mxu0 %v8622
  %8870 = vmatpush.bf16.msra.mxu0 %v8621
  %8871 = vmatpush.bf16.msra.mxu0 %v8620
  %8872 = vmatmul.bf16.gmra.mxu0 %v7952
  %v8873 = vpop.f32.mrf.mxu0
  %v8874 = vadd.f32 %v8861, %v8873
  %v8875 = vpop.f32.mrf.mxu0
  %8876 = vdwg.mxu0
  %8877 = vmatpush.bf16.msra.mxu0 %v8635
  %8878 = vmatpush.bf16.msra.mxu0 %v8634
  %8879 = vmatpush.bf16.msra.mxu0 %v8633
  %8880 = vmatpush.bf16.msra.mxu0 %v8632
  %8881 = vmatpush.bf16.msra.mxu0 %v8631
  %8882 = vmatpush.bf16.msra.mxu0 %v8630
  %8883 = vmatpush.bf16.msra.mxu0 %v8629
  %8884 = vmatpush.bf16.msra.mxu0 %v8628
  %8885 = vmatmul.bf16.gmra.mxu0 %v7953
  %v8886 = vpop.f32.mrf.mxu0
  %v8887 = vadd.f32 %v8874, %v8886
  %v8888 = vpop.f32.mrf.mxu0
  %8889 = vdwg.mxu0
  %8890 = vmatpush.bf16.msra.mxu0 %v8643
  %8891 = vmatpush.bf16.msra.mxu0 %v8642
  %8892 = vmatpush.bf16.msra.mxu0 %v8641
  %8893 = vmatpush.bf16.msra.mxu0 %v8640
  %8894 = vmatpush.bf16.msra.mxu0 %v8639
  %8895 = vmatpush.bf16.msra.mxu0 %v8638
  %8896 = vmatpush.bf16.msra.mxu0 %v8637
  %8897 = vmatpush.bf16.msra.mxu0 %v8636
  %8898 = vmatmul.bf16.gmra.mxu0 %v7954
  %v8899 = vpop.f32.mrf.mxu0
  %v8900 = vadd.f32 %v8887, %v8899
  %v8901 = vpop.f32.mrf.mxu0
  %8902 = vdwg.mxu0
  %8903 = vmatpush.bf16.msra.mxu0 0
  %8904 = vmatpush.bf16.msra.mxu0 0
  %8905 = vmatpush.bf16.msra.mxu0 0
  %8906 = vmatpush.bf16.msra.mxu0 0
  %8907 = vmatpush.bf16.msra.mxu0 0
  %8908 = vmatpush.bf16.msra.mxu0 0
  %8909 = vmatpush.bf16.msra.mxu0 %v8645
  %8910 = vmatpush.bf16.msra.mxu0 %v8644
  %8911 = vmatmul.bf16.gmra.mxu0 %v8745
  %v8912 = vpop.f32.mrf.mxu0
  %v8913 = vadd.f32 %v8900, %v8912
  %v8914 = vpop.f32.mrf.mxu0
  %8915 = vdwg.mxu0
  %v8916 = vmax.f32 %v8913, 0.0
  %v8917 = vpack.c.bf16 %v8916, %v8916
  %v8918 = vld [vmem:[%s7] sm:$0xf]
  %v8919 = vld [vmem:[%s7 + $0x4] sm:$0xf]
  %v8920 = vld [vmem:[%s7 + $0x8] sm:$0xf]
  %v8921 = vld [vmem:[%s7 + $0xc] sm:$0xf]
  %v8922 = vld [vmem:[%s7 + $0x10] sm:$0xf]
  %v8923 = vld [vmem:[%s7 + $0x14] sm:$0xf]
  %v8924 = vld [vmem:[%s7 + $0x18] sm:$0xf]
  %v8925 = vld [vmem:[%s7 + $0x1c] sm:$0xf]
  %v8926 = vld [vmem:[%s7 + $0x20] sm:$0xf]
  %v8927 = vld [vmem:[%s7 + $0x24] sm:$0xf]
  %v8928 = vld [vmem:[%s7 + $0x28] sm:$0xf]
  %v8929 = vld [vmem:[%s7 + $0x2c] sm:$0xf]
  %v8930 = vld [vmem:[%s7 + $0x30] sm:$0xf]
  %v8931 = vld [vmem:[%s7 + $0x34] sm:$0xf]
  %v8932 = vld [vmem:[%s7 + $0x38] sm:$0xf]
  %v8933 = vld [vmem:[%s7 + $0x3c] sm:$0xf]
  %v8934 = vld [vmem:[%s8] sm:$0x1]
  %v8936 = vperm.slane %v8934, 0
  %v8954 = vunpack.c.l.b16 %v8918
  %v8955 = vunpack.c.l.b16 %v8919
  %v8956 = vunpack.c.l.b16 %v8920
  %v8957 = vunpack.c.l.b16 %v8921
  %v8958 = vunpack.c.l.b16 %v8922
  %v8959 = vunpack.c.l.b16 %v8923
  %v8960 = vunpack.c.l.b16 %v8924
  %v8961 = vunpack.c.l.b16 %v8925
  %v8962 = vunpack.c.l.b16 %v8926
  %v8963 = vunpack.c.l.b16 %v8927
  %v8964 = vunpack.c.l.b16 %v8928
  %v8965 = vunpack.c.l.b16 %v8929
  %v8966 = vunpack.c.l.b16 %v8930
  %v8967 = vunpack.c.l.b16 %v8931
  %v8968 = vunpack.c.l.b16 %v8932
  %v8969 = vunpack.c.l.b16 %v8933
  %v8970 = vpack.c.b16 %v8955, %v8954
  %v8971 = vpack.c.b16 %v8957, %v8956
  %v8972 = vpack.c.b16 %v8959, %v8958
  %v8973 = vpack.c.b16 %v8961, %v8960
  %v8974 = vpack.c.b16 %v8963, %v8962
  %v8975 = vpack.c.b16 %v8965, %v8964
  %v8976 = vpack.c.b16 %v8967, %v8966
  %v8977 = vpack.c.b16 %v8969, %v8968
  %8986 = vmatpush.bf16.msra.mxu0 %v8977
  %8987 = vmatpush.bf16.msra.mxu0 %v8976
  %8988 = vmatpush.bf16.msra.mxu0 %v8975
  %8989 = vmatpush.bf16.msra.mxu0 %v8974
  %8990 = vmatpush.bf16.msra.mxu0 %v8973
  %8991 = vmatpush.bf16.msra.mxu0 %v8972
  %8992 = vmatpush.bf16.msra.mxu0 %v8971
  %8993 = vmatpush.bf16.msra.mxu0 %v8970
  %8994 = vmatmul.bf16.gmra.mxu0 %v8917
  %v8995 = vpop.f32.mrf.mxu0
  %v8996 = vadd.f32 %v8936, %v8995
  %v8997 = vpop.f32.mrf.mxu0
  %8998 = vdwg.mxu0
  %8999 = vst [vmem:[%s9] sm:$0xff] %v8996
  // Predicated region
  $region38: #{simplenet_forward.1} parent=0 // pred_check
    _
  $region39: #{simplenet_forward.1} parent=0 // pred_check_branch
    %9001 = sbr.rel (0) target = $region41
  $region40: #{simplenet_forward.1} parent=0 // pred_region
    _
  $region41: #{simplenet_forward.1} parent=0 // pred_fallthru
    _
  // Predicated region
  $region42: #{simplenet_forward.1} parent=0 // pred_check
    _
  $region43: #{simplenet_forward.1} parent=0 // pred_check_branch
    %9003 = sbr.rel (0) target = $region45
  $region44: #{simplenet_forward.1} parent=0 // pred_region
    _
  $region45: #{simplenet_forward.1} parent=0 // pred_fallthru
    _

</llo_original>
